<compile_context>
chip_gen: v5e
topology: v5e:2x2
jax: 0.10.0
libtpu: 0.0.40
codegen_flags: <defaults>
</compile_context>

<pallas_src>
import jax
import jax.numpy as jnp
from jax.experimental import pallas as pl
from jax.experimental.pallas import tpu as pltpu

_VMEM_SPEC = pl.BlockSpec(memory_space=pltpu.MemorySpace.VMEM)
_BN_EPS = 1e-5
_CPAD = 128  # lane-padded output-channel width for both conv layers


# ----------------------------- Pallas kernels ------------------------------

def _conv_pool_kernel(p00_ref, p01_ref, p10_ref, p11_ref, w_ref, b_ref, o_ref):
    """Fused conv (as matmul, DSBN pre-folded) + bias + ReLU + 2x2 max-pool.

    The four patch refs hold the im2col rows of one image partitioned by the
    (row, col) parity of the conv output position, so the 2x2/stride-2 pool is
    just an elementwise max of the four (rows, Cpad) activation tiles.
    """
    w = w_ref[...]
    b = b_ref[...]

    def branch(p_ref):
        acc = jnp.dot(p_ref[...], w, preferred_element_type=jnp.float32)
        return jnp.maximum(acc + b, 0.0)

    pooled = jnp.maximum(jnp.maximum(branch(p00_ref), branch(p01_ref)),
                         jnp.maximum(branch(p10_ref), branch(p11_ref)))
    o_ref[...] = pooled.astype(o_ref.dtype)


def _fc_kernel(x_ref, w_ref, b_ref, o_ref):
    """o = x @ w + b  (fc1, no activation)."""
    acc = jnp.dot(x_ref[...], w_ref[...], preferred_element_type=jnp.float32)
    o_ref[...] = (acc + b_ref[...]).astype(o_ref.dtype)


# ------------------------------ kernel wrappers -----------------------------

def _conv_bn_relu_pool(parity_patches, w_pad, b_pad, rows):
    """parity_patches: 4 x (N, rows, K); w_pad: (K, _CPAD) bf16; b_pad: (1, _CPAD) f32.

    Returns pooled activation (N, rows, _CPAD) f32, rows ordered (oh_pool, ow_pool).
    Gridded over the batch so VMEM per step is constant and the pipeline
    double-buffers the per-image patch DMAs; "parallel" lets v7x's 2 TCs split it.
    """
    n = parity_patches[0].shape[0]
    k_dim = parity_patches[0].shape[-1]
    cpad = w_pad.shape[-1]

    patch_spec = pl.BlockSpec((None, rows, k_dim), lambda i: (i, 0, 0))
    return pl.pallas_call(
        _conv_pool_kernel,
        grid=(n,),
        out_shape=jax.ShapeDtypeStruct((n, rows, cpad), jnp.float32),
        in_specs=[patch_spec, patch_spec, patch_spec, patch_spec,
                  pl.BlockSpec((k_dim, cpad), lambda i: (0, 0)),
                  pl.BlockSpec((1, cpad), lambda i: (0, 0))],
        out_specs=pl.BlockSpec((None, rows, cpad), lambda i: (i, 0, 0)),
        compiler_params=pltpu.CompilerParams(
            dimension_semantics=("parallel",)),
    )(*[p.astype(jnp.bfloat16) for p in parity_patches], w_pad, b_pad)


def _linear(x, w, b):
    """x: (N, K) -> (N, Cout).  Single tile: everything here is a few KB/MB."""
    m = x.shape[0]
    cout = w.shape[1]
    return pl.pallas_call(
        _fc_kernel,
        out_shape=jax.ShapeDtypeStruct((m, cout), jnp.float32),
        in_specs=[_VMEM_SPEC] * 3,
        out_specs=_VMEM_SPEC,
    )(x.astype(jnp.bfloat16), w.astype(jnp.bfloat16),
      b.reshape(1, cout).astype(jnp.float32))


# ---------------------------------- glue ------------------------------------

def _im2col_parity(x, k, out_half):
    """x: (N, H, W, C) -> list of 4 arrays (N, out_half*out_half, k*k*C).

    Entry (py, px) holds the im2col patches (last dim ordered (kh, kw, c)) for
    the conv-output positions (2*i + py, 2*j + px); row r = i*out_half + j.
    """
    n, _, _, c = x.shape
    outs = []
    for py in range(2):
        for px in range(2):
            cols = [x[:, py + kh: py + kh + 2 * out_half: 2,
                      px + kw: px + kw + 2 * out_half: 2, :]
                    for kh in range(k) for kw in range(k)]
            p = jnp.concatenate(cols, axis=-1)               # (N, oh, ow, k*k*C)
            outs.append(p.reshape(n, out_half * out_half, k * k * c))
    return outs


def init_params(key, num_classes=10, num_domains=2):
    """Matches init_weights(): conv/linear ~ N(0, 0.01) clamped to [-0.02, 0.02],
    zero biases; BatchNorm reset_parameters (gamma=1, beta=0, mean=0, var=1)."""
    del num_classes  # fc2/classifier head is not part of this forward pass
    k1, k2, k3 = jax.random.split(key, 3)

    def wnorm(k, shape):
        return jnp.clip(0.01 * jax.random.normal(k, shape, dtype=jnp.float32),
                        -0.02, 0.02)

    return {
        # torch Conv2d weight layout: (Cout, Cin, KH, KW)
        "conv1_w": wnorm(k1, (20, 3, 5, 5)),
        "conv1_b": jnp.zeros((20,), jnp.float32),
        "conv2_w": wnorm(k2, (50, 20, 5, 5)),
        "conv2_b": jnp.zeros((50,), jnp.float32),
        # torch Linear weight layout: (out_features, in_features)
        "fc1_w": wnorm(k3, (500, 1250)),
        "fc1_b": jnp.zeros((500,), jnp.float32),
        # per-domain BN params / running stats
        "bn1_gamma": jnp.ones((num_domains, 20), jnp.float32),
        "bn1_beta": jnp.zeros((num_domains, 20), jnp.float32),
        "bn1_mean": jnp.zeros((num_domains, 20), jnp.float32),
        "bn1_var": jnp.ones((num_domains, 20), jnp.float32),
        "bn2_gamma": jnp.ones((num_domains, 50), jnp.float32),
        "bn2_beta": jnp.zeros((num_domains, 50), jnp.float32),
        "bn2_mean": jnp.zeros((num_domains, 50), jnp.float32),
        "bn2_var": jnp.ones((num_domains, 50), jnp.float32),
    }


def lenet_forward(params, x_nchw, y):
    """x_nchw: (N, 3, 32, 32) float32; y: domain index selecting the BN branch.
    Returns (fc1_out (N, 500), [output1 (N,20,14,14), output2 (N,50,5,5)])."""
    n = x_nchw.shape[0]
    x = jnp.transpose(x_nchw, (0, 2, 3, 1))                  # -> NHWC (N,32,32,3)

    # ---- fold DSBN (eval-mode) into conv weights/bias; pad Cout to 128 lanes.
    s1 = params["bn1_gamma"][y] * jax.lax.rsqrt(params["bn1_var"][y] + _BN_EPS)
    t1 = params["bn1_beta"][y] - params["bn1_mean"][y] * s1
    w1 = jnp.transpose(params["conv1_w"], (2, 3, 1, 0)).reshape(75, 20)
    w1p = jnp.pad(w1 * s1[None, :], ((0, 0), (0, _CPAD - 20))).astype(jnp.bfloat16)
    b1p = jnp.pad(params["conv1_b"] * s1 + t1, (0, _CPAD - 20)).reshape(1, _CPAD)

    s2 = params["bn2_gamma"][y] * jax.lax.rsqrt(params["bn2_var"][y] + _BN_EPS)
    t2 = params["bn2_beta"][y] - params["bn2_mean"][y] * s2
    w2 = jnp.transpose(params["conv2_w"], (2, 3, 1, 0)).reshape(500, 50)
    w2p = jnp.pad(w2 * s2[None, :], ((0, 0), (0, _CPAD - 50))).astype(jnp.bfloat16)
    b2p = jnp.pad(params["conv2_b"] * s2 + t2, (0, _CPAD - 50)).reshape(1, _CPAD)

    # fc1 weight permuted (NCHW -> NHWC flatten order) and channel-padded so it
    # consumes the lane-padded pooled activation directly.
    wfc = params["fc1_w"].reshape(500, 50, 5, 5)             # (out, c, h, w)
    wfc = jnp.transpose(wfc, (2, 3, 1, 0))                   # (h, w, c, out)
    wfc = jnp.pad(wfc, ((0, 0), (0, 0), (0, _CPAD - 50), (0, 0)))
    wfc = wfc.reshape(5 * 5 * _CPAD, 500).astype(jnp.bfloat16)

    # ---- conv1 + bn1(y) + relu + pool1 (one fused kernel) ----
    p1 = _im2col_parity(x, 5, 14)                            # 4 x (N, 196, 75)
    h1 = _conv_bn_relu_pool(p1, w1p, b1p, 196)               # (N, 196, 128)
    out1 = h1.reshape(n, 14, 14, _CPAD)

    # ---- conv2 + bn2(y) + relu + pool2 (one fused kernel) ----
    p2 = _im2col_parity(out1[..., :20], 5, 5)                # 4 x (N, 25, 500)
    h2 = _conv_bn_relu_pool(p2, w2p, b2p, 25)                # (N, 25, 128)
    out2 = h2.reshape(n, 5, 5, _CPAD)

    # ---- fc1: consumes padded NHWC flatten via the permuted weight ----
    logits = _linear(h2.reshape(n, 5 * 5 * _CPAD), wfc, params["fc1_b"])  # (N,500)

    # Returned intermediates in torch NCHW layout.
    output1 = jnp.transpose(out1[..., :20], (0, 3, 1, 2))    # (N, 20, 14, 14)
    output2 = jnp.transpose(out2[..., :50], (0, 3, 1, 2))    # (N, 50, 5, 5)
    return logits, [output1, output2]


# ---------------------------------- main -------------------------------------

if __name__ == "__main__":
    key = jax.random.PRNGKey(0)
    pkey, xkey = jax.random.split(key)
    params = init_params(pkey, num_classes=10, num_domains=2)

    # Module fixes num_channels=3, image_size=32 (fc1 expects 1250 = 50*5*5).
    x = jax.random.normal(xkey, (2, 3, 32, 32), dtype=jnp.float32)
    y = 1  # domain index in [0, num_domains)

    forward = jax.jit(lenet_forward, static_argnums=(2,))
    logits, (output1, output2) = forward(params, x, y)
    jax.block_until_ready((logits, output1, output2))

    assert logits.shape == (2, 500)
    assert output1.shape == (2, 20, 14, 14)
    assert output2.shape == (2, 50, 5, 5)
    print("KERNEL_OK")
</pallas_src>

<mosaic_0001>
module attributes {stable_mosaic.version = 11 : i64} {
  func.func @_conv_pool_kernel(%arg0: i32, %arg1: memref<1x196x75xbf16, #tpu.memory_space<vmem>>, %arg2: memref<1x196x75xbf16, #tpu.memory_space<vmem>>, %arg3: memref<1x196x75xbf16, #tpu.memory_space<vmem>>, %arg4: memref<1x196x75xbf16, #tpu.memory_space<vmem>>, %arg5: memref<75x128xbf16, #tpu.memory_space<vmem>>, %arg6: memref<1x128xf32, #tpu.memory_space<vmem>>, %arg7: memref<1x196x128xf32, #tpu.memory_space<vmem>>) attributes {dimension_semantics = [#tpu.dimension_semantics<parallel>], iteration_bounds = array<i64: 2>, scalar_prefetch = 0 : i64, scratch_operands = 0 : i64, tpu.core_type = #tpu.core_type<tc>, window_params = [{transform_indices = @transform_0, window_bounds = array<i64: 1, 196, 75>}, {transform_indices = @transform_1, window_bounds = array<i64: 1, 196, 75>}, {transform_indices = @transform_2, window_bounds = array<i64: 1, 196, 75>}, {transform_indices = @transform_3, window_bounds = array<i64: 1, 196, 75>}, {pipeline_mode = #tpu.pipeline_mode<synchronous>, transform_indices = @transform_4, window_bounds = array<i64: 75, 128>}, {pipeline_mode = #tpu.pipeline_mode<synchronous>, transform_indices = @transform_5, window_bounds = array<i64: 1, 128>}, {transform_indices = @transform_6, window_bounds = array<i64: 1, 196, 128>}]} {
    %c0 = arith.constant 0 : index
    %c0_0 = arith.constant 0 : index
    %0 = vector.load %arg5[%c0, %c0_0] : memref<75x128xbf16, #tpu.memory_space<vmem>>, vector<75x128xbf16>
    %c0_1 = arith.constant 0 : index
    %c0_2 = arith.constant 0 : index
    %1 = vector.load %arg6[%c0_1, %c0_2] : memref<1x128xf32, #tpu.memory_space<vmem>>, vector<1x128xf32>
    %c0_3 = arith.constant 0 : index
    %c0_4 = arith.constant 0 : index
    %c0_5 = arith.constant 0 : index
    %2 = vector.load %arg1[%c0_3, %c0_4, %c0_5] : memref<1x196x75xbf16, #tpu.memory_space<vmem>>, vector<1x196x75xbf16>
    %3 = vector.shape_cast %2 : vector<1x196x75xbf16> to vector<196x75xbf16>
    %cst = arith.constant dense<0.000000e+00> : vector<196x128xf32>
    %4 = tpu.matmul %3, %0, %cst {dimension_numbers = #tpu.dot_dimension_numbers<[1], [0], [0], [1], [0, 0, 1, 1], [], []>} : vector<196x75xbf16>, vector<75x128xbf16>, vector<196x128xf32> -> vector<196x128xf32>
    %5 = vector.broadcast %1 : vector<1x128xf32> to vector<196x128xf32>
    %6 = arith.addf %4, %5 : vector<196x128xf32>
    %cst_6 = arith.constant 0.000000e+00 : f32
    %7 = vector.broadcast %cst_6 : f32 to vector<196x128xf32>
    %8 = arith.maximumf %6, %7 : vector<196x128xf32>
    %c0_7 = arith.constant 0 : index
    %c0_8 = arith.constant 0 : index
    %c0_9 = arith.constant 0 : index
    %9 = vector.load %arg2[%c0_7, %c0_8, %c0_9] : memref<1x196x75xbf16, #tpu.memory_space<vmem>>, vector<1x196x75xbf16>
    %10 = vector.shape_cast %9 : vector<1x196x75xbf16> to vector<196x75xbf16>
    %cst_10 = arith.constant dense<0.000000e+00> : vector<196x128xf32>
    %11 = tpu.matmul %10, %0, %cst_10 {dimension_numbers = #tpu.dot_dimension_numbers<[1], [0], [0], [1], [0, 0, 1, 1], [], []>} : vector<196x75xbf16>, vector<75x128xbf16>, vector<196x128xf32> -> vector<196x128xf32>
    %12 = vector.broadcast %1 : vector<1x128xf32> to vector<196x128xf32>
    %13 = arith.addf %11, %12 : vector<196x128xf32>
    %cst_11 = arith.constant 0.000000e+00 : f32
    %14 = vector.broadcast %cst_11 : f32 to vector<196x128xf32>
    %15 = arith.maximumf %13, %14 : vector<196x128xf32>
    %16 = arith.maximumf %8, %15 : vector<196x128xf32>
    %c0_12 = arith.constant 0 : index
    %c0_13 = arith.constant 0 : index
    %c0_14 = arith.constant 0 : index
    %17 = vector.load %arg3[%c0_12, %c0_13, %c0_14] : memref<1x196x75xbf16, #tpu.memory_space<vmem>>, vector<1x196x75xbf16>
    %18 = vector.shape_cast %17 : vector<1x196x75xbf16> to vector<196x75xbf16>
    %cst_15 = arith.constant dense<0.000000e+00> : vector<196x128xf32>
    %19 = tpu.matmul %18, %0, %cst_15 {dimension_numbers = #tpu.dot_dimension_numbers<[1], [0], [0], [1], [0, 0, 1, 1], [], []>} : vector<196x75xbf16>, vector<75x128xbf16>, vector<196x128xf32> -> vector<196x128xf32>
    %20 = vector.broadcast %1 : vector<1x128xf32> to vector<196x128xf32>
    %21 = arith.addf %19, %20 : vector<196x128xf32>
    %cst_16 = arith.constant 0.000000e+00 : f32
    %22 = vector.broadcast %cst_16 : f32 to vector<196x128xf32>
    %23 = arith.maximumf %21, %22 : vector<196x128xf32>
    %c0_17 = arith.constant 0 : index
    %c0_18 = arith.constant 0 : index
    %c0_19 = arith.constant 0 : index
    %24 = vector.load %arg4[%c0_17, %c0_18, %c0_19] : memref<1x196x75xbf16, #tpu.memory_space<vmem>>, vector<1x196x75xbf16>
    %25 = vector.shape_cast %24 : vector<1x196x75xbf16> to vector<196x75xbf16>
    %cst_20 = arith.constant dense<0.000000e+00> : vector<196x128xf32>
    %26 = tpu.matmul %25, %0, %cst_20 {dimension_numbers = #tpu.dot_dimension_numbers<[1], [0], [0], [1], [0, 0, 1, 1], [], []>} : vector<196x75xbf16>, vector<75x128xbf16>, vector<196x128xf32> -> vector<196x128xf32>
    %27 = vector.broadcast %1 : vector<1x128xf32> to vector<196x128xf32>
    %28 = arith.addf %26, %27 : vector<196x128xf32>
    %cst_21 = arith.constant 0.000000e+00 : f32
    %29 = vector.broadcast %cst_21 : f32 to vector<196x128xf32>
    %30 = arith.maximumf %28, %29 : vector<196x128xf32>
    %31 = arith.maximumf %23, %30 : vector<196x128xf32>
    %32 = arith.maximumf %16, %31 : vector<196x128xf32>
    %c0_22 = arith.constant 0 : index
    %c0_23 = arith.constant 0 : index
    %c0_24 = arith.constant 0 : index
    %33 = vector.load %arg7[%c0_22, %c0_23, %c0_24] : memref<1x196x128xf32, #tpu.memory_space<vmem>>, vector<1x196x128xf32>
    %34 = vector.shape_cast %33 : vector<1x196x128xf32> to vector<196x128xf32>
    %35 = vector.shape_cast %32 : vector<196x128xf32> to vector<1x196x128xf32>
    tpu.vector_store %arg7[%c0_22, %c0_23, %c0_24], %35 {strides = array<i32>} : memref<1x196x128xf32, #tpu.memory_space<vmem>>, vector<1x196x128xf32>,
    return
  }
  func.func @transform_0(%arg0: i32) -> (i32, i32, i32) {
    %c0_i32 = arith.constant 0 : i32
    %c0_i32_0 = arith.constant 0 : i32
    %c0_i32_1 = arith.constant 0 : i32
    return %arg0, %c0_i32, %c0_i32_0 : i32, i32, i32
  }
  func.func @transform_1(%arg0: i32) -> (i32, i32, i32) {
    %c0_i32 = arith.constant 0 : i32
    %c0_i32_0 = arith.constant 0 : i32
    %c0_i32_1 = arith.constant 0 : i32
    return %arg0, %c0_i32, %c0_i32_0 : i32, i32, i32
  }
  func.func @transform_2(%arg0: i32) -> (i32, i32, i32) {
    %c0_i32 = arith.constant 0 : i32
    %c0_i32_0 = arith.constant 0 : i32
    %c0_i32_1 = arith.constant 0 : i32
    return %arg0, %c0_i32, %c0_i32_0 : i32, i32, i32
  }
  func.func @transform_3(%arg0: i32) -> (i32, i32, i32) {
    %c0_i32 = arith.constant 0 : i32
    %c0_i32_0 = arith.constant 0 : i32
    %c0_i32_1 = arith.constant 0 : i32
    return %arg0, %c0_i32, %c0_i32_0 : i32, i32, i32
  }
  func.func @transform_4(%arg0: i32) -> (i32, i32) {
    %c0_i32 = arith.constant 0 : i32
    %c0_i32_0 = arith.constant 0 : i32
    %c0_i32_1 = arith.constant 0 : i32
    return %c0_i32, %c0_i32_0 : i32, i32
  }
  func.func @transform_5(%arg0: i32) -> (i32, i32) {
    %c0_i32 = arith.constant 0 : i32
    %c0_i32_0 = arith.constant 0 : i32
    %c0_i32_1 = arith.constant 0 : i32
    return %c0_i32, %c0_i32_0 : i32, i32
  }
  func.func @transform_6(%arg0: i32) -> (i32, i32, i32) {
    %c0_i32 = arith.constant 0 : i32
    %c0_i32_0 = arith.constant 0 : i32
    %c0_i32_1 = arith.constant 0 : i32
    return %arg0, %c0_i32, %c0_i32_0 : i32, i32, i32
  }
}

module attributes {stable_mosaic.version = 11 : i64} {
  func.func @_conv_pool_kernel(%arg0: i32, %arg1: memref<1x25x500xbf16, #tpu.memory_space<vmem>>, %arg2: memref<1x25x500xbf16, #tpu.memory_space<vmem>>, %arg3: memref<1x25x500xbf16, #tpu.memory_space<vmem>>, %arg4: memref<1x25x500xbf16, #tpu.memory_space<vmem>>, %arg5: memref<500x128xbf16, #tpu.memory_space<vmem>>, %arg6: memref<1x128xf32, #tpu.memory_space<vmem>>, %arg7: memref<1x25x128xf32, #tpu.memory_space<vmem>>) attributes {dimension_semantics = [#tpu.dimension_semantics<parallel>], iteration_bounds = array<i64: 2>, scalar_prefetch = 0 : i64, scratch_operands = 0 : i64, tpu.core_type = #tpu.core_type<tc>, window_params = [{transform_indices = @transform_0, window_bounds = array<i64: 1, 25, 500>}, {transform_indices = @transform_1, window_bounds = array<i64: 1, 25, 500>}, {transform_indices = @transform_2, window_bounds = array<i64: 1, 25, 500>}, {transform_indices = @transform_3, window_bounds = array<i64: 1, 25, 500>}, {pipeline_mode = #tpu.pipeline_mode<synchronous>, transform_indices = @transform_4, window_bounds = array<i64: 500, 128>}, {pipeline_mode = #tpu.pipeline_mode<synchronous>, transform_indices = @transform_5, window_bounds = array<i64: 1, 128>}, {transform_indices = @transform_6, window_bounds = array<i64: 1, 25, 128>}]} {
    %c0 = arith.constant 0 : index
    %c0_0 = arith.constant 0 : index
    %0 = vector.load %arg5[%c0, %c0_0] : memref<500x128xbf16, #tpu.memory_space<vmem>>, vector<500x128xbf16>
    %c0_1 = arith.constant 0 : index
    %c0_2 = arith.constant 0 : index
    %1 = vector.load %arg6[%c0_1, %c0_2] : memref<1x128xf32, #tpu.memory_space<vmem>>, vector<1x128xf32>
    %c0_3 = arith.constant 0 : index
    %c0_4 = arith.constant 0 : index
    %c0_5 = arith.constant 0 : index
    %2 = vector.load %arg1[%c0_3, %c0_4, %c0_5] : memref<1x25x500xbf16, #tpu.memory_space<vmem>>, vector<1x25x500xbf16>
    %3 = vector.shape_cast %2 : vector<1x25x500xbf16> to vector<25x500xbf16>
    %cst = arith.constant dense<0.000000e+00> : vector<25x128xf32>
    %4 = tpu.matmul %3, %0, %cst {dimension_numbers = #tpu.dot_dimension_numbers<[1], [0], [0], [1], [0, 0, 1, 1], [], []>} : vector<25x500xbf16>, vector<500x128xbf16>, vector<25x128xf32> -> vector<25x128xf32>
    %5 = vector.broadcast %1 : vector<1x128xf32> to vector<25x128xf32>
    %6 = arith.addf %4, %5 : vector<25x128xf32>
    %cst_6 = arith.constant 0.000000e+00 : f32
    %7 = vector.broadcast %cst_6 : f32 to vector<25x128xf32>
    %8 = arith.maximumf %6, %7 : vector<25x128xf32>
    %c0_7 = arith.constant 0 : index
    %c0_8 = arith.constant 0 : index
    %c0_9 = arith.constant 0 : index
    %9 = vector.load %arg2[%c0_7, %c0_8, %c0_9] : memref<1x25x500xbf16, #tpu.memory_space<vmem>>, vector<1x25x500xbf16>
    %10 = vector.shape_cast %9 : vector<1x25x500xbf16> to vector<25x500xbf16>
    %cst_10 = arith.constant dense<0.000000e+00> : vector<25x128xf32>
    %11 = tpu.matmul %10, %0, %cst_10 {dimension_numbers = #tpu.dot_dimension_numbers<[1], [0], [0], [1], [0, 0, 1, 1], [], []>} : vector<25x500xbf16>, vector<500x128xbf16>, vector<25x128xf32> -> vector<25x128xf32>
    %12 = vector.broadcast %1 : vector<1x128xf32> to vector<25x128xf32>
    %13 = arith.addf %11, %12 : vector<25x128xf32>
    %cst_11 = arith.constant 0.000000e+00 : f32
    %14 = vector.broadcast %cst_11 : f32 to vector<25x128xf32>
    %15 = arith.maximumf %13, %14 : vector<25x128xf32>
    %16 = arith.maximumf %8, %15 : vector<25x128xf32>
    %c0_12 = arith.constant 0 : index
    %c0_13 = arith.constant 0 : index
    %c0_14 = arith.constant 0 : index
    %17 = vector.load %arg3[%c0_12, %c0_13, %c0_14] : memref<1x25x500xbf16, #tpu.memory_space<vmem>>, vector<1x25x500xbf16>
    %18 = vector.shape_cast %17 : vector<1x25x500xbf16> to vector<25x500xbf16>
    %cst_15 = arith.constant dense<0.000000e+00> : vector<25x128xf32>
    %19 = tpu.matmul %18, %0, %cst_15 {dimension_numbers = #tpu.dot_dimension_numbers<[1], [0], [0], [1], [0, 0, 1, 1], [], []>} : vector<25x500xbf16>, vector<500x128xbf16>, vector<25x128xf32> -> vector<25x128xf32>
    %20 = vector.broadcast %1 : vector<1x128xf32> to vector<25x128xf32>
    %21 = arith.addf %19, %20 : vector<25x128xf32>
    %cst_16 = arith.constant 0.000000e+00 : f32
    %22 = vector.broadcast %cst_16 : f32 to vector<25x128xf32>
    %23 = arith.maximumf %21, %22 : vector<25x128xf32>
    %c0_17 = arith.constant 0 : index
    %c0_18 = arith.constant 0 : index
    %c0_19 = arith.constant 0 : index
    %24 = vector.load %arg4[%c0_17, %c0_18, %c0_19] : memref<1x25x500xbf16, #tpu.memory_space<vmem>>, vector<1x25x500xbf16>
    %25 = vector.shape_cast %24 : vector<1x25x500xbf16> to vector<25x500xbf16>
    %cst_20 = arith.constant dense<0.000000e+00> : vector<25x128xf32>
    %26 = tpu.matmul %25, %0, %cst_20 {dimension_numbers = #tpu.dot_dimension_numbers<[1], [0], [0], [1], [0, 0, 1, 1], [], []>} : vector<25x500xbf16>, vector<500x128xbf16>, vector<25x128xf32> -> vector<25x128xf32>
    %27 = vector.broadcast %1 : vector<1x128xf32> to vector<25x128xf32>
    %28 = arith.addf %26, %27 : vector<25x128xf32>
    %cst_21 = arith.constant 0.000000e+00 : f32
    %29 = vector.broadcast %cst_21 : f32 to vector<25x128xf32>
    %30 = arith.maximumf %28, %29 : vector<25x128xf32>
    %31 = arith.maximumf %23, %30 : vector<25x128xf32>
    %32 = arith.maximumf %16, %31 : vector<25x128xf32>
    %c0_22 = arith.constant 0 : index
    %c0_23 = arith.constant 0 : index
    %c0_24 = arith.constant 0 : index
    %33 = vector.load %arg7[%c0_22, %c0_23, %c0_24] : memref<1x25x128xf32, #tpu.memory_space<vmem>>, vector<1x25x128xf32>
    %34 = vector.shape_cast %33 : vector<1x25x128xf32> to vector<25x128xf32>
    %35 = vector.shape_cast %32 : vector<25x128xf32> to vector<1x25x128xf32>
    tpu.vector_store %arg7[%c0_22, %c0_23, %c0_24], %35 {strides = array<i32>} : memref<1x25x128xf32, #tpu.memory_space<vmem>>, vector<1x25x128xf32>,
    return
  }
  func.func @transform_0(%arg0: i32) -> (i32, i32, i32) {
    %c0_i32 = arith.constant 0 : i32
    %c0_i32_0 = arith.constant 0 : i32
    %c0_i32_1 = arith.constant 0 : i32
    return %arg0, %c0_i32, %c0_i32_0 : i32, i32, i32
  }
  func.func @transform_1(%arg0: i32) -> (i32, i32, i32) {
    %c0_i32 = arith.constant 0 : i32
    %c0_i32_0 = arith.constant 0 : i32
    %c0_i32_1 = arith.constant 0 : i32
    return %arg0, %c0_i32, %c0_i32_0 : i32, i32, i32
  }
  func.func @transform_2(%arg0: i32) -> (i32, i32, i32) {
    %c0_i32 = arith.constant 0 : i32
    %c0_i32_0 = arith.constant 0 : i32
    %c0_i32_1 = arith.constant 0 : i32
    return %arg0, %c0_i32, %c0_i32_0 : i32, i32, i32
  }
  func.func @transform_3(%arg0: i32) -> (i32, i32, i32) {
    %c0_i32 = arith.constant 0 : i32
    %c0_i32_0 = arith.constant 0 : i32
    %c0_i32_1 = arith.constant 0 : i32
    return %arg0, %c0_i32, %c0_i32_0 : i32, i32, i32
  }
  func.func @transform_4(%arg0: i32) -> (i32, i32) {
    %c0_i32 = arith.constant 0 : i32
    %c0_i32_0 = arith.constant 0 : i32
    %c0_i32_1 = arith.constant 0 : i32
    return %c0_i32, %c0_i32_0 : i32, i32
  }
  func.func @transform_5(%arg0: i32) -> (i32, i32) {
    %c0_i32 = arith.constant 0 : i32
    %c0_i32_0 = arith.constant 0 : i32
    %c0_i32_1 = arith.constant 0 : i32
    return %c0_i32, %c0_i32_0 : i32, i32
  }
  func.func @transform_6(%arg0: i32) -> (i32, i32, i32) {
    %c0_i32 = arith.constant 0 : i32
    %c0_i32_0 = arith.constant 0 : i32
    %c0_i32_1 = arith.constant 0 : i32
    return %arg0, %c0_i32, %c0_i32_0 : i32, i32, i32
  }
}

module attributes {stable_mosaic.version = 11 : i64} {
  func.func @_fc_kernel(%arg0: memref<2x3200xbf16, #tpu.memory_space<vmem>>, %arg1: memref<3200x500xbf16, #tpu.memory_space<vmem>>, %arg2: memref<1x500xf32, #tpu.memory_space<vmem>>, %arg3: memref<2x500xf32, #tpu.memory_space<vmem>>) attributes {dimension_semantics = [], scalar_prefetch = 0 : i64, scratch_operands = 0 : i64, tpu.core_type = #tpu.core_type<tc>} {
    %c0 = arith.constant 0 : index
    %c0_0 = arith.constant 0 : index
    %0 = vector.load %arg0[%c0, %c0_0] : memref<2x3200xbf16, #tpu.memory_space<vmem>>, vector<2x3200xbf16>
    %c0_1 = arith.constant 0 : index
    %c0_2 = arith.constant 0 : index
    %1 = vector.load %arg1[%c0_1, %c0_2] : memref<3200x500xbf16, #tpu.memory_space<vmem>>, vector<3200x500xbf16>
    %cst = arith.constant dense<0.000000e+00> : vector<2x500xf32>
    %2 = tpu.matmul %0, %1, %cst {dimension_numbers = #tpu.dot_dimension_numbers<[1], [0], [0], [1], [0, 0, 1, 1], [], []>} : vector<2x3200xbf16>, vector<3200x500xbf16>, vector<2x500xf32> -> vector<2x500xf32>
    %c0_3 = arith.constant 0 : index
    %c0_4 = arith.constant 0 : index
    %3 = vector.load %arg2[%c0_3, %c0_4] : memref<1x500xf32, #tpu.memory_space<vmem>>, vector<1x500xf32>
    %4 = vector.broadcast %3 : vector<1x500xf32> to vector<2x500xf32>
    %5 = arith.addf %2, %4 : vector<2x500xf32>
    %c0_5 = arith.constant 0 : index
    %c0_6 = arith.constant 0 : index
    %6 = vector.load %arg3[%c0_5, %c0_6] : memref<2x500xf32, #tpu.memory_space<vmem>>, vector<2x500xf32>
    tpu.vector_store %arg3[%c0_5, %c0_6], %5 {strides = array<i32>} : memref<2x500xf32, #tpu.memory_space<vmem>>, vector<2x500xf32>,
    return
  }
}

</mosaic_0001>

<llo_original>
// kernel: lenet_forward.3
$region0: #{lenet_forward.3}
  #allocation0 [shape = 'u32[]', space=smem, size = 0x4, offset = 0x4, fixed_abs, tag = 'smem constant byte address 0x4 - core index']
  #allocation1 [shape = 'u32[72,128]{1,0:T(1,128)}', space=vmem, size = 0x9000, scoped, tag = 'internal scratch']
  %s0 = inlined_call_operand.vmem [shape: bf16[2,196,75], index: 0, kind: input, shape index: {}]
  %s1 = inlined_call_operand.vmem [shape: bf16[2,196,75], index: 1, kind: input, shape index: {}]
  %s2 = inlined_call_operand.vmem [shape: bf16[2,196,75], index: 2, kind: input, shape index: {}]
  %s3 = inlined_call_operand.vmem [shape: bf16[2,196,75], index: 3, kind: input, shape index: {}]
  %s4 = inlined_call_operand.vmem [shape: bf16[75,128], index: 4, kind: input, shape index: {}]
  %s5 = inlined_call_operand.vmem [shape: f32[1,128], index: 5, kind: input, shape index: {}]
  %s6 = inlined_call_operand.vmem [shape: f32[2,196,128], index: 6, kind: output, shape index: {}]
  %s7 = sld [smem:[#allocation0]]
  $region57: #{lenet_forward.3} parent=0
    _
  %s9 = ssub.s32 1, %s7
  %s10 = scalar_select 0, %s9, %s7
  loop: start=0, step=1, limit=4
  $region2: #{lenet_forward.3} parent=0 // loop_pre_header
    _
  $region3: #{lenet_forward.3} parent=0 // loop_header
    %s12 = sphi 0, %s16
    %p13 = scmp.ge.s32.totalorder %s12, 4
    %s22 = sphi 0, %s24
    %s25 = sphi 0, %s22
    %s26 = sphi 0, %s25
    %s42 = sphi 0, %s26
    %s48 = sphi 0, %s50
    %s51 = sphi 0, %s48
    %s52 = sphi 0, %s51
    %s68 = sphi 0, %s52
    %s74 = sphi 0, %s76
    %s77 = sphi 0, %s74
    %s78 = sphi 0, %s77
    %s94 = sphi 0, %s78
    %s100 = sphi 0, %s102
    %s103 = sphi 0, %s100
    %s104 = sphi 0, %s103
    %s120 = sphi 0, %s104
    %s124 = sphi 0, %s124
    %s126 = sphi 0, %s124
    %s127 = sphi 0, %s126
    %s141 = sphi 0, %s127
    %s145 = sphi 0, %s145
    %s147 = sphi 0, %s145
    %s148 = sphi 0, %s147
    %s162 = sphi 0, %s148
    %s168 = sphi 0, %s170
    %s171 = sphi 0, %s168
    %s172 = sphi 0, %s171
    %s188 = sphi 0, %s172
  $region4: #{lenet_forward.3} parent=0 // loop_header_branch
    %15 = sbr.rel (%p13) target = $region8
  $region5: #{lenet_forward.3} parent=0 // loop_body
    %s17 = ssub.s32 %s12, 1
    %s18 = ssub.s32 %s12, 2
    %s19 = sadd.s32 %s12, 1
    %s20 = ssub.s32 %s12, %s19
    %p21 = scmp.eq.s32.totalorder %s20, 0
    %s23 = sadd.s32 %s22, 1
    %s24 = scalar_select %p21, %s22, %s23
    %p27 = pneg %p21
    %p28 = scmp.eq.s32.totalorder %s12, 1
    %p29 = por %p27, %p28
    %p30 = scmp.ne.s32.totalorder %s22, %s25
    %p31 = scmp.eq.s32.totalorder %s12, 0
    %p32 = por %p30, %p31
    %p33 = scmp.ne.s32.totalorder %s22, %s25
    %p34 = scmp.eq.s32.totalorder %s17, 1
    %p35 = por %p33, %p34
    %p36 = scmp.ne.s32.totalorder %s25, %s26
    %p37 = scmp.eq.s32.totalorder %s17, 0
    %p38 = por %p36, %p37
    %p39 = scmp.ne.s32.totalorder %s25, %s26
    %p40 = scmp.eq.s32.totalorder %s18, 1
    %p41 = por %p39, %p40
    %p43 = scmp.ne.s32.totalorder %s26, %s42
    %p44 = scmp.eq.s32.totalorder %s18, 0
    %p45 = por %p43, %p44
    %s46 = ssub.s32 %s12, %s19
    %p47 = scmp.eq.s32.totalorder %s46, 0
    %s49 = sadd.s32 %s48, 1
    %s50 = scalar_select %p47, %s48, %s49
    %p53 = pneg %p47
    %p54 = scmp.eq.s32.totalorder %s12, 1
    %p55 = por %p53, %p54
    %p56 = scmp.ne.s32.totalorder %s48, %s51
    %p57 = scmp.eq.s32.totalorder %s12, 0
    %p58 = por %p56, %p57
    %p59 = scmp.ne.s32.totalorder %s48, %s51
    %p60 = scmp.eq.s32.totalorder %s17, 1
    %p61 = por %p59, %p60
    %p62 = scmp.ne.s32.totalorder %s51, %s52
    %p63 = scmp.eq.s32.totalorder %s17, 0
    %p64 = por %p62, %p63
    %p65 = scmp.ne.s32.totalorder %s51, %s52
    %p66 = scmp.eq.s32.totalorder %s18, 1
    %p67 = por %p65, %p66
    %p69 = scmp.ne.s32.totalorder %s52, %s68
    %p70 = scmp.eq.s32.totalorder %s18, 0
    %p71 = por %p69, %p70
    %s72 = ssub.s32 %s12, %s19
    %p73 = scmp.eq.s32.totalorder %s72, 0
    %s75 = sadd.s32 %s74, 1
    %s76 = scalar_select %p73, %s74, %s75
    %p79 = pneg %p73
    %p80 = scmp.eq.s32.totalorder %s12, 1
    %p81 = por %p79, %p80
    %p82 = scmp.ne.s32.totalorder %s74, %s77
    %p83 = scmp.eq.s32.totalorder %s12, 0
    %p84 = por %p82, %p83
    %p85 = scmp.ne.s32.totalorder %s74, %s77
    %p86 = scmp.eq.s32.totalorder %s17, 1
    %p87 = por %p85, %p86
    %p88 = scmp.ne.s32.totalorder %s77, %s78
    %p89 = scmp.eq.s32.totalorder %s17, 0
    %p90 = por %p88, %p89
    %p91 = scmp.ne.s32.totalorder %s77, %s78
    %p92 = scmp.eq.s32.totalorder %s18, 1
    %p93 = por %p91, %p92
    %p95 = scmp.ne.s32.totalorder %s78, %s94
    %p96 = scmp.eq.s32.totalorder %s18, 0
    %p97 = por %p95, %p96
    %s98 = ssub.s32 %s12, %s19
    %p99 = scmp.eq.s32.totalorder %s98, 0
    %s101 = sadd.s32 %s100, 1
    %s102 = scalar_select %p99, %s100, %s101
    %p105 = pneg %p99
    %p106 = scmp.eq.s32.totalorder %s12, 1
    %p107 = por %p105, %p106
    %p108 = scmp.ne.s32.totalorder %s100, %s103
    %p109 = scmp.eq.s32.totalorder %s12, 0
    %p110 = por %p108, %p109
    %p111 = scmp.ne.s32.totalorder %s100, %s103
    %p112 = scmp.eq.s32.totalorder %s17, 1
    %p113 = por %p111, %p112
    %p114 = scmp.ne.s32.totalorder %s103, %s104
    %p115 = scmp.eq.s32.totalorder %s17, 0
    %p116 = por %p114, %p115
    %p117 = scmp.ne.s32.totalorder %s103, %s104
    %p118 = scmp.eq.s32.totalorder %s18, 1
    %p119 = por %p117, %p118
    %p121 = scmp.ne.s32.totalorder %s104, %s120
    %p122 = scmp.eq.s32.totalorder %s18, 0
    %p123 = por %p121, %p122
    %s125 = sadd.s32 %s124, 1
    %p128 = scmp.eq.s32.totalorder %s12, 1
    %p129 = scmp.ne.s32.totalorder %s124, %s126
    %p130 = scmp.eq.s32.totalorder %s12, 0
    %p131 = por %p129, %p130
    %p132 = scmp.ne.s32.totalorder %s124, %s126
    %p133 = scmp.eq.s32.totalorder %s17, 1
    %p134 = por %p132, %p133
    %p135 = scmp.ne.s32.totalorder %s126, %s127
    %p136 = scmp.eq.s32.totalorder %s17, 0
    %p137 = por %p135, %p136
    %p138 = scmp.ne.s32.totalorder %s126, %s127
    %p139 = scmp.eq.s32.totalorder %s18, 1
    %p140 = por %p138, %p139
    %p142 = scmp.ne.s32.totalorder %s127, %s141
    %p143 = scmp.eq.s32.totalorder %s18, 0
    %p144 = por %p142, %p143
    %s146 = sadd.s32 %s145, 1
    %p149 = scmp.eq.s32.totalorder %s12, 1
    %p150 = scmp.ne.s32.totalorder %s145, %s147
    %p151 = scmp.eq.s32.totalorder %s12, 0
    %p152 = por %p150, %p151
    %p153 = scmp.ne.s32.totalorder %s145, %s147
    %p154 = scmp.eq.s32.totalorder %s17, 1
    %p155 = por %p153, %p154
    %p156 = scmp.ne.s32.totalorder %s147, %s148
    %p157 = scmp.eq.s32.totalorder %s17, 0
    %p158 = por %p156, %p157
    %p159 = scmp.ne.s32.totalorder %s147, %s148
    %p160 = scmp.eq.s32.totalorder %s18, 1
    %p161 = por %p159, %p160
    %p163 = scmp.ne.s32.totalorder %s148, %s162
    %p164 = scmp.eq.s32.totalorder %s18, 0
    %p165 = por %p163, %p164
    %s166 = ssub.s32 %s12, %s19
    %p167 = scmp.eq.s32.totalorder %s166, 0
    %s169 = sadd.s32 %s168, 1
    %s170 = scalar_select %p167, %s168, %s169
    %p173 = pneg %p167
    %p174 = scmp.eq.s32.totalorder %s12, 1
    %p175 = por %p173, %p174
    %p176 = scmp.ne.s32.totalorder %s168, %s171
    %p177 = scmp.eq.s32.totalorder %s12, 0
    %p178 = por %p176, %p177
    %p179 = scmp.ne.s32.totalorder %s168, %s171
    %p180 = scmp.eq.s32.totalorder %s17, 1
    %p181 = por %p179, %p180
    %p182 = scmp.ne.s32.totalorder %s171, %s172
    %p183 = scmp.eq.s32.totalorder %s17, 0
    %p184 = por %p182, %p183
    %p185 = scmp.ne.s32.totalorder %s171, %s172
    %p186 = scmp.eq.s32.totalorder %s18, 1
    %p187 = por %p185, %p186
    %p189 = scmp.ne.s32.totalorder %s172, %s188
    %p190 = scmp.eq.s32.totalorder %s18, 0
    %p191 = por %p189, %p190
    %p192 = scmp.le.s32.totalorder 1, %s12
    %p193 = scmp.lt.s32.totalorder %s12, 3
    %p194 = pnand %p192, %p193
    %p195 = pneg %p194
    // Predicated region
    $region9: #{lenet_forward.3} parent=5 // pred_check
      _
    $region10: #{lenet_forward.3} parent=5 // pred_check_branch
      %197 = sbr.rel (%p194) target = $region12
    $region11: #{lenet_forward.3} parent=5 // pred_region
      %s198 = ssub.s32 %s12, 1
      // Predicated region
      $region13: #{lenet_forward.3} parent=11 // pred_check
        %p199 = pneg %p137
      $region14: #{lenet_forward.3} parent=11 // pred_check_branch
        %201 = sbr.rel (%p199) target = $region16
      $region15: #{lenet_forward.3} parent=11 // pred_region
        _
      $region16: #{lenet_forward.3} parent=11 // pred_fallthru
        _
      // Predicated region
      $region17: #{lenet_forward.3} parent=11 // pred_check
        %p202 = pneg %p158
      $region18: #{lenet_forward.3} parent=11 // pred_check_branch
        %204 = sbr.rel (%p202) target = $region20
      $region19: #{lenet_forward.3} parent=11 // pred_region
        _
      $region20: #{lenet_forward.3} parent=11 // pred_fallthru
        _
    $region12: #{lenet_forward.3} parent=5 // pred_fallthru
      _
    %p205 = scmp.lt.s32.totalorder %s12, 2
    // Predicated region
    $region21: #{lenet_forward.3} parent=5 // pred_check
      %p206 = pneg %p205
    $region22: #{lenet_forward.3} parent=5 // pred_check_branch
      %208 = sbr.rel (%p206) target = $region24
    $region23: #{lenet_forward.3} parent=5 // pred_region
      // Predicated region
      $region25: #{lenet_forward.3} parent=23 // pred_check
        %p209 = pneg %p32
      $region26: #{lenet_forward.3} parent=23 // pred_check_branch
        %211 = sbr.rel (%p209) target = $region28
      $region27: #{lenet_forward.3} parent=23 // pred_region
        %p212 = scmp.lt.s32.totalorder %s12, 1
        %s213 = scalar_select %p212, %s12, 1
        %s214 = smul.addr %s213, 25
        %s215 = smul.addr %s214, 4
        %s216 = scalar_lea.vmem %s0, %s215
      $region28: #{lenet_forward.3} parent=23 // pred_fallthru
        _
      // Predicated region
      $region29: #{lenet_forward.3} parent=23 // pred_check
        %p217 = pneg %p58
      $region30: #{lenet_forward.3} parent=23 // pred_check_branch
        %219 = sbr.rel (%p217) target = $region32
      $region31: #{lenet_forward.3} parent=23 // pred_region
        %p220 = scmp.lt.s32.totalorder %s12, 1
        %s221 = scalar_select %p220, %s12, 1
        %s222 = smul.addr %s221, 25
        %s223 = smul.addr %s222, 4
        %s224 = scalar_lea.vmem %s1, %s223
      $region32: #{lenet_forward.3} parent=23 // pred_fallthru
        _
      // Predicated region
      $region33: #{lenet_forward.3} parent=23 // pred_check
        %p225 = pneg %p84
      $region34: #{lenet_forward.3} parent=23 // pred_check_branch
        %227 = sbr.rel (%p225) target = $region36
      $region35: #{lenet_forward.3} parent=23 // pred_region
        %p228 = scmp.lt.s32.totalorder %s12, 1
        %s229 = scalar_select %p228, %s12, 1
        %s230 = smul.addr %s229, 25
        %s231 = smul.addr %s230, 4
        %s232 = scalar_lea.vmem %s2, %s231
      $region36: #{lenet_forward.3} parent=23 // pred_fallthru
        _
      // Predicated region
      $region37: #{lenet_forward.3} parent=23 // pred_check
        %p233 = pneg %p110
      $region38: #{lenet_forward.3} parent=23 // pred_check_branch
        %235 = sbr.rel (%p233) target = $region40
      $region39: #{lenet_forward.3} parent=23 // pred_region
        %p236 = scmp.lt.s32.totalorder %s12, 1
        %s237 = scalar_select %p236, %s12, 1
        %s238 = smul.addr %s237, 25
        %s239 = smul.addr %s238, 4
        %s240 = scalar_lea.vmem %s3, %s239
      $region40: #{lenet_forward.3} parent=23 // pred_fallthru
        _
    $region24: #{lenet_forward.3} parent=5 // pred_fallthru
      _
    %p241 = scmp.le.s32.totalorder 1, %s12
    %p242 = scmp.lt.s32.totalorder %s12, 3
    %p243 = pnand %p241, %p242
    %p244 = pneg %p243
    // Predicated region
    $region41: #{lenet_forward.3} parent=5 // pred_check
      _
    $region42: #{lenet_forward.3} parent=5 // pred_check_branch
      %246 = sbr.rel (%p243) target = $region44
    $region43: #{lenet_forward.3} parent=5 // pred_region
      %s247 = ssub.s32 %s12, 1
      %p248 = scmp.lt.s32.totalorder %s17, 1
      %s249 = scalar_select %p248, %s17, 1
      %s250 = smul.addr %s249, 25
      %s251 = smul.addr %s250, 4
      %s252 = scalar_lea.vmem %s0, %s251
      %p253 = pneg %p38
      %p254 = pneg %p35
      %p255 = scmp.lt.s32.totalorder %s17, 1
      %s256 = scalar_select %p255, %s17, 1
      %s257 = smul.addr %s256, 25
      %s258 = smul.addr %s257, 4
      %s259 = scalar_lea.vmem %s1, %s258
      %p260 = pneg %p64
      %p261 = pneg %p61
      %p262 = scmp.lt.s32.totalorder %s17, 1
      %s263 = scalar_select %p262, %s17, 1
      %s264 = smul.addr %s263, 25
      %s265 = smul.addr %s264, 4
      %s266 = scalar_lea.vmem %s2, %s265
      %p267 = pneg %p90
      %p268 = pneg %p87
      %p269 = scmp.lt.s32.totalorder %s17, 1
      %s270 = scalar_select %p269, %s17, 1
      %s271 = smul.addr %s270, 25
      %s272 = smul.addr %s271, 4
      %s273 = scalar_lea.vmem %s3, %s272
      %p274 = pneg %p116
      %p275 = pneg %p113
      %p276 = pneg %p137
      %p277 = pneg %p134
      %p278 = pneg %p158
      %p279 = pneg %p155
      %p280 = pneg %p184
      %p281 = pneg %p181
      %p282 = scmp.lt.s32.totalorder %s17, 1
      %s283 = scalar_select %p282, %s17, 1
      %s284 = smul.addr %s283, 25
      %s285 = smul.addr %s284, 8
      %s286 = scalar_lea.vmem %s6, %s285
      %p287 = scmp.lt.s32.totalorder %s17, 1
      %s288 = scalar_select %p287, %s17, 1
      %s289 = smul.addr %s288, 25
      %s290 = smul.addr %s289, 4
      %s291 = scalar_lea.vmem %s0, %s290
      %p292 = scmp.lt.s32.totalorder %s17, 1
      %s293 = scalar_select %p292, %s17, 1
      %s294 = smul.addr %s293, 25
      %s295 = smul.addr %s294, 4
      %s296 = scalar_lea.vmem %s1, %s295
      %p297 = scmp.lt.s32.totalorder %s17, 1
      %s298 = scalar_select %p297, %s17, 1
      %s299 = smul.addr %s298, 25
      %s300 = smul.addr %s299, 4
      %s301 = scalar_lea.vmem %s2, %s300
      %p302 = scmp.lt.s32.totalorder %s17, 1
      %s303 = scalar_select %p302, %s17, 1
      %s304 = smul.addr %s303, 25
      %s305 = smul.addr %s304, 4
      %s306 = scalar_lea.vmem %s3, %s305
      %p307 = scmp.lt.s32.totalorder %s17, 1
      %s308 = scalar_select %p307, %s17, 1
      %s309 = smul.addr %s308, 25
      %s310 = smul.addr %s309, 8
      %s311 = scalar_lea.vmem %s6, %s310
      %v313 = vld [vmem:[%s4] sm:$0xf]
      %v314 = vld [vmem:[%s4 + $0x4] sm:$0xf]
      %v315 = vld [vmem:[%s4 + $0x8] sm:$0xf]
      %v316 = vld [vmem:[%s4 + $0xc] sm:$0xf]
      %v317 = vld [vmem:[%s4 + $0x10] sm:$0xf]
      %v318 = vld [vmem:[%s4 + $0x14] sm:$0xf]
      %v319 = vld [vmem:[%s4 + $0x18] sm:$0xf]
      %v320 = vld [vmem:[%s4 + $0x1c] sm:$0xf]
      %v321 = vld [vmem:[%s4 + $0x20] sm:$0xf]
      %v322 = vld [vmem:[%s4 + $0x24] sm:$0x3]
      %v323 = vld [vmem:[%s5] sm:$0x1]
      %v324 = vld [vmem:[%s291] sm:$0xf]
      %v325 = vld [vmem:[%s291 + $0x4] sm:$0xf]
      %v326 = vld [vmem:[%s291 + $0x8] sm:$0xf]
      %v327 = vld [vmem:[%s291 + $0xc] sm:$0xf]
      %v328 = vld [vmem:[%s291 + $0x10] sm:$0xf]
      %v329 = vld [vmem:[%s291 + $0x14] sm:$0xf]
      %v330 = vld [vmem:[%s291 + $0x18] sm:$0xf]
      %v331 = vld [vmem:[%s291 + $0x1c] sm:$0xf]
      %v332 = vld [vmem:[%s291 + $0x20] sm:$0xf]
      %v333 = vld [vmem:[%s291 + $0x24] sm:$0xf]
      %v334 = vld [vmem:[%s291 + $0x28] sm:$0xf]
      %v335 = vld [vmem:[%s291 + $0x2c] sm:$0xf]
      %v336 = vld [vmem:[%s291 + $0x30] sm:$0xf]
      %v337 = vld [vmem:[%s291 + $0x34] sm:$0xf]
      %v338 = vld [vmem:[%s291 + $0x38] sm:$0xf]
      %v339 = vld [vmem:[%s291 + $0x3c] sm:$0xf]
      %v340 = vld [vmem:[%s291 + $0x40] sm:$0xf]
      %v341 = vld [vmem:[%s291 + $0x44] sm:$0xf]
      %v342 = vld [vmem:[%s291 + $0x48] sm:$0xf]
      %v343 = vld [vmem:[%s291 + $0x4c] sm:$0xf]
      %v344 = vld [vmem:[%s291 + $0x50] sm:$0xf]
      %v345 = vld [vmem:[%s291 + $0x54] sm:$0xf]
      %v346 = vld [vmem:[%s291 + $0x58] sm:$0xf]
      %v347 = vld [vmem:[%s291 + $0x5c] sm:$0xf]
      %v348 = vld [vmem:[%s291 + $0x60] sm:$0x3]
      %v350 = vperm.slane %v323, 0
      %v377 = vunpack.c.l.b16 %v324
      %v378 = vunpack.c.l.b16 %v325
      %v379 = vunpack.c.l.b16 %v326
      %v380 = vunpack.c.l.b16 %v327
      %v381 = vunpack.c.l.b16 %v328
      %v382 = vunpack.c.l.b16 %v329
      %v383 = vunpack.c.l.b16 %v330
      %v384 = vunpack.c.l.b16 %v331
      %v385 = vunpack.c.l.b16 %v332
      %v386 = vunpack.c.l.b16 %v333
      %v387 = vunpack.c.l.b16 %v334
      %v388 = vunpack.c.l.b16 %v335
      %v389 = vunpack.c.l.b16 %v336
      %v390 = vunpack.c.l.b16 %v337
      %v391 = vunpack.c.l.b16 %v338
      %v392 = vunpack.c.l.b16 %v339
      %v393 = vunpack.c.l.b16 %v340
      %v394 = vunpack.c.l.b16 %v341
      %v395 = vunpack.c.l.b16 %v342
      %v396 = vunpack.c.l.b16 %v343
      %v397 = vunpack.c.l.b16 %v344
      %v398 = vunpack.c.l.b16 %v345
      %v399 = vunpack.c.l.b16 %v346
      %v400 = vunpack.c.l.b16 %v347
      %v401 = vunpack.c.l.b16 %v348
      %v402 = vpack.c.b16 %v378, %v377
      %v403 = vpack.c.b16 %v380, %v379
      %v404 = vpack.c.b16 %v382, %v381
      %v405 = vpack.c.b16 %v384, %v383
      %v406 = vpack.c.b16 %v386, %v385
      %v407 = vpack.c.b16 %v388, %v387
      %v408 = vpack.c.b16 %v390, %v389
      %v409 = vpack.c.b16 %v392, %v391
      %v410 = vpack.c.b16 %v394, %v393
      %v411 = vpack.c.b16 %v396, %v395
      %v412 = vpack.c.b16 %v398, %v397
      %v413 = vpack.c.b16 %v400, %v399
      %v414 = vpack.c.b16 %v401, %v401
      %v425 = vunpack.c.l.b16 %v313
      %v426 = vunpack.c.l.b16 %v314
      %v427 = vunpack.c.l.b16 %v315
      %v428 = vunpack.c.l.b16 %v316
      %v429 = vunpack.c.l.b16 %v317
      %v430 = vunpack.c.l.b16 %v318
      %v431 = vunpack.c.l.b16 %v319
      %v432 = vunpack.c.l.b16 %v320
      %v433 = vunpack.c.l.b16 %v321
      %v434 = vunpack.c.l.b16 %v322
      %v435 = vpack.c.b16 %v426, %v425
      %v436 = vpack.c.b16 %v428, %v427
      %v437 = vpack.c.b16 %v430, %v429
      %v438 = vpack.c.b16 %v432, %v431
      %v439 = vpack.c.b16 %v434, %v433
      %vm444 = vcmask 613376
      %v446 = vsel %vm444, %v402, 0
      %v449 = vsel %vm444, %v403, 0
      %v452 = vsel %vm444, %v404, 0
      %v455 = vsel %vm444, %v405, 0
      %v458 = vsel %vm444, %v406, 0
      %v461 = vsel %vm444, %v407, 0
      %v464 = vsel %vm444, %v408, 0
      %v467 = vsel %vm444, %v409, 0
      %v470 = vsel %vm444, %v410, 0
      %v473 = vsel %vm444, %v411, 0
      %v476 = vsel %vm444, %v412, 0
      %v479 = vsel %vm444, %v413, 0
      %v482 = vsel %vm444, %v414, 0
      %vm484 = vcmask 1044480
      %vm485 = vcmask 1045504
      %v486 = vsel %vm484, 4294967295, 65535
      %v487 = vsel %vm485, %v486, 0
      %v489 = vand.u32 %v439, %v487
      %491 = vmatpush.bf16.msra.mxu0 0
      %492 = vmatpush.bf16.msra.mxu0 0
      %493 = vmatpush.bf16.msra.mxu0 0
      %494 = vmatpush.bf16.msra.mxu0 %v489
      %495 = vmatpush.bf16.msra.mxu0 %v438
      %496 = vmatpush.bf16.msra.mxu0 %v437
      %497 = vmatpush.bf16.msra.mxu0 %v436
      %498 = vmatpush.bf16.msra.mxu0 %v435
      %499 = vmatmul.bf16.gmra.mxu0 %v446
      %v500 = vpop.f32.mrf.mxu0
      %v501 = vadd.f32 %v350, %v500
      %v502 = vpop.f32.mrf.mxu0
      %v503 = vadd.f32 %v350, %v502
      %504 = vmatmul.bf16.gmra.mxu0 %v449
      %v505 = vpop.f32.mrf.mxu0
      %v506 = vadd.f32 %v350, %v505
      %v507 = vpop.f32.mrf.mxu0
      %v508 = vadd.f32 %v350, %v507
      %509 = vmatmul.bf16.gmra.mxu0 %v452
      %v510 = vpop.f32.mrf.mxu0
      %v511 = vadd.f32 %v350, %v510
      %v512 = vpop.f32.mrf.mxu0
      %v513 = vadd.f32 %v350, %v512
      %514 = vmatmul.bf16.gmra.mxu0 %v455
      %v515 = vpop.f32.mrf.mxu0
      %v516 = vadd.f32 %v350, %v515
      %v517 = vpop.f32.mrf.mxu0
      %v518 = vadd.f32 %v350, %v517
      %519 = vmatmul.bf16.gmra.mxu0 %v458
      %v520 = vpop.f32.mrf.mxu0
      %v521 = vadd.f32 %v350, %v520
      %v522 = vpop.f32.mrf.mxu0
      %v523 = vadd.f32 %v350, %v522
      %524 = vmatmul.bf16.gmra.mxu0 %v461
      %v525 = vpop.f32.mrf.mxu0
      %v526 = vadd.f32 %v350, %v525
      %v527 = vpop.f32.mrf.mxu0
      %v528 = vadd.f32 %v350, %v527
      %529 = vmatmul.bf16.gmra.mxu0 %v464
      %v530 = vpop.f32.mrf.mxu0
      %v531 = vadd.f32 %v350, %v530
      %v532 = vpop.f32.mrf.mxu0
      %v533 = vadd.f32 %v350, %v532
      %534 = vmatmul.bf16.gmra.mxu0 %v467
      %v535 = vpop.f32.mrf.mxu0
      %v536 = vadd.f32 %v350, %v535
      %v537 = vpop.f32.mrf.mxu0
      %v538 = vadd.f32 %v350, %v537
      %539 = vmatmul.bf16.gmra.mxu0 %v470
      %v540 = vpop.f32.mrf.mxu0
      %v541 = vadd.f32 %v350, %v540
      %v542 = vpop.f32.mrf.mxu0
      %v543 = vadd.f32 %v350, %v542
      %544 = vmatmul.bf16.gmra.mxu0 %v473
      %v545 = vpop.f32.mrf.mxu0
      %v546 = vadd.f32 %v350, %v545
      %v547 = vpop.f32.mrf.mxu0
      %v548 = vadd.f32 %v350, %v547
      %549 = vmatmul.bf16.gmra.mxu0 %v476
      %v550 = vpop.f32.mrf.mxu0
      %v551 = vadd.f32 %v350, %v550
      %v552 = vpop.f32.mrf.mxu0
      %v553 = vadd.f32 %v350, %v552
      %554 = vmatmul.bf16.gmra.mxu0 %v479
      %v555 = vpop.f32.mrf.mxu0
      %v556 = vadd.f32 %v350, %v555
      %v557 = vpop.f32.mrf.mxu0
      %v558 = vadd.f32 %v350, %v557
      %559 = vmatmul.bf16.gmra.mxu0 %v482
      %v560 = vpop.f32.mrf.mxu0
      %v561 = vadd.f32 %v350, %v560
      %v562 = vpop.f32.mrf.mxu0
      %563 = vdwg.mxu0
      %v564 = vmax.f32 %v501, 0.0
      %v565 = vmax.f32 %v503, 0.0
      %v566 = vmax.f32 %v506, 0.0
      %v567 = vmax.f32 %v508, 0.0
      %v568 = vmax.f32 %v511, 0.0
      %v569 = vmax.f32 %v513, 0.0
      %v570 = vmax.f32 %v516, 0.0
      %v571 = vmax.f32 %v518, 0.0
      %v572 = vmax.f32 %v521, 0.0
      %v573 = vmax.f32 %v523, 0.0
      %v574 = vmax.f32 %v526, 0.0
      %v575 = vmax.f32 %v528, 0.0
      %v576 = vmax.f32 %v531, 0.0
      %v577 = vmax.f32 %v533, 0.0
      %v578 = vmax.f32 %v536, 0.0
      %v579 = vmax.f32 %v538, 0.0
      %v580 = vmax.f32 %v541, 0.0
      %v581 = vmax.f32 %v543, 0.0
      %v582 = vmax.f32 %v546, 0.0
      %v583 = vmax.f32 %v548, 0.0
      %v584 = vmax.f32 %v551, 0.0
      %v585 = vmax.f32 %v553, 0.0
      %v586 = vmax.f32 %v556, 0.0
      %v587 = vmax.f32 %v558, 0.0
      %v588 = vmax.f32 %v561, 0.0
      %v589 = vld [vmem:[%s296] sm:$0xf]
      %v590 = vld [vmem:[%s296 + $0x4] sm:$0xf]
      %v591 = vld [vmem:[%s296 + $0x8] sm:$0xf]
      %v592 = vld [vmem:[%s296 + $0xc] sm:$0xf]
      %v593 = vld [vmem:[%s296 + $0x10] sm:$0xf]
      %v594 = vld [vmem:[%s296 + $0x14] sm:$0xf]
      %v595 = vld [vmem:[%s296 + $0x18] sm:$0xf]
      %v596 = vld [vmem:[%s296 + $0x1c] sm:$0xf]
      %v597 = vld [vmem:[%s296 + $0x20] sm:$0xf]
      %v598 = vld [vmem:[%s296 + $0x24] sm:$0xf]
      %v599 = vld [vmem:[%s296 + $0x28] sm:$0xf]
      %v600 = vld [vmem:[%s296 + $0x2c] sm:$0xf]
      %v601 = vld [vmem:[%s296 + $0x30] sm:$0xf]
      %v602 = vld [vmem:[%s296 + $0x34] sm:$0xf]
      %v603 = vld [vmem:[%s296 + $0x38] sm:$0xf]
      %v604 = vld [vmem:[%s296 + $0x3c] sm:$0xf]
      %v605 = vld [vmem:[%s296 + $0x40] sm:$0xf]
      %v606 = vld [vmem:[%s296 + $0x44] sm:$0xf]
      %v607 = vld [vmem:[%s296 + $0x48] sm:$0xf]
      %v608 = vld [vmem:[%s296 + $0x4c] sm:$0xf]
      %v609 = vld [vmem:[%s296 + $0x50] sm:$0xf]
      %v610 = vld [vmem:[%s296 + $0x54] sm:$0xf]
      %v611 = vld [vmem:[%s296 + $0x58] sm:$0xf]
      %v612 = vld [vmem:[%s296 + $0x5c] sm:$0xf]
      %v613 = vld [vmem:[%s296 + $0x60] sm:$0x3]
      %v639 = vunpack.c.l.b16 %v589
      %v640 = vunpack.c.l.b16 %v590
      %v641 = vunpack.c.l.b16 %v591
      %v642 = vunpack.c.l.b16 %v592
      %v643 = vunpack.c.l.b16 %v593
      %v644 = vunpack.c.l.b16 %v594
      %v645 = vunpack.c.l.b16 %v595
      %v646 = vunpack.c.l.b16 %v596
      %v647 = vunpack.c.l.b16 %v597
      %v648 = vunpack.c.l.b16 %v598
      %v649 = vunpack.c.l.b16 %v599
      %v650 = vunpack.c.l.b16 %v600
      %v651 = vunpack.c.l.b16 %v601
      %v652 = vunpack.c.l.b16 %v602
      %v653 = vunpack.c.l.b16 %v603
      %v654 = vunpack.c.l.b16 %v604
      %v655 = vunpack.c.l.b16 %v605
      %v656 = vunpack.c.l.b16 %v606
      %v657 = vunpack.c.l.b16 %v607
      %v658 = vunpack.c.l.b16 %v608
      %v659 = vunpack.c.l.b16 %v609
      %v660 = vunpack.c.l.b16 %v610
      %v661 = vunpack.c.l.b16 %v611
      %v662 = vunpack.c.l.b16 %v612
      %v663 = vunpack.c.l.b16 %v613
      %v664 = vpack.c.b16 %v640, %v639
      %v665 = vpack.c.b16 %v642, %v641
      %v666 = vpack.c.b16 %v644, %v643
      %v667 = vpack.c.b16 %v646, %v645
      %v668 = vpack.c.b16 %v648, %v647
      %v669 = vpack.c.b16 %v650, %v649
      %v670 = vpack.c.b16 %v652, %v651
      %v671 = vpack.c.b16 %v654, %v653
      %v672 = vpack.c.b16 %v656, %v655
      %v673 = vpack.c.b16 %v658, %v657
      %v674 = vpack.c.b16 %v660, %v659
      %v675 = vpack.c.b16 %v662, %v661
      %v676 = vpack.c.b16 %v663, %v663
      %v678 = vsel %vm444, %v664, 0
      %v681 = vsel %vm444, %v665, 0
      %v684 = vsel %vm444, %v666, 0
      %v687 = vsel %vm444, %v667, 0
      %v690 = vsel %vm444, %v668, 0
      %v693 = vsel %vm444, %v669, 0
      %v696 = vsel %vm444, %v670, 0
      %v699 = vsel %vm444, %v671, 0
      %v702 = vsel %vm444, %v672, 0
      %v705 = vsel %vm444, %v673, 0
      %v708 = vsel %vm444, %v674, 0
      %v711 = vsel %vm444, %v675, 0
      %v714 = vsel %vm444, %v676, 0
      %716 = vmatpush.bf16.msra.mxu0 0
      %717 = vmatpush.bf16.msra.mxu0 0
      %718 = vmatpush.bf16.msra.mxu0 0
      %719 = vmatpush.bf16.msra.mxu0 %v489
      %720 = vmatpush.bf16.msra.mxu0 %v438
      %721 = vmatpush.bf16.msra.mxu0 %v437
      %722 = vmatpush.bf16.msra.mxu0 %v436
      %723 = vmatpush.bf16.msra.mxu0 %v435
      %724 = vmatmul.bf16.gmra.mxu0 %v678
      %v725 = vpop.f32.mrf.mxu0
      %v726 = vadd.f32 %v350, %v725
      %v727 = vpop.f32.mrf.mxu0
      %v728 = vadd.f32 %v350, %v727
      %729 = vmatmul.bf16.gmra.mxu0 %v681
      %v730 = vpop.f32.mrf.mxu0
      %v731 = vadd.f32 %v350, %v730
      %v732 = vpop.f32.mrf.mxu0
      %v733 = vadd.f32 %v350, %v732
      %734 = vmatmul.bf16.gmra.mxu0 %v684
      %v735 = vpop.f32.mrf.mxu0
      %v736 = vadd.f32 %v350, %v735
      %v737 = vpop.f32.mrf.mxu0
      %v738 = vadd.f32 %v350, %v737
      %739 = vmatmul.bf16.gmra.mxu0 %v687
      %v740 = vpop.f32.mrf.mxu0
      %v741 = vadd.f32 %v350, %v740
      %v742 = vpop.f32.mrf.mxu0
      %v743 = vadd.f32 %v350, %v742
      %744 = vmatmul.bf16.gmra.mxu0 %v690
      %v745 = vpop.f32.mrf.mxu0
      %v746 = vadd.f32 %v350, %v745
      %v747 = vpop.f32.mrf.mxu0
      %v748 = vadd.f32 %v350, %v747
      %749 = vmatmul.bf16.gmra.mxu0 %v693
      %v750 = vpop.f32.mrf.mxu0
      %v751 = vadd.f32 %v350, %v750
      %v752 = vpop.f32.mrf.mxu0
      %v753 = vadd.f32 %v350, %v752
      %754 = vmatmul.bf16.gmra.mxu0 %v696
      %v755 = vpop.f32.mrf.mxu0
      %v756 = vadd.f32 %v350, %v755
      %v757 = vpop.f32.mrf.mxu0
      %v758 = vadd.f32 %v350, %v757
      %759 = vmatmul.bf16.gmra.mxu0 %v699
      %v760 = vpop.f32.mrf.mxu0
      %v761 = vadd.f32 %v350, %v760
      %v762 = vpop.f32.mrf.mxu0
      %v763 = vadd.f32 %v350, %v762
      %764 = vmatmul.bf16.gmra.mxu0 %v702
      %v765 = vpop.f32.mrf.mxu0
      %v766 = vadd.f32 %v350, %v765
      %v767 = vpop.f32.mrf.mxu0
      %v768 = vadd.f32 %v350, %v767
      %769 = vmatmul.bf16.gmra.mxu0 %v705
      %v770 = vpop.f32.mrf.mxu0
      %v771 = vadd.f32 %v350, %v770
      %v772 = vpop.f32.mrf.mxu0
      %v773 = vadd.f32 %v350, %v772
      %774 = vmatmul.bf16.gmra.mxu0 %v708
      %v775 = vpop.f32.mrf.mxu0
      %v776 = vadd.f32 %v350, %v775
      %v777 = vpop.f32.mrf.mxu0
      %v778 = vadd.f32 %v350, %v777
      %779 = vmatmul.bf16.gmra.mxu0 %v711
      %v780 = vpop.f32.mrf.mxu0
      %v781 = vadd.f32 %v350, %v780
      %v782 = vpop.f32.mrf.mxu0
      %v783 = vadd.f32 %v350, %v782
      %784 = vmatmul.bf16.gmra.mxu0 %v714
      %v785 = vpop.f32.mrf.mxu0
      %v786 = vadd.f32 %v350, %v785
      %v787 = vpop.f32.mrf.mxu0
      %788 = vdwg.mxu0
      %v789 = vmax.f32 %v726, 0.0
      %v790 = vmax.f32 %v728, 0.0
      %v791 = vmax.f32 %v731, 0.0
      %v792 = vmax.f32 %v733, 0.0
      %v793 = vmax.f32 %v736, 0.0
      %v794 = vmax.f32 %v738, 0.0
      %v795 = vmax.f32 %v741, 0.0
      %v796 = vmax.f32 %v743, 0.0
      %v797 = vmax.f32 %v746, 0.0
      %v798 = vmax.f32 %v748, 0.0
      %v799 = vmax.f32 %v751, 0.0
      %v800 = vmax.f32 %v753, 0.0
      %v801 = vmax.f32 %v756, 0.0
      %v802 = vmax.f32 %v758, 0.0
      %v803 = vmax.f32 %v761, 0.0
      %v804 = vmax.f32 %v763, 0.0
      %v805 = vmax.f32 %v766, 0.0
      %v806 = vmax.f32 %v768, 0.0
      %v807 = vmax.f32 %v771, 0.0
      %v808 = vmax.f32 %v773, 0.0
      %v809 = vmax.f32 %v776, 0.0
      %v810 = vmax.f32 %v778, 0.0
      %v811 = vmax.f32 %v781, 0.0
      %v812 = vmax.f32 %v783, 0.0
      %v813 = vmax.f32 %v786, 0.0
      %v814 = vmax.f32 %v564, %v789
      %v815 = vmax.f32 %v565, %v790
      %v816 = vmax.f32 %v566, %v791
      %v817 = vmax.f32 %v567, %v792
      %v818 = vmax.f32 %v568, %v793
      %v819 = vmax.f32 %v569, %v794
      %v820 = vmax.f32 %v570, %v795
      %v821 = vmax.f32 %v571, %v796
      %v822 = vmax.f32 %v572, %v797
      %v823 = vmax.f32 %v573, %v798
      %v824 = vmax.f32 %v574, %v799
      %v825 = vmax.f32 %v575, %v800
      %v826 = vmax.f32 %v576, %v801
      %v827 = vmax.f32 %v577, %v802
      %v828 = vmax.f32 %v578, %v803
      %v829 = vmax.f32 %v579, %v804
      %v830 = vmax.f32 %v580, %v805
      %v831 = vmax.f32 %v581, %v806
      %v832 = vmax.f32 %v582, %v807
      %v833 = vmax.f32 %v583, %v808
      %v834 = vmax.f32 %v584, %v809
      %v835 = vmax.f32 %v585, %v810
      %v836 = vmax.f32 %v586, %v811
      %v837 = vmax.f32 %v587, %v812
      %v838 = vmax.f32 %v588, %v813
      %v839 = vld [vmem:[%s301] sm:$0xf]
      %v840 = vld [vmem:[%s301 + $0x4] sm:$0xf]
      %v841 = vld [vmem:[%s301 + $0x8] sm:$0xf]
      %v842 = vld [vmem:[%s301 + $0xc] sm:$0xf]
      %v843 = vld [vmem:[%s301 + $0x10] sm:$0xf]
      %v844 = vld [vmem:[%s301 + $0x14] sm:$0xf]
      %v845 = vld [vmem:[%s301 + $0x18] sm:$0xf]
      %v846 = vld [vmem:[%s301 + $0x1c] sm:$0xf]
      %v847 = vld [vmem:[%s301 + $0x20] sm:$0xf]
      %v848 = vld [vmem:[%s301 + $0x24] sm:$0xf]
      %v849 = vld [vmem:[%s301 + $0x28] sm:$0xf]
      %v850 = vld [vmem:[%s301 + $0x2c] sm:$0xf]
      %v851 = vld [vmem:[%s301 + $0x30] sm:$0xf]
      %v852 = vld [vmem:[%s301 + $0x34] sm:$0xf]
      %v853 = vld [vmem:[%s301 + $0x38] sm:$0xf]
      %v854 = vld [vmem:[%s301 + $0x3c] sm:$0xf]
      %v855 = vld [vmem:[%s301 + $0x40] sm:$0xf]
      %v856 = vld [vmem:[%s301 + $0x44] sm:$0xf]
      %v857 = vld [vmem:[%s301 + $0x48] sm:$0xf]
      %v858 = vld [vmem:[%s301 + $0x4c] sm:$0xf]
      %v859 = vld [vmem:[%s301 + $0x50] sm:$0xf]
      %v860 = vld [vmem:[%s301 + $0x54] sm:$0xf]
      %v861 = vld [vmem:[%s301 + $0x58] sm:$0xf]
      %v862 = vld [vmem:[%s301 + $0x5c] sm:$0xf]
      %v863 = vld [vmem:[%s301 + $0x60] sm:$0x3]
      %v889 = vunpack.c.l.b16 %v839
      %v890 = vunpack.c.l.b16 %v840
      %v891 = vunpack.c.l.b16 %v841
      %v892 = vunpack.c.l.b16 %v842
      %v893 = vunpack.c.l.b16 %v843
      %v894 = vunpack.c.l.b16 %v844
      %v895 = vunpack.c.l.b16 %v845
      %v896 = vunpack.c.l.b16 %v846
      %v897 = vunpack.c.l.b16 %v847
      %v898 = vunpack.c.l.b16 %v848
      %v899 = vunpack.c.l.b16 %v849
      %v900 = vunpack.c.l.b16 %v850
      %v901 = vunpack.c.l.b16 %v851
      %v902 = vunpack.c.l.b16 %v852
      %v903 = vunpack.c.l.b16 %v853
      %v904 = vunpack.c.l.b16 %v854
      %v905 = vunpack.c.l.b16 %v855
      %v906 = vunpack.c.l.b16 %v856
      %v907 = vunpack.c.l.b16 %v857
      %v908 = vunpack.c.l.b16 %v858
      %v909 = vunpack.c.l.b16 %v859
      %v910 = vunpack.c.l.b16 %v860
      %v911 = vunpack.c.l.b16 %v861
      %v912 = vunpack.c.l.b16 %v862
      %v913 = vunpack.c.l.b16 %v863
      %v914 = vpack.c.b16 %v890, %v889
      %v915 = vpack.c.b16 %v892, %v891
      %v916 = vpack.c.b16 %v894, %v893
      %v917 = vpack.c.b16 %v896, %v895
      %v918 = vpack.c.b16 %v898, %v897
      %v919 = vpack.c.b16 %v900, %v899
      %v920 = vpack.c.b16 %v902, %v901
      %v921 = vpack.c.b16 %v904, %v903
      %v922 = vpack.c.b16 %v906, %v905
      %v923 = vpack.c.b16 %v908, %v907
      %v924 = vpack.c.b16 %v910, %v909
      %v925 = vpack.c.b16 %v912, %v911
      %v926 = vpack.c.b16 %v913, %v913
      %v928 = vsel %vm444, %v914, 0
      %v931 = vsel %vm444, %v915, 0
      %v934 = vsel %vm444, %v916, 0
      %v937 = vsel %vm444, %v917, 0
      %v940 = vsel %vm444, %v918, 0
      %v943 = vsel %vm444, %v919, 0
      %v946 = vsel %vm444, %v920, 0
      %v949 = vsel %vm444, %v921, 0
      %v952 = vsel %vm444, %v922, 0
      %v955 = vsel %vm444, %v923, 0
      %v958 = vsel %vm444, %v924, 0
      %v961 = vsel %vm444, %v925, 0
      %v964 = vsel %vm444, %v926, 0
      %966 = vmatpush.bf16.msra.mxu0 0
      %967 = vmatpush.bf16.msra.mxu0 0
      %968 = vmatpush.bf16.msra.mxu0 0
      %969 = vmatpush.bf16.msra.mxu0 %v489
      %970 = vmatpush.bf16.msra.mxu0 %v438
      %971 = vmatpush.bf16.msra.mxu0 %v437
      %972 = vmatpush.bf16.msra.mxu0 %v436
      %973 = vmatpush.bf16.msra.mxu0 %v435
      %974 = vmatmul.bf16.gmra.mxu0 %v928
      %v975 = vpop.f32.mrf.mxu0
      %v976 = vadd.f32 %v350, %v975
      %v977 = vpop.f32.mrf.mxu0
      %v978 = vadd.f32 %v350, %v977
      %979 = vmatmul.bf16.gmra.mxu0 %v931
      %v980 = vpop.f32.mrf.mxu0
      %v981 = vadd.f32 %v350, %v980
      %v982 = vpop.f32.mrf.mxu0
      %v983 = vadd.f32 %v350, %v982
      %984 = vmatmul.bf16.gmra.mxu0 %v934
      %v985 = vpop.f32.mrf.mxu0
      %v986 = vadd.f32 %v350, %v985
      %v987 = vpop.f32.mrf.mxu0
      %v988 = vadd.f32 %v350, %v987
      %989 = vmatmul.bf16.gmra.mxu0 %v937
      %v990 = vpop.f32.mrf.mxu0
      %v991 = vadd.f32 %v350, %v990
      %v992 = vpop.f32.mrf.mxu0
      %v993 = vadd.f32 %v350, %v992
      %994 = vmatmul.bf16.gmra.mxu0 %v940
      %v995 = vpop.f32.mrf.mxu0
      %v996 = vadd.f32 %v350, %v995
      %v997 = vpop.f32.mrf.mxu0
      %v998 = vadd.f32 %v350, %v997
      %999 = vmatmul.bf16.gmra.mxu0 %v943
      %v1000 = vpop.f32.mrf.mxu0
      %v1001 = vadd.f32 %v350, %v1000
      %v1002 = vpop.f32.mrf.mxu0
      %v1003 = vadd.f32 %v350, %v1002
      %1004 = vmatmul.bf16.gmra.mxu0 %v946
      %v1005 = vpop.f32.mrf.mxu0
      %v1006 = vadd.f32 %v350, %v1005
      %v1007 = vpop.f32.mrf.mxu0
      %v1008 = vadd.f32 %v350, %v1007
      %1009 = vmatmul.bf16.gmra.mxu0 %v949
      %v1010 = vpop.f32.mrf.mxu0
      %v1011 = vadd.f32 %v350, %v1010
      %v1012 = vpop.f32.mrf.mxu0
      %v1013 = vadd.f32 %v350, %v1012
      %1014 = vmatmul.bf16.gmra.mxu0 %v952
      %v1015 = vpop.f32.mrf.mxu0
      %v1016 = vadd.f32 %v350, %v1015
      %v1017 = vpop.f32.mrf.mxu0
      %v1018 = vadd.f32 %v350, %v1017
      %1019 = vmatmul.bf16.gmra.mxu0 %v955
      %v1020 = vpop.f32.mrf.mxu0
      %v1021 = vadd.f32 %v350, %v1020
      %v1022 = vpop.f32.mrf.mxu0
      %v1023 = vadd.f32 %v350, %v1022
      %1024 = vmatmul.bf16.gmra.mxu0 %v958
      %v1025 = vpop.f32.mrf.mxu0
      %v1026 = vadd.f32 %v350, %v1025
      %v1027 = vpop.f32.mrf.mxu0
      %v1028 = vadd.f32 %v350, %v1027
      %1029 = vmatmul.bf16.gmra.mxu0 %v961
      %v1030 = vpop.f32.mrf.mxu0
      %v1031 = vadd.f32 %v350, %v1030
      %v1032 = vpop.f32.mrf.mxu0
      %v1033 = vadd.f32 %v350, %v1032
      %1034 = vmatmul.bf16.gmra.mxu0 %v964
      %v1035 = vpop.f32.mrf.mxu0
      %v1036 = vadd.f32 %v350, %v1035
      %v1037 = vpop.f32.mrf.mxu0
      %1038 = vdwg.mxu0
      %v1039 = vmax.f32 %v976, 0.0
      %v1040 = vmax.f32 %v978, 0.0
      %v1041 = vmax.f32 %v981, 0.0
      %v1042 = vmax.f32 %v983, 0.0
      %v1043 = vmax.f32 %v986, 0.0
      %v1044 = vmax.f32 %v988, 0.0
      %v1045 = vmax.f32 %v991, 0.0
      %v1046 = vmax.f32 %v993, 0.0
      %v1047 = vmax.f32 %v996, 0.0
      %v1048 = vmax.f32 %v998, 0.0
      %v1049 = vmax.f32 %v1001, 0.0
      %v1050 = vmax.f32 %v1003, 0.0
      %v1051 = vmax.f32 %v1006, 0.0
      %v1052 = vmax.f32 %v1008, 0.0
      %v1053 = vmax.f32 %v1011, 0.0
      %v1054 = vmax.f32 %v1013, 0.0
      %v1055 = vmax.f32 %v1016, 0.0
      %v1056 = vmax.f32 %v1018, 0.0
      %v1057 = vmax.f32 %v1021, 0.0
      %v1058 = vmax.f32 %v1023, 0.0
      %v1059 = vmax.f32 %v1026, 0.0
      %v1060 = vmax.f32 %v1028, 0.0
      %v1061 = vmax.f32 %v1031, 0.0
      %v1062 = vmax.f32 %v1033, 0.0
      %v1063 = vmax.f32 %v1036, 0.0
      %v1064 = vld [vmem:[%s306] sm:$0xf]
      %v1065 = vld [vmem:[%s306 + $0x4] sm:$0xf]
      %v1066 = vld [vmem:[%s306 + $0x8] sm:$0xf]
      %v1067 = vld [vmem:[%s306 + $0xc] sm:$0xf]
      %v1068 = vld [vmem:[%s306 + $0x10] sm:$0xf]
      %v1069 = vld [vmem:[%s306 + $0x14] sm:$0xf]
      %v1070 = vld [vmem:[%s306 + $0x18] sm:$0xf]
      %v1071 = vld [vmem:[%s306 + $0x1c] sm:$0xf]
      %v1072 = vld [vmem:[%s306 + $0x20] sm:$0xf]
      %v1073 = vld [vmem:[%s306 + $0x24] sm:$0xf]
      %v1074 = vld [vmem:[%s306 + $0x28] sm:$0xf]
      %v1075 = vld [vmem:[%s306 + $0x2c] sm:$0xf]
      %v1076 = vld [vmem:[%s306 + $0x30] sm:$0xf]
      %v1077 = vld [vmem:[%s306 + $0x34] sm:$0xf]
      %v1078 = vld [vmem:[%s306 + $0x38] sm:$0xf]
      %v1079 = vld [vmem:[%s306 + $0x3c] sm:$0xf]
      %v1080 = vld [vmem:[%s306 + $0x40] sm:$0xf]
      %v1081 = vld [vmem:[%s306 + $0x44] sm:$0xf]
      %v1082 = vld [vmem:[%s306 + $0x48] sm:$0xf]
      %v1083 = vld [vmem:[%s306 + $0x4c] sm:$0xf]
      %v1084 = vld [vmem:[%s306 + $0x50] sm:$0xf]
      %v1085 = vld [vmem:[%s306 + $0x54] sm:$0xf]
      %v1086 = vld [vmem:[%s306 + $0x58] sm:$0xf]
      %v1087 = vld [vmem:[%s306 + $0x5c] sm:$0xf]
      %v1088 = vld [vmem:[%s306 + $0x60] sm:$0x3]
      %v1114 = vunpack.c.l.b16 %v1064
      %v1115 = vunpack.c.l.b16 %v1065
      %v1116 = vunpack.c.l.b16 %v1066
      %v1117 = vunpack.c.l.b16 %v1067
      %v1118 = vunpack.c.l.b16 %v1068
      %v1119 = vunpack.c.l.b16 %v1069
      %v1120 = vunpack.c.l.b16 %v1070
      %v1121 = vunpack.c.l.b16 %v1071
      %v1122 = vunpack.c.l.b16 %v1072
      %v1123 = vunpack.c.l.b16 %v1073
      %v1124 = vunpack.c.l.b16 %v1074
      %v1125 = vunpack.c.l.b16 %v1075
      %v1126 = vunpack.c.l.b16 %v1076
      %v1127 = vunpack.c.l.b16 %v1077
      %v1128 = vunpack.c.l.b16 %v1078
      %v1129 = vunpack.c.l.b16 %v1079
      %v1130 = vunpack.c.l.b16 %v1080
      %v1131 = vunpack.c.l.b16 %v1081
      %v1132 = vunpack.c.l.b16 %v1082
      %v1133 = vunpack.c.l.b16 %v1083
      %v1134 = vunpack.c.l.b16 %v1084
      %v1135 = vunpack.c.l.b16 %v1085
      %v1136 = vunpack.c.l.b16 %v1086
      %v1137 = vunpack.c.l.b16 %v1087
      %v1138 = vunpack.c.l.b16 %v1088
      %v1139 = vpack.c.b16 %v1115, %v1114
      %v1140 = vpack.c.b16 %v1117, %v1116
      %v1141 = vpack.c.b16 %v1119, %v1118
      %v1142 = vpack.c.b16 %v1121, %v1120
      %v1143 = vpack.c.b16 %v1123, %v1122
      %v1144 = vpack.c.b16 %v1125, %v1124
      %v1145 = vpack.c.b16 %v1127, %v1126
      %v1146 = vpack.c.b16 %v1129, %v1128
      %v1147 = vpack.c.b16 %v1131, %v1130
      %v1148 = vpack.c.b16 %v1133, %v1132
      %v1149 = vpack.c.b16 %v1135, %v1134
      %v1150 = vpack.c.b16 %v1137, %v1136
      %v1151 = vpack.c.b16 %v1138, %v1138
      %v1153 = vsel %vm444, %v1139, 0
      %v1156 = vsel %vm444, %v1140, 0
      %v1159 = vsel %vm444, %v1141, 0
      %v1162 = vsel %vm444, %v1142, 0
      %v1165 = vsel %vm444, %v1143, 0
      %v1168 = vsel %vm444, %v1144, 0
      %v1171 = vsel %vm444, %v1145, 0
      %v1174 = vsel %vm444, %v1146, 0
      %v1177 = vsel %vm444, %v1147, 0
      %v1180 = vsel %vm444, %v1148, 0
      %v1183 = vsel %vm444, %v1149, 0
      %v1186 = vsel %vm444, %v1150, 0
      %v1189 = vsel %vm444, %v1151, 0
      %1191 = vmatpush.bf16.msra.mxu0 0
      %1192 = vmatpush.bf16.msra.mxu0 0
      %1193 = vmatpush.bf16.msra.mxu0 0
      %1194 = vmatpush.bf16.msra.mxu0 %v489
      %1195 = vmatpush.bf16.msra.mxu0 %v438
      %1196 = vmatpush.bf16.msra.mxu0 %v437
      %1197 = vmatpush.bf16.msra.mxu0 %v436
      %1198 = vmatpush.bf16.msra.mxu0 %v435
      %1199 = vmatmul.bf16.gmra.mxu0 %v1153
      %v1200 = vpop.f32.mrf.mxu0
      %v1201 = vadd.f32 %v350, %v1200
      %v1202 = vpop.f32.mrf.mxu0
      %v1203 = vadd.f32 %v350, %v1202
      %1204 = vmatmul.bf16.gmra.mxu0 %v1156
      %v1205 = vpop.f32.mrf.mxu0
      %v1206 = vadd.f32 %v350, %v1205
      %v1207 = vpop.f32.mrf.mxu0
      %v1208 = vadd.f32 %v350, %v1207
      %1209 = vmatmul.bf16.gmra.mxu0 %v1159
      %v1210 = vpop.f32.mrf.mxu0
      %v1211 = vadd.f32 %v350, %v1210
      %v1212 = vpop.f32.mrf.mxu0
      %v1213 = vadd.f32 %v350, %v1212
      %1214 = vmatmul.bf16.gmra.mxu0 %v1162
      %v1215 = vpop.f32.mrf.mxu0
      %v1216 = vadd.f32 %v350, %v1215
      %v1217 = vpop.f32.mrf.mxu0
      %v1218 = vadd.f32 %v350, %v1217
      %1219 = vmatmul.bf16.gmra.mxu0 %v1165
      %v1220 = vpop.f32.mrf.mxu0
      %v1221 = vadd.f32 %v350, %v1220
      %v1222 = vpop.f32.mrf.mxu0
      %v1223 = vadd.f32 %v350, %v1222
      %1224 = vmatmul.bf16.gmra.mxu0 %v1168
      %v1225 = vpop.f32.mrf.mxu0
      %v1226 = vadd.f32 %v350, %v1225
      %v1227 = vpop.f32.mrf.mxu0
      %v1228 = vadd.f32 %v350, %v1227
      %1229 = vmatmul.bf16.gmra.mxu0 %v1171
      %v1230 = vpop.f32.mrf.mxu0
      %v1231 = vadd.f32 %v350, %v1230
      %v1232 = vpop.f32.mrf.mxu0
      %v1233 = vadd.f32 %v350, %v1232
      %1234 = vmatmul.bf16.gmra.mxu0 %v1174
      %v1235 = vpop.f32.mrf.mxu0
      %v1236 = vadd.f32 %v350, %v1235
      %v1237 = vpop.f32.mrf.mxu0
      %v1238 = vadd.f32 %v350, %v1237
      %1239 = vmatmul.bf16.gmra.mxu0 %v1177
      %v1240 = vpop.f32.mrf.mxu0
      %v1241 = vadd.f32 %v350, %v1240
      %v1242 = vpop.f32.mrf.mxu0
      %v1243 = vadd.f32 %v350, %v1242
      %1244 = vmatmul.bf16.gmra.mxu0 %v1180
      %v1245 = vpop.f32.mrf.mxu0
      %v1246 = vadd.f32 %v350, %v1245
      %v1247 = vpop.f32.mrf.mxu0
      %v1248 = vadd.f32 %v350, %v1247
      %1249 = vmatmul.bf16.gmra.mxu0 %v1183
      %v1250 = vpop.f32.mrf.mxu0
      %v1251 = vadd.f32 %v350, %v1250
      %v1252 = vpop.f32.mrf.mxu0
      %v1253 = vadd.f32 %v350, %v1252
      %1254 = vmatmul.bf16.gmra.mxu0 %v1186
      %v1255 = vpop.f32.mrf.mxu0
      %v1256 = vadd.f32 %v350, %v1255
      %v1257 = vpop.f32.mrf.mxu0
      %v1258 = vadd.f32 %v350, %v1257
      %1259 = vmatmul.bf16.gmra.mxu0 %v1189
      %v1260 = vpop.f32.mrf.mxu0
      %v1261 = vadd.f32 %v350, %v1260
      %v1262 = vpop.f32.mrf.mxu0
      %1263 = vdwg.mxu0
      %v1264 = vmax.f32 %v1201, 0.0
      %v1265 = vmax.f32 %v1203, 0.0
      %v1266 = vmax.f32 %v1206, 0.0
      %v1267 = vmax.f32 %v1208, 0.0
      %v1268 = vmax.f32 %v1211, 0.0
      %v1269 = vmax.f32 %v1213, 0.0
      %v1270 = vmax.f32 %v1216, 0.0
      %v1271 = vmax.f32 %v1218, 0.0
      %v1272 = vmax.f32 %v1221, 0.0
      %v1273 = vmax.f32 %v1223, 0.0
      %v1274 = vmax.f32 %v1226, 0.0
      %v1275 = vmax.f32 %v1228, 0.0
      %v1276 = vmax.f32 %v1231, 0.0
      %v1277 = vmax.f32 %v1233, 0.0
      %v1278 = vmax.f32 %v1236, 0.0
      %v1279 = vmax.f32 %v1238, 0.0
      %v1280 = vmax.f32 %v1241, 0.0
      %v1281 = vmax.f32 %v1243, 0.0
      %v1282 = vmax.f32 %v1246, 0.0
      %v1283 = vmax.f32 %v1248, 0.0
      %v1284 = vmax.f32 %v1251, 0.0
      %v1285 = vmax.f32 %v1253, 0.0
      %v1286 = vmax.f32 %v1256, 0.0
      %v1287 = vmax.f32 %v1258, 0.0
      %v1288 = vmax.f32 %v1261, 0.0
      %v1289 = vmax.f32 %v1039, %v1264
      %v1290 = vmax.f32 %v1040, %v1265
      %v1291 = vmax.f32 %v1041, %v1266
      %v1292 = vmax.f32 %v1042, %v1267
      %v1293 = vmax.f32 %v1043, %v1268
      %v1294 = vmax.f32 %v1044, %v1269
      %v1295 = vmax.f32 %v1045, %v1270
      %v1296 = vmax.f32 %v1046, %v1271
      %v1297 = vmax.f32 %v1047, %v1272
      %v1298 = vmax.f32 %v1048, %v1273
      %v1299 = vmax.f32 %v1049, %v1274
      %v1300 = vmax.f32 %v1050, %v1275
      %v1301 = vmax.f32 %v1051, %v1276
      %v1302 = vmax.f32 %v1052, %v1277
      %v1303 = vmax.f32 %v1053, %v1278
      %v1304 = vmax.f32 %v1054, %v1279
      %v1305 = vmax.f32 %v1055, %v1280
      %v1306 = vmax.f32 %v1056, %v1281
      %v1307 = vmax.f32 %v1057, %v1282
      %v1308 = vmax.f32 %v1058, %v1283
      %v1309 = vmax.f32 %v1059, %v1284
      %v1310 = vmax.f32 %v1060, %v1285
      %v1311 = vmax.f32 %v1061, %v1286
      %v1312 = vmax.f32 %v1062, %v1287
      %v1313 = vmax.f32 %v1063, %v1288
      %v1314 = vmax.f32 %v814, %v1289
      %v1315 = vmax.f32 %v815, %v1290
      %v1316 = vmax.f32 %v816, %v1291
      %v1317 = vmax.f32 %v817, %v1292
      %v1318 = vmax.f32 %v818, %v1293
      %v1319 = vmax.f32 %v819, %v1294
      %v1320 = vmax.f32 %v820, %v1295
      %v1321 = vmax.f32 %v821, %v1296
      %v1322 = vmax.f32 %v822, %v1297
      %v1323 = vmax.f32 %v823, %v1298
      %v1324 = vmax.f32 %v824, %v1299
      %v1325 = vmax.f32 %v825, %v1300
      %v1326 = vmax.f32 %v826, %v1301
      %v1327 = vmax.f32 %v827, %v1302
      %v1328 = vmax.f32 %v828, %v1303
      %v1329 = vmax.f32 %v829, %v1304
      %v1330 = vmax.f32 %v830, %v1305
      %v1331 = vmax.f32 %v831, %v1306
      %v1332 = vmax.f32 %v832, %v1307
      %v1333 = vmax.f32 %v833, %v1308
      %v1334 = vmax.f32 %v834, %v1309
      %v1335 = vmax.f32 %v835, %v1310
      %v1336 = vmax.f32 %v836, %v1311
      %v1337 = vmax.f32 %v837, %v1312
      %v1338 = vmax.f32 %v838, %v1313
      %1339 = vst [vmem:[%s311] sm:$0xff] %v1314
      %1340 = vst [vmem:[%s311 + $0x8] sm:$0xff] %v1315
      %1341 = vst [vmem:[%s311 + $0x10] sm:$0xff] %v1316
      %1342 = vst [vmem:[%s311 + $0x18] sm:$0xff] %v1317
      %1343 = vst [vmem:[%s311 + $0x20] sm:$0xff] %v1318
      %1344 = vst [vmem:[%s311 + $0x28] sm:$0xff] %v1319
      %1345 = vst [vmem:[%s311 + $0x30] sm:$0xff] %v1320
      %1346 = vst [vmem:[%s311 + $0x38] sm:$0xff] %v1321
      %1347 = vst [vmem:[%s311 + $0x40] sm:$0xff] %v1322
      %1348 = vst [vmem:[%s311 + $0x48] sm:$0xff] %v1323
      %1349 = vst [vmem:[%s311 + $0x50] sm:$0xff] %v1324
      %1350 = vst [vmem:[%s311 + $0x58] sm:$0xff] %v1325
      %1351 = vst [vmem:[%s311 + $0x60] sm:$0xff] %v1326
      %1352 = vst [vmem:[%s311 + $0x68] sm:$0xff] %v1327
      %1353 = vst [vmem:[%s311 + $0x70] sm:$0xff] %v1328
      %1354 = vst [vmem:[%s311 + $0x78] sm:$0xff] %v1329
      %1355 = vst [vmem:[%s311 + $0x80] sm:$0xff] %v1330
      %1356 = vst [vmem:[%s311 + $0x88] sm:$0xff] %v1331
      %1357 = vst [vmem:[%s311 + $0x90] sm:$0xff] %v1332
      %1358 = vst [vmem:[%s311 + $0x98] sm:$0xff] %v1333
      %1359 = vst [vmem:[%s311 + $0xa0] sm:$0xff] %v1334
      %1360 = vst [vmem:[%s311 + $0xa8] sm:$0xff] %v1335
      %1361 = vst [vmem:[%s311 + $0xb0] sm:$0xff] %v1336
      %1362 = vst [vmem:[%s311 + $0xb8] sm:$0xff] %v1337
      %1363 = vst [vmem:[%s311 + $0xc0] sm:$0xf] %v1338
      %p1364 = scmp.lt.s32.totalorder %s17, 1
      %s1365 = scalar_select %p1364, %s17, 1
      %s1366 = smul.addr %s1365, 25
      %s1367 = smul.addr %s1366, 8
      %s1368 = scalar_lea.vmem %s6, %s1367
      // Predicated region
      $region45: #{lenet_forward.3} parent=43 // pred_check
        %p1369 = pneg %p181
      $region46: #{lenet_forward.3} parent=43 // pred_check_branch
        %1371 = sbr.rel (%p1369) target = $region48
      $region47: #{lenet_forward.3} parent=43 // pred_region
        _
      $region48: #{lenet_forward.3} parent=43 // pred_fallthru
        _
    $region44: #{lenet_forward.3} parent=5 // pred_fallthru
      _
    %p1372 = scmp.le.s32.totalorder 2, %s12
    // Predicated region
    $region49: #{lenet_forward.3} parent=5 // pred_check
      %p1373 = pneg %p1372
    $region50: #{lenet_forward.3} parent=5 // pred_check_branch
      %1375 = sbr.rel (%p1373) target = $region52
    $region51: #{lenet_forward.3} parent=5 // pred_region
      %s1376 = ssub.s32 %s12, 2
      // Predicated region
      $region53: #{lenet_forward.3} parent=51 // pred_check
        %p1377 = pneg %p187
      $region54: #{lenet_forward.3} parent=51 // pred_check_branch
        %1379 = sbr.rel (%p1377) target = $region56
      $region55: #{lenet_forward.3} parent=51 // pred_region
        %p1380 = scmp.lt.s32.totalorder %s18, 1
        %s1381 = scalar_select %p1380, %s18, 1
        %s1382 = smul.addr %s1381, 25
        %s1383 = smul.addr %s1382, 8
        %s1384 = scalar_lea.vmem %s6, %s1383
      $region56: #{lenet_forward.3} parent=51 // pred_fallthru
        _
    $region52: #{lenet_forward.3} parent=5 // pred_fallthru
      _
  $region6: #{lenet_forward.3} parent=0 // loop_footer
    %s16 = sadd.s32 1, %s12
  $region7: #{lenet_forward.3} parent=0 // loop_footer_branch
    %11 = sbr.rel target = $region3
  $region8: #{lenet_forward.3} parent=0 // loop_exit
    _

// kernel: lenet_forward.4
$region0: #{lenet_forward.4}
  #allocation0 [shape = 'u32[]', space=smem, size = 0x4, offset = 0x4, fixed_abs, tag = 'smem constant byte address 0x4 - core index']
  #allocation1 [shape = 'u32[72,128]{1,0:T(1,128)}', space=vmem, size = 0x9000, scoped, tag = 'internal scratch']
  %s0 = inlined_call_operand.vmem [shape: bf16[2,25,500], index: 0, kind: input, shape index: {}]
  %s1 = inlined_call_operand.vmem [shape: bf16[2,25,500], index: 1, kind: input, shape index: {}]
  %s2 = inlined_call_operand.vmem [shape: bf16[2,25,500], index: 2, kind: input, shape index: {}]
  %s3 = inlined_call_operand.vmem [shape: bf16[2,25,500], index: 3, kind: input, shape index: {}]
  %s4 = inlined_call_operand.vmem [shape: bf16[500,128], index: 4, kind: input, shape index: {}]
  %s5 = inlined_call_operand.vmem [shape: f32[1,128], index: 5, kind: input, shape index: {}]
  %s6 = inlined_call_operand.vmem [shape: f32[2,25,128], index: 6, kind: output, shape index: {}]
  %s7 = sld [smem:[#allocation0]]
  $region57: #{lenet_forward.4} parent=0
    _
  %s9 = ssub.s32 1, %s7
  %s10 = scalar_select 0, %s9, %s7
  loop: start=0, step=1, limit=4
  $region2: #{lenet_forward.4} parent=0 // loop_pre_header
    _
  $region3: #{lenet_forward.4} parent=0 // loop_header
    %s12 = sphi 0, %s16
    %p13 = scmp.ge.s32.totalorder %s12, 4
    %s22 = sphi 0, %s24
    %s25 = sphi 0, %s22
    %s26 = sphi 0, %s25
    %s42 = sphi 0, %s26
    %s48 = sphi 0, %s50
    %s51 = sphi 0, %s48
    %s52 = sphi 0, %s51
    %s68 = sphi 0, %s52
    %s74 = sphi 0, %s76
    %s77 = sphi 0, %s74
    %s78 = sphi 0, %s77
    %s94 = sphi 0, %s78
    %s100 = sphi 0, %s102
    %s103 = sphi 0, %s100
    %s104 = sphi 0, %s103
    %s120 = sphi 0, %s104
    %s124 = sphi 0, %s124
    %s126 = sphi 0, %s124
    %s127 = sphi 0, %s126
    %s141 = sphi 0, %s127
    %s145 = sphi 0, %s145
    %s147 = sphi 0, %s145
    %s148 = sphi 0, %s147
    %s162 = sphi 0, %s148
    %s168 = sphi 0, %s170
    %s171 = sphi 0, %s168
    %s172 = sphi 0, %s171
    %s188 = sphi 0, %s172
  $region4: #{lenet_forward.4} parent=0 // loop_header_branch
    %15 = sbr.rel (%p13) target = $region8
  $region5: #{lenet_forward.4} parent=0 // loop_body
    %s17 = ssub.s32 %s12, 1
    %s18 = ssub.s32 %s12, 2
    %s19 = sadd.s32 %s12, 1
    %s20 = ssub.s32 %s12, %s19
    %p21 = scmp.eq.s32.totalorder %s20, 0
    %s23 = sadd.s32 %s22, 1
    %s24 = scalar_select %p21, %s22, %s23
    %p27 = pneg %p21
    %p28 = scmp.eq.s32.totalorder %s12, 1
    %p29 = por %p27, %p28
    %p30 = scmp.ne.s32.totalorder %s22, %s25
    %p31 = scmp.eq.s32.totalorder %s12, 0
    %p32 = por %p30, %p31
    %p33 = scmp.ne.s32.totalorder %s22, %s25
    %p34 = scmp.eq.s32.totalorder %s17, 1
    %p35 = por %p33, %p34
    %p36 = scmp.ne.s32.totalorder %s25, %s26
    %p37 = scmp.eq.s32.totalorder %s17, 0
    %p38 = por %p36, %p37
    %p39 = scmp.ne.s32.totalorder %s25, %s26
    %p40 = scmp.eq.s32.totalorder %s18, 1
    %p41 = por %p39, %p40
    %p43 = scmp.ne.s32.totalorder %s26, %s42
    %p44 = scmp.eq.s32.totalorder %s18, 0
    %p45 = por %p43, %p44
    %s46 = ssub.s32 %s12, %s19
    %p47 = scmp.eq.s32.totalorder %s46, 0
    %s49 = sadd.s32 %s48, 1
    %s50 = scalar_select %p47, %s48, %s49
    %p53 = pneg %p47
    %p54 = scmp.eq.s32.totalorder %s12, 1
    %p55 = por %p53, %p54
    %p56 = scmp.ne.s32.totalorder %s48, %s51
    %p57 = scmp.eq.s32.totalorder %s12, 0
    %p58 = por %p56, %p57
    %p59 = scmp.ne.s32.totalorder %s48, %s51
    %p60 = scmp.eq.s32.totalorder %s17, 1
    %p61 = por %p59, %p60
    %p62 = scmp.ne.s32.totalorder %s51, %s52
    %p63 = scmp.eq.s32.totalorder %s17, 0
    %p64 = por %p62, %p63
    %p65 = scmp.ne.s32.totalorder %s51, %s52
    %p66 = scmp.eq.s32.totalorder %s18, 1
    %p67 = por %p65, %p66
    %p69 = scmp.ne.s32.totalorder %s52, %s68
    %p70 = scmp.eq.s32.totalorder %s18, 0
    %p71 = por %p69, %p70
    %s72 = ssub.s32 %s12, %s19
    %p73 = scmp.eq.s32.totalorder %s72, 0
    %s75 = sadd.s32 %s74, 1
    %s76 = scalar_select %p73, %s74, %s75
    %p79 = pneg %p73
    %p80 = scmp.eq.s32.totalorder %s12, 1
    %p81 = por %p79, %p80
    %p82 = scmp.ne.s32.totalorder %s74, %s77
    %p83 = scmp.eq.s32.totalorder %s12, 0
    %p84 = por %p82, %p83
    %p85 = scmp.ne.s32.totalorder %s74, %s77
    %p86 = scmp.eq.s32.totalorder %s17, 1
    %p87 = por %p85, %p86
    %p88 = scmp.ne.s32.totalorder %s77, %s78
    %p89 = scmp.eq.s32.totalorder %s17, 0
    %p90 = por %p88, %p89
    %p91 = scmp.ne.s32.totalorder %s77, %s78
    %p92 = scmp.eq.s32.totalorder %s18, 1
    %p93 = por %p91, %p92
    %p95 = scmp.ne.s32.totalorder %s78, %s94
    %p96 = scmp.eq.s32.totalorder %s18, 0
    %p97 = por %p95, %p96
    %s98 = ssub.s32 %s12, %s19
    %p99 = scmp.eq.s32.totalorder %s98, 0
    %s101 = sadd.s32 %s100, 1
    %s102 = scalar_select %p99, %s100, %s101
    %p105 = pneg %p99
    %p106 = scmp.eq.s32.totalorder %s12, 1
    %p107 = por %p105, %p106
    %p108 = scmp.ne.s32.totalorder %s100, %s103
    %p109 = scmp.eq.s32.totalorder %s12, 0
    %p110 = por %p108, %p109
    %p111 = scmp.ne.s32.totalorder %s100, %s103
    %p112 = scmp.eq.s32.totalorder %s17, 1
    %p113 = por %p111, %p112
    %p114 = scmp.ne.s32.totalorder %s103, %s104
    %p115 = scmp.eq.s32.totalorder %s17, 0
    %p116 = por %p114, %p115
    %p117 = scmp.ne.s32.totalorder %s103, %s104
    %p118 = scmp.eq.s32.totalorder %s18, 1
    %p119 = por %p117, %p118
    %p121 = scmp.ne.s32.totalorder %s104, %s120
    %p122 = scmp.eq.s32.totalorder %s18, 0
    %p123 = por %p121, %p122
    %s125 = sadd.s32 %s124, 1
    %p128 = scmp.eq.s32.totalorder %s12, 1
    %p129 = scmp.ne.s32.totalorder %s124, %s126
    %p130 = scmp.eq.s32.totalorder %s12, 0
    %p131 = por %p129, %p130
    %p132 = scmp.ne.s32.totalorder %s124, %s126
    %p133 = scmp.eq.s32.totalorder %s17, 1
    %p134 = por %p132, %p133
    %p135 = scmp.ne.s32.totalorder %s126, %s127
    %p136 = scmp.eq.s32.totalorder %s17, 0
    %p137 = por %p135, %p136
    %p138 = scmp.ne.s32.totalorder %s126, %s127
    %p139 = scmp.eq.s32.totalorder %s18, 1
    %p140 = por %p138, %p139
    %p142 = scmp.ne.s32.totalorder %s127, %s141
    %p143 = scmp.eq.s32.totalorder %s18, 0
    %p144 = por %p142, %p143
    %s146 = sadd.s32 %s145, 1
    %p149 = scmp.eq.s32.totalorder %s12, 1
    %p150 = scmp.ne.s32.totalorder %s145, %s147
    %p151 = scmp.eq.s32.totalorder %s12, 0
    %p152 = por %p150, %p151
    %p153 = scmp.ne.s32.totalorder %s145, %s147
    %p154 = scmp.eq.s32.totalorder %s17, 1
    %p155 = por %p153, %p154
    %p156 = scmp.ne.s32.totalorder %s147, %s148
    %p157 = scmp.eq.s32.totalorder %s17, 0
    %p158 = por %p156, %p157
    %p159 = scmp.ne.s32.totalorder %s147, %s148
    %p160 = scmp.eq.s32.totalorder %s18, 1
    %p161 = por %p159, %p160
    %p163 = scmp.ne.s32.totalorder %s148, %s162
    %p164 = scmp.eq.s32.totalorder %s18, 0
    %p165 = por %p163, %p164
    %s166 = ssub.s32 %s12, %s19
    %p167 = scmp.eq.s32.totalorder %s166, 0
    %s169 = sadd.s32 %s168, 1
    %s170 = scalar_select %p167, %s168, %s169
    %p173 = pneg %p167
    %p174 = scmp.eq.s32.totalorder %s12, 1
    %p175 = por %p173, %p174
    %p176 = scmp.ne.s32.totalorder %s168, %s171
    %p177 = scmp.eq.s32.totalorder %s12, 0
    %p178 = por %p176, %p177
    %p179 = scmp.ne.s32.totalorder %s168, %s171
    %p180 = scmp.eq.s32.totalorder %s17, 1
    %p181 = por %p179, %p180
    %p182 = scmp.ne.s32.totalorder %s171, %s172
    %p183 = scmp.eq.s32.totalorder %s17, 0
    %p184 = por %p182, %p183
    %p185 = scmp.ne.s32.totalorder %s171, %s172
    %p186 = scmp.eq.s32.totalorder %s18, 1
    %p187 = por %p185, %p186
    %p189 = scmp.ne.s32.totalorder %s172, %s188
    %p190 = scmp.eq.s32.totalorder %s18, 0
    %p191 = por %p189, %p190
    %p192 = scmp.le.s32.totalorder 1, %s12
    %p193 = scmp.lt.s32.totalorder %s12, 3
    %p194 = pnand %p192, %p193
    %p195 = pneg %p194
    // Predicated region
    $region9: #{lenet_forward.4} parent=5 // pred_check
      _
    $region10: #{lenet_forward.4} parent=5 // pred_check_branch
      %197 = sbr.rel (%p194) target = $region12
    $region11: #{lenet_forward.4} parent=5 // pred_region
      %s198 = ssub.s32 %s12, 1
      // Predicated region
      $region13: #{lenet_forward.4} parent=11 // pred_check
        %p199 = pneg %p137
      $region14: #{lenet_forward.4} parent=11 // pred_check_branch
        %201 = sbr.rel (%p199) target = $region16
      $region15: #{lenet_forward.4} parent=11 // pred_region
        _
      $region16: #{lenet_forward.4} parent=11 // pred_fallthru
        _
      // Predicated region
      $region17: #{lenet_forward.4} parent=11 // pred_check
        %p202 = pneg %p158
      $region18: #{lenet_forward.4} parent=11 // pred_check_branch
        %204 = sbr.rel (%p202) target = $region20
      $region19: #{lenet_forward.4} parent=11 // pred_region
        _
      $region20: #{lenet_forward.4} parent=11 // pred_fallthru
        _
    $region12: #{lenet_forward.4} parent=5 // pred_fallthru
      _
    %p205 = scmp.lt.s32.totalorder %s12, 2
    // Predicated region
    $region21: #{lenet_forward.4} parent=5 // pred_check
      %p206 = pneg %p205
    $region22: #{lenet_forward.4} parent=5 // pred_check_branch
      %208 = sbr.rel (%p206) target = $region24
    $region23: #{lenet_forward.4} parent=5 // pred_region
      // Predicated region
      $region25: #{lenet_forward.4} parent=23 // pred_check
        %p209 = pneg %p32
      $region26: #{lenet_forward.4} parent=23 // pred_check_branch
        %211 = sbr.rel (%p209) target = $region28
      $region27: #{lenet_forward.4} parent=23 // pred_region
        %p212 = scmp.lt.s32.totalorder %s12, 1
        %s213 = scalar_select %p212, %s12, 1
        %s214 = smul.addr %s213, 16
        %s215 = smul.addr %s214, 4
        %s216 = scalar_lea.vmem %s0, %s215
      $region28: #{lenet_forward.4} parent=23 // pred_fallthru
        _
      // Predicated region
      $region29: #{lenet_forward.4} parent=23 // pred_check
        %p217 = pneg %p58
      $region30: #{lenet_forward.4} parent=23 // pred_check_branch
        %219 = sbr.rel (%p217) target = $region32
      $region31: #{lenet_forward.4} parent=23 // pred_region
        %p220 = scmp.lt.s32.totalorder %s12, 1
        %s221 = scalar_select %p220, %s12, 1
        %s222 = smul.addr %s221, 16
        %s223 = smul.addr %s222, 4
        %s224 = scalar_lea.vmem %s1, %s223
      $region32: #{lenet_forward.4} parent=23 // pred_fallthru
        _
      // Predicated region
      $region33: #{lenet_forward.4} parent=23 // pred_check
        %p225 = pneg %p84
      $region34: #{lenet_forward.4} parent=23 // pred_check_branch
        %227 = sbr.rel (%p225) target = $region36
      $region35: #{lenet_forward.4} parent=23 // pred_region
        %p228 = scmp.lt.s32.totalorder %s12, 1
        %s229 = scalar_select %p228, %s12, 1
        %s230 = smul.addr %s229, 16
        %s231 = smul.addr %s230, 4
        %s232 = scalar_lea.vmem %s2, %s231
      $region36: #{lenet_forward.4} parent=23 // pred_fallthru
        _
      // Predicated region
      $region37: #{lenet_forward.4} parent=23 // pred_check
        %p233 = pneg %p110
      $region38: #{lenet_forward.4} parent=23 // pred_check_branch
        %235 = sbr.rel (%p233) target = $region40
      $region39: #{lenet_forward.4} parent=23 // pred_region
        %p236 = scmp.lt.s32.totalorder %s12, 1
        %s237 = scalar_select %p236, %s12, 1
        %s238 = smul.addr %s237, 16
        %s239 = smul.addr %s238, 4
        %s240 = scalar_lea.vmem %s3, %s239
      $region40: #{lenet_forward.4} parent=23 // pred_fallthru
        _
    $region24: #{lenet_forward.4} parent=5 // pred_fallthru
      _
    %p241 = scmp.le.s32.totalorder 1, %s12
    %p242 = scmp.lt.s32.totalorder %s12, 3
    %p243 = pnand %p241, %p242
    %p244 = pneg %p243
    // Predicated region
    $region41: #{lenet_forward.4} parent=5 // pred_check
      _
    $region42: #{lenet_forward.4} parent=5 // pred_check_branch
      %246 = sbr.rel (%p243) target = $region44
    $region43: #{lenet_forward.4} parent=5 // pred_region
      %s247 = ssub.s32 %s12, 1
      %p248 = scmp.lt.s32.totalorder %s17, 1
      %s249 = scalar_select %p248, %s17, 1
      %s250 = smul.addr %s249, 16
      %s251 = smul.addr %s250, 4
      %s252 = scalar_lea.vmem %s0, %s251
      %p253 = pneg %p38
      %p254 = pneg %p35
      %p255 = scmp.lt.s32.totalorder %s17, 1
      %s256 = scalar_select %p255, %s17, 1
      %s257 = smul.addr %s256, 16
      %s258 = smul.addr %s257, 4
      %s259 = scalar_lea.vmem %s1, %s258
      %p260 = pneg %p64
      %p261 = pneg %p61
      %p262 = scmp.lt.s32.totalorder %s17, 1
      %s263 = scalar_select %p262, %s17, 1
      %s264 = smul.addr %s263, 16
      %s265 = smul.addr %s264, 4
      %s266 = scalar_lea.vmem %s2, %s265
      %p267 = pneg %p90
      %p268 = pneg %p87
      %p269 = scmp.lt.s32.totalorder %s17, 1
      %s270 = scalar_select %p269, %s17, 1
      %s271 = smul.addr %s270, 16
      %s272 = smul.addr %s271, 4
      %s273 = scalar_lea.vmem %s3, %s272
      %p274 = pneg %p116
      %p275 = pneg %p113
      %p276 = pneg %p137
      %p277 = pneg %p134
      %p278 = pneg %p158
      %p279 = pneg %p155
      %p280 = pneg %p184
      %p281 = pneg %p181
      %p282 = scmp.lt.s32.totalorder %s17, 1
      %s283 = scalar_select %p282, %s17, 1
      %s284 = smul.addr %s283, 4
      %s285 = smul.addr %s284, 8
      %s286 = scalar_lea.vmem %s6, %s285
      %p287 = scmp.lt.s32.totalorder %s17, 1
      %s288 = scalar_select %p287, %s17, 1
      %s289 = smul.addr %s288, 16
      %s290 = smul.addr %s289, 4
      %s291 = scalar_lea.vmem %s0, %s290
      %p292 = scmp.lt.s32.totalorder %s17, 1
      %s293 = scalar_select %p292, %s17, 1
      %s294 = smul.addr %s293, 16
      %s295 = smul.addr %s294, 4
      %s296 = scalar_lea.vmem %s1, %s295
      %p297 = scmp.lt.s32.totalorder %s17, 1
      %s298 = scalar_select %p297, %s17, 1
      %s299 = smul.addr %s298, 16
      %s300 = smul.addr %s299, 4
      %s301 = scalar_lea.vmem %s2, %s300
      %p302 = scmp.lt.s32.totalorder %s17, 1
      %s303 = scalar_select %p302, %s17, 1
      %s304 = smul.addr %s303, 16
      %s305 = smul.addr %s304, 4
      %s306 = scalar_lea.vmem %s3, %s305
      %p307 = scmp.lt.s32.totalorder %s17, 1
      %s308 = scalar_select %p307, %s17, 1
      %s309 = smul.addr %s308, 4
      %s310 = smul.addr %s309, 8
      %s311 = scalar_lea.vmem %s6, %s310
      %v312 = vld [vmem:[%s4] sm:$0xf]
      %v313 = vld [vmem:[%s4 + $0x4] sm:$0xf]
      %v314 = vld [vmem:[%s4 + $0x8] sm:$0xf]
      %v315 = vld [vmem:[%s4 + $0xc] sm:$0xf]
      %v316 = vld [vmem:[%s4 + $0x10] sm:$0xf]
      %v317 = vld [vmem:[%s4 + $0x14] sm:$0xf]
      %v318 = vld [vmem:[%s4 + $0x18] sm:$0xf]
      %v319 = vld [vmem:[%s4 + $0x1c] sm:$0xf]
      %v320 = vld [vmem:[%s4 + $0x20] sm:$0xf]
      %v321 = vld [vmem:[%s4 + $0x24] sm:$0xf]
      %v322 = vld [vmem:[%s4 + $0x28] sm:$0xf]
      %v323 = vld [vmem:[%s4 + $0x2c] sm:$0xf]
      %v324 = vld [vmem:[%s4 + $0x30] sm:$0xf]
      %v325 = vld [vmem:[%s4 + $0x34] sm:$0xf]
      %v326 = vld [vmem:[%s4 + $0x38] sm:$0xf]
      %v327 = vld [vmem:[%s4 + $0x3c] sm:$0xf]
      %v328 = vld [vmem:[%s4 + $0x40] sm:$0xf]
      %v329 = vld [vmem:[%s4 + $0x44] sm:$0xf]
      %v330 = vld [vmem:[%s4 + $0x48] sm:$0xf]
      %v331 = vld [vmem:[%s4 + $0x4c] sm:$0xf]
      %v332 = vld [vmem:[%s4 + $0x50] sm:$0xf]
      %v333 = vld [vmem:[%s4 + $0x54] sm:$0xf]
      %v334 = vld [vmem:[%s4 + $0x58] sm:$0xf]
      %v335 = vld [vmem:[%s4 + $0x5c] sm:$0xf]
      %v336 = vld [vmem:[%s4 + $0x60] sm:$0xf]
      %v337 = vld [vmem:[%s4 + $0x64] sm:$0xf]
      %v338 = vld [vmem:[%s4 + $0x68] sm:$0xf]
      %v339 = vld [vmem:[%s4 + $0x6c] sm:$0xf]
      %v340 = vld [vmem:[%s4 + $0x70] sm:$0xf]
      %v341 = vld [vmem:[%s4 + $0x74] sm:$0xf]
      %v342 = vld [vmem:[%s4 + $0x78] sm:$0xf]
      %v343 = vld [vmem:[%s4 + $0x7c] sm:$0xf]
      %v344 = vld [vmem:[%s4 + $0x80] sm:$0xf]
      %v345 = vld [vmem:[%s4 + $0x84] sm:$0xf]
      %v346 = vld [vmem:[%s4 + $0x88] sm:$0xf]
      %v347 = vld [vmem:[%s4 + $0x8c] sm:$0xf]
      %v348 = vld [vmem:[%s4 + $0x90] sm:$0xf]
      %v349 = vld [vmem:[%s4 + $0x94] sm:$0xf]
      %v350 = vld [vmem:[%s4 + $0x98] sm:$0xf]
      %v351 = vld [vmem:[%s4 + $0x9c] sm:$0xf]
      %v352 = vld [vmem:[%s4 + $0xa0] sm:$0xf]
      %v353 = vld [vmem:[%s4 + $0xa4] sm:$0xf]
      %v354 = vld [vmem:[%s4 + $0xa8] sm:$0xf]
      %v355 = vld [vmem:[%s4 + $0xac] sm:$0xf]
      %v356 = vld [vmem:[%s4 + $0xb0] sm:$0xf]
      %v357 = vld [vmem:[%s4 + $0xb4] sm:$0xf]
      %v358 = vld [vmem:[%s4 + $0xb8] sm:$0xf]
      %v359 = vld [vmem:[%s4 + $0xbc] sm:$0xf]
      %v360 = vld [vmem:[%s4 + $0xc0] sm:$0xf]
      %v361 = vld [vmem:[%s4 + $0xc4] sm:$0xf]
      %v362 = vld [vmem:[%s4 + $0xc8] sm:$0xf]
      %v363 = vld [vmem:[%s4 + $0xcc] sm:$0xf]
      %v364 = vld [vmem:[%s4 + $0xd0] sm:$0xf]
      %v365 = vld [vmem:[%s4 + $0xd4] sm:$0xf]
      %v366 = vld [vmem:[%s4 + $0xd8] sm:$0xf]
      %v367 = vld [vmem:[%s4 + $0xdc] sm:$0xf]
      %v368 = vld [vmem:[%s4 + $0xe0] sm:$0xf]
      %v369 = vld [vmem:[%s4 + $0xe4] sm:$0xf]
      %v370 = vld [vmem:[%s4 + $0xe8] sm:$0xf]
      %v371 = vld [vmem:[%s4 + $0xec] sm:$0xf]
      %v372 = vld [vmem:[%s4 + $0xf0] sm:$0xf]
      %v373 = vld [vmem:[%s4 + $0xf4] sm:$0xf]
      %v374 = vld [vmem:[%s4 + $0xf8] sm:$0x3]
      %v375 = vld [vmem:[%s5] sm:$0x1]
      %v376 = vld [vmem:[%s291] sm:$0xff]
      %v377 = vld [vmem:[%s291 + $0x8] sm:$0xff]
      %v378 = vld [vmem:[%s291 + $0x10] sm:$0xff]
      %v379 = vld [vmem:[%s291 + $0x18] sm:$0xff]
      %v380 = vld [vmem:[%s291 + $0x20] sm:$0xff]
      %v381 = vld [vmem:[%s291 + $0x28] sm:$0xff]
      %v382 = vld [vmem:[%s291 + $0x30] sm:$0x11]
      %v383 = vld [vmem:[%s291 + $0x38] sm:$0x11]
      %v385 = vperm.slane %v375, 0
      %v395 = vunpack.c.l.b16 %v376
      %v396 = vunpack.c.h.b16 %v376
      %v397 = vunpack.c.l.b16 %v377
      %v398 = vunpack.c.h.b16 %v377
      %v399 = vunpack.c.l.b16 %v378
      %v400 = vunpack.c.h.b16 %v378
      %v401 = vunpack.c.l.b16 %v379
      %v402 = vunpack.c.h.b16 %v379
      %v403 = vunpack.c.l.b16 %v380
      %v404 = vunpack.c.h.b16 %v380
      %v405 = vunpack.c.l.b16 %v381
      %v406 = vunpack.c.h.b16 %v381
      %v407 = vunpack.c.l.b16 %v382
      %v408 = vunpack.c.h.b16 %v382
      %v409 = vunpack.c.l.b16 %v383
      %v410 = vunpack.c.h.b16 %v383
      %v411 = vpack.c.b16 %v399, %v395
      %v412 = vpack.c.b16 %v400, %v396
      %v413 = vpack.c.b16 %v401, %v397
      %v414 = vpack.c.b16 %v402, %v398
      %v415 = vpack.c.b16 %v407, %v403
      %v416 = vpack.c.b16 %v408, %v404
      %v417 = vpack.c.b16 %v409, %v405
      %v418 = vpack.c.b16 %v410, %v406
      %v488 = vunpack.c.l.b16 %v312
      %v489 = vunpack.c.l.b16 %v313
      %v490 = vunpack.c.l.b16 %v314
      %v491 = vunpack.c.l.b16 %v315
      %v492 = vunpack.c.l.b16 %v316
      %v493 = vunpack.c.l.b16 %v317
      %v494 = vunpack.c.l.b16 %v318
      %v495 = vunpack.c.l.b16 %v319
      %v496 = vunpack.c.l.b16 %v320
      %v497 = vunpack.c.l.b16 %v321
      %v498 = vunpack.c.l.b16 %v322
      %v499 = vunpack.c.l.b16 %v323
      %v500 = vunpack.c.l.b16 %v324
      %v501 = vunpack.c.l.b16 %v325
      %v502 = vunpack.c.l.b16 %v326
      %v503 = vunpack.c.l.b16 %v327
      %v504 = vunpack.c.l.b16 %v328
      %v505 = vunpack.c.l.b16 %v329
      %v506 = vunpack.c.l.b16 %v330
      %v507 = vunpack.c.l.b16 %v331
      %v508 = vunpack.c.l.b16 %v332
      %v509 = vunpack.c.l.b16 %v333
      %v510 = vunpack.c.l.b16 %v334
      %v511 = vunpack.c.l.b16 %v335
      %v512 = vunpack.c.l.b16 %v336
      %v513 = vunpack.c.l.b16 %v337
      %v514 = vunpack.c.l.b16 %v338
      %v515 = vunpack.c.l.b16 %v339
      %v516 = vunpack.c.l.b16 %v340
      %v517 = vunpack.c.l.b16 %v341
      %v518 = vunpack.c.l.b16 %v342
      %v519 = vunpack.c.l.b16 %v343
      %v520 = vunpack.c.l.b16 %v344
      %v521 = vunpack.c.l.b16 %v345
      %v522 = vunpack.c.l.b16 %v346
      %v523 = vunpack.c.l.b16 %v347
      %v524 = vunpack.c.l.b16 %v348
      %v525 = vunpack.c.l.b16 %v349
      %v526 = vunpack.c.l.b16 %v350
      %v527 = vunpack.c.l.b16 %v351
      %v528 = vunpack.c.l.b16 %v352
      %v529 = vunpack.c.l.b16 %v353
      %v530 = vunpack.c.l.b16 %v354
      %v531 = vunpack.c.l.b16 %v355
      %v532 = vunpack.c.l.b16 %v356
      %v533 = vunpack.c.l.b16 %v357
      %v534 = vunpack.c.l.b16 %v358
      %v535 = vunpack.c.l.b16 %v359
      %v536 = vunpack.c.l.b16 %v360
      %v537 = vunpack.c.l.b16 %v361
      %v538 = vunpack.c.l.b16 %v362
      %v539 = vunpack.c.l.b16 %v363
      %v540 = vunpack.c.l.b16 %v364
      %v541 = vunpack.c.l.b16 %v365
      %v542 = vunpack.c.l.b16 %v366
      %v543 = vunpack.c.l.b16 %v367
      %v544 = vunpack.c.l.b16 %v368
      %v545 = vunpack.c.l.b16 %v369
      %v546 = vunpack.c.l.b16 %v370
      %v547 = vunpack.c.l.b16 %v371
      %v548 = vunpack.c.l.b16 %v372
      %v549 = vunpack.c.l.b16 %v373
      %v550 = vunpack.c.l.b16 %v374
      %v551 = vpack.c.b16 %v489, %v488
      %v552 = vpack.c.b16 %v491, %v490
      %v553 = vpack.c.b16 %v493, %v492
      %v554 = vpack.c.b16 %v495, %v494
      %v555 = vpack.c.b16 %v497, %v496
      %v556 = vpack.c.b16 %v499, %v498
      %v557 = vpack.c.b16 %v501, %v500
      %v558 = vpack.c.b16 %v503, %v502
      %v559 = vpack.c.b16 %v505, %v504
      %v560 = vpack.c.b16 %v507, %v506
      %v561 = vpack.c.b16 %v509, %v508
      %v562 = vpack.c.b16 %v511, %v510
      %v563 = vpack.c.b16 %v513, %v512
      %v564 = vpack.c.b16 %v515, %v514
      %v565 = vpack.c.b16 %v517, %v516
      %v566 = vpack.c.b16 %v519, %v518
      %v567 = vpack.c.b16 %v521, %v520
      %v568 = vpack.c.b16 %v523, %v522
      %v569 = vpack.c.b16 %v525, %v524
      %v570 = vpack.c.b16 %v527, %v526
      %v571 = vpack.c.b16 %v529, %v528
      %v572 = vpack.c.b16 %v531, %v530
      %v573 = vpack.c.b16 %v533, %v532
      %v574 = vpack.c.b16 %v535, %v534
      %v575 = vpack.c.b16 %v537, %v536
      %v576 = vpack.c.b16 %v539, %v538
      %v577 = vpack.c.b16 %v541, %v540
      %v578 = vpack.c.b16 %v543, %v542
      %v579 = vpack.c.b16 %v545, %v544
      %v580 = vpack.c.b16 %v547, %v546
      %v581 = vpack.c.b16 %v549, %v548
      %v582 = vpack.c.b16 %v550, %v550
      %vm614 = vcmask 949248
      %v616 = vsel %vm614, %v414, 0
      %v619 = vsel %vm614, %v418, 0
      %vm621 = vcmask 1041408
      %v623 = vsel %vm621, %v582, 0
      %625 = vmatpush.bf16.msra.mxu0 %v558
      %626 = vmatpush.bf16.msra.mxu0 %v557
      %627 = vmatpush.bf16.msra.mxu0 %v556
      %628 = vmatpush.bf16.msra.mxu0 %v555
      %629 = vmatpush.bf16.msra.mxu0 %v554
      %630 = vmatpush.bf16.msra.mxu0 %v553
      %631 = vmatpush.bf16.msra.mxu0 %v552
      %632 = vmatpush.bf16.msra.mxu0 %v551
      %633 = vmatmul.bf16.gmra.mxu0 %v411
      %v634 = vpop.f32.mrf.mxu0
      %v635 = vadd.f32 %v385, %v634
      %v636 = vpop.f32.mrf.mxu0
      %v637 = vadd.f32 %v385, %v636
      %638 = vmatmul.bf16.gmra.mxu0 %v415
      %v639 = vpop.f32.mrf.mxu0
      %v640 = vadd.f32 %v385, %v639
      %v641 = vpop.f32.mrf.mxu0
      %v642 = vadd.f32 %v385, %v641
      %643 = vdwg.mxu0
      %644 = vmatpush.bf16.msra.mxu0 %v566
      %645 = vmatpush.bf16.msra.mxu0 %v565
      %646 = vmatpush.bf16.msra.mxu0 %v564
      %647 = vmatpush.bf16.msra.mxu0 %v563
      %648 = vmatpush.bf16.msra.mxu0 %v562
      %649 = vmatpush.bf16.msra.mxu0 %v561
      %650 = vmatpush.bf16.msra.mxu0 %v560
      %651 = vmatpush.bf16.msra.mxu0 %v559
      %652 = vmatmul.bf16.gmra.mxu0 %v412
      %v653 = vpop.f32.mrf.mxu0
      %v654 = vadd.f32 %v635, %v653
      %v655 = vpop.f32.mrf.mxu0
      %v656 = vadd.f32 %v637, %v655
      %657 = vmatmul.bf16.gmra.mxu0 %v416
      %v658 = vpop.f32.mrf.mxu0
      %v659 = vadd.f32 %v640, %v658
      %v660 = vpop.f32.mrf.mxu0
      %v661 = vadd.f32 %v642, %v660
      %662 = vdwg.mxu0
      %663 = vmatpush.bf16.msra.mxu0 %v574
      %664 = vmatpush.bf16.msra.mxu0 %v573
      %665 = vmatpush.bf16.msra.mxu0 %v572
      %666 = vmatpush.bf16.msra.mxu0 %v571
      %667 = vmatpush.bf16.msra.mxu0 %v570
      %668 = vmatpush.bf16.msra.mxu0 %v569
      %669 = vmatpush.bf16.msra.mxu0 %v568
      %670 = vmatpush.bf16.msra.mxu0 %v567
      %671 = vmatmul.bf16.gmra.mxu0 %v413
      %v672 = vpop.f32.mrf.mxu0
      %v673 = vadd.f32 %v654, %v672
      %v674 = vpop.f32.mrf.mxu0
      %v675 = vadd.f32 %v656, %v674
      %676 = vmatmul.bf16.gmra.mxu0 %v417
      %v677 = vpop.f32.mrf.mxu0
      %v678 = vadd.f32 %v659, %v677
      %v679 = vpop.f32.mrf.mxu0
      %v680 = vadd.f32 %v661, %v679
      %681 = vdwg.mxu0
      %682 = vmatpush.bf16.msra.mxu0 %v623
      %683 = vmatpush.bf16.msra.mxu0 %v581
      %684 = vmatpush.bf16.msra.mxu0 %v580
      %685 = vmatpush.bf16.msra.mxu0 %v579
      %686 = vmatpush.bf16.msra.mxu0 %v578
      %687 = vmatpush.bf16.msra.mxu0 %v577
      %688 = vmatpush.bf16.msra.mxu0 %v576
      %689 = vmatpush.bf16.msra.mxu0 %v575
      %690 = vmatmul.bf16.gmra.mxu0 %v616
      %v691 = vpop.f32.mrf.mxu0
      %v692 = vadd.f32 %v673, %v691
      %v693 = vpop.f32.mrf.mxu0
      %v694 = vadd.f32 %v675, %v693
      %695 = vmatmul.bf16.gmra.mxu0 %v619
      %v696 = vpop.f32.mrf.mxu0
      %v697 = vadd.f32 %v678, %v696
      %v698 = vpop.f32.mrf.mxu0
      %v699 = vadd.f32 %v680, %v698
      %700 = vdwg.mxu0
      %v701 = vmax.f32 %v692, 0.0
      %v702 = vmax.f32 %v694, 0.0
      %v703 = vmax.f32 %v697, 0.0
      %v704 = vmax.f32 %v699, 0.0
      %v705 = vld [vmem:[%s296] sm:$0xff]
      %v706 = vld [vmem:[%s296 + $0x8] sm:$0xff]
      %v707 = vld [vmem:[%s296 + $0x10] sm:$0xff]
      %v708 = vld [vmem:[%s296 + $0x18] sm:$0xff]
      %v709 = vld [vmem:[%s296 + $0x20] sm:$0xff]
      %v710 = vld [vmem:[%s296 + $0x28] sm:$0xff]
      %v711 = vld [vmem:[%s296 + $0x30] sm:$0x11]
      %v712 = vld [vmem:[%s296 + $0x38] sm:$0x11]
      %v721 = vunpack.c.l.b16 %v705
      %v722 = vunpack.c.h.b16 %v705
      %v723 = vunpack.c.l.b16 %v706
      %v724 = vunpack.c.h.b16 %v706
      %v725 = vunpack.c.l.b16 %v707
      %v726 = vunpack.c.h.b16 %v707
      %v727 = vunpack.c.l.b16 %v708
      %v728 = vunpack.c.h.b16 %v708
      %v729 = vunpack.c.l.b16 %v709
      %v730 = vunpack.c.h.b16 %v709
      %v731 = vunpack.c.l.b16 %v710
      %v732 = vunpack.c.h.b16 %v710
      %v733 = vunpack.c.l.b16 %v711
      %v734 = vunpack.c.h.b16 %v711
      %v735 = vunpack.c.l.b16 %v712
      %v736 = vunpack.c.h.b16 %v712
      %v737 = vpack.c.b16 %v725, %v721
      %v738 = vpack.c.b16 %v726, %v722
      %v739 = vpack.c.b16 %v727, %v723
      %v740 = vpack.c.b16 %v728, %v724
      %v741 = vpack.c.b16 %v733, %v729
      %v742 = vpack.c.b16 %v734, %v730
      %v743 = vpack.c.b16 %v735, %v731
      %v744 = vpack.c.b16 %v736, %v732
      %v752 = vsel %vm614, %v740, 0
      %v755 = vsel %vm614, %v744, 0
      %757 = vmatpush.bf16.msra.mxu0 %v558
      %758 = vmatpush.bf16.msra.mxu0 %v557
      %759 = vmatpush.bf16.msra.mxu0 %v556
      %760 = vmatpush.bf16.msra.mxu0 %v555
      %761 = vmatpush.bf16.msra.mxu0 %v554
      %762 = vmatpush.bf16.msra.mxu0 %v553
      %763 = vmatpush.bf16.msra.mxu0 %v552
      %764 = vmatpush.bf16.msra.mxu0 %v551
      %765 = vmatmul.bf16.gmra.mxu0 %v737
      %v766 = vpop.f32.mrf.mxu0
      %v767 = vadd.f32 %v385, %v766
      %v768 = vpop.f32.mrf.mxu0
      %v769 = vadd.f32 %v385, %v768
      %770 = vmatmul.bf16.gmra.mxu0 %v741
      %v771 = vpop.f32.mrf.mxu0
      %v772 = vadd.f32 %v385, %v771
      %v773 = vpop.f32.mrf.mxu0
      %v774 = vadd.f32 %v385, %v773
      %775 = vdwg.mxu0
      %776 = vmatpush.bf16.msra.mxu0 %v566
      %777 = vmatpush.bf16.msra.mxu0 %v565
      %778 = vmatpush.bf16.msra.mxu0 %v564
      %779 = vmatpush.bf16.msra.mxu0 %v563
      %780 = vmatpush.bf16.msra.mxu0 %v562
      %781 = vmatpush.bf16.msra.mxu0 %v561
      %782 = vmatpush.bf16.msra.mxu0 %v560
      %783 = vmatpush.bf16.msra.mxu0 %v559
      %784 = vmatmul.bf16.gmra.mxu0 %v738
      %v785 = vpop.f32.mrf.mxu0
      %v786 = vadd.f32 %v767, %v785
      %v787 = vpop.f32.mrf.mxu0
      %v788 = vadd.f32 %v769, %v787
      %789 = vmatmul.bf16.gmra.mxu0 %v742
      %v790 = vpop.f32.mrf.mxu0
      %v791 = vadd.f32 %v772, %v790
      %v792 = vpop.f32.mrf.mxu0
      %v793 = vadd.f32 %v774, %v792
      %794 = vdwg.mxu0
      %795 = vmatpush.bf16.msra.mxu0 %v574
      %796 = vmatpush.bf16.msra.mxu0 %v573
      %797 = vmatpush.bf16.msra.mxu0 %v572
      %798 = vmatpush.bf16.msra.mxu0 %v571
      %799 = vmatpush.bf16.msra.mxu0 %v570
      %800 = vmatpush.bf16.msra.mxu0 %v569
      %801 = vmatpush.bf16.msra.mxu0 %v568
      %802 = vmatpush.bf16.msra.mxu0 %v567
      %803 = vmatmul.bf16.gmra.mxu0 %v739
      %v804 = vpop.f32.mrf.mxu0
      %v805 = vadd.f32 %v786, %v804
      %v806 = vpop.f32.mrf.mxu0
      %v807 = vadd.f32 %v788, %v806
      %808 = vmatmul.bf16.gmra.mxu0 %v743
      %v809 = vpop.f32.mrf.mxu0
      %v810 = vadd.f32 %v791, %v809
      %v811 = vpop.f32.mrf.mxu0
      %v812 = vadd.f32 %v793, %v811
      %813 = vdwg.mxu0
      %814 = vmatpush.bf16.msra.mxu0 %v623
      %815 = vmatpush.bf16.msra.mxu0 %v581
      %816 = vmatpush.bf16.msra.mxu0 %v580
      %817 = vmatpush.bf16.msra.mxu0 %v579
      %818 = vmatpush.bf16.msra.mxu0 %v578
      %819 = vmatpush.bf16.msra.mxu0 %v577
      %820 = vmatpush.bf16.msra.mxu0 %v576
      %821 = vmatpush.bf16.msra.mxu0 %v575
      %822 = vmatmul.bf16.gmra.mxu0 %v752
      %v823 = vpop.f32.mrf.mxu0
      %v824 = vadd.f32 %v805, %v823
      %v825 = vpop.f32.mrf.mxu0
      %v826 = vadd.f32 %v807, %v825
      %827 = vmatmul.bf16.gmra.mxu0 %v755
      %v828 = vpop.f32.mrf.mxu0
      %v829 = vadd.f32 %v810, %v828
      %v830 = vpop.f32.mrf.mxu0
      %v831 = vadd.f32 %v812, %v830
      %832 = vdwg.mxu0
      %v833 = vmax.f32 %v824, 0.0
      %v834 = vmax.f32 %v826, 0.0
      %v835 = vmax.f32 %v829, 0.0
      %v836 = vmax.f32 %v831, 0.0
      %v837 = vmax.f32 %v701, %v833
      %v838 = vmax.f32 %v702, %v834
      %v839 = vmax.f32 %v703, %v835
      %v840 = vmax.f32 %v704, %v836
      %v841 = vld [vmem:[%s301] sm:$0xff]
      %v842 = vld [vmem:[%s301 + $0x8] sm:$0xff]
      %v843 = vld [vmem:[%s301 + $0x10] sm:$0xff]
      %v844 = vld [vmem:[%s301 + $0x18] sm:$0xff]
      %v845 = vld [vmem:[%s301 + $0x20] sm:$0xff]
      %v846 = vld [vmem:[%s301 + $0x28] sm:$0xff]
      %v847 = vld [vmem:[%s301 + $0x30] sm:$0x11]
      %v848 = vld [vmem:[%s301 + $0x38] sm:$0x11]
      %v857 = vunpack.c.l.b16 %v841
      %v858 = vunpack.c.h.b16 %v841
      %v859 = vunpack.c.l.b16 %v842
      %v860 = vunpack.c.h.b16 %v842
      %v861 = vunpack.c.l.b16 %v843
      %v862 = vunpack.c.h.b16 %v843
      %v863 = vunpack.c.l.b16 %v844
      %v864 = vunpack.c.h.b16 %v844
      %v865 = vunpack.c.l.b16 %v845
      %v866 = vunpack.c.h.b16 %v845
      %v867 = vunpack.c.l.b16 %v846
      %v868 = vunpack.c.h.b16 %v846
      %v869 = vunpack.c.l.b16 %v847
      %v870 = vunpack.c.h.b16 %v847
      %v871 = vunpack.c.l.b16 %v848
      %v872 = vunpack.c.h.b16 %v848
      %v873 = vpack.c.b16 %v861, %v857
      %v874 = vpack.c.b16 %v862, %v858
      %v875 = vpack.c.b16 %v863, %v859
      %v876 = vpack.c.b16 %v864, %v860
      %v877 = vpack.c.b16 %v869, %v865
      %v878 = vpack.c.b16 %v870, %v866
      %v879 = vpack.c.b16 %v871, %v867
      %v880 = vpack.c.b16 %v872, %v868
      %v888 = vsel %vm614, %v876, 0
      %v891 = vsel %vm614, %v880, 0
      %893 = vmatpush.bf16.msra.mxu0 %v558
      %894 = vmatpush.bf16.msra.mxu0 %v557
      %895 = vmatpush.bf16.msra.mxu0 %v556
      %896 = vmatpush.bf16.msra.mxu0 %v555
      %897 = vmatpush.bf16.msra.mxu0 %v554
      %898 = vmatpush.bf16.msra.mxu0 %v553
      %899 = vmatpush.bf16.msra.mxu0 %v552
      %900 = vmatpush.bf16.msra.mxu0 %v551
      %901 = vmatmul.bf16.gmra.mxu0 %v873
      %v902 = vpop.f32.mrf.mxu0
      %v903 = vadd.f32 %v385, %v902
      %v904 = vpop.f32.mrf.mxu0
      %v905 = vadd.f32 %v385, %v904
      %906 = vmatmul.bf16.gmra.mxu0 %v877
      %v907 = vpop.f32.mrf.mxu0
      %v908 = vadd.f32 %v385, %v907
      %v909 = vpop.f32.mrf.mxu0
      %v910 = vadd.f32 %v385, %v909
      %911 = vdwg.mxu0
      %912 = vmatpush.bf16.msra.mxu0 %v566
      %913 = vmatpush.bf16.msra.mxu0 %v565
      %914 = vmatpush.bf16.msra.mxu0 %v564
      %915 = vmatpush.bf16.msra.mxu0 %v563
      %916 = vmatpush.bf16.msra.mxu0 %v562
      %917 = vmatpush.bf16.msra.mxu0 %v561
      %918 = vmatpush.bf16.msra.mxu0 %v560
      %919 = vmatpush.bf16.msra.mxu0 %v559
      %920 = vmatmul.bf16.gmra.mxu0 %v874
      %v921 = vpop.f32.mrf.mxu0
      %v922 = vadd.f32 %v903, %v921
      %v923 = vpop.f32.mrf.mxu0
      %v924 = vadd.f32 %v905, %v923
      %925 = vmatmul.bf16.gmra.mxu0 %v878
      %v926 = vpop.f32.mrf.mxu0
      %v927 = vadd.f32 %v908, %v926
      %v928 = vpop.f32.mrf.mxu0
      %v929 = vadd.f32 %v910, %v928
      %930 = vdwg.mxu0
      %931 = vmatpush.bf16.msra.mxu0 %v574
      %932 = vmatpush.bf16.msra.mxu0 %v573
      %933 = vmatpush.bf16.msra.mxu0 %v572
      %934 = vmatpush.bf16.msra.mxu0 %v571
      %935 = vmatpush.bf16.msra.mxu0 %v570
      %936 = vmatpush.bf16.msra.mxu0 %v569
      %937 = vmatpush.bf16.msra.mxu0 %v568
      %938 = vmatpush.bf16.msra.mxu0 %v567
      %939 = vmatmul.bf16.gmra.mxu0 %v875
      %v940 = vpop.f32.mrf.mxu0
      %v941 = vadd.f32 %v922, %v940
      %v942 = vpop.f32.mrf.mxu0
      %v943 = vadd.f32 %v924, %v942
      %944 = vmatmul.bf16.gmra.mxu0 %v879
      %v945 = vpop.f32.mrf.mxu0
      %v946 = vadd.f32 %v927, %v945
      %v947 = vpop.f32.mrf.mxu0
      %v948 = vadd.f32 %v929, %v947
      %949 = vdwg.mxu0
      %950 = vmatpush.bf16.msra.mxu0 %v623
      %951 = vmatpush.bf16.msra.mxu0 %v581
      %952 = vmatpush.bf16.msra.mxu0 %v580
      %953 = vmatpush.bf16.msra.mxu0 %v579
      %954 = vmatpush.bf16.msra.mxu0 %v578
      %955 = vmatpush.bf16.msra.mxu0 %v577
      %956 = vmatpush.bf16.msra.mxu0 %v576
      %957 = vmatpush.bf16.msra.mxu0 %v575
      %958 = vmatmul.bf16.gmra.mxu0 %v888
      %v959 = vpop.f32.mrf.mxu0
      %v960 = vadd.f32 %v941, %v959
      %v961 = vpop.f32.mrf.mxu0
      %v962 = vadd.f32 %v943, %v961
      %963 = vmatmul.bf16.gmra.mxu0 %v891
      %v964 = vpop.f32.mrf.mxu0
      %v965 = vadd.f32 %v946, %v964
      %v966 = vpop.f32.mrf.mxu0
      %v967 = vadd.f32 %v948, %v966
      %968 = vdwg.mxu0
      %v969 = vmax.f32 %v960, 0.0
      %v970 = vmax.f32 %v962, 0.0
      %v971 = vmax.f32 %v965, 0.0
      %v972 = vmax.f32 %v967, 0.0
      %v973 = vld [vmem:[%s306] sm:$0xff]
      %v974 = vld [vmem:[%s306 + $0x8] sm:$0xff]
      %v975 = vld [vmem:[%s306 + $0x10] sm:$0xff]
      %v976 = vld [vmem:[%s306 + $0x18] sm:$0xff]
      %v977 = vld [vmem:[%s306 + $0x20] sm:$0xff]
      %v978 = vld [vmem:[%s306 + $0x28] sm:$0xff]
      %v979 = vld [vmem:[%s306 + $0x30] sm:$0x11]
      %v980 = vld [vmem:[%s306 + $0x38] sm:$0x11]
      %v989 = vunpack.c.l.b16 %v973
      %v990 = vunpack.c.h.b16 %v973
      %v991 = vunpack.c.l.b16 %v974
      %v992 = vunpack.c.h.b16 %v974
      %v993 = vunpack.c.l.b16 %v975
      %v994 = vunpack.c.h.b16 %v975
      %v995 = vunpack.c.l.b16 %v976
      %v996 = vunpack.c.h.b16 %v976
      %v997 = vunpack.c.l.b16 %v977
      %v998 = vunpack.c.h.b16 %v977
      %v999 = vunpack.c.l.b16 %v978
      %v1000 = vunpack.c.h.b16 %v978
      %v1001 = vunpack.c.l.b16 %v979
      %v1002 = vunpack.c.h.b16 %v979
      %v1003 = vunpack.c.l.b16 %v980
      %v1004 = vunpack.c.h.b16 %v980
      %v1005 = vpack.c.b16 %v993, %v989
      %v1006 = vpack.c.b16 %v994, %v990
      %v1007 = vpack.c.b16 %v995, %v991
      %v1008 = vpack.c.b16 %v996, %v992
      %v1009 = vpack.c.b16 %v1001, %v997
      %v1010 = vpack.c.b16 %v1002, %v998
      %v1011 = vpack.c.b16 %v1003, %v999
      %v1012 = vpack.c.b16 %v1004, %v1000
      %v1020 = vsel %vm614, %v1008, 0
      %v1023 = vsel %vm614, %v1012, 0
      %1025 = vmatpush.bf16.msra.mxu0 %v558
      %1026 = vmatpush.bf16.msra.mxu0 %v557
      %1027 = vmatpush.bf16.msra.mxu0 %v556
      %1028 = vmatpush.bf16.msra.mxu0 %v555
      %1029 = vmatpush.bf16.msra.mxu0 %v554
      %1030 = vmatpush.bf16.msra.mxu0 %v553
      %1031 = vmatpush.bf16.msra.mxu0 %v552
      %1032 = vmatpush.bf16.msra.mxu0 %v551
      %1033 = vmatmul.bf16.gmra.mxu0 %v1005
      %v1034 = vpop.f32.mrf.mxu0
      %v1035 = vadd.f32 %v385, %v1034
      %v1036 = vpop.f32.mrf.mxu0
      %v1037 = vadd.f32 %v385, %v1036
      %1038 = vmatmul.bf16.gmra.mxu0 %v1009
      %v1039 = vpop.f32.mrf.mxu0
      %v1040 = vadd.f32 %v385, %v1039
      %v1041 = vpop.f32.mrf.mxu0
      %v1042 = vadd.f32 %v385, %v1041
      %1043 = vdwg.mxu0
      %1044 = vmatpush.bf16.msra.mxu0 %v566
      %1045 = vmatpush.bf16.msra.mxu0 %v565
      %1046 = vmatpush.bf16.msra.mxu0 %v564
      %1047 = vmatpush.bf16.msra.mxu0 %v563
      %1048 = vmatpush.bf16.msra.mxu0 %v562
      %1049 = vmatpush.bf16.msra.mxu0 %v561
      %1050 = vmatpush.bf16.msra.mxu0 %v560
      %1051 = vmatpush.bf16.msra.mxu0 %v559
      %1052 = vmatmul.bf16.gmra.mxu0 %v1006
      %v1053 = vpop.f32.mrf.mxu0
      %v1054 = vadd.f32 %v1035, %v1053
      %v1055 = vpop.f32.mrf.mxu0
      %v1056 = vadd.f32 %v1037, %v1055
      %1057 = vmatmul.bf16.gmra.mxu0 %v1010
      %v1058 = vpop.f32.mrf.mxu0
      %v1059 = vadd.f32 %v1040, %v1058
      %v1060 = vpop.f32.mrf.mxu0
      %v1061 = vadd.f32 %v1042, %v1060
      %1062 = vdwg.mxu0
      %1063 = vmatpush.bf16.msra.mxu0 %v574
      %1064 = vmatpush.bf16.msra.mxu0 %v573
      %1065 = vmatpush.bf16.msra.mxu0 %v572
      %1066 = vmatpush.bf16.msra.mxu0 %v571
      %1067 = vmatpush.bf16.msra.mxu0 %v570
      %1068 = vmatpush.bf16.msra.mxu0 %v569
      %1069 = vmatpush.bf16.msra.mxu0 %v568
      %1070 = vmatpush.bf16.msra.mxu0 %v567
      %1071 = vmatmul.bf16.gmra.mxu0 %v1007
      %v1072 = vpop.f32.mrf.mxu0
      %v1073 = vadd.f32 %v1054, %v1072
      %v1074 = vpop.f32.mrf.mxu0
      %v1075 = vadd.f32 %v1056, %v1074
      %1076 = vmatmul.bf16.gmra.mxu0 %v1011
      %v1077 = vpop.f32.mrf.mxu0
      %v1078 = vadd.f32 %v1059, %v1077
      %v1079 = vpop.f32.mrf.mxu0
      %v1080 = vadd.f32 %v1061, %v1079
      %1081 = vdwg.mxu0
      %1082 = vmatpush.bf16.msra.mxu0 %v623
      %1083 = vmatpush.bf16.msra.mxu0 %v581
      %1084 = vmatpush.bf16.msra.mxu0 %v580
      %1085 = vmatpush.bf16.msra.mxu0 %v579
      %1086 = vmatpush.bf16.msra.mxu0 %v578
      %1087 = vmatpush.bf16.msra.mxu0 %v577
      %1088 = vmatpush.bf16.msra.mxu0 %v576
      %1089 = vmatpush.bf16.msra.mxu0 %v575
      %1090 = vmatmul.bf16.gmra.mxu0 %v1020
      %v1091 = vpop.f32.mrf.mxu0
      %v1092 = vadd.f32 %v1073, %v1091
      %v1093 = vpop.f32.mrf.mxu0
      %v1094 = vadd.f32 %v1075, %v1093
      %1095 = vmatmul.bf16.gmra.mxu0 %v1023
      %v1096 = vpop.f32.mrf.mxu0
      %v1097 = vadd.f32 %v1078, %v1096
      %v1098 = vpop.f32.mrf.mxu0
      %v1099 = vadd.f32 %v1080, %v1098
      %1100 = vdwg.mxu0
      %v1101 = vmax.f32 %v1092, 0.0
      %v1102 = vmax.f32 %v1094, 0.0
      %v1103 = vmax.f32 %v1097, 0.0
      %v1104 = vmax.f32 %v1099, 0.0
      %v1105 = vmax.f32 %v969, %v1101
      %v1106 = vmax.f32 %v970, %v1102
      %v1107 = vmax.f32 %v971, %v1103
      %v1108 = vmax.f32 %v972, %v1104
      %v1109 = vmax.f32 %v837, %v1105
      %v1110 = vmax.f32 %v838, %v1106
      %v1111 = vmax.f32 %v839, %v1107
      %v1112 = vmax.f32 %v840, %v1108
      %1113 = vst [vmem:[%s311] sm:$0xff] %v1109
      %1114 = vst [vmem:[%s311 + $0x8] sm:$0xff] %v1110
      %1115 = vst [vmem:[%s311 + $0x10] sm:$0xff] %v1111
      %1116 = vst [vmem:[%s311 + $0x18] sm:$0x1] %v1112
      %p1117 = scmp.lt.s32.totalorder %s17, 1
      %s1118 = scalar_select %p1117, %s17, 1
      %s1119 = smul.addr %s1118, 4
      %s1120 = smul.addr %s1119, 8
      %s1121 = scalar_lea.vmem %s6, %s1120
      // Predicated region
      $region45: #{lenet_forward.4} parent=43 // pred_check
        %p1122 = pneg %p181
      $region46: #{lenet_forward.4} parent=43 // pred_check_branch
        %1124 = sbr.rel (%p1122) target = $region48
      $region47: #{lenet_forward.4} parent=43 // pred_region
        _
      $region48: #{lenet_forward.4} parent=43 // pred_fallthru
        _
    $region44: #{lenet_forward.4} parent=5 // pred_fallthru
      _
    %p1125 = scmp.le.s32.totalorder 2, %s12
    // Predicated region
    $region49: #{lenet_forward.4} parent=5 // pred_check
      %p1126 = pneg %p1125
    $region50: #{lenet_forward.4} parent=5 // pred_check_branch
      %1128 = sbr.rel (%p1126) target = $region52
    $region51: #{lenet_forward.4} parent=5 // pred_region
      %s1129 = ssub.s32 %s12, 2
      // Predicated region
      $region53: #{lenet_forward.4} parent=51 // pred_check
        %p1130 = pneg %p187
      $region54: #{lenet_forward.4} parent=51 // pred_check_branch
        %1132 = sbr.rel (%p1130) target = $region56
      $region55: #{lenet_forward.4} parent=51 // pred_region
        %p1133 = scmp.lt.s32.totalorder %s18, 1
        %s1134 = scalar_select %p1133, %s18, 1
        %s1135 = smul.addr %s1134, 4
        %s1136 = smul.addr %s1135, 8
        %s1137 = scalar_lea.vmem %s6, %s1136
      $region56: #{lenet_forward.4} parent=51 // pred_fallthru
        _
    $region52: #{lenet_forward.4} parent=5 // pred_fallthru
      _
  $region6: #{lenet_forward.4} parent=0 // loop_footer
    %s16 = sadd.s32 1, %s12
  $region7: #{lenet_forward.4} parent=0 // loop_footer_branch
    %11 = sbr.rel target = $region3
  $region8: #{lenet_forward.4} parent=0 // loop_exit
    _

// kernel: lenet_forward.5
$region0: #{lenet_forward.5}
  #allocation0 [shape = 'u32[]', space=smem, size = 0x4, offset = 0x4, fixed_abs, tag = 'smem constant byte address 0x4 - core index']
  #allocation1 [shape = 'u32[72,128]{1,0:T(1,128)}', space=vmem, size = 0x9000, scoped, tag = 'internal scratch']
  %s0 = inlined_call_operand.vmem [shape: bf16[2,3200], index: 0, kind: input, shape index: {}]
  %s1 = inlined_call_operand.vmem [shape: bf16[3200,500], index: 1, kind: input, shape index: {}]
  %s2 = inlined_call_operand.vmem [shape: f32[1,500], index: 2, kind: input, shape index: {}]
  %s3 = inlined_call_operand.hbm [shape: f32[2,500], index: 3, kind: output, shape index: {}]
  %s4 = sld [smem:[#allocation0]]
  $region22: #{lenet_forward.5} parent=0
    _
  %s6 = ssub.s32 1, %s4
  %s7 = scalar_select 0, %s6, %s4
  $region1: #{lenet_forward.5} parent=0
    #allocation2 [shape = 'u8[4096]{0}', space=vmem, size = 0x1000, scoped, tag = 'output window, operand 0, single buffered']
    #allocation3 [shape = 's32[1]{0}', space=sflag, size = 0x4, scoped, tag = 'scoped memory for lenet_forward.5']
    %8 = vsyncpa [#allocation3], 0
    // Predicated region
    $region2: #{lenet_forward.5} parent=1 // pred_check
      _
    $region3: #{lenet_forward.5} parent=1 // pred_check_branch
      %10 = sbr.rel (0) target = $region5
    $region4: #{lenet_forward.5} parent=1 // pred_region
      _
    $region5: #{lenet_forward.5} parent=1 // pred_fallthru
      _
    // Predicated region
    $region6: #{lenet_forward.5} parent=1 // pred_check
      _
    $region7: #{lenet_forward.5} parent=1 // pred_check_branch
      %12 = sbr.rel (0) target = $region9
    $region8: #{lenet_forward.5} parent=1 // pred_region
      _
    $region9: #{lenet_forward.5} parent=1 // pred_fallthru
      _
    // Predicated region
    $region10: #{lenet_forward.5} parent=1 // pred_check
      _
    $region11: #{lenet_forward.5} parent=1 // pred_check_branch
      %14 = sbr.rel (0) target = $region13
    $region12: #{lenet_forward.5} parent=1 // pred_region
      _
    $region13: #{lenet_forward.5} parent=1 // pred_fallthru
      _
    %v15 = vld [vmem:[%s0] sm:$0xff]
    %v16 = vld [vmem:[%s0 + $0x8] sm:$0xff]
    %v17 = vld [vmem:[%s0 + $0x10] sm:$0xff]
    %v18 = vld [vmem:[%s0 + $0x18] sm:$0x1]
    %v19 = vld [vmem:[%s1] sm:$0xff]
    %v20 = vld [vmem:[%s1 + $0x8] sm:$0xff]
    %v21 = vld [vmem:[%s1 + $0x10] sm:$0xff]
    %v22 = vld [vmem:[%s1 + $0x18] sm:$0xff]
    %v23 = vld [vmem:[%s1 + $0x20] sm:$0xff]
    %v24 = vld [vmem:[%s1 + $0x28] sm:$0xff]
    %v25 = vld [vmem:[%s1 + $0x30] sm:$0xff]
    %v26 = vld [vmem:[%s1 + $0x38] sm:$0xff]
    %v27 = vld [vmem:[%s1 + $0x40] sm:$0xff]
    %v28 = vld [vmem:[%s1 + $0x48] sm:$0xff]
    %v29 = vld [vmem:[%s1 + $0x50] sm:$0xff]
    %v30 = vld [vmem:[%s1 + $0x58] sm:$0xff]
    %v31 = vld [vmem:[%s1 + $0x60] sm:$0xff]
    %v32 = vld [vmem:[%s1 + $0x68] sm:$0xff]
    %v33 = vld [vmem:[%s1 + $0x70] sm:$0xff]
    %v34 = vld [vmem:[%s1 + $0x78] sm:$0xff]
    %v35 = vld [vmem:[%s1 + $0x80] sm:$0xff]
    %v36 = vld [vmem:[%s1 + $0x88] sm:$0xff]
    %v37 = vld [vmem:[%s1 + $0x90] sm:$0xff]
    %v38 = vld [vmem:[%s1 + $0x98] sm:$0xff]
    %v39 = vld [vmem:[%s1 + $0xa0] sm:$0xff]
    %v40 = vld [vmem:[%s1 + $0xa8] sm:$0xff]
    %v41 = vld [vmem:[%s1 + $0xb0] sm:$0xff]
    %v42 = vld [vmem:[%s1 + $0xb8] sm:$0xff]
    %v43 = vld [vmem:[%s1 + $0xc0] sm:$0xff]
    %v44 = vld [vmem:[%s1 + $0xc8] sm:$0xff]
    %v45 = vld [vmem:[%s1 + $0xd0] sm:$0xff]
    %v46 = vld [vmem:[%s1 + $0xd8] sm:$0xff]
    %v47 = vld [vmem:[%s1 + $0xe0] sm:$0xff]
    %v48 = vld [vmem:[%s1 + $0xe8] sm:$0xff]
    %v49 = vld [vmem:[%s1 + $0xf0] sm:$0xff]
    %v50 = vld [vmem:[%s1 + $0xf8] sm:$0xff]
    %v51 = vld [vmem:[%s1 + $0x100] sm:$0xff]
    %v52 = vld [vmem:[%s1 + $0x108] sm:$0xff]
    %v53 = vld [vmem:[%s1 + $0x110] sm:$0xff]
    %v54 = vld [vmem:[%s1 + $0x118] sm:$0xff]
    %v55 = vld [vmem:[%s1 + $0x120] sm:$0xff]
    %v56 = vld [vmem:[%s1 + $0x128] sm:$0xff]
    %v57 = vld [vmem:[%s1 + $0x130] sm:$0xff]
    %v58 = vld [vmem:[%s1 + $0x138] sm:$0xff]
    %v59 = vld [vmem:[%s1 + $0x140] sm:$0xff]
    %v60 = vld [vmem:[%s1 + $0x148] sm:$0xff]
    %v61 = vld [vmem:[%s1 + $0x150] sm:$0xff]
    %v62 = vld [vmem:[%s1 + $0x158] sm:$0xff]
    %v63 = vld [vmem:[%s1 + $0x160] sm:$0xff]
    %v64 = vld [vmem:[%s1 + $0x168] sm:$0xff]
    %v65 = vld [vmem:[%s1 + $0x170] sm:$0xff]
    %v66 = vld [vmem:[%s1 + $0x178] sm:$0xff]
    %v67 = vld [vmem:[%s1 + $0x180] sm:$0xff]
    %v68 = vld [vmem:[%s1 + $0x188] sm:$0xff]
    %v69 = vld [vmem:[%s1 + $0x190] sm:$0xff]
    %v70 = vld [vmem:[%s1 + $0x198] sm:$0xff]
    %v71 = vld [vmem:[%s1 + $0x1a0] sm:$0xff]
    %v72 = vld [vmem:[%s1 + $0x1a8] sm:$0xff]
    %v73 = vld [vmem:[%s1 + $0x1b0] sm:$0xff]
    %v74 = vld [vmem:[%s1 + $0x1b8] sm:$0xff]
    %v75 = vld [vmem:[%s1 + $0x1c0] sm:$0xff]
    %v76 = vld [vmem:[%s1 + $0x1c8] sm:$0xff]
    %v77 = vld [vmem:[%s1 + $0x1d0] sm:$0xff]
    %v78 = vld [vmem:[%s1 + $0x1d8] sm:$0xff]
    %v79 = vld [vmem:[%s1 + $0x1e0] sm:$0xff]
    %v80 = vld [vmem:[%s1 + $0x1e8] sm:$0xff]
    %v81 = vld [vmem:[%s1 + $0x1f0] sm:$0xff]
    %v82 = vld [vmem:[%s1 + $0x1f8] sm:$0xff]
    %v83 = vld [vmem:[%s1 + $0x200] sm:$0xff]
    %v84 = vld [vmem:[%s1 + $0x208] sm:$0xff]
    %v85 = vld [vmem:[%s1 + $0x210] sm:$0xff]
    %v86 = vld [vmem:[%s1 + $0x218] sm:$0xff]
    %v87 = vld [vmem:[%s1 + $0x220] sm:$0xff]
    %v88 = vld [vmem:[%s1 + $0x228] sm:$0xff]
    %v89 = vld [vmem:[%s1 + $0x230] sm:$0xff]
    %v90 = vld [vmem:[%s1 + $0x238] sm:$0xff]
    %v91 = vld [vmem:[%s1 + $0x240] sm:$0xff]
    %v92 = vld [vmem:[%s1 + $0x248] sm:$0xff]
    %v93 = vld [vmem:[%s1 + $0x250] sm:$0xff]
    %v94 = vld [vmem:[%s1 + $0x258] sm:$0xff]
    %v95 = vld [vmem:[%s1 + $0x260] sm:$0xff]
    %v96 = vld [vmem:[%s1 + $0x268] sm:$0xff]
    %v97 = vld [vmem:[%s1 + $0x270] sm:$0xff]
    %v98 = vld [vmem:[%s1 + $0x278] sm:$0xff]
    %v99 = vld [vmem:[%s1 + $0x280] sm:$0xff]
    %v100 = vld [vmem:[%s1 + $0x288] sm:$0xff]
    %v101 = vld [vmem:[%s1 + $0x290] sm:$0xff]
    %v102 = vld [vmem:[%s1 + $0x298] sm:$0xff]
    %v103 = vld [vmem:[%s1 + $0x2a0] sm:$0xff]
    %v104 = vld [vmem:[%s1 + $0x2a8] sm:$0xff]
    %v105 = vld [vmem:[%s1 + $0x2b0] sm:$0xff]
    %v106 = vld [vmem:[%s1 + $0x2b8] sm:$0xff]
    %v107 = vld [vmem:[%s1 + $0x2c0] sm:$0xff]
    %v108 = vld [vmem:[%s1 + $0x2c8] sm:$0xff]
    %v109 = vld [vmem:[%s1 + $0x2d0] sm:$0xff]
    %v110 = vld [vmem:[%s1 + $0x2d8] sm:$0xff]
    %v111 = vld [vmem:[%s1 + $0x2e0] sm:$0xff]
    %v112 = vld [vmem:[%s1 + $0x2e8] sm:$0xff]
    %v113 = vld [vmem:[%s1 + $0x2f0] sm:$0xff]
    %v114 = vld [vmem:[%s1 + $0x2f8] sm:$0xff]
    %v115 = vld [vmem:[%s1 + $0x300] sm:$0xff]
    %v116 = vld [vmem:[%s1 + $0x308] sm:$0xff]
    %v117 = vld [vmem:[%s1 + $0x310] sm:$0xff]
    %v118 = vld [vmem:[%s1 + $0x318] sm:$0xff]
    %v119 = vld [vmem:[%s1 + $0x320] sm:$0xff]
    %v120 = vld [vmem:[%s1 + $0x328] sm:$0xff]
    %v121 = vld [vmem:[%s1 + $0x330] sm:$0xff]
    %v122 = vld [vmem:[%s1 + $0x338] sm:$0xff]
    %v123 = vld [vmem:[%s1 + $0x340] sm:$0xff]
    %v124 = vld [vmem:[%s1 + $0x348] sm:$0xff]
    %v125 = vld [vmem:[%s1 + $0x350] sm:$0xff]
    %v126 = vld [vmem:[%s1 + $0x358] sm:$0xff]
    %v127 = vld [vmem:[%s1 + $0x360] sm:$0xff]
    %v128 = vld [vmem:[%s1 + $0x368] sm:$0xff]
    %v129 = vld [vmem:[%s1 + $0x370] sm:$0xff]
    %v130 = vld [vmem:[%s1 + $0x378] sm:$0xff]
    %v131 = vld [vmem:[%s1 + $0x380] sm:$0xff]
    %v132 = vld [vmem:[%s1 + $0x388] sm:$0xff]
    %v133 = vld [vmem:[%s1 + $0x390] sm:$0xff]
    %v134 = vld [vmem:[%s1 + $0x398] sm:$0xff]
    %v135 = vld [vmem:[%s1 + $0x3a0] sm:$0xff]
    %v136 = vld [vmem:[%s1 + $0x3a8] sm:$0xff]
    %v137 = vld [vmem:[%s1 + $0x3b0] sm:$0xff]
    %v138 = vld [vmem:[%s1 + $0x3b8] sm:$0xff]
    %v139 = vld [vmem:[%s1 + $0x3c0] sm:$0xff]
    %v140 = vld [vmem:[%s1 + $0x3c8] sm:$0xff]
    %v141 = vld [vmem:[%s1 + $0x3d0] sm:$0xff]
    %v142 = vld [vmem:[%s1 + $0x3d8] sm:$0xff]
    %v143 = vld [vmem:[%s1 + $0x3e0] sm:$0xff]
    %v144 = vld [vmem:[%s1 + $0x3e8] sm:$0xff]
    %v145 = vld [vmem:[%s1 + $0x3f0] sm:$0xff]
    %v146 = vld [vmem:[%s1 + $0x3f8] sm:$0xff]
    %v147 = vld [vmem:[%s1 + $0x400] sm:$0xff]
    %v148 = vld [vmem:[%s1 + $0x408] sm:$0xff]
    %v149 = vld [vmem:[%s1 + $0x410] sm:$0xff]
    %v150 = vld [vmem:[%s1 + $0x418] sm:$0xff]
    %v151 = vld [vmem:[%s1 + $0x420] sm:$0xff]
    %v152 = vld [vmem:[%s1 + $0x428] sm:$0xff]
    %v153 = vld [vmem:[%s1 + $0x430] sm:$0xff]
    %v154 = vld [vmem:[%s1 + $0x438] sm:$0xff]
    %v155 = vld [vmem:[%s1 + $0x440] sm:$0xff]
    %v156 = vld [vmem:[%s1 + $0x448] sm:$0xff]
    %v157 = vld [vmem:[%s1 + $0x450] sm:$0xff]
    %v158 = vld [vmem:[%s1 + $0x458] sm:$0xff]
    %v159 = vld [vmem:[%s1 + $0x460] sm:$0xff]
    %v160 = vld [vmem:[%s1 + $0x468] sm:$0xff]
    %v161 = vld [vmem:[%s1 + $0x470] sm:$0xff]
    %v162 = vld [vmem:[%s1 + $0x478] sm:$0xff]
    %v163 = vld [vmem:[%s1 + $0x480] sm:$0xff]
    %v164 = vld [vmem:[%s1 + $0x488] sm:$0xff]
    %v165 = vld [vmem:[%s1 + $0x490] sm:$0xff]
    %v166 = vld [vmem:[%s1 + $0x498] sm:$0xff]
    %v167 = vld [vmem:[%s1 + $0x4a0] sm:$0xff]
    %v168 = vld [vmem:[%s1 + $0x4a8] sm:$0xff]
    %v169 = vld [vmem:[%s1 + $0x4b0] sm:$0xff]
    %v170 = vld [vmem:[%s1 + $0x4b8] sm:$0xff]
    %v171 = vld [vmem:[%s1 + $0x4c0] sm:$0xff]
    %v172 = vld [vmem:[%s1 + $0x4c8] sm:$0xff]
    %v173 = vld [vmem:[%s1 + $0x4d0] sm:$0xff]
    %v174 = vld [vmem:[%s1 + $0x4d8] sm:$0xff]
    %v175 = vld [vmem:[%s1 + $0x4e0] sm:$0xff]
    %v176 = vld [vmem:[%s1 + $0x4e8] sm:$0xff]
    %v177 = vld [vmem:[%s1 + $0x4f0] sm:$0xff]
    %v178 = vld [vmem:[%s1 + $0x4f8] sm:$0xff]
    %v179 = vld [vmem:[%s1 + $0x500] sm:$0xff]
    %v180 = vld [vmem:[%s1 + $0x508] sm:$0xff]
    %v181 = vld [vmem:[%s1 + $0x510] sm:$0xff]
    %v182 = vld [vmem:[%s1 + $0x518] sm:$0xff]
    %v183 = vld [vmem:[%s1 + $0x520] sm:$0xff]
    %v184 = vld [vmem:[%s1 + $0x528] sm:$0xff]
    %v185 = vld [vmem:[%s1 + $0x530] sm:$0xff]
    %v186 = vld [vmem:[%s1 + $0x538] sm:$0xff]
    %v187 = vld [vmem:[%s1 + $0x540] sm:$0xff]
    %v188 = vld [vmem:[%s1 + $0x548] sm:$0xff]
    %v189 = vld [vmem:[%s1 + $0x550] sm:$0xff]
    %v190 = vld [vmem:[%s1 + $0x558] sm:$0xff]
    %v191 = vld [vmem:[%s1 + $0x560] sm:$0xff]
    %v192 = vld [vmem:[%s1 + $0x568] sm:$0xff]
    %v193 = vld [vmem:[%s1 + $0x570] sm:$0xff]
    %v194 = vld [vmem:[%s1 + $0x578] sm:$0xff]
    %v195 = vld [vmem:[%s1 + $0x580] sm:$0xff]
    %v196 = vld [vmem:[%s1 + $0x588] sm:$0xff]
    %v197 = vld [vmem:[%s1 + $0x590] sm:$0xff]
    %v198 = vld [vmem:[%s1 + $0x598] sm:$0xff]
    %v199 = vld [vmem:[%s1 + $0x5a0] sm:$0xff]
    %v200 = vld [vmem:[%s1 + $0x5a8] sm:$0xff]
    %v201 = vld [vmem:[%s1 + $0x5b0] sm:$0xff]
    %v202 = vld [vmem:[%s1 + $0x5b8] sm:$0xff]
    %v203 = vld [vmem:[%s1 + $0x5c0] sm:$0xff]
    %v204 = vld [vmem:[%s1 + $0x5c8] sm:$0xff]
    %v205 = vld [vmem:[%s1 + $0x5d0] sm:$0xff]
    %v206 = vld [vmem:[%s1 + $0x5d8] sm:$0xff]
    %v207 = vld [vmem:[%s1 + $0x5e0] sm:$0xff]
    %v208 = vld [vmem:[%s1 + $0x5e8] sm:$0xff]
    %v209 = vld [vmem:[%s1 + $0x5f0] sm:$0xff]
    %v210 = vld [vmem:[%s1 + $0x5f8] sm:$0xff]
    %v211 = vld [vmem:[%s1 + $0x600] sm:$0xff]
    %v212 = vld [vmem:[%s1 + $0x608] sm:$0xff]
    %v213 = vld [vmem:[%s1 + $0x610] sm:$0xff]
    %v214 = vld [vmem:[%s1 + $0x618] sm:$0xff]
    %v215 = vld [vmem:[%s1 + $0x620] sm:$0xff]
    %v216 = vld [vmem:[%s1 + $0x628] sm:$0xff]
    %v217 = vld [vmem:[%s1 + $0x630] sm:$0xff]
    %v218 = vld [vmem:[%s1 + $0x638] sm:$0xff]
    %v219 = vld [vmem:[%s1 + $0x640] sm:$0xff]
    %v220 = vld [vmem:[%s1 + $0x648] sm:$0xff]
    %v221 = vld [vmem:[%s1 + $0x650] sm:$0xff]
    %v222 = vld [vmem:[%s1 + $0x658] sm:$0xff]
    %v223 = vld [vmem:[%s1 + $0x660] sm:$0xff]
    %v224 = vld [vmem:[%s1 + $0x668] sm:$0xff]
    %v225 = vld [vmem:[%s1 + $0x670] sm:$0xff]
    %v226 = vld [vmem:[%s1 + $0x678] sm:$0xff]
    %v227 = vld [vmem:[%s1 + $0x680] sm:$0xff]
    %v228 = vld [vmem:[%s1 + $0x688] sm:$0xff]
    %v229 = vld [vmem:[%s1 + $0x690] sm:$0xff]
    %v230 = vld [vmem:[%s1 + $0x698] sm:$0xff]
    %v231 = vld [vmem:[%s1 + $0x6a0] sm:$0xff]
    %v232 = vld [vmem:[%s1 + $0x6a8] sm:$0xff]
    %v233 = vld [vmem:[%s1 + $0x6b0] sm:$0xff]
    %v234 = vld [vmem:[%s1 + $0x6b8] sm:$0xff]
    %v235 = vld [vmem:[%s1 + $0x6c0] sm:$0xff]
    %v236 = vld [vmem:[%s1 + $0x6c8] sm:$0xff]
    %v237 = vld [vmem:[%s1 + $0x6d0] sm:$0xff]
    %v238 = vld [vmem:[%s1 + $0x6d8] sm:$0xff]
    %v239 = vld [vmem:[%s1 + $0x6e0] sm:$0xff]
    %v240 = vld [vmem:[%s1 + $0x6e8] sm:$0xff]
    %v241 = vld [vmem:[%s1 + $0x6f0] sm:$0xff]
    %v242 = vld [vmem:[%s1 + $0x6f8] sm:$0xff]
    %v243 = vld [vmem:[%s1 + $0x700] sm:$0xff]
    %v244 = vld [vmem:[%s1 + $0x708] sm:$0xff]
    %v245 = vld [vmem:[%s1 + $0x710] sm:$0xff]
    %v246 = vld [vmem:[%s1 + $0x718] sm:$0xff]
    %v247 = vld [vmem:[%s1 + $0x720] sm:$0xff]
    %v248 = vld [vmem:[%s1 + $0x728] sm:$0xff]
    %v249 = vld [vmem:[%s1 + $0x730] sm:$0xff]
    %v250 = vld [vmem:[%s1 + $0x738] sm:$0xff]
    %v251 = vld [vmem:[%s1 + $0x740] sm:$0xff]
    %v252 = vld [vmem:[%s1 + $0x748] sm:$0xff]
    %v253 = vld [vmem:[%s1 + $0x750] sm:$0xff]
    %v254 = vld [vmem:[%s1 + $0x758] sm:$0xff]
    %v255 = vld [vmem:[%s1 + $0x760] sm:$0xff]
    %v256 = vld [vmem:[%s1 + $0x768] sm:$0xff]
    %v257 = vld [vmem:[%s1 + $0x770] sm:$0xff]
    %v258 = vld [vmem:[%s1 + $0x778] sm:$0xff]
    %v259 = vld [vmem:[%s1 + $0x780] sm:$0xff]
    %v260 = vld [vmem:[%s1 + $0x788] sm:$0xff]
    %v261 = vld [vmem:[%s1 + $0x790] sm:$0xff]
    %v262 = vld [vmem:[%s1 + $0x798] sm:$0xff]
    %v263 = vld [vmem:[%s1 + $0x7a0] sm:$0xff]
    %v264 = vld [vmem:[%s1 + $0x7a8] sm:$0xff]
    %v265 = vld [vmem:[%s1 + $0x7b0] sm:$0xff]
    %v266 = vld [vmem:[%s1 + $0x7b8] sm:$0xff]
    %v267 = vld [vmem:[%s1 + $0x7c0] sm:$0xff]
    %v268 = vld [vmem:[%s1 + $0x7c8] sm:$0xff]
    %v269 = vld [vmem:[%s1 + $0x7d0] sm:$0xff]
    %v270 = vld [vmem:[%s1 + $0x7d8] sm:$0xff]
    %v271 = vld [vmem:[%s1 + $0x7e0] sm:$0xff]
    %v272 = vld [vmem:[%s1 + $0x7e8] sm:$0xff]
    %v273 = vld [vmem:[%s1 + $0x7f0] sm:$0xff]
    %v274 = vld [vmem:[%s1 + $0x7f8] sm:$0xff]
    %v275 = vld [vmem:[%s1 + $0x800] sm:$0xff]
    %v276 = vld [vmem:[%s1 + $0x808] sm:$0xff]
    %v277 = vld [vmem:[%s1 + $0x810] sm:$0xff]
    %v278 = vld [vmem:[%s1 + $0x818] sm:$0xff]
    %v279 = vld [vmem:[%s1 + $0x820] sm:$0xff]
    %v280 = vld [vmem:[%s1 + $0x828] sm:$0xff]
    %v281 = vld [vmem:[%s1 + $0x830] sm:$0xff]
    %v282 = vld [vmem:[%s1 + $0x838] sm:$0xff]
    %v283 = vld [vmem:[%s1 + $0x840] sm:$0xff]
    %v284 = vld [vmem:[%s1 + $0x848] sm:$0xff]
    %v285 = vld [vmem:[%s1 + $0x850] sm:$0xff]
    %v286 = vld [vmem:[%s1 + $0x858] sm:$0xff]
    %v287 = vld [vmem:[%s1 + $0x860] sm:$0xff]
    %v288 = vld [vmem:[%s1 + $0x868] sm:$0xff]
    %v289 = vld [vmem:[%s1 + $0x870] sm:$0xff]
    %v290 = vld [vmem:[%s1 + $0x878] sm:$0xff]
    %v291 = vld [vmem:[%s1 + $0x880] sm:$0xff]
    %v292 = vld [vmem:[%s1 + $0x888] sm:$0xff]
    %v293 = vld [vmem:[%s1 + $0x890] sm:$0xff]
    %v294 = vld [vmem:[%s1 + $0x898] sm:$0xff]
    %v295 = vld [vmem:[%s1 + $0x8a0] sm:$0xff]
    %v296 = vld [vmem:[%s1 + $0x8a8] sm:$0xff]
    %v297 = vld [vmem:[%s1 + $0x8b0] sm:$0xff]
    %v298 = vld [vmem:[%s1 + $0x8b8] sm:$0xff]
    %v299 = vld [vmem:[%s1 + $0x8c0] sm:$0xff]
    %v300 = vld [vmem:[%s1 + $0x8c8] sm:$0xff]
    %v301 = vld [vmem:[%s1 + $0x8d0] sm:$0xff]
    %v302 = vld [vmem:[%s1 + $0x8d8] sm:$0xff]
    %v303 = vld [vmem:[%s1 + $0x8e0] sm:$0xff]
    %v304 = vld [vmem:[%s1 + $0x8e8] sm:$0xff]
    %v305 = vld [vmem:[%s1 + $0x8f0] sm:$0xff]
    %v306 = vld [vmem:[%s1 + $0x8f8] sm:$0xff]
    %v307 = vld [vmem:[%s1 + $0x900] sm:$0xff]
    %v308 = vld [vmem:[%s1 + $0x908] sm:$0xff]
    %v309 = vld [vmem:[%s1 + $0x910] sm:$0xff]
    %v310 = vld [vmem:[%s1 + $0x918] sm:$0xff]
    %v311 = vld [vmem:[%s1 + $0x920] sm:$0xff]
    %v312 = vld [vmem:[%s1 + $0x928] sm:$0xff]
    %v313 = vld [vmem:[%s1 + $0x930] sm:$0xff]
    %v314 = vld [vmem:[%s1 + $0x938] sm:$0xff]
    %v315 = vld [vmem:[%s1 + $0x940] sm:$0xff]
    %v316 = vld [vmem:[%s1 + $0x948] sm:$0xff]
    %v317 = vld [vmem:[%s1 + $0x950] sm:$0xff]
    %v318 = vld [vmem:[%s1 + $0x958] sm:$0xff]
    %v319 = vld [vmem:[%s1 + $0x960] sm:$0xff]
    %v320 = vld [vmem:[%s1 + $0x968] sm:$0xff]
    %v321 = vld [vmem:[%s1 + $0x970] sm:$0xff]
    %v322 = vld [vmem:[%s1 + $0x978] sm:$0xff]
    %v323 = vld [vmem:[%s1 + $0x980] sm:$0xff]
    %v324 = vld [vmem:[%s1 + $0x988] sm:$0xff]
    %v325 = vld [vmem:[%s1 + $0x990] sm:$0xff]
    %v326 = vld [vmem:[%s1 + $0x998] sm:$0xff]
    %v327 = vld [vmem:[%s1 + $0x9a0] sm:$0xff]
    %v328 = vld [vmem:[%s1 + $0x9a8] sm:$0xff]
    %v329 = vld [vmem:[%s1 + $0x9b0] sm:$0xff]
    %v330 = vld [vmem:[%s1 + $0x9b8] sm:$0xff]
    %v331 = vld [vmem:[%s1 + $0x9c0] sm:$0xff]
    %v332 = vld [vmem:[%s1 + $0x9c8] sm:$0xff]
    %v333 = vld [vmem:[%s1 + $0x9d0] sm:$0xff]
    %v334 = vld [vmem:[%s1 + $0x9d8] sm:$0xff]
    %v335 = vld [vmem:[%s1 + $0x9e0] sm:$0xff]
    %v336 = vld [vmem:[%s1 + $0x9e8] sm:$0xff]
    %v337 = vld [vmem:[%s1 + $0x9f0] sm:$0xff]
    %v338 = vld [vmem:[%s1 + $0x9f8] sm:$0xff]
    %v339 = vld [vmem:[%s1 + $0xa00] sm:$0xff]
    %v340 = vld [vmem:[%s1 + $0xa08] sm:$0xff]
    %v341 = vld [vmem:[%s1 + $0xa10] sm:$0xff]
    %v342 = vld [vmem:[%s1 + $0xa18] sm:$0xff]
    %v343 = vld [vmem:[%s1 + $0xa20] sm:$0xff]
    %v344 = vld [vmem:[%s1 + $0xa28] sm:$0xff]
    %v345 = vld [vmem:[%s1 + $0xa30] sm:$0xff]
    %v346 = vld [vmem:[%s1 + $0xa38] sm:$0xff]
    %v347 = vld [vmem:[%s1 + $0xa40] sm:$0xff]
    %v348 = vld [vmem:[%s1 + $0xa48] sm:$0xff]
    %v349 = vld [vmem:[%s1 + $0xa50] sm:$0xff]
    %v350 = vld [vmem:[%s1 + $0xa58] sm:$0xff]
    %v351 = vld [vmem:[%s1 + $0xa60] sm:$0xff]
    %v352 = vld [vmem:[%s1 + $0xa68] sm:$0xff]
    %v353 = vld [vmem:[%s1 + $0xa70] sm:$0xff]
    %v354 = vld [vmem:[%s1 + $0xa78] sm:$0xff]
    %v355 = vld [vmem:[%s1 + $0xa80] sm:$0xff]
    %v356 = vld [vmem:[%s1 + $0xa88] sm:$0xff]
    %v357 = vld [vmem:[%s1 + $0xa90] sm:$0xff]
    %v358 = vld [vmem:[%s1 + $0xa98] sm:$0xff]
    %v359 = vld [vmem:[%s1 + $0xaa0] sm:$0xff]
    %v360 = vld [vmem:[%s1 + $0xaa8] sm:$0xff]
    %v361 = vld [vmem:[%s1 + $0xab0] sm:$0xff]
    %v362 = vld [vmem:[%s1 + $0xab8] sm:$0xff]
    %v363 = vld [vmem:[%s1 + $0xac0] sm:$0xff]
    %v364 = vld [vmem:[%s1 + $0xac8] sm:$0xff]
    %v365 = vld [vmem:[%s1 + $0xad0] sm:$0xff]
    %v366 = vld [vmem:[%s1 + $0xad8] sm:$0xff]
    %v367 = vld [vmem:[%s1 + $0xae0] sm:$0xff]
    %v368 = vld [vmem:[%s1 + $0xae8] sm:$0xff]
    %v369 = vld [vmem:[%s1 + $0xaf0] sm:$0xff]
    %v370 = vld [vmem:[%s1 + $0xaf8] sm:$0xff]
    %v371 = vld [vmem:[%s1 + $0xb00] sm:$0xff]
    %v372 = vld [vmem:[%s1 + $0xb08] sm:$0xff]
    %v373 = vld [vmem:[%s1 + $0xb10] sm:$0xff]
    %v374 = vld [vmem:[%s1 + $0xb18] sm:$0xff]
    %v375 = vld [vmem:[%s1 + $0xb20] sm:$0xff]
    %v376 = vld [vmem:[%s1 + $0xb28] sm:$0xff]
    %v377 = vld [vmem:[%s1 + $0xb30] sm:$0xff]
    %v378 = vld [vmem:[%s1 + $0xb38] sm:$0xff]
    %v379 = vld [vmem:[%s1 + $0xb40] sm:$0xff]
    %v380 = vld [vmem:[%s1 + $0xb48] sm:$0xff]
    %v381 = vld [vmem:[%s1 + $0xb50] sm:$0xff]
    %v382 = vld [vmem:[%s1 + $0xb58] sm:$0xff]
    %v383 = vld [vmem:[%s1 + $0xb60] sm:$0xff]
    %v384 = vld [vmem:[%s1 + $0xb68] sm:$0xff]
    %v385 = vld [vmem:[%s1 + $0xb70] sm:$0xff]
    %v386 = vld [vmem:[%s1 + $0xb78] sm:$0xff]
    %v387 = vld [vmem:[%s1 + $0xb80] sm:$0xff]
    %v388 = vld [vmem:[%s1 + $0xb88] sm:$0xff]
    %v389 = vld [vmem:[%s1 + $0xb90] sm:$0xff]
    %v390 = vld [vmem:[%s1 + $0xb98] sm:$0xff]
    %v391 = vld [vmem:[%s1 + $0xba0] sm:$0xff]
    %v392 = vld [vmem:[%s1 + $0xba8] sm:$0xff]
    %v393 = vld [vmem:[%s1 + $0xbb0] sm:$0xff]
    %v394 = vld [vmem:[%s1 + $0xbb8] sm:$0xff]
    %v395 = vld [vmem:[%s1 + $0xbc0] sm:$0xff]
    %v396 = vld [vmem:[%s1 + $0xbc8] sm:$0xff]
    %v397 = vld [vmem:[%s1 + $0xbd0] sm:$0xff]
    %v398 = vld [vmem:[%s1 + $0xbd8] sm:$0xff]
    %v399 = vld [vmem:[%s1 + $0xbe0] sm:$0xff]
    %v400 = vld [vmem:[%s1 + $0xbe8] sm:$0xff]
    %v401 = vld [vmem:[%s1 + $0xbf0] sm:$0xff]
    %v402 = vld [vmem:[%s1 + $0xbf8] sm:$0xff]
    %v403 = vld [vmem:[%s1 + $0xc00] sm:$0xff]
    %v404 = vld [vmem:[%s1 + $0xc08] sm:$0xff]
    %v405 = vld [vmem:[%s1 + $0xc10] sm:$0xff]
    %v406 = vld [vmem:[%s1 + $0xc18] sm:$0xff]
    %v407 = vld [vmem:[%s1 + $0xc20] sm:$0xff]
    %v408 = vld [vmem:[%s1 + $0xc28] sm:$0xff]
    %v409 = vld [vmem:[%s1 + $0xc30] sm:$0xff]
    %v410 = vld [vmem:[%s1 + $0xc38] sm:$0xff]
    %v411 = vld [vmem:[%s1 + $0xc40] sm:$0xff]
    %v412 = vld [vmem:[%s1 + $0xc48] sm:$0xff]
    %v413 = vld [vmem:[%s1 + $0xc50] sm:$0xff]
    %v414 = vld [vmem:[%s1 + $0xc58] sm:$0xff]
    %v415 = vld [vmem:[%s1 + $0xc60] sm:$0xff]
    %v416 = vld [vmem:[%s1 + $0xc68] sm:$0xff]
    %v417 = vld [vmem:[%s1 + $0xc70] sm:$0xff]
    %v418 = vld [vmem:[%s1 + $0xc78] sm:$0xff]
    %v419 = vld [vmem:[%s1 + $0xc80] sm:$0xff]
    %v420 = vld [vmem:[%s1 + $0xc88] sm:$0xff]
    %v421 = vld [vmem:[%s1 + $0xc90] sm:$0xff]
    %v422 = vld [vmem:[%s1 + $0xc98] sm:$0xff]
    %v423 = vld [vmem:[%s1 + $0xca0] sm:$0xff]
    %v424 = vld [vmem:[%s1 + $0xca8] sm:$0xff]
    %v425 = vld [vmem:[%s1 + $0xcb0] sm:$0xff]
    %v426 = vld [vmem:[%s1 + $0xcb8] sm:$0xff]
    %v427 = vld [vmem:[%s1 + $0xcc0] sm:$0xff]
    %v428 = vld [vmem:[%s1 + $0xcc8] sm:$0xff]
    %v429 = vld [vmem:[%s1 + $0xcd0] sm:$0xff]
    %v430 = vld [vmem:[%s1 + $0xcd8] sm:$0xff]
    %v431 = vld [vmem:[%s1 + $0xce0] sm:$0xff]
    %v432 = vld [vmem:[%s1 + $0xce8] sm:$0xff]
    %v433 = vld [vmem:[%s1 + $0xcf0] sm:$0xff]
    %v434 = vld [vmem:[%s1 + $0xcf8] sm:$0xff]
    %v435 = vld [vmem:[%s1 + $0xd00] sm:$0xff]
    %v436 = vld [vmem:[%s1 + $0xd08] sm:$0xff]
    %v437 = vld [vmem:[%s1 + $0xd10] sm:$0xff]
    %v438 = vld [vmem:[%s1 + $0xd18] sm:$0xff]
    %v439 = vld [vmem:[%s1 + $0xd20] sm:$0xff]
    %v440 = vld [vmem:[%s1 + $0xd28] sm:$0xff]
    %v441 = vld [vmem:[%s1 + $0xd30] sm:$0xff]
    %v442 = vld [vmem:[%s1 + $0xd38] sm:$0xff]
    %v443 = vld [vmem:[%s1 + $0xd40] sm:$0xff]
    %v444 = vld [vmem:[%s1 + $0xd48] sm:$0xff]
    %v445 = vld [vmem:[%s1 + $0xd50] sm:$0xff]
    %v446 = vld [vmem:[%s1 + $0xd58] sm:$0xff]
    %v447 = vld [vmem:[%s1 + $0xd60] sm:$0xff]
    %v448 = vld [vmem:[%s1 + $0xd68] sm:$0xff]
    %v449 = vld [vmem:[%s1 + $0xd70] sm:$0xff]
    %v450 = vld [vmem:[%s1 + $0xd78] sm:$0xff]
    %v451 = vld [vmem:[%s1 + $0xd80] sm:$0xff]
    %v452 = vld [vmem:[%s1 + $0xd88] sm:$0xff]
    %v453 = vld [vmem:[%s1 + $0xd90] sm:$0xff]
    %v454 = vld [vmem:[%s1 + $0xd98] sm:$0xff]
    %v455 = vld [vmem:[%s1 + $0xda0] sm:$0xff]
    %v456 = vld [vmem:[%s1 + $0xda8] sm:$0xff]
    %v457 = vld [vmem:[%s1 + $0xdb0] sm:$0xff]
    %v458 = vld [vmem:[%s1 + $0xdb8] sm:$0xff]
    %v459 = vld [vmem:[%s1 + $0xdc0] sm:$0xff]
    %v460 = vld [vmem:[%s1 + $0xdc8] sm:$0xff]
    %v461 = vld [vmem:[%s1 + $0xdd0] sm:$0xff]
    %v462 = vld [vmem:[%s1 + $0xdd8] sm:$0xff]
    %v463 = vld [vmem:[%s1 + $0xde0] sm:$0xff]
    %v464 = vld [vmem:[%s1 + $0xde8] sm:$0xff]
    %v465 = vld [vmem:[%s1 + $0xdf0] sm:$0xff]
    %v466 = vld [vmem:[%s1 + $0xdf8] sm:$0xff]
    %v467 = vld [vmem:[%s1 + $0xe00] sm:$0xff]
    %v468 = vld [vmem:[%s1 + $0xe08] sm:$0xff]
    %v469 = vld [vmem:[%s1 + $0xe10] sm:$0xff]
    %v470 = vld [vmem:[%s1 + $0xe18] sm:$0xff]
    %v471 = vld [vmem:[%s1 + $0xe20] sm:$0xff]
    %v472 = vld [vmem:[%s1 + $0xe28] sm:$0xff]
    %v473 = vld [vmem:[%s1 + $0xe30] sm:$0xff]
    %v474 = vld [vmem:[%s1 + $0xe38] sm:$0xff]
    %v475 = vld [vmem:[%s1 + $0xe40] sm:$0xff]
    %v476 = vld [vmem:[%s1 + $0xe48] sm:$0xff]
    %v477 = vld [vmem:[%s1 + $0xe50] sm:$0xff]
    %v478 = vld [vmem:[%s1 + $0xe58] sm:$0xff]
    %v479 = vld [vmem:[%s1 + $0xe60] sm:$0xff]
    %v480 = vld [vmem:[%s1 + $0xe68] sm:$0xff]
    %v481 = vld [vmem:[%s1 + $0xe70] sm:$0xff]
    %v482 = vld [vmem:[%s1 + $0xe78] sm:$0xff]
    %v483 = vld [vmem:[%s1 + $0xe80] sm:$0xff]
    %v484 = vld [vmem:[%s1 + $0xe88] sm:$0xff]
    %v485 = vld [vmem:[%s1 + $0xe90] sm:$0xff]
    %v486 = vld [vmem:[%s1 + $0xe98] sm:$0xff]
    %v487 = vld [vmem:[%s1 + $0xea0] sm:$0xff]
    %v488 = vld [vmem:[%s1 + $0xea8] sm:$0xff]
    %v489 = vld [vmem:[%s1 + $0xeb0] sm:$0xff]
    %v490 = vld [vmem:[%s1 + $0xeb8] sm:$0xff]
    %v491 = vld [vmem:[%s1 + $0xec0] sm:$0xff]
    %v492 = vld [vmem:[%s1 + $0xec8] sm:$0xff]
    %v493 = vld [vmem:[%s1 + $0xed0] sm:$0xff]
    %v494 = vld [vmem:[%s1 + $0xed8] sm:$0xff]
    %v495 = vld [vmem:[%s1 + $0xee0] sm:$0xff]
    %v496 = vld [vmem:[%s1 + $0xee8] sm:$0xff]
    %v497 = vld [vmem:[%s1 + $0xef0] sm:$0xff]
    %v498 = vld [vmem:[%s1 + $0xef8] sm:$0xff]
    %v499 = vld [vmem:[%s1 + $0xf00] sm:$0xff]
    %v500 = vld [vmem:[%s1 + $0xf08] sm:$0xff]
    %v501 = vld [vmem:[%s1 + $0xf10] sm:$0xff]
    %v502 = vld [vmem:[%s1 + $0xf18] sm:$0xff]
    %v503 = vld [vmem:[%s1 + $0xf20] sm:$0xff]
    %v504 = vld [vmem:[%s1 + $0xf28] sm:$0xff]
    %v505 = vld [vmem:[%s1 + $0xf30] sm:$0xff]
    %v506 = vld [vmem:[%s1 + $0xf38] sm:$0xff]
    %v507 = vld [vmem:[%s1 + $0xf40] sm:$0xff]
    %v508 = vld [vmem:[%s1 + $0xf48] sm:$0xff]
    %v509 = vld [vmem:[%s1 + $0xf50] sm:$0xff]
    %v510 = vld [vmem:[%s1 + $0xf58] sm:$0xff]
    %v511 = vld [vmem:[%s1 + $0xf60] sm:$0xff]
    %v512 = vld [vmem:[%s1 + $0xf68] sm:$0xff]
    %v513 = vld [vmem:[%s1 + $0xf70] sm:$0xff]
    %v514 = vld [vmem:[%s1 + $0xf78] sm:$0xff]
    %v515 = vld [vmem:[%s1 + $0xf80] sm:$0xff]
    %v516 = vld [vmem:[%s1 + $0xf88] sm:$0xff]
    %v517 = vld [vmem:[%s1 + $0xf90] sm:$0xff]
    %v518 = vld [vmem:[%s1 + $0xf98] sm:$0xff]
    %v519 = vld [vmem:[%s1 + $0xfa0] sm:$0xff]
    %v520 = vld [vmem:[%s1 + $0xfa8] sm:$0xff]
    %v521 = vld [vmem:[%s1 + $0xfb0] sm:$0xff]
    %v522 = vld [vmem:[%s1 + $0xfb8] sm:$0xff]
    %v523 = vld [vmem:[%s1 + $0xfc0] sm:$0xff]
    %v524 = vld [vmem:[%s1 + $0xfc8] sm:$0xff]
    %v525 = vld [vmem:[%s1 + $0xfd0] sm:$0xff]
    %v526 = vld [vmem:[%s1 + $0xfd8] sm:$0xff]
    %v527 = vld [vmem:[%s1 + $0xfe0] sm:$0xff]
    %v528 = vld [vmem:[%s1 + $0xfe8] sm:$0xff]
    %v529 = vld [vmem:[%s1 + $0xff0] sm:$0xff]
    %v530 = vld [vmem:[%s1 + $0xff8] sm:$0xff]
    %v531 = vld [vmem:[%s1 + $0x1000] sm:$0xff]
    %v532 = vld [vmem:[%s1 + $0x1008] sm:$0xff]
    %v533 = vld [vmem:[%s1 + $0x1010] sm:$0xff]
    %v534 = vld [vmem:[%s1 + $0x1018] sm:$0xff]
    %v535 = vld [vmem:[%s1 + $0x1020] sm:$0xff]
    %v536 = vld [vmem:[%s1 + $0x1028] sm:$0xff]
    %v537 = vld [vmem:[%s1 + $0x1030] sm:$0xff]
    %v538 = vld [vmem:[%s1 + $0x1038] sm:$0xff]
    %v539 = vld [vmem:[%s1 + $0x1040] sm:$0xff]
    %v540 = vld [vmem:[%s1 + $0x1048] sm:$0xff]
    %v541 = vld [vmem:[%s1 + $0x1050] sm:$0xff]
    %v542 = vld [vmem:[%s1 + $0x1058] sm:$0xff]
    %v543 = vld [vmem:[%s1 + $0x1060] sm:$0xff]
    %v544 = vld [vmem:[%s1 + $0x1068] sm:$0xff]
    %v545 = vld [vmem:[%s1 + $0x1070] sm:$0xff]
    %v546 = vld [vmem:[%s1 + $0x1078] sm:$0xff]
    %v547 = vld [vmem:[%s1 + $0x1080] sm:$0xff]
    %v548 = vld [vmem:[%s1 + $0x1088] sm:$0xff]
    %v549 = vld [vmem:[%s1 + $0x1090] sm:$0xff]
    %v550 = vld [vmem:[%s1 + $0x1098] sm:$0xff]
    %v551 = vld [vmem:[%s1 + $0x10a0] sm:$0xff]
    %v552 = vld [vmem:[%s1 + $0x10a8] sm:$0xff]
    %v553 = vld [vmem:[%s1 + $0x10b0] sm:$0xff]
    %v554 = vld [vmem:[%s1 + $0x10b8] sm:$0xff]
    %v555 = vld [vmem:[%s1 + $0x10c0] sm:$0xff]
    %v556 = vld [vmem:[%s1 + $0x10c8] sm:$0xff]
    %v557 = vld [vmem:[%s1 + $0x10d0] sm:$0xff]
    %v558 = vld [vmem:[%s1 + $0x10d8] sm:$0xff]
    %v559 = vld [vmem:[%s1 + $0x10e0] sm:$0xff]
    %v560 = vld [vmem:[%s1 + $0x10e8] sm:$0xff]
    %v561 = vld [vmem:[%s1 + $0x10f0] sm:$0xff]
    %v562 = vld [vmem:[%s1 + $0x10f8] sm:$0xff]
    %v563 = vld [vmem:[%s1 + $0x1100] sm:$0xff]
    %v564 = vld [vmem:[%s1 + $0x1108] sm:$0xff]
    %v565 = vld [vmem:[%s1 + $0x1110] sm:$0xff]
    %v566 = vld [vmem:[%s1 + $0x1118] sm:$0xff]
    %v567 = vld [vmem:[%s1 + $0x1120] sm:$0xff]
    %v568 = vld [vmem:[%s1 + $0x1128] sm:$0xff]
    %v569 = vld [vmem:[%s1 + $0x1130] sm:$0xff]
    %v570 = vld [vmem:[%s1 + $0x1138] sm:$0xff]
    %v571 = vld [vmem:[%s1 + $0x1140] sm:$0xff]
    %v572 = vld [vmem:[%s1 + $0x1148] sm:$0xff]
    %v573 = vld [vmem:[%s1 + $0x1150] sm:$0xff]
    %v574 = vld [vmem:[%s1 + $0x1158] sm:$0xff]
    %v575 = vld [vmem:[%s1 + $0x1160] sm:$0xff]
    %v576 = vld [vmem:[%s1 + $0x1168] sm:$0xff]
    %v577 = vld [vmem:[%s1 + $0x1170] sm:$0xff]
    %v578 = vld [vmem:[%s1 + $0x1178] sm:$0xff]
    %v579 = vld [vmem:[%s1 + $0x1180] sm:$0xff]
    %v580 = vld [vmem:[%s1 + $0x1188] sm:$0xff]
    %v581 = vld [vmem:[%s1 + $0x1190] sm:$0xff]
    %v582 = vld [vmem:[%s1 + $0x1198] sm:$0xff]
    %v583 = vld [vmem:[%s1 + $0x11a0] sm:$0xff]
    %v584 = vld [vmem:[%s1 + $0x11a8] sm:$0xff]
    %v585 = vld [vmem:[%s1 + $0x11b0] sm:$0xff]
    %v586 = vld [vmem:[%s1 + $0x11b8] sm:$0xff]
    %v587 = vld [vmem:[%s1 + $0x11c0] sm:$0xff]
    %v588 = vld [vmem:[%s1 + $0x11c8] sm:$0xff]
    %v589 = vld [vmem:[%s1 + $0x11d0] sm:$0xff]
    %v590 = vld [vmem:[%s1 + $0x11d8] sm:$0xff]
    %v591 = vld [vmem:[%s1 + $0x11e0] sm:$0xff]
    %v592 = vld [vmem:[%s1 + $0x11e8] sm:$0xff]
    %v593 = vld [vmem:[%s1 + $0x11f0] sm:$0xff]
    %v594 = vld [vmem:[%s1 + $0x11f8] sm:$0xff]
    %v595 = vld [vmem:[%s1 + $0x1200] sm:$0xff]
    %v596 = vld [vmem:[%s1 + $0x1208] sm:$0xff]
    %v597 = vld [vmem:[%s1 + $0x1210] sm:$0xff]
    %v598 = vld [vmem:[%s1 + $0x1218] sm:$0xff]
    %v599 = vld [vmem:[%s1 + $0x1220] sm:$0xff]
    %v600 = vld [vmem:[%s1 + $0x1228] sm:$0xff]
    %v601 = vld [vmem:[%s1 + $0x1230] sm:$0xff]
    %v602 = vld [vmem:[%s1 + $0x1238] sm:$0xff]
    %v603 = vld [vmem:[%s1 + $0x1240] sm:$0xff]
    %v604 = vld [vmem:[%s1 + $0x1248] sm:$0xff]
    %v605 = vld [vmem:[%s1 + $0x1250] sm:$0xff]
    %v606 = vld [vmem:[%s1 + $0x1258] sm:$0xff]
    %v607 = vld [vmem:[%s1 + $0x1260] sm:$0xff]
    %v608 = vld [vmem:[%s1 + $0x1268] sm:$0xff]
    %v609 = vld [vmem:[%s1 + $0x1270] sm:$0xff]
    %v610 = vld [vmem:[%s1 + $0x1278] sm:$0xff]
    %v611 = vld [vmem:[%s1 + $0x1280] sm:$0xff]
    %v612 = vld [vmem:[%s1 + $0x1288] sm:$0xff]
    %v613 = vld [vmem:[%s1 + $0x1290] sm:$0xff]
    %v614 = vld [vmem:[%s1 + $0x1298] sm:$0xff]
    %v615 = vld [vmem:[%s1 + $0x12a0] sm:$0xff]
    %v616 = vld [vmem:[%s1 + $0x12a8] sm:$0xff]
    %v617 = vld [vmem:[%s1 + $0x12b0] sm:$0xff]
    %v618 = vld [vmem:[%s1 + $0x12b8] sm:$0xff]
    %v619 = vld [vmem:[%s1 + $0x12c0] sm:$0xff]
    %v620 = vld [vmem:[%s1 + $0x12c8] sm:$0xff]
    %v621 = vld [vmem:[%s1 + $0x12d0] sm:$0xff]
    %v622 = vld [vmem:[%s1 + $0x12d8] sm:$0xff]
    %v623 = vld [vmem:[%s1 + $0x12e0] sm:$0xff]
    %v624 = vld [vmem:[%s1 + $0x12e8] sm:$0xff]
    %v625 = vld [vmem:[%s1 + $0x12f0] sm:$0xff]
    %v626 = vld [vmem:[%s1 + $0x12f8] sm:$0xff]
    %v627 = vld [vmem:[%s1 + $0x1300] sm:$0xff]
    %v628 = vld [vmem:[%s1 + $0x1308] sm:$0xff]
    %v629 = vld [vmem:[%s1 + $0x1310] sm:$0xff]
    %v630 = vld [vmem:[%s1 + $0x1318] sm:$0xff]
    %v631 = vld [vmem:[%s1 + $0x1320] sm:$0xff]
    %v632 = vld [vmem:[%s1 + $0x1328] sm:$0xff]
    %v633 = vld [vmem:[%s1 + $0x1330] sm:$0xff]
    %v634 = vld [vmem:[%s1 + $0x1338] sm:$0xff]
    %v635 = vld [vmem:[%s1 + $0x1340] sm:$0xff]
    %v636 = vld [vmem:[%s1 + $0x1348] sm:$0xff]
    %v637 = vld [vmem:[%s1 + $0x1350] sm:$0xff]
    %v638 = vld [vmem:[%s1 + $0x1358] sm:$0xff]
    %v639 = vld [vmem:[%s1 + $0x1360] sm:$0xff]
    %v640 = vld [vmem:[%s1 + $0x1368] sm:$0xff]
    %v641 = vld [vmem:[%s1 + $0x1370] sm:$0xff]
    %v642 = vld [vmem:[%s1 + $0x1378] sm:$0xff]
    %v643 = vld [vmem:[%s1 + $0x1380] sm:$0xff]
    %v644 = vld [vmem:[%s1 + $0x1388] sm:$0xff]
    %v645 = vld [vmem:[%s1 + $0x1390] sm:$0xff]
    %v646 = vld [vmem:[%s1 + $0x1398] sm:$0xff]
    %v647 = vld [vmem:[%s1 + $0x13a0] sm:$0xff]
    %v648 = vld [vmem:[%s1 + $0x13a8] sm:$0xff]
    %v649 = vld [vmem:[%s1 + $0x13b0] sm:$0xff]
    %v650 = vld [vmem:[%s1 + $0x13b8] sm:$0xff]
    %v651 = vld [vmem:[%s1 + $0x13c0] sm:$0xff]
    %v652 = vld [vmem:[%s1 + $0x13c8] sm:$0xff]
    %v653 = vld [vmem:[%s1 + $0x13d0] sm:$0xff]
    %v654 = vld [vmem:[%s1 + $0x13d8] sm:$0xff]
    %v655 = vld [vmem:[%s1 + $0x13e0] sm:$0xff]
    %v656 = vld [vmem:[%s1 + $0x13e8] sm:$0xff]
    %v657 = vld [vmem:[%s1 + $0x13f0] sm:$0xff]
    %v658 = vld [vmem:[%s1 + $0x13f8] sm:$0xff]
    %v659 = vld [vmem:[%s1 + $0x1400] sm:$0xff]
    %v660 = vld [vmem:[%s1 + $0x1408] sm:$0xff]
    %v661 = vld [vmem:[%s1 + $0x1410] sm:$0xff]
    %v662 = vld [vmem:[%s1 + $0x1418] sm:$0xff]
    %v663 = vld [vmem:[%s1 + $0x1420] sm:$0xff]
    %v664 = vld [vmem:[%s1 + $0x1428] sm:$0xff]
    %v665 = vld [vmem:[%s1 + $0x1430] sm:$0xff]
    %v666 = vld [vmem:[%s1 + $0x1438] sm:$0xff]
    %v667 = vld [vmem:[%s1 + $0x1440] sm:$0xff]
    %v668 = vld [vmem:[%s1 + $0x1448] sm:$0xff]
    %v669 = vld [vmem:[%s1 + $0x1450] sm:$0xff]
    %v670 = vld [vmem:[%s1 + $0x1458] sm:$0xff]
    %v671 = vld [vmem:[%s1 + $0x1460] sm:$0xff]
    %v672 = vld [vmem:[%s1 + $0x1468] sm:$0xff]
    %v673 = vld [vmem:[%s1 + $0x1470] sm:$0xff]
    %v674 = vld [vmem:[%s1 + $0x1478] sm:$0xff]
    %v675 = vld [vmem:[%s1 + $0x1480] sm:$0xff]
    %v676 = vld [vmem:[%s1 + $0x1488] sm:$0xff]
    %v677 = vld [vmem:[%s1 + $0x1490] sm:$0xff]
    %v678 = vld [vmem:[%s1 + $0x1498] sm:$0xff]
    %v679 = vld [vmem:[%s1 + $0x14a0] sm:$0xff]
    %v680 = vld [vmem:[%s1 + $0x14a8] sm:$0xff]
    %v681 = vld [vmem:[%s1 + $0x14b0] sm:$0xff]
    %v682 = vld [vmem:[%s1 + $0x14b8] sm:$0xff]
    %v683 = vld [vmem:[%s1 + $0x14c0] sm:$0xff]
    %v684 = vld [vmem:[%s1 + $0x14c8] sm:$0xff]
    %v685 = vld [vmem:[%s1 + $0x14d0] sm:$0xff]
    %v686 = vld [vmem:[%s1 + $0x14d8] sm:$0xff]
    %v687 = vld [vmem:[%s1 + $0x14e0] sm:$0xff]
    %v688 = vld [vmem:[%s1 + $0x14e8] sm:$0xff]
    %v689 = vld [vmem:[%s1 + $0x14f0] sm:$0xff]
    %v690 = vld [vmem:[%s1 + $0x14f8] sm:$0xff]
    %v691 = vld [vmem:[%s1 + $0x1500] sm:$0xff]
    %v692 = vld [vmem:[%s1 + $0x1508] sm:$0xff]
    %v693 = vld [vmem:[%s1 + $0x1510] sm:$0xff]
    %v694 = vld [vmem:[%s1 + $0x1518] sm:$0xff]
    %v695 = vld [vmem:[%s1 + $0x1520] sm:$0xff]
    %v696 = vld [vmem:[%s1 + $0x1528] sm:$0xff]
    %v697 = vld [vmem:[%s1 + $0x1530] sm:$0xff]
    %v698 = vld [vmem:[%s1 + $0x1538] sm:$0xff]
    %v699 = vld [vmem:[%s1 + $0x1540] sm:$0xff]
    %v700 = vld [vmem:[%s1 + $0x1548] sm:$0xff]
    %v701 = vld [vmem:[%s1 + $0x1550] sm:$0xff]
    %v702 = vld [vmem:[%s1 + $0x1558] sm:$0xff]
    %v703 = vld [vmem:[%s1 + $0x1560] sm:$0xff]
    %v704 = vld [vmem:[%s1 + $0x1568] sm:$0xff]
    %v705 = vld [vmem:[%s1 + $0x1570] sm:$0xff]
    %v706 = vld [vmem:[%s1 + $0x1578] sm:$0xff]
    %v707 = vld [vmem:[%s1 + $0x1580] sm:$0xff]
    %v708 = vld [vmem:[%s1 + $0x1588] sm:$0xff]
    %v709 = vld [vmem:[%s1 + $0x1590] sm:$0xff]
    %v710 = vld [vmem:[%s1 + $0x1598] sm:$0xff]
    %v711 = vld [vmem:[%s1 + $0x15a0] sm:$0xff]
    %v712 = vld [vmem:[%s1 + $0x15a8] sm:$0xff]
    %v713 = vld [vmem:[%s1 + $0x15b0] sm:$0xff]
    %v714 = vld [vmem:[%s1 + $0x15b8] sm:$0xff]
    %v715 = vld [vmem:[%s1 + $0x15c0] sm:$0xff]
    %v716 = vld [vmem:[%s1 + $0x15c8] sm:$0xff]
    %v717 = vld [vmem:[%s1 + $0x15d0] sm:$0xff]
    %v718 = vld [vmem:[%s1 + $0x15d8] sm:$0xff]
    %v719 = vld [vmem:[%s1 + $0x15e0] sm:$0xff]
    %v720 = vld [vmem:[%s1 + $0x15e8] sm:$0xff]
    %v721 = vld [vmem:[%s1 + $0x15f0] sm:$0xff]
    %v722 = vld [vmem:[%s1 + $0x15f8] sm:$0xff]
    %v723 = vld [vmem:[%s1 + $0x1600] sm:$0xff]
    %v724 = vld [vmem:[%s1 + $0x1608] sm:$0xff]
    %v725 = vld [vmem:[%s1 + $0x1610] sm:$0xff]
    %v726 = vld [vmem:[%s1 + $0x1618] sm:$0xff]
    %v727 = vld [vmem:[%s1 + $0x1620] sm:$0xff]
    %v728 = vld [vmem:[%s1 + $0x1628] sm:$0xff]
    %v729 = vld [vmem:[%s1 + $0x1630] sm:$0xff]
    %v730 = vld [vmem:[%s1 + $0x1638] sm:$0xff]
    %v731 = vld [vmem:[%s1 + $0x1640] sm:$0xff]
    %v732 = vld [vmem:[%s1 + $0x1648] sm:$0xff]
    %v733 = vld [vmem:[%s1 + $0x1650] sm:$0xff]
    %v734 = vld [vmem:[%s1 + $0x1658] sm:$0xff]
    %v735 = vld [vmem:[%s1 + $0x1660] sm:$0xff]
    %v736 = vld [vmem:[%s1 + $0x1668] sm:$0xff]
    %v737 = vld [vmem:[%s1 + $0x1670] sm:$0xff]
    %v738 = vld [vmem:[%s1 + $0x1678] sm:$0xff]
    %v739 = vld [vmem:[%s1 + $0x1680] sm:$0xff]
    %v740 = vld [vmem:[%s1 + $0x1688] sm:$0xff]
    %v741 = vld [vmem:[%s1 + $0x1690] sm:$0xff]
    %v742 = vld [vmem:[%s1 + $0x1698] sm:$0xff]
    %v743 = vld [vmem:[%s1 + $0x16a0] sm:$0xff]
    %v744 = vld [vmem:[%s1 + $0x16a8] sm:$0xff]
    %v745 = vld [vmem:[%s1 + $0x16b0] sm:$0xff]
    %v746 = vld [vmem:[%s1 + $0x16b8] sm:$0xff]
    %v747 = vld [vmem:[%s1 + $0x16c0] sm:$0xff]
    %v748 = vld [vmem:[%s1 + $0x16c8] sm:$0xff]
    %v749 = vld [vmem:[%s1 + $0x16d0] sm:$0xff]
    %v750 = vld [vmem:[%s1 + $0x16d8] sm:$0xff]
    %v751 = vld [vmem:[%s1 + $0x16e0] sm:$0xff]
    %v752 = vld [vmem:[%s1 + $0x16e8] sm:$0xff]
    %v753 = vld [vmem:[%s1 + $0x16f0] sm:$0xff]
    %v754 = vld [vmem:[%s1 + $0x16f8] sm:$0xff]
    %v755 = vld [vmem:[%s1 + $0x1700] sm:$0xff]
    %v756 = vld [vmem:[%s1 + $0x1708] sm:$0xff]
    %v757 = vld [vmem:[%s1 + $0x1710] sm:$0xff]
    %v758 = vld [vmem:[%s1 + $0x1718] sm:$0xff]
    %v759 = vld [vmem:[%s1 + $0x1720] sm:$0xff]
    %v760 = vld [vmem:[%s1 + $0x1728] sm:$0xff]
    %v761 = vld [vmem:[%s1 + $0x1730] sm:$0xff]
    %v762 = vld [vmem:[%s1 + $0x1738] sm:$0xff]
    %v763 = vld [vmem:[%s1 + $0x1740] sm:$0xff]
    %v764 = vld [vmem:[%s1 + $0x1748] sm:$0xff]
    %v765 = vld [vmem:[%s1 + $0x1750] sm:$0xff]
    %v766 = vld [vmem:[%s1 + $0x1758] sm:$0xff]
    %v767 = vld [vmem:[%s1 + $0x1760] sm:$0xff]
    %v768 = vld [vmem:[%s1 + $0x1768] sm:$0xff]
    %v769 = vld [vmem:[%s1 + $0x1770] sm:$0xff]
    %v770 = vld [vmem:[%s1 + $0x1778] sm:$0xff]
    %v771 = vld [vmem:[%s1 + $0x1780] sm:$0xff]
    %v772 = vld [vmem:[%s1 + $0x1788] sm:$0xff]
    %v773 = vld [vmem:[%s1 + $0x1790] sm:$0xff]
    %v774 = vld [vmem:[%s1 + $0x1798] sm:$0xff]
    %v775 = vld [vmem:[%s1 + $0x17a0] sm:$0xff]
    %v776 = vld [vmem:[%s1 + $0x17a8] sm:$0xff]
    %v777 = vld [vmem:[%s1 + $0x17b0] sm:$0xff]
    %v778 = vld [vmem:[%s1 + $0x17b8] sm:$0xff]
    %v779 = vld [vmem:[%s1 + $0x17c0] sm:$0xff]
    %v780 = vld [vmem:[%s1 + $0x17c8] sm:$0xff]
    %v781 = vld [vmem:[%s1 + $0x17d0] sm:$0xff]
    %v782 = vld [vmem:[%s1 + $0x17d8] sm:$0xff]
    %v783 = vld [vmem:[%s1 + $0x17e0] sm:$0xff]
    %v784 = vld [vmem:[%s1 + $0x17e8] sm:$0xff]
    %v785 = vld [vmem:[%s1 + $0x17f0] sm:$0xff]
    %v786 = vld [vmem:[%s1 + $0x17f8] sm:$0xff]
    %v787 = vld [vmem:[%s1 + $0x1800] sm:$0xff]
    %v788 = vld [vmem:[%s1 + $0x1808] sm:$0xff]
    %v789 = vld [vmem:[%s1 + $0x1810] sm:$0xff]
    %v790 = vld [vmem:[%s1 + $0x1818] sm:$0xff]
    %v791 = vld [vmem:[%s1 + $0x1820] sm:$0xff]
    %v792 = vld [vmem:[%s1 + $0x1828] sm:$0xff]
    %v793 = vld [vmem:[%s1 + $0x1830] sm:$0xff]
    %v794 = vld [vmem:[%s1 + $0x1838] sm:$0xff]
    %v795 = vld [vmem:[%s1 + $0x1840] sm:$0xff]
    %v796 = vld [vmem:[%s1 + $0x1848] sm:$0xff]
    %v797 = vld [vmem:[%s1 + $0x1850] sm:$0xff]
    %v798 = vld [vmem:[%s1 + $0x1858] sm:$0xff]
    %v799 = vld [vmem:[%s1 + $0x1860] sm:$0xff]
    %v800 = vld [vmem:[%s1 + $0x1868] sm:$0xff]
    %v801 = vld [vmem:[%s1 + $0x1870] sm:$0xff]
    %v802 = vld [vmem:[%s1 + $0x1878] sm:$0xff]
    %v803 = vld [vmem:[%s1 + $0x1880] sm:$0xff]
    %v804 = vld [vmem:[%s1 + $0x1888] sm:$0xff]
    %v805 = vld [vmem:[%s1 + $0x1890] sm:$0xff]
    %v806 = vld [vmem:[%s1 + $0x1898] sm:$0xff]
    %v807 = vld [vmem:[%s1 + $0x18a0] sm:$0xff]
    %v808 = vld [vmem:[%s1 + $0x18a8] sm:$0xff]
    %v809 = vld [vmem:[%s1 + $0x18b0] sm:$0xff]
    %v810 = vld [vmem:[%s1 + $0x18b8] sm:$0xff]
    %v811 = vld [vmem:[%s1 + $0x18c0] sm:$0xff]
    %v812 = vld [vmem:[%s1 + $0x18c8] sm:$0xff]
    %v813 = vld [vmem:[%s1 + $0x18d0] sm:$0xff]
    %v814 = vld [vmem:[%s1 + $0x18d8] sm:$0xff]
    %v815 = vld [vmem:[%s1 + $0x18e0] sm:$0xff]
    %v816 = vld [vmem:[%s1 + $0x18e8] sm:$0xff]
    %v817 = vld [vmem:[%s1 + $0x18f0] sm:$0xff]
    %v818 = vld [vmem:[%s1 + $0x18f8] sm:$0xff]
    %v819 = vld [vmem:[%s2] sm:$0xf]
    %v821 = vperm.slane %v819, 0
    %v822 = vperm.slane %v819, 1
    %v823 = vperm.slane %v819, 2
    %v824 = vperm.slane %v819, 3
    %830 = vst [vmem:[#allocation1] ss:$9 sm:$0xff] %v15
    %v831 = vld [vmem:[#allocation1] sm:$0xff]
    %v832 = vld [vmem:[#allocation1 + $0x9] sm:$0xff]
    %v833 = vld [vmem:[#allocation1 + $0x12] sm:$0xff]
    %v834 = vld [vmem:[#allocation1 + $0x1b] sm:$0xff]
    %v835 = vld [vmem:[#allocation1 + $0x24] sm:$0xff]
    %v836 = vld [vmem:[#allocation1 + $0x2d] sm:$0xff]
    %v837 = vld [vmem:[#allocation1 + $0x36] sm:$0xff]
    %v838 = vld [vmem:[#allocation1 + $0x3f] sm:$0xff]
    %840 = vst [vmem:[#allocation1] ss:$9 sm:$0xff] %v16
    %v841 = vld [vmem:[#allocation1] sm:$0xff]
    %v842 = vld [vmem:[#allocation1 + $0x9] sm:$0xff]
    %v843 = vld [vmem:[#allocation1 + $0x12] sm:$0xff]
    %v844 = vld [vmem:[#allocation1 + $0x1b] sm:$0xff]
    %v845 = vld [vmem:[#allocation1 + $0x24] sm:$0xff]
    %v846 = vld [vmem:[#allocation1 + $0x2d] sm:$0xff]
    %v847 = vld [vmem:[#allocation1 + $0x36] sm:$0xff]
    %v848 = vld [vmem:[#allocation1 + $0x3f] sm:$0xff]
    %850 = vst [vmem:[#allocation1] ss:$9 sm:$0xff] %v17
    %v851 = vld [vmem:[#allocation1] sm:$0xff]
    %v852 = vld [vmem:[#allocation1 + $0x9] sm:$0xff]
    %v853 = vld [vmem:[#allocation1 + $0x12] sm:$0xff]
    %v854 = vld [vmem:[#allocation1 + $0x1b] sm:$0xff]
    %v855 = vld [vmem:[#allocation1 + $0x24] sm:$0xff]
    %v856 = vld [vmem:[#allocation1 + $0x2d] sm:$0xff]
    %v857 = vld [vmem:[#allocation1 + $0x36] sm:$0xff]
    %v858 = vld [vmem:[#allocation1 + $0x3f] sm:$0xff]
    %860 = vst [vmem:[#allocation1] ss:$9 sm:$0xff] %v18
    %v861 = vld [vmem:[#allocation1] sm:$0xff]
    %v1687 = vunpack.c.l.b16 %v19
    %v1688 = vunpack.c.h.b16 %v19
    %v1689 = vunpack.c.l.b16 %v20
    %v1690 = vunpack.c.h.b16 %v20
    %v1691 = vunpack.c.l.b16 %v21
    %v1692 = vunpack.c.h.b16 %v21
    %v1693 = vunpack.c.l.b16 %v22
    %v1694 = vunpack.c.h.b16 %v22
    %v1695 = vunpack.c.l.b16 %v23
    %v1696 = vunpack.c.h.b16 %v23
    %v1697 = vunpack.c.l.b16 %v24
    %v1698 = vunpack.c.h.b16 %v24
    %v1699 = vunpack.c.l.b16 %v25
    %v1700 = vunpack.c.h.b16 %v25
    %v1701 = vunpack.c.l.b16 %v26
    %v1702 = vunpack.c.h.b16 %v26
    %v1703 = vunpack.c.l.b16 %v27
    %v1704 = vunpack.c.h.b16 %v27
    %v1705 = vunpack.c.l.b16 %v28
    %v1706 = vunpack.c.h.b16 %v28
    %v1707 = vunpack.c.l.b16 %v29
    %v1708 = vunpack.c.h.b16 %v29
    %v1709 = vunpack.c.l.b16 %v30
    %v1710 = vunpack.c.h.b16 %v30
    %v1711 = vunpack.c.l.b16 %v31
    %v1712 = vunpack.c.h.b16 %v31
    %v1713 = vunpack.c.l.b16 %v32
    %v1714 = vunpack.c.h.b16 %v32
    %v1715 = vunpack.c.l.b16 %v33
    %v1716 = vunpack.c.h.b16 %v33
    %v1717 = vunpack.c.l.b16 %v34
    %v1718 = vunpack.c.h.b16 %v34
    %v1719 = vunpack.c.l.b16 %v35
    %v1720 = vunpack.c.h.b16 %v35
    %v1721 = vunpack.c.l.b16 %v36
    %v1722 = vunpack.c.h.b16 %v36
    %v1723 = vunpack.c.l.b16 %v37
    %v1724 = vunpack.c.h.b16 %v37
    %v1725 = vunpack.c.l.b16 %v38
    %v1726 = vunpack.c.h.b16 %v38
    %v1727 = vunpack.c.l.b16 %v39
    %v1728 = vunpack.c.h.b16 %v39
    %v1729 = vunpack.c.l.b16 %v40
    %v1730 = vunpack.c.h.b16 %v40
    %v1731 = vunpack.c.l.b16 %v41
    %v1732 = vunpack.c.h.b16 %v41
    %v1733 = vunpack.c.l.b16 %v42
    %v1734 = vunpack.c.h.b16 %v42
    %v1735 = vunpack.c.l.b16 %v43
    %v1736 = vunpack.c.h.b16 %v43
    %v1737 = vunpack.c.l.b16 %v44
    %v1738 = vunpack.c.h.b16 %v44
    %v1739 = vunpack.c.l.b16 %v45
    %v1740 = vunpack.c.h.b16 %v45
    %v1741 = vunpack.c.l.b16 %v46
    %v1742 = vunpack.c.h.b16 %v46
    %v1743 = vunpack.c.l.b16 %v47
    %v1744 = vunpack.c.h.b16 %v47
    %v1745 = vunpack.c.l.b16 %v48
    %v1746 = vunpack.c.h.b16 %v48
    %v1747 = vunpack.c.l.b16 %v49
    %v1748 = vunpack.c.h.b16 %v49
    %v1749 = vunpack.c.l.b16 %v50
    %v1750 = vunpack.c.h.b16 %v50
    %v1751 = vunpack.c.l.b16 %v51
    %v1752 = vunpack.c.h.b16 %v51
    %v1753 = vunpack.c.l.b16 %v52
    %v1754 = vunpack.c.h.b16 %v52
    %v1755 = vunpack.c.l.b16 %v53
    %v1756 = vunpack.c.h.b16 %v53
    %v1757 = vunpack.c.l.b16 %v54
    %v1758 = vunpack.c.h.b16 %v54
    %v1759 = vunpack.c.l.b16 %v55
    %v1760 = vunpack.c.h.b16 %v55
    %v1761 = vunpack.c.l.b16 %v56
    %v1762 = vunpack.c.h.b16 %v56
    %v1763 = vunpack.c.l.b16 %v57
    %v1764 = vunpack.c.h.b16 %v57
    %v1765 = vunpack.c.l.b16 %v58
    %v1766 = vunpack.c.h.b16 %v58
    %v1767 = vunpack.c.l.b16 %v59
    %v1768 = vunpack.c.h.b16 %v59
    %v1769 = vunpack.c.l.b16 %v60
    %v1770 = vunpack.c.h.b16 %v60
    %v1771 = vunpack.c.l.b16 %v61
    %v1772 = vunpack.c.h.b16 %v61
    %v1773 = vunpack.c.l.b16 %v62
    %v1774 = vunpack.c.h.b16 %v62
    %v1775 = vunpack.c.l.b16 %v63
    %v1776 = vunpack.c.h.b16 %v63
    %v1777 = vunpack.c.l.b16 %v64
    %v1778 = vunpack.c.h.b16 %v64
    %v1779 = vunpack.c.l.b16 %v65
    %v1780 = vunpack.c.h.b16 %v65
    %v1781 = vunpack.c.l.b16 %v66
    %v1782 = vunpack.c.h.b16 %v66
    %v1783 = vunpack.c.l.b16 %v67
    %v1784 = vunpack.c.h.b16 %v67
    %v1785 = vunpack.c.l.b16 %v68
    %v1786 = vunpack.c.h.b16 %v68
    %v1787 = vunpack.c.l.b16 %v69
    %v1788 = vunpack.c.h.b16 %v69
    %v1789 = vunpack.c.l.b16 %v70
    %v1790 = vunpack.c.h.b16 %v70
    %v1791 = vunpack.c.l.b16 %v71
    %v1792 = vunpack.c.h.b16 %v71
    %v1793 = vunpack.c.l.b16 %v72
    %v1794 = vunpack.c.h.b16 %v72
    %v1795 = vunpack.c.l.b16 %v73
    %v1796 = vunpack.c.h.b16 %v73
    %v1797 = vunpack.c.l.b16 %v74
    %v1798 = vunpack.c.h.b16 %v74
    %v1799 = vunpack.c.l.b16 %v75
    %v1800 = vunpack.c.h.b16 %v75
    %v1801 = vunpack.c.l.b16 %v76
    %v1802 = vunpack.c.h.b16 %v76
    %v1803 = vunpack.c.l.b16 %v77
    %v1804 = vunpack.c.h.b16 %v77
    %v1805 = vunpack.c.l.b16 %v78
    %v1806 = vunpack.c.h.b16 %v78
    %v1807 = vunpack.c.l.b16 %v79
    %v1808 = vunpack.c.h.b16 %v79
    %v1809 = vunpack.c.l.b16 %v80
    %v1810 = vunpack.c.h.b16 %v80
    %v1811 = vunpack.c.l.b16 %v81
    %v1812 = vunpack.c.h.b16 %v81
    %v1813 = vunpack.c.l.b16 %v82
    %v1814 = vunpack.c.h.b16 %v82
    %v1815 = vunpack.c.l.b16 %v83
    %v1816 = vunpack.c.h.b16 %v83
    %v1817 = vunpack.c.l.b16 %v84
    %v1818 = vunpack.c.h.b16 %v84
    %v1819 = vunpack.c.l.b16 %v85
    %v1820 = vunpack.c.h.b16 %v85
    %v1821 = vunpack.c.l.b16 %v86
    %v1822 = vunpack.c.h.b16 %v86
    %v1823 = vunpack.c.l.b16 %v87
    %v1824 = vunpack.c.h.b16 %v87
    %v1825 = vunpack.c.l.b16 %v88
    %v1826 = vunpack.c.h.b16 %v88
    %v1827 = vunpack.c.l.b16 %v89
    %v1828 = vunpack.c.h.b16 %v89
    %v1829 = vunpack.c.l.b16 %v90
    %v1830 = vunpack.c.h.b16 %v90
    %v1831 = vunpack.c.l.b16 %v91
    %v1832 = vunpack.c.h.b16 %v91
    %v1833 = vunpack.c.l.b16 %v92
    %v1834 = vunpack.c.h.b16 %v92
    %v1835 = vunpack.c.l.b16 %v93
    %v1836 = vunpack.c.h.b16 %v93
    %v1837 = vunpack.c.l.b16 %v94
    %v1838 = vunpack.c.h.b16 %v94
    %v1839 = vunpack.c.l.b16 %v95
    %v1840 = vunpack.c.h.b16 %v95
    %v1841 = vunpack.c.l.b16 %v96
    %v1842 = vunpack.c.h.b16 %v96
    %v1843 = vunpack.c.l.b16 %v97
    %v1844 = vunpack.c.h.b16 %v97
    %v1845 = vunpack.c.l.b16 %v98
    %v1846 = vunpack.c.h.b16 %v98
    %v1847 = vunpack.c.l.b16 %v99
    %v1848 = vunpack.c.h.b16 %v99
    %v1849 = vunpack.c.l.b16 %v100
    %v1850 = vunpack.c.h.b16 %v100
    %v1851 = vunpack.c.l.b16 %v101
    %v1852 = vunpack.c.h.b16 %v101
    %v1853 = vunpack.c.l.b16 %v102
    %v1854 = vunpack.c.h.b16 %v102
    %v1855 = vunpack.c.l.b16 %v103
    %v1856 = vunpack.c.h.b16 %v103
    %v1857 = vunpack.c.l.b16 %v104
    %v1858 = vunpack.c.h.b16 %v104
    %v1859 = vunpack.c.l.b16 %v105
    %v1860 = vunpack.c.h.b16 %v105
    %v1861 = vunpack.c.l.b16 %v106
    %v1862 = vunpack.c.h.b16 %v106
    %v1863 = vunpack.c.l.b16 %v107
    %v1864 = vunpack.c.h.b16 %v107
    %v1865 = vunpack.c.l.b16 %v108
    %v1866 = vunpack.c.h.b16 %v108
    %v1867 = vunpack.c.l.b16 %v109
    %v1868 = vunpack.c.h.b16 %v109
    %v1869 = vunpack.c.l.b16 %v110
    %v1870 = vunpack.c.h.b16 %v110
    %v1871 = vunpack.c.l.b16 %v111
    %v1872 = vunpack.c.h.b16 %v111
    %v1873 = vunpack.c.l.b16 %v112
    %v1874 = vunpack.c.h.b16 %v112
    %v1875 = vunpack.c.l.b16 %v113
    %v1876 = vunpack.c.h.b16 %v113
    %v1877 = vunpack.c.l.b16 %v114
    %v1878 = vunpack.c.h.b16 %v114
    %v1879 = vunpack.c.l.b16 %v115
    %v1880 = vunpack.c.h.b16 %v115
    %v1881 = vunpack.c.l.b16 %v116
    %v1882 = vunpack.c.h.b16 %v116
    %v1883 = vunpack.c.l.b16 %v117
    %v1884 = vunpack.c.h.b16 %v117
    %v1885 = vunpack.c.l.b16 %v118
    %v1886 = vunpack.c.h.b16 %v118
    %v1887 = vunpack.c.l.b16 %v119
    %v1888 = vunpack.c.h.b16 %v119
    %v1889 = vunpack.c.l.b16 %v120
    %v1890 = vunpack.c.h.b16 %v120
    %v1891 = vunpack.c.l.b16 %v121
    %v1892 = vunpack.c.h.b16 %v121
    %v1893 = vunpack.c.l.b16 %v122
    %v1894 = vunpack.c.h.b16 %v122
    %v1895 = vunpack.c.l.b16 %v123
    %v1896 = vunpack.c.h.b16 %v123
    %v1897 = vunpack.c.l.b16 %v124
    %v1898 = vunpack.c.h.b16 %v124
    %v1899 = vunpack.c.l.b16 %v125
    %v1900 = vunpack.c.h.b16 %v125
    %v1901 = vunpack.c.l.b16 %v126
    %v1902 = vunpack.c.h.b16 %v126
    %v1903 = vunpack.c.l.b16 %v127
    %v1904 = vunpack.c.h.b16 %v127
    %v1905 = vunpack.c.l.b16 %v128
    %v1906 = vunpack.c.h.b16 %v128
    %v1907 = vunpack.c.l.b16 %v129
    %v1908 = vunpack.c.h.b16 %v129
    %v1909 = vunpack.c.l.b16 %v130
    %v1910 = vunpack.c.h.b16 %v130
    %v1911 = vunpack.c.l.b16 %v131
    %v1912 = vunpack.c.h.b16 %v131
    %v1913 = vunpack.c.l.b16 %v132
    %v1914 = vunpack.c.h.b16 %v132
    %v1915 = vunpack.c.l.b16 %v133
    %v1916 = vunpack.c.h.b16 %v133
    %v1917 = vunpack.c.l.b16 %v134
    %v1918 = vunpack.c.h.b16 %v134
    %v1919 = vunpack.c.l.b16 %v135
    %v1920 = vunpack.c.h.b16 %v135
    %v1921 = vunpack.c.l.b16 %v136
    %v1922 = vunpack.c.h.b16 %v136
    %v1923 = vunpack.c.l.b16 %v137
    %v1924 = vunpack.c.h.b16 %v137
    %v1925 = vunpack.c.l.b16 %v138
    %v1926 = vunpack.c.h.b16 %v138
    %v1927 = vunpack.c.l.b16 %v139
    %v1928 = vunpack.c.h.b16 %v139
    %v1929 = vunpack.c.l.b16 %v140
    %v1930 = vunpack.c.h.b16 %v140
    %v1931 = vunpack.c.l.b16 %v141
    %v1932 = vunpack.c.h.b16 %v141
    %v1933 = vunpack.c.l.b16 %v142
    %v1934 = vunpack.c.h.b16 %v142
    %v1935 = vunpack.c.l.b16 %v143
    %v1936 = vunpack.c.h.b16 %v143
    %v1937 = vunpack.c.l.b16 %v144
    %v1938 = vunpack.c.h.b16 %v144
    %v1939 = vunpack.c.l.b16 %v145
    %v1940 = vunpack.c.h.b16 %v145
    %v1941 = vunpack.c.l.b16 %v146
    %v1942 = vunpack.c.h.b16 %v146
    %v1943 = vunpack.c.l.b16 %v147
    %v1944 = vunpack.c.h.b16 %v147
    %v1945 = vunpack.c.l.b16 %v148
    %v1946 = vunpack.c.h.b16 %v148
    %v1947 = vunpack.c.l.b16 %v149
    %v1948 = vunpack.c.h.b16 %v149
    %v1949 = vunpack.c.l.b16 %v150
    %v1950 = vunpack.c.h.b16 %v150
    %v1951 = vunpack.c.l.b16 %v151
    %v1952 = vunpack.c.h.b16 %v151
    %v1953 = vunpack.c.l.b16 %v152
    %v1954 = vunpack.c.h.b16 %v152
    %v1955 = vunpack.c.l.b16 %v153
    %v1956 = vunpack.c.h.b16 %v153
    %v1957 = vunpack.c.l.b16 %v154
    %v1958 = vunpack.c.h.b16 %v154
    %v1959 = vunpack.c.l.b16 %v155
    %v1960 = vunpack.c.h.b16 %v155
    %v1961 = vunpack.c.l.b16 %v156
    %v1962 = vunpack.c.h.b16 %v156
    %v1963 = vunpack.c.l.b16 %v157
    %v1964 = vunpack.c.h.b16 %v157
    %v1965 = vunpack.c.l.b16 %v158
    %v1966 = vunpack.c.h.b16 %v158
    %v1967 = vunpack.c.l.b16 %v159
    %v1968 = vunpack.c.h.b16 %v159
    %v1969 = vunpack.c.l.b16 %v160
    %v1970 = vunpack.c.h.b16 %v160
    %v1971 = vunpack.c.l.b16 %v161
    %v1972 = vunpack.c.h.b16 %v161
    %v1973 = vunpack.c.l.b16 %v162
    %v1974 = vunpack.c.h.b16 %v162
    %v1975 = vunpack.c.l.b16 %v163
    %v1976 = vunpack.c.h.b16 %v163
    %v1977 = vunpack.c.l.b16 %v164
    %v1978 = vunpack.c.h.b16 %v164
    %v1979 = vunpack.c.l.b16 %v165
    %v1980 = vunpack.c.h.b16 %v165
    %v1981 = vunpack.c.l.b16 %v166
    %v1982 = vunpack.c.h.b16 %v166
    %v1983 = vunpack.c.l.b16 %v167
    %v1984 = vunpack.c.h.b16 %v167
    %v1985 = vunpack.c.l.b16 %v168
    %v1986 = vunpack.c.h.b16 %v168
    %v1987 = vunpack.c.l.b16 %v169
    %v1988 = vunpack.c.h.b16 %v169
    %v1989 = vunpack.c.l.b16 %v170
    %v1990 = vunpack.c.h.b16 %v170
    %v1991 = vunpack.c.l.b16 %v171
    %v1992 = vunpack.c.h.b16 %v171
    %v1993 = vunpack.c.l.b16 %v172
    %v1994 = vunpack.c.h.b16 %v172
    %v1995 = vunpack.c.l.b16 %v173
    %v1996 = vunpack.c.h.b16 %v173
    %v1997 = vunpack.c.l.b16 %v174
    %v1998 = vunpack.c.h.b16 %v174
    %v1999 = vunpack.c.l.b16 %v175
    %v2000 = vunpack.c.h.b16 %v175
    %v2001 = vunpack.c.l.b16 %v176
    %v2002 = vunpack.c.h.b16 %v176
    %v2003 = vunpack.c.l.b16 %v177
    %v2004 = vunpack.c.h.b16 %v177
    %v2005 = vunpack.c.l.b16 %v178
    %v2006 = vunpack.c.h.b16 %v178
    %v2007 = vunpack.c.l.b16 %v179
    %v2008 = vunpack.c.h.b16 %v179
    %v2009 = vunpack.c.l.b16 %v180
    %v2010 = vunpack.c.h.b16 %v180
    %v2011 = vunpack.c.l.b16 %v181
    %v2012 = vunpack.c.h.b16 %v181
    %v2013 = vunpack.c.l.b16 %v182
    %v2014 = vunpack.c.h.b16 %v182
    %v2015 = vunpack.c.l.b16 %v183
    %v2016 = vunpack.c.h.b16 %v183
    %v2017 = vunpack.c.l.b16 %v184
    %v2018 = vunpack.c.h.b16 %v184
    %v2019 = vunpack.c.l.b16 %v185
    %v2020 = vunpack.c.h.b16 %v185
    %v2021 = vunpack.c.l.b16 %v186
    %v2022 = vunpack.c.h.b16 %v186
    %v2023 = vunpack.c.l.b16 %v187
    %v2024 = vunpack.c.h.b16 %v187
    %v2025 = vunpack.c.l.b16 %v188
    %v2026 = vunpack.c.h.b16 %v188
    %v2027 = vunpack.c.l.b16 %v189
    %v2028 = vunpack.c.h.b16 %v189
    %v2029 = vunpack.c.l.b16 %v190
    %v2030 = vunpack.c.h.b16 %v190
    %v2031 = vunpack.c.l.b16 %v191
    %v2032 = vunpack.c.h.b16 %v191
    %v2033 = vunpack.c.l.b16 %v192
    %v2034 = vunpack.c.h.b16 %v192
    %v2035 = vunpack.c.l.b16 %v193
    %v2036 = vunpack.c.h.b16 %v193
    %v2037 = vunpack.c.l.b16 %v194
    %v2038 = vunpack.c.h.b16 %v194
    %v2039 = vunpack.c.l.b16 %v195
    %v2040 = vunpack.c.h.b16 %v195
    %v2041 = vunpack.c.l.b16 %v196
    %v2042 = vunpack.c.h.b16 %v196
    %v2043 = vunpack.c.l.b16 %v197
    %v2044 = vunpack.c.h.b16 %v197
    %v2045 = vunpack.c.l.b16 %v198
    %v2046 = vunpack.c.h.b16 %v198
    %v2047 = vunpack.c.l.b16 %v199
    %v2048 = vunpack.c.h.b16 %v199
    %v2049 = vunpack.c.l.b16 %v200
    %v2050 = vunpack.c.h.b16 %v200
    %v2051 = vunpack.c.l.b16 %v201
    %v2052 = vunpack.c.h.b16 %v201
    %v2053 = vunpack.c.l.b16 %v202
    %v2054 = vunpack.c.h.b16 %v202
    %v2055 = vunpack.c.l.b16 %v203
    %v2056 = vunpack.c.h.b16 %v203
    %v2057 = vunpack.c.l.b16 %v204
    %v2058 = vunpack.c.h.b16 %v204
    %v2059 = vunpack.c.l.b16 %v205
    %v2060 = vunpack.c.h.b16 %v205
    %v2061 = vunpack.c.l.b16 %v206
    %v2062 = vunpack.c.h.b16 %v206
    %v2063 = vunpack.c.l.b16 %v207
    %v2064 = vunpack.c.h.b16 %v207
    %v2065 = vunpack.c.l.b16 %v208
    %v2066 = vunpack.c.h.b16 %v208
    %v2067 = vunpack.c.l.b16 %v209
    %v2068 = vunpack.c.h.b16 %v209
    %v2069 = vunpack.c.l.b16 %v210
    %v2070 = vunpack.c.h.b16 %v210
    %v2071 = vunpack.c.l.b16 %v211
    %v2072 = vunpack.c.h.b16 %v211
    %v2073 = vunpack.c.l.b16 %v212
    %v2074 = vunpack.c.h.b16 %v212
    %v2075 = vunpack.c.l.b16 %v213
    %v2076 = vunpack.c.h.b16 %v213
    %v2077 = vunpack.c.l.b16 %v214
    %v2078 = vunpack.c.h.b16 %v214
    %v2079 = vunpack.c.l.b16 %v215
    %v2080 = vunpack.c.h.b16 %v215
    %v2081 = vunpack.c.l.b16 %v216
    %v2082 = vunpack.c.h.b16 %v216
    %v2083 = vunpack.c.l.b16 %v217
    %v2084 = vunpack.c.h.b16 %v217
    %v2085 = vunpack.c.l.b16 %v218
    %v2086 = vunpack.c.h.b16 %v218
    %v2087 = vunpack.c.l.b16 %v219
    %v2088 = vunpack.c.h.b16 %v219
    %v2089 = vunpack.c.l.b16 %v220
    %v2090 = vunpack.c.h.b16 %v220
    %v2091 = vunpack.c.l.b16 %v221
    %v2092 = vunpack.c.h.b16 %v221
    %v2093 = vunpack.c.l.b16 %v222
    %v2094 = vunpack.c.h.b16 %v222
    %v2095 = vunpack.c.l.b16 %v223
    %v2096 = vunpack.c.h.b16 %v223
    %v2097 = vunpack.c.l.b16 %v224
    %v2098 = vunpack.c.h.b16 %v224
    %v2099 = vunpack.c.l.b16 %v225
    %v2100 = vunpack.c.h.b16 %v225
    %v2101 = vunpack.c.l.b16 %v226
    %v2102 = vunpack.c.h.b16 %v226
    %v2103 = vunpack.c.l.b16 %v227
    %v2104 = vunpack.c.h.b16 %v227
    %v2105 = vunpack.c.l.b16 %v228
    %v2106 = vunpack.c.h.b16 %v228
    %v2107 = vunpack.c.l.b16 %v229
    %v2108 = vunpack.c.h.b16 %v229
    %v2109 = vunpack.c.l.b16 %v230
    %v2110 = vunpack.c.h.b16 %v230
    %v2111 = vunpack.c.l.b16 %v231
    %v2112 = vunpack.c.h.b16 %v231
    %v2113 = vunpack.c.l.b16 %v232
    %v2114 = vunpack.c.h.b16 %v232
    %v2115 = vunpack.c.l.b16 %v233
    %v2116 = vunpack.c.h.b16 %v233
    %v2117 = vunpack.c.l.b16 %v234
    %v2118 = vunpack.c.h.b16 %v234
    %v2119 = vunpack.c.l.b16 %v235
    %v2120 = vunpack.c.h.b16 %v235
    %v2121 = vunpack.c.l.b16 %v236
    %v2122 = vunpack.c.h.b16 %v236
    %v2123 = vunpack.c.l.b16 %v237
    %v2124 = vunpack.c.h.b16 %v237
    %v2125 = vunpack.c.l.b16 %v238
    %v2126 = vunpack.c.h.b16 %v238
    %v2127 = vunpack.c.l.b16 %v239
    %v2128 = vunpack.c.h.b16 %v239
    %v2129 = vunpack.c.l.b16 %v240
    %v2130 = vunpack.c.h.b16 %v240
    %v2131 = vunpack.c.l.b16 %v241
    %v2132 = vunpack.c.h.b16 %v241
    %v2133 = vunpack.c.l.b16 %v242
    %v2134 = vunpack.c.h.b16 %v242
    %v2135 = vunpack.c.l.b16 %v243
    %v2136 = vunpack.c.h.b16 %v243
    %v2137 = vunpack.c.l.b16 %v244
    %v2138 = vunpack.c.h.b16 %v244
    %v2139 = vunpack.c.l.b16 %v245
    %v2140 = vunpack.c.h.b16 %v245
    %v2141 = vunpack.c.l.b16 %v246
    %v2142 = vunpack.c.h.b16 %v246
    %v2143 = vunpack.c.l.b16 %v247
    %v2144 = vunpack.c.h.b16 %v247
    %v2145 = vunpack.c.l.b16 %v248
    %v2146 = vunpack.c.h.b16 %v248
    %v2147 = vunpack.c.l.b16 %v249
    %v2148 = vunpack.c.h.b16 %v249
    %v2149 = vunpack.c.l.b16 %v250
    %v2150 = vunpack.c.h.b16 %v250
    %v2151 = vunpack.c.l.b16 %v251
    %v2152 = vunpack.c.h.b16 %v251
    %v2153 = vunpack.c.l.b16 %v252
    %v2154 = vunpack.c.h.b16 %v252
    %v2155 = vunpack.c.l.b16 %v253
    %v2156 = vunpack.c.h.b16 %v253
    %v2157 = vunpack.c.l.b16 %v254
    %v2158 = vunpack.c.h.b16 %v254
    %v2159 = vunpack.c.l.b16 %v255
    %v2160 = vunpack.c.h.b16 %v255
    %v2161 = vunpack.c.l.b16 %v256
    %v2162 = vunpack.c.h.b16 %v256
    %v2163 = vunpack.c.l.b16 %v257
    %v2164 = vunpack.c.h.b16 %v257
    %v2165 = vunpack.c.l.b16 %v258
    %v2166 = vunpack.c.h.b16 %v258
    %v2167 = vunpack.c.l.b16 %v259
    %v2168 = vunpack.c.h.b16 %v259
    %v2169 = vunpack.c.l.b16 %v260
    %v2170 = vunpack.c.h.b16 %v260
    %v2171 = vunpack.c.l.b16 %v261
    %v2172 = vunpack.c.h.b16 %v261
    %v2173 = vunpack.c.l.b16 %v262
    %v2174 = vunpack.c.h.b16 %v262
    %v2175 = vunpack.c.l.b16 %v263
    %v2176 = vunpack.c.h.b16 %v263
    %v2177 = vunpack.c.l.b16 %v264
    %v2178 = vunpack.c.h.b16 %v264
    %v2179 = vunpack.c.l.b16 %v265
    %v2180 = vunpack.c.h.b16 %v265
    %v2181 = vunpack.c.l.b16 %v266
    %v2182 = vunpack.c.h.b16 %v266
    %v2183 = vunpack.c.l.b16 %v267
    %v2184 = vunpack.c.h.b16 %v267
    %v2185 = vunpack.c.l.b16 %v268
    %v2186 = vunpack.c.h.b16 %v268
    %v2187 = vunpack.c.l.b16 %v269
    %v2188 = vunpack.c.h.b16 %v269
    %v2189 = vunpack.c.l.b16 %v270
    %v2190 = vunpack.c.h.b16 %v270
    %v2191 = vunpack.c.l.b16 %v271
    %v2192 = vunpack.c.h.b16 %v271
    %v2193 = vunpack.c.l.b16 %v272
    %v2194 = vunpack.c.h.b16 %v272
    %v2195 = vunpack.c.l.b16 %v273
    %v2196 = vunpack.c.h.b16 %v273
    %v2197 = vunpack.c.l.b16 %v274
    %v2198 = vunpack.c.h.b16 %v274
    %v2199 = vunpack.c.l.b16 %v275
    %v2200 = vunpack.c.h.b16 %v275
    %v2201 = vunpack.c.l.b16 %v276
    %v2202 = vunpack.c.h.b16 %v276
    %v2203 = vunpack.c.l.b16 %v277
    %v2204 = vunpack.c.h.b16 %v277
    %v2205 = vunpack.c.l.b16 %v278
    %v2206 = vunpack.c.h.b16 %v278
    %v2207 = vunpack.c.l.b16 %v279
    %v2208 = vunpack.c.h.b16 %v279
    %v2209 = vunpack.c.l.b16 %v280
    %v2210 = vunpack.c.h.b16 %v280
    %v2211 = vunpack.c.l.b16 %v281
    %v2212 = vunpack.c.h.b16 %v281
    %v2213 = vunpack.c.l.b16 %v282
    %v2214 = vunpack.c.h.b16 %v282
    %v2215 = vunpack.c.l.b16 %v283
    %v2216 = vunpack.c.h.b16 %v283
    %v2217 = vunpack.c.l.b16 %v284
    %v2218 = vunpack.c.h.b16 %v284
    %v2219 = vunpack.c.l.b16 %v285
    %v2220 = vunpack.c.h.b16 %v285
    %v2221 = vunpack.c.l.b16 %v286
    %v2222 = vunpack.c.h.b16 %v286
    %v2223 = vunpack.c.l.b16 %v287
    %v2224 = vunpack.c.h.b16 %v287
    %v2225 = vunpack.c.l.b16 %v288
    %v2226 = vunpack.c.h.b16 %v288
    %v2227 = vunpack.c.l.b16 %v289
    %v2228 = vunpack.c.h.b16 %v289
    %v2229 = vunpack.c.l.b16 %v290
    %v2230 = vunpack.c.h.b16 %v290
    %v2231 = vunpack.c.l.b16 %v291
    %v2232 = vunpack.c.h.b16 %v291
    %v2233 = vunpack.c.l.b16 %v292
    %v2234 = vunpack.c.h.b16 %v292
    %v2235 = vunpack.c.l.b16 %v293
    %v2236 = vunpack.c.h.b16 %v293
    %v2237 = vunpack.c.l.b16 %v294
    %v2238 = vunpack.c.h.b16 %v294
    %v2239 = vunpack.c.l.b16 %v295
    %v2240 = vunpack.c.h.b16 %v295
    %v2241 = vunpack.c.l.b16 %v296
    %v2242 = vunpack.c.h.b16 %v296
    %v2243 = vunpack.c.l.b16 %v297
    %v2244 = vunpack.c.h.b16 %v297
    %v2245 = vunpack.c.l.b16 %v298
    %v2246 = vunpack.c.h.b16 %v298
    %v2247 = vunpack.c.l.b16 %v299
    %v2248 = vunpack.c.h.b16 %v299
    %v2249 = vunpack.c.l.b16 %v300
    %v2250 = vunpack.c.h.b16 %v300
    %v2251 = vunpack.c.l.b16 %v301
    %v2252 = vunpack.c.h.b16 %v301
    %v2253 = vunpack.c.l.b16 %v302
    %v2254 = vunpack.c.h.b16 %v302
    %v2255 = vunpack.c.l.b16 %v303
    %v2256 = vunpack.c.h.b16 %v303
    %v2257 = vunpack.c.l.b16 %v304
    %v2258 = vunpack.c.h.b16 %v304
    %v2259 = vunpack.c.l.b16 %v305
    %v2260 = vunpack.c.h.b16 %v305
    %v2261 = vunpack.c.l.b16 %v306
    %v2262 = vunpack.c.h.b16 %v306
    %v2263 = vunpack.c.l.b16 %v307
    %v2264 = vunpack.c.h.b16 %v307
    %v2265 = vunpack.c.l.b16 %v308
    %v2266 = vunpack.c.h.b16 %v308
    %v2267 = vunpack.c.l.b16 %v309
    %v2268 = vunpack.c.h.b16 %v309
    %v2269 = vunpack.c.l.b16 %v310
    %v2270 = vunpack.c.h.b16 %v310
    %v2271 = vunpack.c.l.b16 %v311
    %v2272 = vunpack.c.h.b16 %v311
    %v2273 = vunpack.c.l.b16 %v312
    %v2274 = vunpack.c.h.b16 %v312
    %v2275 = vunpack.c.l.b16 %v313
    %v2276 = vunpack.c.h.b16 %v313
    %v2277 = vunpack.c.l.b16 %v314
    %v2278 = vunpack.c.h.b16 %v314
    %v2279 = vunpack.c.l.b16 %v315
    %v2280 = vunpack.c.h.b16 %v315
    %v2281 = vunpack.c.l.b16 %v316
    %v2282 = vunpack.c.h.b16 %v316
    %v2283 = vunpack.c.l.b16 %v317
    %v2284 = vunpack.c.h.b16 %v317
    %v2285 = vunpack.c.l.b16 %v318
    %v2286 = vunpack.c.h.b16 %v318
    %v2287 = vunpack.c.l.b16 %v319
    %v2288 = vunpack.c.h.b16 %v319
    %v2289 = vunpack.c.l.b16 %v320
    %v2290 = vunpack.c.h.b16 %v320
    %v2291 = vunpack.c.l.b16 %v321
    %v2292 = vunpack.c.h.b16 %v321
    %v2293 = vunpack.c.l.b16 %v322
    %v2294 = vunpack.c.h.b16 %v322
    %v2295 = vunpack.c.l.b16 %v323
    %v2296 = vunpack.c.h.b16 %v323
    %v2297 = vunpack.c.l.b16 %v324
    %v2298 = vunpack.c.h.b16 %v324
    %v2299 = vunpack.c.l.b16 %v325
    %v2300 = vunpack.c.h.b16 %v325
    %v2301 = vunpack.c.l.b16 %v326
    %v2302 = vunpack.c.h.b16 %v326
    %v2303 = vunpack.c.l.b16 %v327
    %v2304 = vunpack.c.h.b16 %v327
    %v2305 = vunpack.c.l.b16 %v328
    %v2306 = vunpack.c.h.b16 %v328
    %v2307 = vunpack.c.l.b16 %v329
    %v2308 = vunpack.c.h.b16 %v329
    %v2309 = vunpack.c.l.b16 %v330
    %v2310 = vunpack.c.h.b16 %v330
    %v2311 = vunpack.c.l.b16 %v331
    %v2312 = vunpack.c.h.b16 %v331
    %v2313 = vunpack.c.l.b16 %v332
    %v2314 = vunpack.c.h.b16 %v332
    %v2315 = vunpack.c.l.b16 %v333
    %v2316 = vunpack.c.h.b16 %v333
    %v2317 = vunpack.c.l.b16 %v334
    %v2318 = vunpack.c.h.b16 %v334
    %v2319 = vunpack.c.l.b16 %v335
    %v2320 = vunpack.c.h.b16 %v335
    %v2321 = vunpack.c.l.b16 %v336
    %v2322 = vunpack.c.h.b16 %v336
    %v2323 = vunpack.c.l.b16 %v337
    %v2324 = vunpack.c.h.b16 %v337
    %v2325 = vunpack.c.l.b16 %v338
    %v2326 = vunpack.c.h.b16 %v338
    %v2327 = vunpack.c.l.b16 %v339
    %v2328 = vunpack.c.h.b16 %v339
    %v2329 = vunpack.c.l.b16 %v340
    %v2330 = vunpack.c.h.b16 %v340
    %v2331 = vunpack.c.l.b16 %v341
    %v2332 = vunpack.c.h.b16 %v341
    %v2333 = vunpack.c.l.b16 %v342
    %v2334 = vunpack.c.h.b16 %v342
    %v2335 = vunpack.c.l.b16 %v343
    %v2336 = vunpack.c.h.b16 %v343
    %v2337 = vunpack.c.l.b16 %v344
    %v2338 = vunpack.c.h.b16 %v344
    %v2339 = vunpack.c.l.b16 %v345
    %v2340 = vunpack.c.h.b16 %v345
    %v2341 = vunpack.c.l.b16 %v346
    %v2342 = vunpack.c.h.b16 %v346
    %v2343 = vunpack.c.l.b16 %v347
    %v2344 = vunpack.c.h.b16 %v347
    %v2345 = vunpack.c.l.b16 %v348
    %v2346 = vunpack.c.h.b16 %v348
    %v2347 = vunpack.c.l.b16 %v349
    %v2348 = vunpack.c.h.b16 %v349
    %v2349 = vunpack.c.l.b16 %v350
    %v2350 = vunpack.c.h.b16 %v350
    %v2351 = vunpack.c.l.b16 %v351
    %v2352 = vunpack.c.h.b16 %v351
    %v2353 = vunpack.c.l.b16 %v352
    %v2354 = vunpack.c.h.b16 %v352
    %v2355 = vunpack.c.l.b16 %v353
    %v2356 = vunpack.c.h.b16 %v353
    %v2357 = vunpack.c.l.b16 %v354
    %v2358 = vunpack.c.h.b16 %v354
    %v2359 = vunpack.c.l.b16 %v355
    %v2360 = vunpack.c.h.b16 %v355
    %v2361 = vunpack.c.l.b16 %v356
    %v2362 = vunpack.c.h.b16 %v356
    %v2363 = vunpack.c.l.b16 %v357
    %v2364 = vunpack.c.h.b16 %v357
    %v2365 = vunpack.c.l.b16 %v358
    %v2366 = vunpack.c.h.b16 %v358
    %v2367 = vunpack.c.l.b16 %v359
    %v2368 = vunpack.c.h.b16 %v359
    %v2369 = vunpack.c.l.b16 %v360
    %v2370 = vunpack.c.h.b16 %v360
    %v2371 = vunpack.c.l.b16 %v361
    %v2372 = vunpack.c.h.b16 %v361
    %v2373 = vunpack.c.l.b16 %v362
    %v2374 = vunpack.c.h.b16 %v362
    %v2375 = vunpack.c.l.b16 %v363
    %v2376 = vunpack.c.h.b16 %v363
    %v2377 = vunpack.c.l.b16 %v364
    %v2378 = vunpack.c.h.b16 %v364
    %v2379 = vunpack.c.l.b16 %v365
    %v2380 = vunpack.c.h.b16 %v365
    %v2381 = vunpack.c.l.b16 %v366
    %v2382 = vunpack.c.h.b16 %v366
    %v2383 = vunpack.c.l.b16 %v367
    %v2384 = vunpack.c.h.b16 %v367
    %v2385 = vunpack.c.l.b16 %v368
    %v2386 = vunpack.c.h.b16 %v368
    %v2387 = vunpack.c.l.b16 %v369
    %v2388 = vunpack.c.h.b16 %v369
    %v2389 = vunpack.c.l.b16 %v370
    %v2390 = vunpack.c.h.b16 %v370
    %v2391 = vunpack.c.l.b16 %v371
    %v2392 = vunpack.c.h.b16 %v371
    %v2393 = vunpack.c.l.b16 %v372
    %v2394 = vunpack.c.h.b16 %v372
    %v2395 = vunpack.c.l.b16 %v373
    %v2396 = vunpack.c.h.b16 %v373
    %v2397 = vunpack.c.l.b16 %v374
    %v2398 = vunpack.c.h.b16 %v374
    %v2399 = vunpack.c.l.b16 %v375
    %v2400 = vunpack.c.h.b16 %v375
    %v2401 = vunpack.c.l.b16 %v376
    %v2402 = vunpack.c.h.b16 %v376
    %v2403 = vunpack.c.l.b16 %v377
    %v2404 = vunpack.c.h.b16 %v377
    %v2405 = vunpack.c.l.b16 %v378
    %v2406 = vunpack.c.h.b16 %v378
    %v2407 = vunpack.c.l.b16 %v379
    %v2408 = vunpack.c.h.b16 %v379
    %v2409 = vunpack.c.l.b16 %v380
    %v2410 = vunpack.c.h.b16 %v380
    %v2411 = vunpack.c.l.b16 %v381
    %v2412 = vunpack.c.h.b16 %v381
    %v2413 = vunpack.c.l.b16 %v382
    %v2414 = vunpack.c.h.b16 %v382
    %v2415 = vunpack.c.l.b16 %v383
    %v2416 = vunpack.c.h.b16 %v383
    %v2417 = vunpack.c.l.b16 %v384
    %v2418 = vunpack.c.h.b16 %v384
    %v2419 = vunpack.c.l.b16 %v385
    %v2420 = vunpack.c.h.b16 %v385
    %v2421 = vunpack.c.l.b16 %v386
    %v2422 = vunpack.c.h.b16 %v386
    %v2423 = vunpack.c.l.b16 %v387
    %v2424 = vunpack.c.h.b16 %v387
    %v2425 = vunpack.c.l.b16 %v388
    %v2426 = vunpack.c.h.b16 %v388
    %v2427 = vunpack.c.l.b16 %v389
    %v2428 = vunpack.c.h.b16 %v389
    %v2429 = vunpack.c.l.b16 %v390
    %v2430 = vunpack.c.h.b16 %v390
    %v2431 = vunpack.c.l.b16 %v391
    %v2432 = vunpack.c.h.b16 %v391
    %v2433 = vunpack.c.l.b16 %v392
    %v2434 = vunpack.c.h.b16 %v392
    %v2435 = vunpack.c.l.b16 %v393
    %v2436 = vunpack.c.h.b16 %v393
    %v2437 = vunpack.c.l.b16 %v394
    %v2438 = vunpack.c.h.b16 %v394
    %v2439 = vunpack.c.l.b16 %v395
    %v2440 = vunpack.c.h.b16 %v395
    %v2441 = vunpack.c.l.b16 %v396
    %v2442 = vunpack.c.h.b16 %v396
    %v2443 = vunpack.c.l.b16 %v397
    %v2444 = vunpack.c.h.b16 %v397
    %v2445 = vunpack.c.l.b16 %v398
    %v2446 = vunpack.c.h.b16 %v398
    %v2447 = vunpack.c.l.b16 %v399
    %v2448 = vunpack.c.h.b16 %v399
    %v2449 = vunpack.c.l.b16 %v400
    %v2450 = vunpack.c.h.b16 %v400
    %v2451 = vunpack.c.l.b16 %v401
    %v2452 = vunpack.c.h.b16 %v401
    %v2453 = vunpack.c.l.b16 %v402
    %v2454 = vunpack.c.h.b16 %v402
    %v2455 = vunpack.c.l.b16 %v403
    %v2456 = vunpack.c.h.b16 %v403
    %v2457 = vunpack.c.l.b16 %v404
    %v2458 = vunpack.c.h.b16 %v404
    %v2459 = vunpack.c.l.b16 %v405
    %v2460 = vunpack.c.h.b16 %v405
    %v2461 = vunpack.c.l.b16 %v406
    %v2462 = vunpack.c.h.b16 %v406
    %v2463 = vunpack.c.l.b16 %v407
    %v2464 = vunpack.c.h.b16 %v407
    %v2465 = vunpack.c.l.b16 %v408
    %v2466 = vunpack.c.h.b16 %v408
    %v2467 = vunpack.c.l.b16 %v409
    %v2468 = vunpack.c.h.b16 %v409
    %v2469 = vunpack.c.l.b16 %v410
    %v2470 = vunpack.c.h.b16 %v410
    %v2471 = vunpack.c.l.b16 %v411
    %v2472 = vunpack.c.h.b16 %v411
    %v2473 = vunpack.c.l.b16 %v412
    %v2474 = vunpack.c.h.b16 %v412
    %v2475 = vunpack.c.l.b16 %v413
    %v2476 = vunpack.c.h.b16 %v413
    %v2477 = vunpack.c.l.b16 %v414
    %v2478 = vunpack.c.h.b16 %v414
    %v2479 = vunpack.c.l.b16 %v415
    %v2480 = vunpack.c.h.b16 %v415
    %v2481 = vunpack.c.l.b16 %v416
    %v2482 = vunpack.c.h.b16 %v416
    %v2483 = vunpack.c.l.b16 %v417
    %v2484 = vunpack.c.h.b16 %v417
    %v2485 = vunpack.c.l.b16 %v418
    %v2486 = vunpack.c.h.b16 %v418
    %v2487 = vunpack.c.l.b16 %v419
    %v2488 = vunpack.c.h.b16 %v419
    %v2489 = vunpack.c.l.b16 %v420
    %v2490 = vunpack.c.h.b16 %v420
    %v2491 = vunpack.c.l.b16 %v421
    %v2492 = vunpack.c.h.b16 %v421
    %v2493 = vunpack.c.l.b16 %v422
    %v2494 = vunpack.c.h.b16 %v422
    %v2495 = vunpack.c.l.b16 %v423
    %v2496 = vunpack.c.h.b16 %v423
    %v2497 = vunpack.c.l.b16 %v424
    %v2498 = vunpack.c.h.b16 %v424
    %v2499 = vunpack.c.l.b16 %v425
    %v2500 = vunpack.c.h.b16 %v425
    %v2501 = vunpack.c.l.b16 %v426
    %v2502 = vunpack.c.h.b16 %v426
    %v2503 = vunpack.c.l.b16 %v427
    %v2504 = vunpack.c.h.b16 %v427
    %v2505 = vunpack.c.l.b16 %v428
    %v2506 = vunpack.c.h.b16 %v428
    %v2507 = vunpack.c.l.b16 %v429
    %v2508 = vunpack.c.h.b16 %v429
    %v2509 = vunpack.c.l.b16 %v430
    %v2510 = vunpack.c.h.b16 %v430
    %v2511 = vunpack.c.l.b16 %v431
    %v2512 = vunpack.c.h.b16 %v431
    %v2513 = vunpack.c.l.b16 %v432
    %v2514 = vunpack.c.h.b16 %v432
    %v2515 = vunpack.c.l.b16 %v433
    %v2516 = vunpack.c.h.b16 %v433
    %v2517 = vunpack.c.l.b16 %v434
    %v2518 = vunpack.c.h.b16 %v434
    %v2519 = vunpack.c.l.b16 %v435
    %v2520 = vunpack.c.h.b16 %v435
    %v2521 = vunpack.c.l.b16 %v436
    %v2522 = vunpack.c.h.b16 %v436
    %v2523 = vunpack.c.l.b16 %v437
    %v2524 = vunpack.c.h.b16 %v437
    %v2525 = vunpack.c.l.b16 %v438
    %v2526 = vunpack.c.h.b16 %v438
    %v2527 = vunpack.c.l.b16 %v439
    %v2528 = vunpack.c.h.b16 %v439
    %v2529 = vunpack.c.l.b16 %v440
    %v2530 = vunpack.c.h.b16 %v440
    %v2531 = vunpack.c.l.b16 %v441
    %v2532 = vunpack.c.h.b16 %v441
    %v2533 = vunpack.c.l.b16 %v442
    %v2534 = vunpack.c.h.b16 %v442
    %v2535 = vunpack.c.l.b16 %v443
    %v2536 = vunpack.c.h.b16 %v443
    %v2537 = vunpack.c.l.b16 %v444
    %v2538 = vunpack.c.h.b16 %v444
    %v2539 = vunpack.c.l.b16 %v445
    %v2540 = vunpack.c.h.b16 %v445
    %v2541 = vunpack.c.l.b16 %v446
    %v2542 = vunpack.c.h.b16 %v446
    %v2543 = vunpack.c.l.b16 %v447
    %v2544 = vunpack.c.h.b16 %v447
    %v2545 = vunpack.c.l.b16 %v448
    %v2546 = vunpack.c.h.b16 %v448
    %v2547 = vunpack.c.l.b16 %v449
    %v2548 = vunpack.c.h.b16 %v449
    %v2549 = vunpack.c.l.b16 %v450
    %v2550 = vunpack.c.h.b16 %v450
    %v2551 = vunpack.c.l.b16 %v451
    %v2552 = vunpack.c.h.b16 %v451
    %v2553 = vunpack.c.l.b16 %v452
    %v2554 = vunpack.c.h.b16 %v452
    %v2555 = vunpack.c.l.b16 %v453
    %v2556 = vunpack.c.h.b16 %v453
    %v2557 = vunpack.c.l.b16 %v454
    %v2558 = vunpack.c.h.b16 %v454
    %v2559 = vunpack.c.l.b16 %v455
    %v2560 = vunpack.c.h.b16 %v455
    %v2561 = vunpack.c.l.b16 %v456
    %v2562 = vunpack.c.h.b16 %v456
    %v2563 = vunpack.c.l.b16 %v457
    %v2564 = vunpack.c.h.b16 %v457
    %v2565 = vunpack.c.l.b16 %v458
    %v2566 = vunpack.c.h.b16 %v458
    %v2567 = vunpack.c.l.b16 %v459
    %v2568 = vunpack.c.h.b16 %v459
    %v2569 = vunpack.c.l.b16 %v460
    %v2570 = vunpack.c.h.b16 %v460
    %v2571 = vunpack.c.l.b16 %v461
    %v2572 = vunpack.c.h.b16 %v461
    %v2573 = vunpack.c.l.b16 %v462
    %v2574 = vunpack.c.h.b16 %v462
    %v2575 = vunpack.c.l.b16 %v463
    %v2576 = vunpack.c.h.b16 %v463
    %v2577 = vunpack.c.l.b16 %v464
    %v2578 = vunpack.c.h.b16 %v464
    %v2579 = vunpack.c.l.b16 %v465
    %v2580 = vunpack.c.h.b16 %v465
    %v2581 = vunpack.c.l.b16 %v466
    %v2582 = vunpack.c.h.b16 %v466
    %v2583 = vunpack.c.l.b16 %v467
    %v2584 = vunpack.c.h.b16 %v467
    %v2585 = vunpack.c.l.b16 %v468
    %v2586 = vunpack.c.h.b16 %v468
    %v2587 = vunpack.c.l.b16 %v469
    %v2588 = vunpack.c.h.b16 %v469
    %v2589 = vunpack.c.l.b16 %v470
    %v2590 = vunpack.c.h.b16 %v470
    %v2591 = vunpack.c.l.b16 %v471
    %v2592 = vunpack.c.h.b16 %v471
    %v2593 = vunpack.c.l.b16 %v472
    %v2594 = vunpack.c.h.b16 %v472
    %v2595 = vunpack.c.l.b16 %v473
    %v2596 = vunpack.c.h.b16 %v473
    %v2597 = vunpack.c.l.b16 %v474
    %v2598 = vunpack.c.h.b16 %v474
    %v2599 = vunpack.c.l.b16 %v475
    %v2600 = vunpack.c.h.b16 %v475
    %v2601 = vunpack.c.l.b16 %v476
    %v2602 = vunpack.c.h.b16 %v476
    %v2603 = vunpack.c.l.b16 %v477
    %v2604 = vunpack.c.h.b16 %v477
    %v2605 = vunpack.c.l.b16 %v478
    %v2606 = vunpack.c.h.b16 %v478
    %v2607 = vunpack.c.l.b16 %v479
    %v2608 = vunpack.c.h.b16 %v479
    %v2609 = vunpack.c.l.b16 %v480
    %v2610 = vunpack.c.h.b16 %v480
    %v2611 = vunpack.c.l.b16 %v481
    %v2612 = vunpack.c.h.b16 %v481
    %v2613 = vunpack.c.l.b16 %v482
    %v2614 = vunpack.c.h.b16 %v482
    %v2615 = vunpack.c.l.b16 %v483
    %v2616 = vunpack.c.h.b16 %v483
    %v2617 = vunpack.c.l.b16 %v484
    %v2618 = vunpack.c.h.b16 %v484
    %v2619 = vunpack.c.l.b16 %v485
    %v2620 = vunpack.c.h.b16 %v485
    %v2621 = vunpack.c.l.b16 %v486
    %v2622 = vunpack.c.h.b16 %v486
    %v2623 = vunpack.c.l.b16 %v487
    %v2624 = vunpack.c.h.b16 %v487
    %v2625 = vunpack.c.l.b16 %v488
    %v2626 = vunpack.c.h.b16 %v488
    %v2627 = vunpack.c.l.b16 %v489
    %v2628 = vunpack.c.h.b16 %v489
    %v2629 = vunpack.c.l.b16 %v490
    %v2630 = vunpack.c.h.b16 %v490
    %v2631 = vunpack.c.l.b16 %v491
    %v2632 = vunpack.c.h.b16 %v491
    %v2633 = vunpack.c.l.b16 %v492
    %v2634 = vunpack.c.h.b16 %v492
    %v2635 = vunpack.c.l.b16 %v493
    %v2636 = vunpack.c.h.b16 %v493
    %v2637 = vunpack.c.l.b16 %v494
    %v2638 = vunpack.c.h.b16 %v494
    %v2639 = vunpack.c.l.b16 %v495
    %v2640 = vunpack.c.h.b16 %v495
    %v2641 = vunpack.c.l.b16 %v496
    %v2642 = vunpack.c.h.b16 %v496
    %v2643 = vunpack.c.l.b16 %v497
    %v2644 = vunpack.c.h.b16 %v497
    %v2645 = vunpack.c.l.b16 %v498
    %v2646 = vunpack.c.h.b16 %v498
    %v2647 = vunpack.c.l.b16 %v499
    %v2648 = vunpack.c.h.b16 %v499
    %v2649 = vunpack.c.l.b16 %v500
    %v2650 = vunpack.c.h.b16 %v500
    %v2651 = vunpack.c.l.b16 %v501
    %v2652 = vunpack.c.h.b16 %v501
    %v2653 = vunpack.c.l.b16 %v502
    %v2654 = vunpack.c.h.b16 %v502
    %v2655 = vunpack.c.l.b16 %v503
    %v2656 = vunpack.c.h.b16 %v503
    %v2657 = vunpack.c.l.b16 %v504
    %v2658 = vunpack.c.h.b16 %v504
    %v2659 = vunpack.c.l.b16 %v505
    %v2660 = vunpack.c.h.b16 %v505
    %v2661 = vunpack.c.l.b16 %v506
    %v2662 = vunpack.c.h.b16 %v506
    %v2663 = vunpack.c.l.b16 %v507
    %v2664 = vunpack.c.h.b16 %v507
    %v2665 = vunpack.c.l.b16 %v508
    %v2666 = vunpack.c.h.b16 %v508
    %v2667 = vunpack.c.l.b16 %v509
    %v2668 = vunpack.c.h.b16 %v509
    %v2669 = vunpack.c.l.b16 %v510
    %v2670 = vunpack.c.h.b16 %v510
    %v2671 = vunpack.c.l.b16 %v511
    %v2672 = vunpack.c.h.b16 %v511
    %v2673 = vunpack.c.l.b16 %v512
    %v2674 = vunpack.c.h.b16 %v512
    %v2675 = vunpack.c.l.b16 %v513
    %v2676 = vunpack.c.h.b16 %v513
    %v2677 = vunpack.c.l.b16 %v514
    %v2678 = vunpack.c.h.b16 %v514
    %v2679 = vunpack.c.l.b16 %v515
    %v2680 = vunpack.c.h.b16 %v515
    %v2681 = vunpack.c.l.b16 %v516
    %v2682 = vunpack.c.h.b16 %v516
    %v2683 = vunpack.c.l.b16 %v517
    %v2684 = vunpack.c.h.b16 %v517
    %v2685 = vunpack.c.l.b16 %v518
    %v2686 = vunpack.c.h.b16 %v518
    %v2687 = vunpack.c.l.b16 %v519
    %v2688 = vunpack.c.h.b16 %v519
    %v2689 = vunpack.c.l.b16 %v520
    %v2690 = vunpack.c.h.b16 %v520
    %v2691 = vunpack.c.l.b16 %v521
    %v2692 = vunpack.c.h.b16 %v521
    %v2693 = vunpack.c.l.b16 %v522
    %v2694 = vunpack.c.h.b16 %v522
    %v2695 = vunpack.c.l.b16 %v523
    %v2696 = vunpack.c.h.b16 %v523
    %v2697 = vunpack.c.l.b16 %v524
    %v2698 = vunpack.c.h.b16 %v524
    %v2699 = vunpack.c.l.b16 %v525
    %v2700 = vunpack.c.h.b16 %v525
    %v2701 = vunpack.c.l.b16 %v526
    %v2702 = vunpack.c.h.b16 %v526
    %v2703 = vunpack.c.l.b16 %v527
    %v2704 = vunpack.c.h.b16 %v527
    %v2705 = vunpack.c.l.b16 %v528
    %v2706 = vunpack.c.h.b16 %v528
    %v2707 = vunpack.c.l.b16 %v529
    %v2708 = vunpack.c.h.b16 %v529
    %v2709 = vunpack.c.l.b16 %v530
    %v2710 = vunpack.c.h.b16 %v530
    %v2711 = vunpack.c.l.b16 %v531
    %v2712 = vunpack.c.h.b16 %v531
    %v2713 = vunpack.c.l.b16 %v532
    %v2714 = vunpack.c.h.b16 %v532
    %v2715 = vunpack.c.l.b16 %v533
    %v2716 = vunpack.c.h.b16 %v533
    %v2717 = vunpack.c.l.b16 %v534
    %v2718 = vunpack.c.h.b16 %v534
    %v2719 = vunpack.c.l.b16 %v535
    %v2720 = vunpack.c.h.b16 %v535
    %v2721 = vunpack.c.l.b16 %v536
    %v2722 = vunpack.c.h.b16 %v536
    %v2723 = vunpack.c.l.b16 %v537
    %v2724 = vunpack.c.h.b16 %v537
    %v2725 = vunpack.c.l.b16 %v538
    %v2726 = vunpack.c.h.b16 %v538
    %v2727 = vunpack.c.l.b16 %v539
    %v2728 = vunpack.c.h.b16 %v539
    %v2729 = vunpack.c.l.b16 %v540
    %v2730 = vunpack.c.h.b16 %v540
    %v2731 = vunpack.c.l.b16 %v541
    %v2732 = vunpack.c.h.b16 %v541
    %v2733 = vunpack.c.l.b16 %v542
    %v2734 = vunpack.c.h.b16 %v542
    %v2735 = vunpack.c.l.b16 %v543
    %v2736 = vunpack.c.h.b16 %v543
    %v2737 = vunpack.c.l.b16 %v544
    %v2738 = vunpack.c.h.b16 %v544
    %v2739 = vunpack.c.l.b16 %v545
    %v2740 = vunpack.c.h.b16 %v545
    %v2741 = vunpack.c.l.b16 %v546
    %v2742 = vunpack.c.h.b16 %v546
    %v2743 = vunpack.c.l.b16 %v547
    %v2744 = vunpack.c.h.b16 %v547
    %v2745 = vunpack.c.l.b16 %v548
    %v2746 = vunpack.c.h.b16 %v548
    %v2747 = vunpack.c.l.b16 %v549
    %v2748 = vunpack.c.h.b16 %v549
    %v2749 = vunpack.c.l.b16 %v550
    %v2750 = vunpack.c.h.b16 %v550
    %v2751 = vunpack.c.l.b16 %v551
    %v2752 = vunpack.c.h.b16 %v551
    %v2753 = vunpack.c.l.b16 %v552
    %v2754 = vunpack.c.h.b16 %v552
    %v2755 = vunpack.c.l.b16 %v553
    %v2756 = vunpack.c.h.b16 %v553
    %v2757 = vunpack.c.l.b16 %v554
    %v2758 = vunpack.c.h.b16 %v554
    %v2759 = vunpack.c.l.b16 %v555
    %v2760 = vunpack.c.h.b16 %v555
    %v2761 = vunpack.c.l.b16 %v556
    %v2762 = vunpack.c.h.b16 %v556
    %v2763 = vunpack.c.l.b16 %v557
    %v2764 = vunpack.c.h.b16 %v557
    %v2765 = vunpack.c.l.b16 %v558
    %v2766 = vunpack.c.h.b16 %v558
    %v2767 = vunpack.c.l.b16 %v559
    %v2768 = vunpack.c.h.b16 %v559
    %v2769 = vunpack.c.l.b16 %v560
    %v2770 = vunpack.c.h.b16 %v560
    %v2771 = vunpack.c.l.b16 %v561
    %v2772 = vunpack.c.h.b16 %v561
    %v2773 = vunpack.c.l.b16 %v562
    %v2774 = vunpack.c.h.b16 %v562
    %v2775 = vunpack.c.l.b16 %v563
    %v2776 = vunpack.c.h.b16 %v563
    %v2777 = vunpack.c.l.b16 %v564
    %v2778 = vunpack.c.h.b16 %v564
    %v2779 = vunpack.c.l.b16 %v565
    %v2780 = vunpack.c.h.b16 %v565
    %v2781 = vunpack.c.l.b16 %v566
    %v2782 = vunpack.c.h.b16 %v566
    %v2783 = vunpack.c.l.b16 %v567
    %v2784 = vunpack.c.h.b16 %v567
    %v2785 = vunpack.c.l.b16 %v568
    %v2786 = vunpack.c.h.b16 %v568
    %v2787 = vunpack.c.l.b16 %v569
    %v2788 = vunpack.c.h.b16 %v569
    %v2789 = vunpack.c.l.b16 %v570
    %v2790 = vunpack.c.h.b16 %v570
    %v2791 = vunpack.c.l.b16 %v571
    %v2792 = vunpack.c.h.b16 %v571
    %v2793 = vunpack.c.l.b16 %v572
    %v2794 = vunpack.c.h.b16 %v572
    %v2795 = vunpack.c.l.b16 %v573
    %v2796 = vunpack.c.h.b16 %v573
    %v2797 = vunpack.c.l.b16 %v574
    %v2798 = vunpack.c.h.b16 %v574
    %v2799 = vunpack.c.l.b16 %v575
    %v2800 = vunpack.c.h.b16 %v575
    %v2801 = vunpack.c.l.b16 %v576
    %v2802 = vunpack.c.h.b16 %v576
    %v2803 = vunpack.c.l.b16 %v577
    %v2804 = vunpack.c.h.b16 %v577
    %v2805 = vunpack.c.l.b16 %v578
    %v2806 = vunpack.c.h.b16 %v578
    %v2807 = vunpack.c.l.b16 %v579
    %v2808 = vunpack.c.h.b16 %v579
    %v2809 = vunpack.c.l.b16 %v580
    %v2810 = vunpack.c.h.b16 %v580
    %v2811 = vunpack.c.l.b16 %v581
    %v2812 = vunpack.c.h.b16 %v581
    %v2813 = vunpack.c.l.b16 %v582
    %v2814 = vunpack.c.h.b16 %v582
    %v2815 = vunpack.c.l.b16 %v583
    %v2816 = vunpack.c.h.b16 %v583
    %v2817 = vunpack.c.l.b16 %v584
    %v2818 = vunpack.c.h.b16 %v584
    %v2819 = vunpack.c.l.b16 %v585
    %v2820 = vunpack.c.h.b16 %v585
    %v2821 = vunpack.c.l.b16 %v586
    %v2822 = vunpack.c.h.b16 %v586
    %v2823 = vunpack.c.l.b16 %v587
    %v2824 = vunpack.c.h.b16 %v587
    %v2825 = vunpack.c.l.b16 %v588
    %v2826 = vunpack.c.h.b16 %v588
    %v2827 = vunpack.c.l.b16 %v589
    %v2828 = vunpack.c.h.b16 %v589
    %v2829 = vunpack.c.l.b16 %v590
    %v2830 = vunpack.c.h.b16 %v590
    %v2831 = vunpack.c.l.b16 %v591
    %v2832 = vunpack.c.h.b16 %v591
    %v2833 = vunpack.c.l.b16 %v592
    %v2834 = vunpack.c.h.b16 %v592
    %v2835 = vunpack.c.l.b16 %v593
    %v2836 = vunpack.c.h.b16 %v593
    %v2837 = vunpack.c.l.b16 %v594
    %v2838 = vunpack.c.h.b16 %v594
    %v2839 = vunpack.c.l.b16 %v595
    %v2840 = vunpack.c.h.b16 %v595
    %v2841 = vunpack.c.l.b16 %v596
    %v2842 = vunpack.c.h.b16 %v596
    %v2843 = vunpack.c.l.b16 %v597
    %v2844 = vunpack.c.h.b16 %v597
    %v2845 = vunpack.c.l.b16 %v598
    %v2846 = vunpack.c.h.b16 %v598
    %v2847 = vunpack.c.l.b16 %v599
    %v2848 = vunpack.c.h.b16 %v599
    %v2849 = vunpack.c.l.b16 %v600
    %v2850 = vunpack.c.h.b16 %v600
    %v2851 = vunpack.c.l.b16 %v601
    %v2852 = vunpack.c.h.b16 %v601
    %v2853 = vunpack.c.l.b16 %v602
    %v2854 = vunpack.c.h.b16 %v602
    %v2855 = vunpack.c.l.b16 %v603
    %v2856 = vunpack.c.h.b16 %v603
    %v2857 = vunpack.c.l.b16 %v604
    %v2858 = vunpack.c.h.b16 %v604
    %v2859 = vunpack.c.l.b16 %v605
    %v2860 = vunpack.c.h.b16 %v605
    %v2861 = vunpack.c.l.b16 %v606
    %v2862 = vunpack.c.h.b16 %v606
    %v2863 = vunpack.c.l.b16 %v607
    %v2864 = vunpack.c.h.b16 %v607
    %v2865 = vunpack.c.l.b16 %v608
    %v2866 = vunpack.c.h.b16 %v608
    %v2867 = vunpack.c.l.b16 %v609
    %v2868 = vunpack.c.h.b16 %v609
    %v2869 = vunpack.c.l.b16 %v610
    %v2870 = vunpack.c.h.b16 %v610
    %v2871 = vunpack.c.l.b16 %v611
    %v2872 = vunpack.c.h.b16 %v611
    %v2873 = vunpack.c.l.b16 %v612
    %v2874 = vunpack.c.h.b16 %v612
    %v2875 = vunpack.c.l.b16 %v613
    %v2876 = vunpack.c.h.b16 %v613
    %v2877 = vunpack.c.l.b16 %v614
    %v2878 = vunpack.c.h.b16 %v614
    %v2879 = vunpack.c.l.b16 %v615
    %v2880 = vunpack.c.h.b16 %v615
    %v2881 = vunpack.c.l.b16 %v616
    %v2882 = vunpack.c.h.b16 %v616
    %v2883 = vunpack.c.l.b16 %v617
    %v2884 = vunpack.c.h.b16 %v617
    %v2885 = vunpack.c.l.b16 %v618
    %v2886 = vunpack.c.h.b16 %v618
    %v2887 = vunpack.c.l.b16 %v619
    %v2888 = vunpack.c.h.b16 %v619
    %v2889 = vunpack.c.l.b16 %v620
    %v2890 = vunpack.c.h.b16 %v620
    %v2891 = vunpack.c.l.b16 %v621
    %v2892 = vunpack.c.h.b16 %v621
    %v2893 = vunpack.c.l.b16 %v622
    %v2894 = vunpack.c.h.b16 %v622
    %v2895 = vunpack.c.l.b16 %v623
    %v2896 = vunpack.c.h.b16 %v623
    %v2897 = vunpack.c.l.b16 %v624
    %v2898 = vunpack.c.h.b16 %v624
    %v2899 = vunpack.c.l.b16 %v625
    %v2900 = vunpack.c.h.b16 %v625
    %v2901 = vunpack.c.l.b16 %v626
    %v2902 = vunpack.c.h.b16 %v626
    %v2903 = vunpack.c.l.b16 %v627
    %v2904 = vunpack.c.h.b16 %v627
    %v2905 = vunpack.c.l.b16 %v628
    %v2906 = vunpack.c.h.b16 %v628
    %v2907 = vunpack.c.l.b16 %v629
    %v2908 = vunpack.c.h.b16 %v629
    %v2909 = vunpack.c.l.b16 %v630
    %v2910 = vunpack.c.h.b16 %v630
    %v2911 = vunpack.c.l.b16 %v631
    %v2912 = vunpack.c.h.b16 %v631
    %v2913 = vunpack.c.l.b16 %v632
    %v2914 = vunpack.c.h.b16 %v632
    %v2915 = vunpack.c.l.b16 %v633
    %v2916 = vunpack.c.h.b16 %v633
    %v2917 = vunpack.c.l.b16 %v634
    %v2918 = vunpack.c.h.b16 %v634
    %v2919 = vunpack.c.l.b16 %v635
    %v2920 = vunpack.c.h.b16 %v635
    %v2921 = vunpack.c.l.b16 %v636
    %v2922 = vunpack.c.h.b16 %v636
    %v2923 = vunpack.c.l.b16 %v637
    %v2924 = vunpack.c.h.b16 %v637
    %v2925 = vunpack.c.l.b16 %v638
    %v2926 = vunpack.c.h.b16 %v638
    %v2927 = vunpack.c.l.b16 %v639
    %v2928 = vunpack.c.h.b16 %v639
    %v2929 = vunpack.c.l.b16 %v640
    %v2930 = vunpack.c.h.b16 %v640
    %v2931 = vunpack.c.l.b16 %v641
    %v2932 = vunpack.c.h.b16 %v641
    %v2933 = vunpack.c.l.b16 %v642
    %v2934 = vunpack.c.h.b16 %v642
    %v2935 = vunpack.c.l.b16 %v643
    %v2936 = vunpack.c.h.b16 %v643
    %v2937 = vunpack.c.l.b16 %v644
    %v2938 = vunpack.c.h.b16 %v644
    %v2939 = vunpack.c.l.b16 %v645
    %v2940 = vunpack.c.h.b16 %v645
    %v2941 = vunpack.c.l.b16 %v646
    %v2942 = vunpack.c.h.b16 %v646
    %v2943 = vunpack.c.l.b16 %v647
    %v2944 = vunpack.c.h.b16 %v647
    %v2945 = vunpack.c.l.b16 %v648
    %v2946 = vunpack.c.h.b16 %v648
    %v2947 = vunpack.c.l.b16 %v649
    %v2948 = vunpack.c.h.b16 %v649
    %v2949 = vunpack.c.l.b16 %v650
    %v2950 = vunpack.c.h.b16 %v650
    %v2951 = vunpack.c.l.b16 %v651
    %v2952 = vunpack.c.h.b16 %v651
    %v2953 = vunpack.c.l.b16 %v652
    %v2954 = vunpack.c.h.b16 %v652
    %v2955 = vunpack.c.l.b16 %v653
    %v2956 = vunpack.c.h.b16 %v653
    %v2957 = vunpack.c.l.b16 %v654
    %v2958 = vunpack.c.h.b16 %v654
    %v2959 = vunpack.c.l.b16 %v655
    %v2960 = vunpack.c.h.b16 %v655
    %v2961 = vunpack.c.l.b16 %v656
    %v2962 = vunpack.c.h.b16 %v656
    %v2963 = vunpack.c.l.b16 %v657
    %v2964 = vunpack.c.h.b16 %v657
    %v2965 = vunpack.c.l.b16 %v658
    %v2966 = vunpack.c.h.b16 %v658
    %v2967 = vunpack.c.l.b16 %v659
    %v2968 = vunpack.c.h.b16 %v659
    %v2969 = vunpack.c.l.b16 %v660
    %v2970 = vunpack.c.h.b16 %v660
    %v2971 = vunpack.c.l.b16 %v661
    %v2972 = vunpack.c.h.b16 %v661
    %v2973 = vunpack.c.l.b16 %v662
    %v2974 = vunpack.c.h.b16 %v662
    %v2975 = vunpack.c.l.b16 %v663
    %v2976 = vunpack.c.h.b16 %v663
    %v2977 = vunpack.c.l.b16 %v664
    %v2978 = vunpack.c.h.b16 %v664
    %v2979 = vunpack.c.l.b16 %v665
    %v2980 = vunpack.c.h.b16 %v665
    %v2981 = vunpack.c.l.b16 %v666
    %v2982 = vunpack.c.h.b16 %v666
    %v2983 = vunpack.c.l.b16 %v667
    %v2984 = vunpack.c.h.b16 %v667
    %v2985 = vunpack.c.l.b16 %v668
    %v2986 = vunpack.c.h.b16 %v668
    %v2987 = vunpack.c.l.b16 %v669
    %v2988 = vunpack.c.h.b16 %v669
    %v2989 = vunpack.c.l.b16 %v670
    %v2990 = vunpack.c.h.b16 %v670
    %v2991 = vunpack.c.l.b16 %v671
    %v2992 = vunpack.c.h.b16 %v671
    %v2993 = vunpack.c.l.b16 %v672
    %v2994 = vunpack.c.h.b16 %v672
    %v2995 = vunpack.c.l.b16 %v673
    %v2996 = vunpack.c.h.b16 %v673
    %v2997 = vunpack.c.l.b16 %v674
    %v2998 = vunpack.c.h.b16 %v674
    %v2999 = vunpack.c.l.b16 %v675
    %v3000 = vunpack.c.h.b16 %v675
    %v3001 = vunpack.c.l.b16 %v676
    %v3002 = vunpack.c.h.b16 %v676
    %v3003 = vunpack.c.l.b16 %v677
    %v3004 = vunpack.c.h.b16 %v677
    %v3005 = vunpack.c.l.b16 %v678
    %v3006 = vunpack.c.h.b16 %v678
    %v3007 = vunpack.c.l.b16 %v679
    %v3008 = vunpack.c.h.b16 %v679
    %v3009 = vunpack.c.l.b16 %v680
    %v3010 = vunpack.c.h.b16 %v680
    %v3011 = vunpack.c.l.b16 %v681
    %v3012 = vunpack.c.h.b16 %v681
    %v3013 = vunpack.c.l.b16 %v682
    %v3014 = vunpack.c.h.b16 %v682
    %v3015 = vunpack.c.l.b16 %v683
    %v3016 = vunpack.c.h.b16 %v683
    %v3017 = vunpack.c.l.b16 %v684
    %v3018 = vunpack.c.h.b16 %v684
    %v3019 = vunpack.c.l.b16 %v685
    %v3020 = vunpack.c.h.b16 %v685
    %v3021 = vunpack.c.l.b16 %v686
    %v3022 = vunpack.c.h.b16 %v686
    %v3023 = vunpack.c.l.b16 %v687
    %v3024 = vunpack.c.h.b16 %v687
    %v3025 = vunpack.c.l.b16 %v688
    %v3026 = vunpack.c.h.b16 %v688
    %v3027 = vunpack.c.l.b16 %v689
    %v3028 = vunpack.c.h.b16 %v689
    %v3029 = vunpack.c.l.b16 %v690
    %v3030 = vunpack.c.h.b16 %v690
    %v3031 = vunpack.c.l.b16 %v691
    %v3032 = vunpack.c.h.b16 %v691
    %v3033 = vunpack.c.l.b16 %v692
    %v3034 = vunpack.c.h.b16 %v692
    %v3035 = vunpack.c.l.b16 %v693
    %v3036 = vunpack.c.h.b16 %v693
    %v3037 = vunpack.c.l.b16 %v694
    %v3038 = vunpack.c.h.b16 %v694
    %v3039 = vunpack.c.l.b16 %v695
    %v3040 = vunpack.c.h.b16 %v695
    %v3041 = vunpack.c.l.b16 %v696
    %v3042 = vunpack.c.h.b16 %v696
    %v3043 = vunpack.c.l.b16 %v697
    %v3044 = vunpack.c.h.b16 %v697
    %v3045 = vunpack.c.l.b16 %v698
    %v3046 = vunpack.c.h.b16 %v698
    %v3047 = vunpack.c.l.b16 %v699
    %v3048 = vunpack.c.h.b16 %v699
    %v3049 = vunpack.c.l.b16 %v700
    %v3050 = vunpack.c.h.b16 %v700
    %v3051 = vunpack.c.l.b16 %v701
    %v3052 = vunpack.c.h.b16 %v701
    %v3053 = vunpack.c.l.b16 %v702
    %v3054 = vunpack.c.h.b16 %v702
    %v3055 = vunpack.c.l.b16 %v703
    %v3056 = vunpack.c.h.b16 %v703
    %v3057 = vunpack.c.l.b16 %v704
    %v3058 = vunpack.c.h.b16 %v704
    %v3059 = vunpack.c.l.b16 %v705
    %v3060 = vunpack.c.h.b16 %v705
    %v3061 = vunpack.c.l.b16 %v706
    %v3062 = vunpack.c.h.b16 %v706
    %v3063 = vunpack.c.l.b16 %v707
    %v3064 = vunpack.c.h.b16 %v707
    %v3065 = vunpack.c.l.b16 %v708
    %v3066 = vunpack.c.h.b16 %v708
    %v3067 = vunpack.c.l.b16 %v709
    %v3068 = vunpack.c.h.b16 %v709
    %v3069 = vunpack.c.l.b16 %v710
    %v3070 = vunpack.c.h.b16 %v710
    %v3071 = vunpack.c.l.b16 %v711
    %v3072 = vunpack.c.h.b16 %v711
    %v3073 = vunpack.c.l.b16 %v712
    %v3074 = vunpack.c.h.b16 %v712
    %v3075 = vunpack.c.l.b16 %v713
    %v3076 = vunpack.c.h.b16 %v713
    %v3077 = vunpack.c.l.b16 %v714
    %v3078 = vunpack.c.h.b16 %v714
    %v3079 = vunpack.c.l.b16 %v715
    %v3080 = vunpack.c.h.b16 %v715
    %v3081 = vunpack.c.l.b16 %v716
    %v3082 = vunpack.c.h.b16 %v716
    %v3083 = vunpack.c.l.b16 %v717
    %v3084 = vunpack.c.h.b16 %v717
    %v3085 = vunpack.c.l.b16 %v718
    %v3086 = vunpack.c.h.b16 %v718
    %v3087 = vunpack.c.l.b16 %v719
    %v3088 = vunpack.c.h.b16 %v719
    %v3089 = vunpack.c.l.b16 %v720
    %v3090 = vunpack.c.h.b16 %v720
    %v3091 = vunpack.c.l.b16 %v721
    %v3092 = vunpack.c.h.b16 %v721
    %v3093 = vunpack.c.l.b16 %v722
    %v3094 = vunpack.c.h.b16 %v722
    %v3095 = vunpack.c.l.b16 %v723
    %v3096 = vunpack.c.h.b16 %v723
    %v3097 = vunpack.c.l.b16 %v724
    %v3098 = vunpack.c.h.b16 %v724
    %v3099 = vunpack.c.l.b16 %v725
    %v3100 = vunpack.c.h.b16 %v725
    %v3101 = vunpack.c.l.b16 %v726
    %v3102 = vunpack.c.h.b16 %v726
    %v3103 = vunpack.c.l.b16 %v727
    %v3104 = vunpack.c.h.b16 %v727
    %v3105 = vunpack.c.l.b16 %v728
    %v3106 = vunpack.c.h.b16 %v728
    %v3107 = vunpack.c.l.b16 %v729
    %v3108 = vunpack.c.h.b16 %v729
    %v3109 = vunpack.c.l.b16 %v730
    %v3110 = vunpack.c.h.b16 %v730
    %v3111 = vunpack.c.l.b16 %v731
    %v3112 = vunpack.c.h.b16 %v731
    %v3113 = vunpack.c.l.b16 %v732
    %v3114 = vunpack.c.h.b16 %v732
    %v3115 = vunpack.c.l.b16 %v733
    %v3116 = vunpack.c.h.b16 %v733
    %v3117 = vunpack.c.l.b16 %v734
    %v3118 = vunpack.c.h.b16 %v734
    %v3119 = vunpack.c.l.b16 %v735
    %v3120 = vunpack.c.h.b16 %v735
    %v3121 = vunpack.c.l.b16 %v736
    %v3122 = vunpack.c.h.b16 %v736
    %v3123 = vunpack.c.l.b16 %v737
    %v3124 = vunpack.c.h.b16 %v737
    %v3125 = vunpack.c.l.b16 %v738
    %v3126 = vunpack.c.h.b16 %v738
    %v3127 = vunpack.c.l.b16 %v739
    %v3128 = vunpack.c.h.b16 %v739
    %v3129 = vunpack.c.l.b16 %v740
    %v3130 = vunpack.c.h.b16 %v740
    %v3131 = vunpack.c.l.b16 %v741
    %v3132 = vunpack.c.h.b16 %v741
    %v3133 = vunpack.c.l.b16 %v742
    %v3134 = vunpack.c.h.b16 %v742
    %v3135 = vunpack.c.l.b16 %v743
    %v3136 = vunpack.c.h.b16 %v743
    %v3137 = vunpack.c.l.b16 %v744
    %v3138 = vunpack.c.h.b16 %v744
    %v3139 = vunpack.c.l.b16 %v745
    %v3140 = vunpack.c.h.b16 %v745
    %v3141 = vunpack.c.l.b16 %v746
    %v3142 = vunpack.c.h.b16 %v746
    %v3143 = vunpack.c.l.b16 %v747
    %v3144 = vunpack.c.h.b16 %v747
    %v3145 = vunpack.c.l.b16 %v748
    %v3146 = vunpack.c.h.b16 %v748
    %v3147 = vunpack.c.l.b16 %v749
    %v3148 = vunpack.c.h.b16 %v749
    %v3149 = vunpack.c.l.b16 %v750
    %v3150 = vunpack.c.h.b16 %v750
    %v3151 = vunpack.c.l.b16 %v751
    %v3152 = vunpack.c.h.b16 %v751
    %v3153 = vunpack.c.l.b16 %v752
    %v3154 = vunpack.c.h.b16 %v752
    %v3155 = vunpack.c.l.b16 %v753
    %v3156 = vunpack.c.h.b16 %v753
    %v3157 = vunpack.c.l.b16 %v754
    %v3158 = vunpack.c.h.b16 %v754
    %v3159 = vunpack.c.l.b16 %v755
    %v3160 = vunpack.c.h.b16 %v755
    %v3161 = vunpack.c.l.b16 %v756
    %v3162 = vunpack.c.h.b16 %v756
    %v3163 = vunpack.c.l.b16 %v757
    %v3164 = vunpack.c.h.b16 %v757
    %v3165 = vunpack.c.l.b16 %v758
    %v3166 = vunpack.c.h.b16 %v758
    %v3167 = vunpack.c.l.b16 %v759
    %v3168 = vunpack.c.h.b16 %v759
    %v3169 = vunpack.c.l.b16 %v760
    %v3170 = vunpack.c.h.b16 %v760
    %v3171 = vunpack.c.l.b16 %v761
    %v3172 = vunpack.c.h.b16 %v761
    %v3173 = vunpack.c.l.b16 %v762
    %v3174 = vunpack.c.h.b16 %v762
    %v3175 = vunpack.c.l.b16 %v763
    %v3176 = vunpack.c.h.b16 %v763
    %v3177 = vunpack.c.l.b16 %v764
    %v3178 = vunpack.c.h.b16 %v764
    %v3179 = vunpack.c.l.b16 %v765
    %v3180 = vunpack.c.h.b16 %v765
    %v3181 = vunpack.c.l.b16 %v766
    %v3182 = vunpack.c.h.b16 %v766
    %v3183 = vunpack.c.l.b16 %v767
    %v3184 = vunpack.c.h.b16 %v767
    %v3185 = vunpack.c.l.b16 %v768
    %v3186 = vunpack.c.h.b16 %v768
    %v3187 = vunpack.c.l.b16 %v769
    %v3188 = vunpack.c.h.b16 %v769
    %v3189 = vunpack.c.l.b16 %v770
    %v3190 = vunpack.c.h.b16 %v770
    %v3191 = vunpack.c.l.b16 %v771
    %v3192 = vunpack.c.h.b16 %v771
    %v3193 = vunpack.c.l.b16 %v772
    %v3194 = vunpack.c.h.b16 %v772
    %v3195 = vunpack.c.l.b16 %v773
    %v3196 = vunpack.c.h.b16 %v773
    %v3197 = vunpack.c.l.b16 %v774
    %v3198 = vunpack.c.h.b16 %v774
    %v3199 = vunpack.c.l.b16 %v775
    %v3200 = vunpack.c.h.b16 %v775
    %v3201 = vunpack.c.l.b16 %v776
    %v3202 = vunpack.c.h.b16 %v776
    %v3203 = vunpack.c.l.b16 %v777
    %v3204 = vunpack.c.h.b16 %v777
    %v3205 = vunpack.c.l.b16 %v778
    %v3206 = vunpack.c.h.b16 %v778
    %v3207 = vunpack.c.l.b16 %v779
    %v3208 = vunpack.c.h.b16 %v779
    %v3209 = vunpack.c.l.b16 %v780
    %v3210 = vunpack.c.h.b16 %v780
    %v3211 = vunpack.c.l.b16 %v781
    %v3212 = vunpack.c.h.b16 %v781
    %v3213 = vunpack.c.l.b16 %v782
    %v3214 = vunpack.c.h.b16 %v782
    %v3215 = vunpack.c.l.b16 %v783
    %v3216 = vunpack.c.h.b16 %v783
    %v3217 = vunpack.c.l.b16 %v784
    %v3218 = vunpack.c.h.b16 %v784
    %v3219 = vunpack.c.l.b16 %v785
    %v3220 = vunpack.c.h.b16 %v785
    %v3221 = vunpack.c.l.b16 %v786
    %v3222 = vunpack.c.h.b16 %v786
    %v3223 = vunpack.c.l.b16 %v787
    %v3224 = vunpack.c.h.b16 %v787
    %v3225 = vunpack.c.l.b16 %v788
    %v3226 = vunpack.c.h.b16 %v788
    %v3227 = vunpack.c.l.b16 %v789
    %v3228 = vunpack.c.h.b16 %v789
    %v3229 = vunpack.c.l.b16 %v790
    %v3230 = vunpack.c.h.b16 %v790
    %v3231 = vunpack.c.l.b16 %v791
    %v3232 = vunpack.c.h.b16 %v791
    %v3233 = vunpack.c.l.b16 %v792
    %v3234 = vunpack.c.h.b16 %v792
    %v3235 = vunpack.c.l.b16 %v793
    %v3236 = vunpack.c.h.b16 %v793
    %v3237 = vunpack.c.l.b16 %v794
    %v3238 = vunpack.c.h.b16 %v794
    %v3239 = vunpack.c.l.b16 %v795
    %v3240 = vunpack.c.h.b16 %v795
    %v3241 = vunpack.c.l.b16 %v796
    %v3242 = vunpack.c.h.b16 %v796
    %v3243 = vunpack.c.l.b16 %v797
    %v3244 = vunpack.c.h.b16 %v797
    %v3245 = vunpack.c.l.b16 %v798
    %v3246 = vunpack.c.h.b16 %v798
    %v3247 = vunpack.c.l.b16 %v799
    %v3248 = vunpack.c.h.b16 %v799
    %v3249 = vunpack.c.l.b16 %v800
    %v3250 = vunpack.c.h.b16 %v800
    %v3251 = vunpack.c.l.b16 %v801
    %v3252 = vunpack.c.h.b16 %v801
    %v3253 = vunpack.c.l.b16 %v802
    %v3254 = vunpack.c.h.b16 %v802
    %v3255 = vunpack.c.l.b16 %v803
    %v3256 = vunpack.c.h.b16 %v803
    %v3257 = vunpack.c.l.b16 %v804
    %v3258 = vunpack.c.h.b16 %v804
    %v3259 = vunpack.c.l.b16 %v805
    %v3260 = vunpack.c.h.b16 %v805
    %v3261 = vunpack.c.l.b16 %v806
    %v3262 = vunpack.c.h.b16 %v806
    %v3263 = vunpack.c.l.b16 %v807
    %v3264 = vunpack.c.h.b16 %v807
    %v3265 = vunpack.c.l.b16 %v808
    %v3266 = vunpack.c.h.b16 %v808
    %v3267 = vunpack.c.l.b16 %v809
    %v3268 = vunpack.c.h.b16 %v809
    %v3269 = vunpack.c.l.b16 %v810
    %v3270 = vunpack.c.h.b16 %v810
    %v3271 = vunpack.c.l.b16 %v811
    %v3272 = vunpack.c.h.b16 %v811
    %v3273 = vunpack.c.l.b16 %v812
    %v3274 = vunpack.c.h.b16 %v812
    %v3275 = vunpack.c.l.b16 %v813
    %v3276 = vunpack.c.h.b16 %v813
    %v3277 = vunpack.c.l.b16 %v814
    %v3278 = vunpack.c.h.b16 %v814
    %v3279 = vunpack.c.l.b16 %v815
    %v3280 = vunpack.c.h.b16 %v815
    %v3281 = vunpack.c.l.b16 %v816
    %v3282 = vunpack.c.h.b16 %v816
    %v3283 = vunpack.c.l.b16 %v817
    %v3284 = vunpack.c.h.b16 %v817
    %v3285 = vunpack.c.l.b16 %v818
    %v3286 = vunpack.c.h.b16 %v818
    %v3287 = vpack.c.b16 %v1691, %v1687
    %v3288 = vpack.c.b16 %v1692, %v1688
    %v3289 = vpack.c.b16 %v1693, %v1689
    %v3290 = vpack.c.b16 %v1694, %v1690
    %v3291 = vpack.c.b16 %v1699, %v1695
    %v3292 = vpack.c.b16 %v1700, %v1696
    %v3293 = vpack.c.b16 %v1701, %v1697
    %v3294 = vpack.c.b16 %v1702, %v1698
    %v3295 = vpack.c.b16 %v1707, %v1703
    %v3296 = vpack.c.b16 %v1708, %v1704
    %v3297 = vpack.c.b16 %v1709, %v1705
    %v3298 = vpack.c.b16 %v1710, %v1706
    %v3299 = vpack.c.b16 %v1715, %v1711
    %v3300 = vpack.c.b16 %v1716, %v1712
    %v3301 = vpack.c.b16 %v1717, %v1713
    %v3302 = vpack.c.b16 %v1718, %v1714
    %v3303 = vpack.c.b16 %v1723, %v1719
    %v3304 = vpack.c.b16 %v1724, %v1720
    %v3305 = vpack.c.b16 %v1725, %v1721
    %v3306 = vpack.c.b16 %v1726, %v1722
    %v3307 = vpack.c.b16 %v1731, %v1727
    %v3308 = vpack.c.b16 %v1732, %v1728
    %v3309 = vpack.c.b16 %v1733, %v1729
    %v3310 = vpack.c.b16 %v1734, %v1730
    %v3311 = vpack.c.b16 %v1739, %v1735
    %v3312 = vpack.c.b16 %v1740, %v1736
    %v3313 = vpack.c.b16 %v1741, %v1737
    %v3314 = vpack.c.b16 %v1742, %v1738
    %v3315 = vpack.c.b16 %v1747, %v1743
    %v3316 = vpack.c.b16 %v1748, %v1744
    %v3317 = vpack.c.b16 %v1749, %v1745
    %v3318 = vpack.c.b16 %v1750, %v1746
    %v3319 = vpack.c.b16 %v1755, %v1751
    %v3320 = vpack.c.b16 %v1756, %v1752
    %v3321 = vpack.c.b16 %v1757, %v1753
    %v3322 = vpack.c.b16 %v1758, %v1754
    %v3323 = vpack.c.b16 %v1763, %v1759
    %v3324 = vpack.c.b16 %v1764, %v1760
    %v3325 = vpack.c.b16 %v1765, %v1761
    %v3326 = vpack.c.b16 %v1766, %v1762
    %v3327 = vpack.c.b16 %v1771, %v1767
    %v3328 = vpack.c.b16 %v1772, %v1768
    %v3329 = vpack.c.b16 %v1773, %v1769
    %v3330 = vpack.c.b16 %v1774, %v1770
    %v3331 = vpack.c.b16 %v1779, %v1775
    %v3332 = vpack.c.b16 %v1780, %v1776
    %v3333 = vpack.c.b16 %v1781, %v1777
    %v3334 = vpack.c.b16 %v1782, %v1778
    %v3335 = vpack.c.b16 %v1787, %v1783
    %v3336 = vpack.c.b16 %v1788, %v1784
    %v3337 = vpack.c.b16 %v1789, %v1785
    %v3338 = vpack.c.b16 %v1790, %v1786
    %v3339 = vpack.c.b16 %v1795, %v1791
    %v3340 = vpack.c.b16 %v1796, %v1792
    %v3341 = vpack.c.b16 %v1797, %v1793
    %v3342 = vpack.c.b16 %v1798, %v1794
    %v3343 = vpack.c.b16 %v1803, %v1799
    %v3344 = vpack.c.b16 %v1804, %v1800
    %v3345 = vpack.c.b16 %v1805, %v1801
    %v3346 = vpack.c.b16 %v1806, %v1802
    %v3347 = vpack.c.b16 %v1811, %v1807
    %v3348 = vpack.c.b16 %v1812, %v1808
    %v3349 = vpack.c.b16 %v1813, %v1809
    %v3350 = vpack.c.b16 %v1814, %v1810
    %v3351 = vpack.c.b16 %v1819, %v1815
    %v3352 = vpack.c.b16 %v1820, %v1816
    %v3353 = vpack.c.b16 %v1821, %v1817
    %v3354 = vpack.c.b16 %v1822, %v1818
    %v3355 = vpack.c.b16 %v1827, %v1823
    %v3356 = vpack.c.b16 %v1828, %v1824
    %v3357 = vpack.c.b16 %v1829, %v1825
    %v3358 = vpack.c.b16 %v1830, %v1826
    %v3359 = vpack.c.b16 %v1835, %v1831
    %v3360 = vpack.c.b16 %v1836, %v1832
    %v3361 = vpack.c.b16 %v1837, %v1833
    %v3362 = vpack.c.b16 %v1838, %v1834
    %v3363 = vpack.c.b16 %v1843, %v1839
    %v3364 = vpack.c.b16 %v1844, %v1840
    %v3365 = vpack.c.b16 %v1845, %v1841
    %v3366 = vpack.c.b16 %v1846, %v1842
    %v3367 = vpack.c.b16 %v1851, %v1847
    %v3368 = vpack.c.b16 %v1852, %v1848
    %v3369 = vpack.c.b16 %v1853, %v1849
    %v3370 = vpack.c.b16 %v1854, %v1850
    %v3371 = vpack.c.b16 %v1859, %v1855
    %v3372 = vpack.c.b16 %v1860, %v1856
    %v3373 = vpack.c.b16 %v1861, %v1857
    %v3374 = vpack.c.b16 %v1862, %v1858
    %v3375 = vpack.c.b16 %v1867, %v1863
    %v3376 = vpack.c.b16 %v1868, %v1864
    %v3377 = vpack.c.b16 %v1869, %v1865
    %v3378 = vpack.c.b16 %v1870, %v1866
    %v3379 = vpack.c.b16 %v1875, %v1871
    %v3380 = vpack.c.b16 %v1876, %v1872
    %v3381 = vpack.c.b16 %v1877, %v1873
    %v3382 = vpack.c.b16 %v1878, %v1874
    %v3383 = vpack.c.b16 %v1883, %v1879
    %v3384 = vpack.c.b16 %v1884, %v1880
    %v3385 = vpack.c.b16 %v1885, %v1881
    %v3386 = vpack.c.b16 %v1886, %v1882
    %v3387 = vpack.c.b16 %v1891, %v1887
    %v3388 = vpack.c.b16 %v1892, %v1888
    %v3389 = vpack.c.b16 %v1893, %v1889
    %v3390 = vpack.c.b16 %v1894, %v1890
    %v3391 = vpack.c.b16 %v1899, %v1895
    %v3392 = vpack.c.b16 %v1900, %v1896
    %v3393 = vpack.c.b16 %v1901, %v1897
    %v3394 = vpack.c.b16 %v1902, %v1898
    %v3395 = vpack.c.b16 %v1907, %v1903
    %v3396 = vpack.c.b16 %v1908, %v1904
    %v3397 = vpack.c.b16 %v1909, %v1905
    %v3398 = vpack.c.b16 %v1910, %v1906
    %v3399 = vpack.c.b16 %v1915, %v1911
    %v3400 = vpack.c.b16 %v1916, %v1912
    %v3401 = vpack.c.b16 %v1917, %v1913
    %v3402 = vpack.c.b16 %v1918, %v1914
    %v3403 = vpack.c.b16 %v1923, %v1919
    %v3404 = vpack.c.b16 %v1924, %v1920
    %v3405 = vpack.c.b16 %v1925, %v1921
    %v3406 = vpack.c.b16 %v1926, %v1922
    %v3407 = vpack.c.b16 %v1931, %v1927
    %v3408 = vpack.c.b16 %v1932, %v1928
    %v3409 = vpack.c.b16 %v1933, %v1929
    %v3410 = vpack.c.b16 %v1934, %v1930
    %v3411 = vpack.c.b16 %v1939, %v1935
    %v3412 = vpack.c.b16 %v1940, %v1936
    %v3413 = vpack.c.b16 %v1941, %v1937
    %v3414 = vpack.c.b16 %v1942, %v1938
    %v3415 = vpack.c.b16 %v1947, %v1943
    %v3416 = vpack.c.b16 %v1948, %v1944
    %v3417 = vpack.c.b16 %v1949, %v1945
    %v3418 = vpack.c.b16 %v1950, %v1946
    %v3419 = vpack.c.b16 %v1955, %v1951
    %v3420 = vpack.c.b16 %v1956, %v1952
    %v3421 = vpack.c.b16 %v1957, %v1953
    %v3422 = vpack.c.b16 %v1958, %v1954
    %v3423 = vpack.c.b16 %v1963, %v1959
    %v3424 = vpack.c.b16 %v1964, %v1960
    %v3425 = vpack.c.b16 %v1965, %v1961
    %v3426 = vpack.c.b16 %v1966, %v1962
    %v3427 = vpack.c.b16 %v1971, %v1967
    %v3428 = vpack.c.b16 %v1972, %v1968
    %v3429 = vpack.c.b16 %v1973, %v1969
    %v3430 = vpack.c.b16 %v1974, %v1970
    %v3431 = vpack.c.b16 %v1979, %v1975
    %v3432 = vpack.c.b16 %v1980, %v1976
    %v3433 = vpack.c.b16 %v1981, %v1977
    %v3434 = vpack.c.b16 %v1982, %v1978
    %v3435 = vpack.c.b16 %v1987, %v1983
    %v3436 = vpack.c.b16 %v1988, %v1984
    %v3437 = vpack.c.b16 %v1989, %v1985
    %v3438 = vpack.c.b16 %v1990, %v1986
    %v3439 = vpack.c.b16 %v1995, %v1991
    %v3440 = vpack.c.b16 %v1996, %v1992
    %v3441 = vpack.c.b16 %v1997, %v1993
    %v3442 = vpack.c.b16 %v1998, %v1994
    %v3443 = vpack.c.b16 %v2003, %v1999
    %v3444 = vpack.c.b16 %v2004, %v2000
    %v3445 = vpack.c.b16 %v2005, %v2001
    %v3446 = vpack.c.b16 %v2006, %v2002
    %v3447 = vpack.c.b16 %v2011, %v2007
    %v3448 = vpack.c.b16 %v2012, %v2008
    %v3449 = vpack.c.b16 %v2013, %v2009
    %v3450 = vpack.c.b16 %v2014, %v2010
    %v3451 = vpack.c.b16 %v2019, %v2015
    %v3452 = vpack.c.b16 %v2020, %v2016
    %v3453 = vpack.c.b16 %v2021, %v2017
    %v3454 = vpack.c.b16 %v2022, %v2018
    %v3455 = vpack.c.b16 %v2027, %v2023
    %v3456 = vpack.c.b16 %v2028, %v2024
    %v3457 = vpack.c.b16 %v2029, %v2025
    %v3458 = vpack.c.b16 %v2030, %v2026
    %v3459 = vpack.c.b16 %v2035, %v2031
    %v3460 = vpack.c.b16 %v2036, %v2032
    %v3461 = vpack.c.b16 %v2037, %v2033
    %v3462 = vpack.c.b16 %v2038, %v2034
    %v3463 = vpack.c.b16 %v2043, %v2039
    %v3464 = vpack.c.b16 %v2044, %v2040
    %v3465 = vpack.c.b16 %v2045, %v2041
    %v3466 = vpack.c.b16 %v2046, %v2042
    %v3467 = vpack.c.b16 %v2051, %v2047
    %v3468 = vpack.c.b16 %v2052, %v2048
    %v3469 = vpack.c.b16 %v2053, %v2049
    %v3470 = vpack.c.b16 %v2054, %v2050
    %v3471 = vpack.c.b16 %v2059, %v2055
    %v3472 = vpack.c.b16 %v2060, %v2056
    %v3473 = vpack.c.b16 %v2061, %v2057
    %v3474 = vpack.c.b16 %v2062, %v2058
    %v3475 = vpack.c.b16 %v2067, %v2063
    %v3476 = vpack.c.b16 %v2068, %v2064
    %v3477 = vpack.c.b16 %v2069, %v2065
    %v3478 = vpack.c.b16 %v2070, %v2066
    %v3479 = vpack.c.b16 %v2075, %v2071
    %v3480 = vpack.c.b16 %v2076, %v2072
    %v3481 = vpack.c.b16 %v2077, %v2073
    %v3482 = vpack.c.b16 %v2078, %v2074
    %v3483 = vpack.c.b16 %v2083, %v2079
    %v3484 = vpack.c.b16 %v2084, %v2080
    %v3485 = vpack.c.b16 %v2085, %v2081
    %v3486 = vpack.c.b16 %v2086, %v2082
    %v3487 = vpack.c.b16 %v2091, %v2087
    %v3488 = vpack.c.b16 %v2092, %v2088
    %v3489 = vpack.c.b16 %v2093, %v2089
    %v3490 = vpack.c.b16 %v2094, %v2090
    %v3491 = vpack.c.b16 %v2099, %v2095
    %v3492 = vpack.c.b16 %v2100, %v2096
    %v3493 = vpack.c.b16 %v2101, %v2097
    %v3494 = vpack.c.b16 %v2102, %v2098
    %v3495 = vpack.c.b16 %v2107, %v2103
    %v3496 = vpack.c.b16 %v2108, %v2104
    %v3497 = vpack.c.b16 %v2109, %v2105
    %v3498 = vpack.c.b16 %v2110, %v2106
    %v3499 = vpack.c.b16 %v2115, %v2111
    %v3500 = vpack.c.b16 %v2116, %v2112
    %v3501 = vpack.c.b16 %v2117, %v2113
    %v3502 = vpack.c.b16 %v2118, %v2114
    %v3503 = vpack.c.b16 %v2123, %v2119
    %v3504 = vpack.c.b16 %v2124, %v2120
    %v3505 = vpack.c.b16 %v2125, %v2121
    %v3506 = vpack.c.b16 %v2126, %v2122
    %v3507 = vpack.c.b16 %v2131, %v2127
    %v3508 = vpack.c.b16 %v2132, %v2128
    %v3509 = vpack.c.b16 %v2133, %v2129
    %v3510 = vpack.c.b16 %v2134, %v2130
    %v3511 = vpack.c.b16 %v2139, %v2135
    %v3512 = vpack.c.b16 %v2140, %v2136
    %v3513 = vpack.c.b16 %v2141, %v2137
    %v3514 = vpack.c.b16 %v2142, %v2138
    %v3515 = vpack.c.b16 %v2147, %v2143
    %v3516 = vpack.c.b16 %v2148, %v2144
    %v3517 = vpack.c.b16 %v2149, %v2145
    %v3518 = vpack.c.b16 %v2150, %v2146
    %v3519 = vpack.c.b16 %v2155, %v2151
    %v3520 = vpack.c.b16 %v2156, %v2152
    %v3521 = vpack.c.b16 %v2157, %v2153
    %v3522 = vpack.c.b16 %v2158, %v2154
    %v3523 = vpack.c.b16 %v2163, %v2159
    %v3524 = vpack.c.b16 %v2164, %v2160
    %v3525 = vpack.c.b16 %v2165, %v2161
    %v3526 = vpack.c.b16 %v2166, %v2162
    %v3527 = vpack.c.b16 %v2171, %v2167
    %v3528 = vpack.c.b16 %v2172, %v2168
    %v3529 = vpack.c.b16 %v2173, %v2169
    %v3530 = vpack.c.b16 %v2174, %v2170
    %v3531 = vpack.c.b16 %v2179, %v2175
    %v3532 = vpack.c.b16 %v2180, %v2176
    %v3533 = vpack.c.b16 %v2181, %v2177
    %v3534 = vpack.c.b16 %v2182, %v2178
    %v3535 = vpack.c.b16 %v2187, %v2183
    %v3536 = vpack.c.b16 %v2188, %v2184
    %v3537 = vpack.c.b16 %v2189, %v2185
    %v3538 = vpack.c.b16 %v2190, %v2186
    %v3539 = vpack.c.b16 %v2195, %v2191
    %v3540 = vpack.c.b16 %v2196, %v2192
    %v3541 = vpack.c.b16 %v2197, %v2193
    %v3542 = vpack.c.b16 %v2198, %v2194
    %v3543 = vpack.c.b16 %v2203, %v2199
    %v3544 = vpack.c.b16 %v2204, %v2200
    %v3545 = vpack.c.b16 %v2205, %v2201
    %v3546 = vpack.c.b16 %v2206, %v2202
    %v3547 = vpack.c.b16 %v2211, %v2207
    %v3548 = vpack.c.b16 %v2212, %v2208
    %v3549 = vpack.c.b16 %v2213, %v2209
    %v3550 = vpack.c.b16 %v2214, %v2210
    %v3551 = vpack.c.b16 %v2219, %v2215
    %v3552 = vpack.c.b16 %v2220, %v2216
    %v3553 = vpack.c.b16 %v2221, %v2217
    %v3554 = vpack.c.b16 %v2222, %v2218
    %v3555 = vpack.c.b16 %v2227, %v2223
    %v3556 = vpack.c.b16 %v2228, %v2224
    %v3557 = vpack.c.b16 %v2229, %v2225
    %v3558 = vpack.c.b16 %v2230, %v2226
    %v3559 = vpack.c.b16 %v2235, %v2231
    %v3560 = vpack.c.b16 %v2236, %v2232
    %v3561 = vpack.c.b16 %v2237, %v2233
    %v3562 = vpack.c.b16 %v2238, %v2234
    %v3563 = vpack.c.b16 %v2243, %v2239
    %v3564 = vpack.c.b16 %v2244, %v2240
    %v3565 = vpack.c.b16 %v2245, %v2241
    %v3566 = vpack.c.b16 %v2246, %v2242
    %v3567 = vpack.c.b16 %v2251, %v2247
    %v3568 = vpack.c.b16 %v2252, %v2248
    %v3569 = vpack.c.b16 %v2253, %v2249
    %v3570 = vpack.c.b16 %v2254, %v2250
    %v3571 = vpack.c.b16 %v2259, %v2255
    %v3572 = vpack.c.b16 %v2260, %v2256
    %v3573 = vpack.c.b16 %v2261, %v2257
    %v3574 = vpack.c.b16 %v2262, %v2258
    %v3575 = vpack.c.b16 %v2267, %v2263
    %v3576 = vpack.c.b16 %v2268, %v2264
    %v3577 = vpack.c.b16 %v2269, %v2265
    %v3578 = vpack.c.b16 %v2270, %v2266
    %v3579 = vpack.c.b16 %v2275, %v2271
    %v3580 = vpack.c.b16 %v2276, %v2272
    %v3581 = vpack.c.b16 %v2277, %v2273
    %v3582 = vpack.c.b16 %v2278, %v2274
    %v3583 = vpack.c.b16 %v2283, %v2279
    %v3584 = vpack.c.b16 %v2284, %v2280
    %v3585 = vpack.c.b16 %v2285, %v2281
    %v3586 = vpack.c.b16 %v2286, %v2282
    %v3587 = vpack.c.b16 %v2291, %v2287
    %v3588 = vpack.c.b16 %v2292, %v2288
    %v3589 = vpack.c.b16 %v2293, %v2289
    %v3590 = vpack.c.b16 %v2294, %v2290
    %v3591 = vpack.c.b16 %v2299, %v2295
    %v3592 = vpack.c.b16 %v2300, %v2296
    %v3593 = vpack.c.b16 %v2301, %v2297
    %v3594 = vpack.c.b16 %v2302, %v2298
    %v3595 = vpack.c.b16 %v2307, %v2303
    %v3596 = vpack.c.b16 %v2308, %v2304
    %v3597 = vpack.c.b16 %v2309, %v2305
    %v3598 = vpack.c.b16 %v2310, %v2306
    %v3599 = vpack.c.b16 %v2315, %v2311
    %v3600 = vpack.c.b16 %v2316, %v2312
    %v3601 = vpack.c.b16 %v2317, %v2313
    %v3602 = vpack.c.b16 %v2318, %v2314
    %v3603 = vpack.c.b16 %v2323, %v2319
    %v3604 = vpack.c.b16 %v2324, %v2320
    %v3605 = vpack.c.b16 %v2325, %v2321
    %v3606 = vpack.c.b16 %v2326, %v2322
    %v3607 = vpack.c.b16 %v2331, %v2327
    %v3608 = vpack.c.b16 %v2332, %v2328
    %v3609 = vpack.c.b16 %v2333, %v2329
    %v3610 = vpack.c.b16 %v2334, %v2330
    %v3611 = vpack.c.b16 %v2339, %v2335
    %v3612 = vpack.c.b16 %v2340, %v2336
    %v3613 = vpack.c.b16 %v2341, %v2337
    %v3614 = vpack.c.b16 %v2342, %v2338
    %v3615 = vpack.c.b16 %v2347, %v2343
    %v3616 = vpack.c.b16 %v2348, %v2344
    %v3617 = vpack.c.b16 %v2349, %v2345
    %v3618 = vpack.c.b16 %v2350, %v2346
    %v3619 = vpack.c.b16 %v2355, %v2351
    %v3620 = vpack.c.b16 %v2356, %v2352
    %v3621 = vpack.c.b16 %v2357, %v2353
    %v3622 = vpack.c.b16 %v2358, %v2354
    %v3623 = vpack.c.b16 %v2363, %v2359
    %v3624 = vpack.c.b16 %v2364, %v2360
    %v3625 = vpack.c.b16 %v2365, %v2361
    %v3626 = vpack.c.b16 %v2366, %v2362
    %v3627 = vpack.c.b16 %v2371, %v2367
    %v3628 = vpack.c.b16 %v2372, %v2368
    %v3629 = vpack.c.b16 %v2373, %v2369
    %v3630 = vpack.c.b16 %v2374, %v2370
    %v3631 = vpack.c.b16 %v2379, %v2375
    %v3632 = vpack.c.b16 %v2380, %v2376
    %v3633 = vpack.c.b16 %v2381, %v2377
    %v3634 = vpack.c.b16 %v2382, %v2378
    %v3635 = vpack.c.b16 %v2387, %v2383
    %v3636 = vpack.c.b16 %v2388, %v2384
    %v3637 = vpack.c.b16 %v2389, %v2385
    %v3638 = vpack.c.b16 %v2390, %v2386
    %v3639 = vpack.c.b16 %v2395, %v2391
    %v3640 = vpack.c.b16 %v2396, %v2392
    %v3641 = vpack.c.b16 %v2397, %v2393
    %v3642 = vpack.c.b16 %v2398, %v2394
    %v3643 = vpack.c.b16 %v2403, %v2399
    %v3644 = vpack.c.b16 %v2404, %v2400
    %v3645 = vpack.c.b16 %v2405, %v2401
    %v3646 = vpack.c.b16 %v2406, %v2402
    %v3647 = vpack.c.b16 %v2411, %v2407
    %v3648 = vpack.c.b16 %v2412, %v2408
    %v3649 = vpack.c.b16 %v2413, %v2409
    %v3650 = vpack.c.b16 %v2414, %v2410
    %v3651 = vpack.c.b16 %v2419, %v2415
    %v3652 = vpack.c.b16 %v2420, %v2416
    %v3653 = vpack.c.b16 %v2421, %v2417
    %v3654 = vpack.c.b16 %v2422, %v2418
    %v3655 = vpack.c.b16 %v2427, %v2423
    %v3656 = vpack.c.b16 %v2428, %v2424
    %v3657 = vpack.c.b16 %v2429, %v2425
    %v3658 = vpack.c.b16 %v2430, %v2426
    %v3659 = vpack.c.b16 %v2435, %v2431
    %v3660 = vpack.c.b16 %v2436, %v2432
    %v3661 = vpack.c.b16 %v2437, %v2433
    %v3662 = vpack.c.b16 %v2438, %v2434
    %v3663 = vpack.c.b16 %v2443, %v2439
    %v3664 = vpack.c.b16 %v2444, %v2440
    %v3665 = vpack.c.b16 %v2445, %v2441
    %v3666 = vpack.c.b16 %v2446, %v2442
    %v3667 = vpack.c.b16 %v2451, %v2447
    %v3668 = vpack.c.b16 %v2452, %v2448
    %v3669 = vpack.c.b16 %v2453, %v2449
    %v3670 = vpack.c.b16 %v2454, %v2450
    %v3671 = vpack.c.b16 %v2459, %v2455
    %v3672 = vpack.c.b16 %v2460, %v2456
    %v3673 = vpack.c.b16 %v2461, %v2457
    %v3674 = vpack.c.b16 %v2462, %v2458
    %v3675 = vpack.c.b16 %v2467, %v2463
    %v3676 = vpack.c.b16 %v2468, %v2464
    %v3677 = vpack.c.b16 %v2469, %v2465
    %v3678 = vpack.c.b16 %v2470, %v2466
    %v3679 = vpack.c.b16 %v2475, %v2471
    %v3680 = vpack.c.b16 %v2476, %v2472
    %v3681 = vpack.c.b16 %v2477, %v2473
    %v3682 = vpack.c.b16 %v2478, %v2474
    %v3683 = vpack.c.b16 %v2483, %v2479
    %v3684 = vpack.c.b16 %v2484, %v2480
    %v3685 = vpack.c.b16 %v2485, %v2481
    %v3686 = vpack.c.b16 %v2486, %v2482
    %v3687 = vpack.c.b16 %v2491, %v2487
    %v3688 = vpack.c.b16 %v2492, %v2488
    %v3689 = vpack.c.b16 %v2493, %v2489
    %v3690 = vpack.c.b16 %v2494, %v2490
    %v3691 = vpack.c.b16 %v2499, %v2495
    %v3692 = vpack.c.b16 %v2500, %v2496
    %v3693 = vpack.c.b16 %v2501, %v2497
    %v3694 = vpack.c.b16 %v2502, %v2498
    %v3695 = vpack.c.b16 %v2507, %v2503
    %v3696 = vpack.c.b16 %v2508, %v2504
    %v3697 = vpack.c.b16 %v2509, %v2505
    %v3698 = vpack.c.b16 %v2510, %v2506
    %v3699 = vpack.c.b16 %v2515, %v2511
    %v3700 = vpack.c.b16 %v2516, %v2512
    %v3701 = vpack.c.b16 %v2517, %v2513
    %v3702 = vpack.c.b16 %v2518, %v2514
    %v3703 = vpack.c.b16 %v2523, %v2519
    %v3704 = vpack.c.b16 %v2524, %v2520
    %v3705 = vpack.c.b16 %v2525, %v2521
    %v3706 = vpack.c.b16 %v2526, %v2522
    %v3707 = vpack.c.b16 %v2531, %v2527
    %v3708 = vpack.c.b16 %v2532, %v2528
    %v3709 = vpack.c.b16 %v2533, %v2529
    %v3710 = vpack.c.b16 %v2534, %v2530
    %v3711 = vpack.c.b16 %v2539, %v2535
    %v3712 = vpack.c.b16 %v2540, %v2536
    %v3713 = vpack.c.b16 %v2541, %v2537
    %v3714 = vpack.c.b16 %v2542, %v2538
    %v3715 = vpack.c.b16 %v2547, %v2543
    %v3716 = vpack.c.b16 %v2548, %v2544
    %v3717 = vpack.c.b16 %v2549, %v2545
    %v3718 = vpack.c.b16 %v2550, %v2546
    %v3719 = vpack.c.b16 %v2555, %v2551
    %v3720 = vpack.c.b16 %v2556, %v2552
    %v3721 = vpack.c.b16 %v2557, %v2553
    %v3722 = vpack.c.b16 %v2558, %v2554
    %v3723 = vpack.c.b16 %v2563, %v2559
    %v3724 = vpack.c.b16 %v2564, %v2560
    %v3725 = vpack.c.b16 %v2565, %v2561
    %v3726 = vpack.c.b16 %v2566, %v2562
    %v3727 = vpack.c.b16 %v2571, %v2567
    %v3728 = vpack.c.b16 %v2572, %v2568
    %v3729 = vpack.c.b16 %v2573, %v2569
    %v3730 = vpack.c.b16 %v2574, %v2570
    %v3731 = vpack.c.b16 %v2579, %v2575
    %v3732 = vpack.c.b16 %v2580, %v2576
    %v3733 = vpack.c.b16 %v2581, %v2577
    %v3734 = vpack.c.b16 %v2582, %v2578
    %v3735 = vpack.c.b16 %v2587, %v2583
    %v3736 = vpack.c.b16 %v2588, %v2584
    %v3737 = vpack.c.b16 %v2589, %v2585
    %v3738 = vpack.c.b16 %v2590, %v2586
    %v3739 = vpack.c.b16 %v2595, %v2591
    %v3740 = vpack.c.b16 %v2596, %v2592
    %v3741 = vpack.c.b16 %v2597, %v2593
    %v3742 = vpack.c.b16 %v2598, %v2594
    %v3743 = vpack.c.b16 %v2603, %v2599
    %v3744 = vpack.c.b16 %v2604, %v2600
    %v3745 = vpack.c.b16 %v2605, %v2601
    %v3746 = vpack.c.b16 %v2606, %v2602
    %v3747 = vpack.c.b16 %v2611, %v2607
    %v3748 = vpack.c.b16 %v2612, %v2608
    %v3749 = vpack.c.b16 %v2613, %v2609
    %v3750 = vpack.c.b16 %v2614, %v2610
    %v3751 = vpack.c.b16 %v2619, %v2615
    %v3752 = vpack.c.b16 %v2620, %v2616
    %v3753 = vpack.c.b16 %v2621, %v2617
    %v3754 = vpack.c.b16 %v2622, %v2618
    %v3755 = vpack.c.b16 %v2627, %v2623
    %v3756 = vpack.c.b16 %v2628, %v2624
    %v3757 = vpack.c.b16 %v2629, %v2625
    %v3758 = vpack.c.b16 %v2630, %v2626
    %v3759 = vpack.c.b16 %v2635, %v2631
    %v3760 = vpack.c.b16 %v2636, %v2632
    %v3761 = vpack.c.b16 %v2637, %v2633
    %v3762 = vpack.c.b16 %v2638, %v2634
    %v3763 = vpack.c.b16 %v2643, %v2639
    %v3764 = vpack.c.b16 %v2644, %v2640
    %v3765 = vpack.c.b16 %v2645, %v2641
    %v3766 = vpack.c.b16 %v2646, %v2642
    %v3767 = vpack.c.b16 %v2651, %v2647
    %v3768 = vpack.c.b16 %v2652, %v2648
    %v3769 = vpack.c.b16 %v2653, %v2649
    %v3770 = vpack.c.b16 %v2654, %v2650
    %v3771 = vpack.c.b16 %v2659, %v2655
    %v3772 = vpack.c.b16 %v2660, %v2656
    %v3773 = vpack.c.b16 %v2661, %v2657
    %v3774 = vpack.c.b16 %v2662, %v2658
    %v3775 = vpack.c.b16 %v2667, %v2663
    %v3776 = vpack.c.b16 %v2668, %v2664
    %v3777 = vpack.c.b16 %v2669, %v2665
    %v3778 = vpack.c.b16 %v2670, %v2666
    %v3779 = vpack.c.b16 %v2675, %v2671
    %v3780 = vpack.c.b16 %v2676, %v2672
    %v3781 = vpack.c.b16 %v2677, %v2673
    %v3782 = vpack.c.b16 %v2678, %v2674
    %v3783 = vpack.c.b16 %v2683, %v2679
    %v3784 = vpack.c.b16 %v2684, %v2680
    %v3785 = vpack.c.b16 %v2685, %v2681
    %v3786 = vpack.c.b16 %v2686, %v2682
    %v3787 = vpack.c.b16 %v2691, %v2687
    %v3788 = vpack.c.b16 %v2692, %v2688
    %v3789 = vpack.c.b16 %v2693, %v2689
    %v3790 = vpack.c.b16 %v2694, %v2690
    %v3791 = vpack.c.b16 %v2699, %v2695
    %v3792 = vpack.c.b16 %v2700, %v2696
    %v3793 = vpack.c.b16 %v2701, %v2697
    %v3794 = vpack.c.b16 %v2702, %v2698
    %v3795 = vpack.c.b16 %v2707, %v2703
    %v3796 = vpack.c.b16 %v2708, %v2704
    %v3797 = vpack.c.b16 %v2709, %v2705
    %v3798 = vpack.c.b16 %v2710, %v2706
    %v3799 = vpack.c.b16 %v2715, %v2711
    %v3800 = vpack.c.b16 %v2716, %v2712
    %v3801 = vpack.c.b16 %v2717, %v2713
    %v3802 = vpack.c.b16 %v2718, %v2714
    %v3803 = vpack.c.b16 %v2723, %v2719
    %v3804 = vpack.c.b16 %v2724, %v2720
    %v3805 = vpack.c.b16 %v2725, %v2721
    %v3806 = vpack.c.b16 %v2726, %v2722
    %v3807 = vpack.c.b16 %v2731, %v2727
    %v3808 = vpack.c.b16 %v2732, %v2728
    %v3809 = vpack.c.b16 %v2733, %v2729
    %v3810 = vpack.c.b16 %v2734, %v2730
    %v3811 = vpack.c.b16 %v2739, %v2735
    %v3812 = vpack.c.b16 %v2740, %v2736
    %v3813 = vpack.c.b16 %v2741, %v2737
    %v3814 = vpack.c.b16 %v2742, %v2738
    %v3815 = vpack.c.b16 %v2747, %v2743
    %v3816 = vpack.c.b16 %v2748, %v2744
    %v3817 = vpack.c.b16 %v2749, %v2745
    %v3818 = vpack.c.b16 %v2750, %v2746
    %v3819 = vpack.c.b16 %v2755, %v2751
    %v3820 = vpack.c.b16 %v2756, %v2752
    %v3821 = vpack.c.b16 %v2757, %v2753
    %v3822 = vpack.c.b16 %v2758, %v2754
    %v3823 = vpack.c.b16 %v2763, %v2759
    %v3824 = vpack.c.b16 %v2764, %v2760
    %v3825 = vpack.c.b16 %v2765, %v2761
    %v3826 = vpack.c.b16 %v2766, %v2762
    %v3827 = vpack.c.b16 %v2771, %v2767
    %v3828 = vpack.c.b16 %v2772, %v2768
    %v3829 = vpack.c.b16 %v2773, %v2769
    %v3830 = vpack.c.b16 %v2774, %v2770
    %v3831 = vpack.c.b16 %v2779, %v2775
    %v3832 = vpack.c.b16 %v2780, %v2776
    %v3833 = vpack.c.b16 %v2781, %v2777
    %v3834 = vpack.c.b16 %v2782, %v2778
    %v3835 = vpack.c.b16 %v2787, %v2783
    %v3836 = vpack.c.b16 %v2788, %v2784
    %v3837 = vpack.c.b16 %v2789, %v2785
    %v3838 = vpack.c.b16 %v2790, %v2786
    %v3839 = vpack.c.b16 %v2795, %v2791
    %v3840 = vpack.c.b16 %v2796, %v2792
    %v3841 = vpack.c.b16 %v2797, %v2793
    %v3842 = vpack.c.b16 %v2798, %v2794
    %v3843 = vpack.c.b16 %v2803, %v2799
    %v3844 = vpack.c.b16 %v2804, %v2800
    %v3845 = vpack.c.b16 %v2805, %v2801
    %v3846 = vpack.c.b16 %v2806, %v2802
    %v3847 = vpack.c.b16 %v2811, %v2807
    %v3848 = vpack.c.b16 %v2812, %v2808
    %v3849 = vpack.c.b16 %v2813, %v2809
    %v3850 = vpack.c.b16 %v2814, %v2810
    %v3851 = vpack.c.b16 %v2819, %v2815
    %v3852 = vpack.c.b16 %v2820, %v2816
    %v3853 = vpack.c.b16 %v2821, %v2817
    %v3854 = vpack.c.b16 %v2822, %v2818
    %v3855 = vpack.c.b16 %v2827, %v2823
    %v3856 = vpack.c.b16 %v2828, %v2824
    %v3857 = vpack.c.b16 %v2829, %v2825
    %v3858 = vpack.c.b16 %v2830, %v2826
    %v3859 = vpack.c.b16 %v2835, %v2831
    %v3860 = vpack.c.b16 %v2836, %v2832
    %v3861 = vpack.c.b16 %v2837, %v2833
    %v3862 = vpack.c.b16 %v2838, %v2834
    %v3863 = vpack.c.b16 %v2843, %v2839
    %v3864 = vpack.c.b16 %v2844, %v2840
    %v3865 = vpack.c.b16 %v2845, %v2841
    %v3866 = vpack.c.b16 %v2846, %v2842
    %v3867 = vpack.c.b16 %v2851, %v2847
    %v3868 = vpack.c.b16 %v2852, %v2848
    %v3869 = vpack.c.b16 %v2853, %v2849
    %v3870 = vpack.c.b16 %v2854, %v2850
    %v3871 = vpack.c.b16 %v2859, %v2855
    %v3872 = vpack.c.b16 %v2860, %v2856
    %v3873 = vpack.c.b16 %v2861, %v2857
    %v3874 = vpack.c.b16 %v2862, %v2858
    %v3875 = vpack.c.b16 %v2867, %v2863
    %v3876 = vpack.c.b16 %v2868, %v2864
    %v3877 = vpack.c.b16 %v2869, %v2865
    %v3878 = vpack.c.b16 %v2870, %v2866
    %v3879 = vpack.c.b16 %v2875, %v2871
    %v3880 = vpack.c.b16 %v2876, %v2872
    %v3881 = vpack.c.b16 %v2877, %v2873
    %v3882 = vpack.c.b16 %v2878, %v2874
    %v3883 = vpack.c.b16 %v2883, %v2879
    %v3884 = vpack.c.b16 %v2884, %v2880
    %v3885 = vpack.c.b16 %v2885, %v2881
    %v3886 = vpack.c.b16 %v2886, %v2882
    %v3887 = vpack.c.b16 %v2891, %v2887
    %v3888 = vpack.c.b16 %v2892, %v2888
    %v3889 = vpack.c.b16 %v2893, %v2889
    %v3890 = vpack.c.b16 %v2894, %v2890
    %v3891 = vpack.c.b16 %v2899, %v2895
    %v3892 = vpack.c.b16 %v2900, %v2896
    %v3893 = vpack.c.b16 %v2901, %v2897
    %v3894 = vpack.c.b16 %v2902, %v2898
    %v3895 = vpack.c.b16 %v2907, %v2903
    %v3896 = vpack.c.b16 %v2908, %v2904
    %v3897 = vpack.c.b16 %v2909, %v2905
    %v3898 = vpack.c.b16 %v2910, %v2906
    %v3899 = vpack.c.b16 %v2915, %v2911
    %v3900 = vpack.c.b16 %v2916, %v2912
    %v3901 = vpack.c.b16 %v2917, %v2913
    %v3902 = vpack.c.b16 %v2918, %v2914
    %v3903 = vpack.c.b16 %v2923, %v2919
    %v3904 = vpack.c.b16 %v2924, %v2920
    %v3905 = vpack.c.b16 %v2925, %v2921
    %v3906 = vpack.c.b16 %v2926, %v2922
    %v3907 = vpack.c.b16 %v2931, %v2927
    %v3908 = vpack.c.b16 %v2932, %v2928
    %v3909 = vpack.c.b16 %v2933, %v2929
    %v3910 = vpack.c.b16 %v2934, %v2930
    %v3911 = vpack.c.b16 %v2939, %v2935
    %v3912 = vpack.c.b16 %v2940, %v2936
    %v3913 = vpack.c.b16 %v2941, %v2937
    %v3914 = vpack.c.b16 %v2942, %v2938
    %v3915 = vpack.c.b16 %v2947, %v2943
    %v3916 = vpack.c.b16 %v2948, %v2944
    %v3917 = vpack.c.b16 %v2949, %v2945
    %v3918 = vpack.c.b16 %v2950, %v2946
    %v3919 = vpack.c.b16 %v2955, %v2951
    %v3920 = vpack.c.b16 %v2956, %v2952
    %v3921 = vpack.c.b16 %v2957, %v2953
    %v3922 = vpack.c.b16 %v2958, %v2954
    %v3923 = vpack.c.b16 %v2963, %v2959
    %v3924 = vpack.c.b16 %v2964, %v2960
    %v3925 = vpack.c.b16 %v2965, %v2961
    %v3926 = vpack.c.b16 %v2966, %v2962
    %v3927 = vpack.c.b16 %v2971, %v2967
    %v3928 = vpack.c.b16 %v2972, %v2968
    %v3929 = vpack.c.b16 %v2973, %v2969
    %v3930 = vpack.c.b16 %v2974, %v2970
    %v3931 = vpack.c.b16 %v2979, %v2975
    %v3932 = vpack.c.b16 %v2980, %v2976
    %v3933 = vpack.c.b16 %v2981, %v2977
    %v3934 = vpack.c.b16 %v2982, %v2978
    %v3935 = vpack.c.b16 %v2987, %v2983
    %v3936 = vpack.c.b16 %v2988, %v2984
    %v3937 = vpack.c.b16 %v2989, %v2985
    %v3938 = vpack.c.b16 %v2990, %v2986
    %v3939 = vpack.c.b16 %v2995, %v2991
    %v3940 = vpack.c.b16 %v2996, %v2992
    %v3941 = vpack.c.b16 %v2997, %v2993
    %v3942 = vpack.c.b16 %v2998, %v2994
    %v3943 = vpack.c.b16 %v3003, %v2999
    %v3944 = vpack.c.b16 %v3004, %v3000
    %v3945 = vpack.c.b16 %v3005, %v3001
    %v3946 = vpack.c.b16 %v3006, %v3002
    %v3947 = vpack.c.b16 %v3011, %v3007
    %v3948 = vpack.c.b16 %v3012, %v3008
    %v3949 = vpack.c.b16 %v3013, %v3009
    %v3950 = vpack.c.b16 %v3014, %v3010
    %v3951 = vpack.c.b16 %v3019, %v3015
    %v3952 = vpack.c.b16 %v3020, %v3016
    %v3953 = vpack.c.b16 %v3021, %v3017
    %v3954 = vpack.c.b16 %v3022, %v3018
    %v3955 = vpack.c.b16 %v3027, %v3023
    %v3956 = vpack.c.b16 %v3028, %v3024
    %v3957 = vpack.c.b16 %v3029, %v3025
    %v3958 = vpack.c.b16 %v3030, %v3026
    %v3959 = vpack.c.b16 %v3035, %v3031
    %v3960 = vpack.c.b16 %v3036, %v3032
    %v3961 = vpack.c.b16 %v3037, %v3033
    %v3962 = vpack.c.b16 %v3038, %v3034
    %v3963 = vpack.c.b16 %v3043, %v3039
    %v3964 = vpack.c.b16 %v3044, %v3040
    %v3965 = vpack.c.b16 %v3045, %v3041
    %v3966 = vpack.c.b16 %v3046, %v3042
    %v3967 = vpack.c.b16 %v3051, %v3047
    %v3968 = vpack.c.b16 %v3052, %v3048
    %v3969 = vpack.c.b16 %v3053, %v3049
    %v3970 = vpack.c.b16 %v3054, %v3050
    %v3971 = vpack.c.b16 %v3059, %v3055
    %v3972 = vpack.c.b16 %v3060, %v3056
    %v3973 = vpack.c.b16 %v3061, %v3057
    %v3974 = vpack.c.b16 %v3062, %v3058
    %v3975 = vpack.c.b16 %v3067, %v3063
    %v3976 = vpack.c.b16 %v3068, %v3064
    %v3977 = vpack.c.b16 %v3069, %v3065
    %v3978 = vpack.c.b16 %v3070, %v3066
    %v3979 = vpack.c.b16 %v3075, %v3071
    %v3980 = vpack.c.b16 %v3076, %v3072
    %v3981 = vpack.c.b16 %v3077, %v3073
    %v3982 = vpack.c.b16 %v3078, %v3074
    %v3983 = vpack.c.b16 %v3083, %v3079
    %v3984 = vpack.c.b16 %v3084, %v3080
    %v3985 = vpack.c.b16 %v3085, %v3081
    %v3986 = vpack.c.b16 %v3086, %v3082
    %v3987 = vpack.c.b16 %v3091, %v3087
    %v3988 = vpack.c.b16 %v3092, %v3088
    %v3989 = vpack.c.b16 %v3093, %v3089
    %v3990 = vpack.c.b16 %v3094, %v3090
    %v3991 = vpack.c.b16 %v3099, %v3095
    %v3992 = vpack.c.b16 %v3100, %v3096
    %v3993 = vpack.c.b16 %v3101, %v3097
    %v3994 = vpack.c.b16 %v3102, %v3098
    %v3995 = vpack.c.b16 %v3107, %v3103
    %v3996 = vpack.c.b16 %v3108, %v3104
    %v3997 = vpack.c.b16 %v3109, %v3105
    %v3998 = vpack.c.b16 %v3110, %v3106
    %v3999 = vpack.c.b16 %v3115, %v3111
    %v4000 = vpack.c.b16 %v3116, %v3112
    %v4001 = vpack.c.b16 %v3117, %v3113
    %v4002 = vpack.c.b16 %v3118, %v3114
    %v4003 = vpack.c.b16 %v3123, %v3119
    %v4004 = vpack.c.b16 %v3124, %v3120
    %v4005 = vpack.c.b16 %v3125, %v3121
    %v4006 = vpack.c.b16 %v3126, %v3122
    %v4007 = vpack.c.b16 %v3131, %v3127
    %v4008 = vpack.c.b16 %v3132, %v3128
    %v4009 = vpack.c.b16 %v3133, %v3129
    %v4010 = vpack.c.b16 %v3134, %v3130
    %v4011 = vpack.c.b16 %v3139, %v3135
    %v4012 = vpack.c.b16 %v3140, %v3136
    %v4013 = vpack.c.b16 %v3141, %v3137
    %v4014 = vpack.c.b16 %v3142, %v3138
    %v4015 = vpack.c.b16 %v3147, %v3143
    %v4016 = vpack.c.b16 %v3148, %v3144
    %v4017 = vpack.c.b16 %v3149, %v3145
    %v4018 = vpack.c.b16 %v3150, %v3146
    %v4019 = vpack.c.b16 %v3155, %v3151
    %v4020 = vpack.c.b16 %v3156, %v3152
    %v4021 = vpack.c.b16 %v3157, %v3153
    %v4022 = vpack.c.b16 %v3158, %v3154
    %v4023 = vpack.c.b16 %v3163, %v3159
    %v4024 = vpack.c.b16 %v3164, %v3160
    %v4025 = vpack.c.b16 %v3165, %v3161
    %v4026 = vpack.c.b16 %v3166, %v3162
    %v4027 = vpack.c.b16 %v3171, %v3167
    %v4028 = vpack.c.b16 %v3172, %v3168
    %v4029 = vpack.c.b16 %v3173, %v3169
    %v4030 = vpack.c.b16 %v3174, %v3170
    %v4031 = vpack.c.b16 %v3179, %v3175
    %v4032 = vpack.c.b16 %v3180, %v3176
    %v4033 = vpack.c.b16 %v3181, %v3177
    %v4034 = vpack.c.b16 %v3182, %v3178
    %v4035 = vpack.c.b16 %v3187, %v3183
    %v4036 = vpack.c.b16 %v3188, %v3184
    %v4037 = vpack.c.b16 %v3189, %v3185
    %v4038 = vpack.c.b16 %v3190, %v3186
    %v4039 = vpack.c.b16 %v3195, %v3191
    %v4040 = vpack.c.b16 %v3196, %v3192
    %v4041 = vpack.c.b16 %v3197, %v3193
    %v4042 = vpack.c.b16 %v3198, %v3194
    %v4043 = vpack.c.b16 %v3203, %v3199
    %v4044 = vpack.c.b16 %v3204, %v3200
    %v4045 = vpack.c.b16 %v3205, %v3201
    %v4046 = vpack.c.b16 %v3206, %v3202
    %v4047 = vpack.c.b16 %v3211, %v3207
    %v4048 = vpack.c.b16 %v3212, %v3208
    %v4049 = vpack.c.b16 %v3213, %v3209
    %v4050 = vpack.c.b16 %v3214, %v3210
    %v4051 = vpack.c.b16 %v3219, %v3215
    %v4052 = vpack.c.b16 %v3220, %v3216
    %v4053 = vpack.c.b16 %v3221, %v3217
    %v4054 = vpack.c.b16 %v3222, %v3218
    %v4055 = vpack.c.b16 %v3227, %v3223
    %v4056 = vpack.c.b16 %v3228, %v3224
    %v4057 = vpack.c.b16 %v3229, %v3225
    %v4058 = vpack.c.b16 %v3230, %v3226
    %v4059 = vpack.c.b16 %v3235, %v3231
    %v4060 = vpack.c.b16 %v3236, %v3232
    %v4061 = vpack.c.b16 %v3237, %v3233
    %v4062 = vpack.c.b16 %v3238, %v3234
    %v4063 = vpack.c.b16 %v3243, %v3239
    %v4064 = vpack.c.b16 %v3244, %v3240
    %v4065 = vpack.c.b16 %v3245, %v3241
    %v4066 = vpack.c.b16 %v3246, %v3242
    %v4067 = vpack.c.b16 %v3251, %v3247
    %v4068 = vpack.c.b16 %v3252, %v3248
    %v4069 = vpack.c.b16 %v3253, %v3249
    %v4070 = vpack.c.b16 %v3254, %v3250
    %v4071 = vpack.c.b16 %v3259, %v3255
    %v4072 = vpack.c.b16 %v3260, %v3256
    %v4073 = vpack.c.b16 %v3261, %v3257
    %v4074 = vpack.c.b16 %v3262, %v3258
    %v4075 = vpack.c.b16 %v3267, %v3263
    %v4076 = vpack.c.b16 %v3268, %v3264
    %v4077 = vpack.c.b16 %v3269, %v3265
    %v4078 = vpack.c.b16 %v3270, %v3266
    %v4079 = vpack.c.b16 %v3275, %v3271
    %v4080 = vpack.c.b16 %v3276, %v3272
    %v4081 = vpack.c.b16 %v3277, %v3273
    %v4082 = vpack.c.b16 %v3278, %v3274
    %v4083 = vpack.c.b16 %v3283, %v3279
    %v4084 = vpack.c.b16 %v3284, %v3280
    %v4085 = vpack.c.b16 %v3285, %v3281
    %v4086 = vpack.c.b16 %v3286, %v3282
    %4887 = vmatpush.bf16.msra.mxu0 %v3315
    %4888 = vmatpush.bf16.msra.mxu0 %v3311
    %4889 = vmatpush.bf16.msra.mxu0 %v3307
    %4890 = vmatpush.bf16.msra.mxu0 %v3303
    %4891 = vmatpush.bf16.msra.mxu0 %v3299
    %4892 = vmatpush.bf16.msra.mxu0 %v3295
    %4893 = vmatpush.bf16.msra.mxu0 %v3291
    %4894 = vmatpush.bf16.msra.mxu0 %v3287
    %4895 = vmatmul.bf16.gmra.mxu0 %v831
    %v4896 = vpop.f32.mrf.mxu0
    %v4897 = vadd.f32 %v821, %v4896
    %v4898 = vpop.f32.mrf.mxu0
    %4899 = vdwg.mxu0
    %4900 = vmatpush.bf16.msra.mxu0 %v3347
    %4901 = vmatpush.bf16.msra.mxu0 %v3343
    %4902 = vmatpush.bf16.msra.mxu0 %v3339
    %4903 = vmatpush.bf16.msra.mxu0 %v3335
    %4904 = vmatpush.bf16.msra.mxu0 %v3331
    %4905 = vmatpush.bf16.msra.mxu0 %v3327
    %4906 = vmatpush.bf16.msra.mxu0 %v3323
    %4907 = vmatpush.bf16.msra.mxu0 %v3319
    %4908 = vmatmul.bf16.gmra.mxu0 %v832
    %v4909 = vpop.f32.mrf.mxu0
    %v4910 = vadd.f32 %v4897, %v4909
    %v4911 = vpop.f32.mrf.mxu0
    %4912 = vdwg.mxu0
    %4913 = vmatpush.bf16.msra.mxu0 %v3379
    %4914 = vmatpush.bf16.msra.mxu0 %v3375
    %4915 = vmatpush.bf16.msra.mxu0 %v3371
    %4916 = vmatpush.bf16.msra.mxu0 %v3367
    %4917 = vmatpush.bf16.msra.mxu0 %v3363
    %4918 = vmatpush.bf16.msra.mxu0 %v3359
    %4919 = vmatpush.bf16.msra.mxu0 %v3355
    %4920 = vmatpush.bf16.msra.mxu0 %v3351
    %4921 = vmatmul.bf16.gmra.mxu0 %v833
    %v4922 = vpop.f32.mrf.mxu0
    %v4923 = vadd.f32 %v4910, %v4922
    %v4924 = vpop.f32.mrf.mxu0
    %4925 = vdwg.mxu0
    %4926 = vmatpush.bf16.msra.mxu0 %v3411
    %4927 = vmatpush.bf16.msra.mxu0 %v3407
    %4928 = vmatpush.bf16.msra.mxu0 %v3403
    %4929 = vmatpush.bf16.msra.mxu0 %v3399
    %4930 = vmatpush.bf16.msra.mxu0 %v3395
    %4931 = vmatpush.bf16.msra.mxu0 %v3391
    %4932 = vmatpush.bf16.msra.mxu0 %v3387
    %4933 = vmatpush.bf16.msra.mxu0 %v3383
    %4934 = vmatmul.bf16.gmra.mxu0 %v834
    %v4935 = vpop.f32.mrf.mxu0
    %v4936 = vadd.f32 %v4923, %v4935
    %v4937 = vpop.f32.mrf.mxu0
    %4938 = vdwg.mxu0
    %4939 = vmatpush.bf16.msra.mxu0 %v3443
    %4940 = vmatpush.bf16.msra.mxu0 %v3439
    %4941 = vmatpush.bf16.msra.mxu0 %v3435
    %4942 = vmatpush.bf16.msra.mxu0 %v3431
    %4943 = vmatpush.bf16.msra.mxu0 %v3427
    %4944 = vmatpush.bf16.msra.mxu0 %v3423
    %4945 = vmatpush.bf16.msra.mxu0 %v3419
    %4946 = vmatpush.bf16.msra.mxu0 %v3415
    %4947 = vmatmul.bf16.gmra.mxu0 %v835
    %v4948 = vpop.f32.mrf.mxu0
    %v4949 = vadd.f32 %v4936, %v4948
    %v4950 = vpop.f32.mrf.mxu0
    %4951 = vdwg.mxu0
    %4952 = vmatpush.bf16.msra.mxu0 %v3475
    %4953 = vmatpush.bf16.msra.mxu0 %v3471
    %4954 = vmatpush.bf16.msra.mxu0 %v3467
    %4955 = vmatpush.bf16.msra.mxu0 %v3463
    %4956 = vmatpush.bf16.msra.mxu0 %v3459
    %4957 = vmatpush.bf16.msra.mxu0 %v3455
    %4958 = vmatpush.bf16.msra.mxu0 %v3451
    %4959 = vmatpush.bf16.msra.mxu0 %v3447
    %4960 = vmatmul.bf16.gmra.mxu0 %v836
    %v4961 = vpop.f32.mrf.mxu0
    %v4962 = vadd.f32 %v4949, %v4961
    %v4963 = vpop.f32.mrf.mxu0
    %4964 = vdwg.mxu0
    %4965 = vmatpush.bf16.msra.mxu0 %v3507
    %4966 = vmatpush.bf16.msra.mxu0 %v3503
    %4967 = vmatpush.bf16.msra.mxu0 %v3499
    %4968 = vmatpush.bf16.msra.mxu0 %v3495
    %4969 = vmatpush.bf16.msra.mxu0 %v3491
    %4970 = vmatpush.bf16.msra.mxu0 %v3487
    %4971 = vmatpush.bf16.msra.mxu0 %v3483
    %4972 = vmatpush.bf16.msra.mxu0 %v3479
    %4973 = vmatmul.bf16.gmra.mxu0 %v837
    %v4974 = vpop.f32.mrf.mxu0
    %v4975 = vadd.f32 %v4962, %v4974
    %v4976 = vpop.f32.mrf.mxu0
    %4977 = vdwg.mxu0
    %4978 = vmatpush.bf16.msra.mxu0 %v3539
    %4979 = vmatpush.bf16.msra.mxu0 %v3535
    %4980 = vmatpush.bf16.msra.mxu0 %v3531
    %4981 = vmatpush.bf16.msra.mxu0 %v3527
    %4982 = vmatpush.bf16.msra.mxu0 %v3523
    %4983 = vmatpush.bf16.msra.mxu0 %v3519
    %4984 = vmatpush.bf16.msra.mxu0 %v3515
    %4985 = vmatpush.bf16.msra.mxu0 %v3511
    %4986 = vmatmul.bf16.gmra.mxu0 %v838
    %v4987 = vpop.f32.mrf.mxu0
    %v4988 = vadd.f32 %v4975, %v4987
    %v4989 = vpop.f32.mrf.mxu0
    %4990 = vdwg.mxu0
    %4991 = vmatpush.bf16.msra.mxu0 %v3571
    %4992 = vmatpush.bf16.msra.mxu0 %v3567
    %4993 = vmatpush.bf16.msra.mxu0 %v3563
    %4994 = vmatpush.bf16.msra.mxu0 %v3559
    %4995 = vmatpush.bf16.msra.mxu0 %v3555
    %4996 = vmatpush.bf16.msra.mxu0 %v3551
    %4997 = vmatpush.bf16.msra.mxu0 %v3547
    %4998 = vmatpush.bf16.msra.mxu0 %v3543
    %4999 = vmatmul.bf16.gmra.mxu0 %v841
    %v5000 = vpop.f32.mrf.mxu0
    %v5001 = vadd.f32 %v4988, %v5000
    %v5002 = vpop.f32.mrf.mxu0
    %5003 = vdwg.mxu0
    %5004 = vmatpush.bf16.msra.mxu0 %v3603
    %5005 = vmatpush.bf16.msra.mxu0 %v3599
    %5006 = vmatpush.bf16.msra.mxu0 %v3595
    %5007 = vmatpush.bf16.msra.mxu0 %v3591
    %5008 = vmatpush.bf16.msra.mxu0 %v3587
    %5009 = vmatpush.bf16.msra.mxu0 %v3583
    %5010 = vmatpush.bf16.msra.mxu0 %v3579
    %5011 = vmatpush.bf16.msra.mxu0 %v3575
    %5012 = vmatmul.bf16.gmra.mxu0 %v842
    %v5013 = vpop.f32.mrf.mxu0
    %v5014 = vadd.f32 %v5001, %v5013
    %v5015 = vpop.f32.mrf.mxu0
    %5016 = vdwg.mxu0
    %5017 = vmatpush.bf16.msra.mxu0 %v3635
    %5018 = vmatpush.bf16.msra.mxu0 %v3631
    %5019 = vmatpush.bf16.msra.mxu0 %v3627
    %5020 = vmatpush.bf16.msra.mxu0 %v3623
    %5021 = vmatpush.bf16.msra.mxu0 %v3619
    %5022 = vmatpush.bf16.msra.mxu0 %v3615
    %5023 = vmatpush.bf16.msra.mxu0 %v3611
    %5024 = vmatpush.bf16.msra.mxu0 %v3607
    %5025 = vmatmul.bf16.gmra.mxu0 %v843
    %v5026 = vpop.f32.mrf.mxu0
    %v5027 = vadd.f32 %v5014, %v5026
    %v5028 = vpop.f32.mrf.mxu0
    %5029 = vdwg.mxu0
    %5030 = vmatpush.bf16.msra.mxu0 %v3667
    %5031 = vmatpush.bf16.msra.mxu0 %v3663
    %5032 = vmatpush.bf16.msra.mxu0 %v3659
    %5033 = vmatpush.bf16.msra.mxu0 %v3655
    %5034 = vmatpush.bf16.msra.mxu0 %v3651
    %5035 = vmatpush.bf16.msra.mxu0 %v3647
    %5036 = vmatpush.bf16.msra.mxu0 %v3643
    %5037 = vmatpush.bf16.msra.mxu0 %v3639
    %5038 = vmatmul.bf16.gmra.mxu0 %v844
    %v5039 = vpop.f32.mrf.mxu0
    %v5040 = vadd.f32 %v5027, %v5039
    %v5041 = vpop.f32.mrf.mxu0
    %5042 = vdwg.mxu0
    %5043 = vmatpush.bf16.msra.mxu0 %v3699
    %5044 = vmatpush.bf16.msra.mxu0 %v3695
    %5045 = vmatpush.bf16.msra.mxu0 %v3691
    %5046 = vmatpush.bf16.msra.mxu0 %v3687
    %5047 = vmatpush.bf16.msra.mxu0 %v3683
    %5048 = vmatpush.bf16.msra.mxu0 %v3679
    %5049 = vmatpush.bf16.msra.mxu0 %v3675
    %5050 = vmatpush.bf16.msra.mxu0 %v3671
    %5051 = vmatmul.bf16.gmra.mxu0 %v845
    %v5052 = vpop.f32.mrf.mxu0
    %v5053 = vadd.f32 %v5040, %v5052
    %v5054 = vpop.f32.mrf.mxu0
    %5055 = vdwg.mxu0
    %5056 = vmatpush.bf16.msra.mxu0 %v3731
    %5057 = vmatpush.bf16.msra.mxu0 %v3727
    %5058 = vmatpush.bf16.msra.mxu0 %v3723
    %5059 = vmatpush.bf16.msra.mxu0 %v3719
    %5060 = vmatpush.bf16.msra.mxu0 %v3715
    %5061 = vmatpush.bf16.msra.mxu0 %v3711
    %5062 = vmatpush.bf16.msra.mxu0 %v3707
    %5063 = vmatpush.bf16.msra.mxu0 %v3703
    %5064 = vmatmul.bf16.gmra.mxu0 %v846
    %v5065 = vpop.f32.mrf.mxu0
    %v5066 = vadd.f32 %v5053, %v5065
    %v5067 = vpop.f32.mrf.mxu0
    %5068 = vdwg.mxu0
    %5069 = vmatpush.bf16.msra.mxu0 %v3763
    %5070 = vmatpush.bf16.msra.mxu0 %v3759
    %5071 = vmatpush.bf16.msra.mxu0 %v3755
    %5072 = vmatpush.bf16.msra.mxu0 %v3751
    %5073 = vmatpush.bf16.msra.mxu0 %v3747
    %5074 = vmatpush.bf16.msra.mxu0 %v3743
    %5075 = vmatpush.bf16.msra.mxu0 %v3739
    %5076 = vmatpush.bf16.msra.mxu0 %v3735
    %5077 = vmatmul.bf16.gmra.mxu0 %v847
    %v5078 = vpop.f32.mrf.mxu0
    %v5079 = vadd.f32 %v5066, %v5078
    %v5080 = vpop.f32.mrf.mxu0
    %5081 = vdwg.mxu0
    %5082 = vmatpush.bf16.msra.mxu0 %v3795
    %5083 = vmatpush.bf16.msra.mxu0 %v3791
    %5084 = vmatpush.bf16.msra.mxu0 %v3787
    %5085 = vmatpush.bf16.msra.mxu0 %v3783
    %5086 = vmatpush.bf16.msra.mxu0 %v3779
    %5087 = vmatpush.bf16.msra.mxu0 %v3775
    %5088 = vmatpush.bf16.msra.mxu0 %v3771
    %5089 = vmatpush.bf16.msra.mxu0 %v3767
    %5090 = vmatmul.bf16.gmra.mxu0 %v848
    %v5091 = vpop.f32.mrf.mxu0
    %v5092 = vadd.f32 %v5079, %v5091
    %v5093 = vpop.f32.mrf.mxu0
    %5094 = vdwg.mxu0
    %5095 = vmatpush.bf16.msra.mxu0 %v3827
    %5096 = vmatpush.bf16.msra.mxu0 %v3823
    %5097 = vmatpush.bf16.msra.mxu0 %v3819
    %5098 = vmatpush.bf16.msra.mxu0 %v3815
    %5099 = vmatpush.bf16.msra.mxu0 %v3811
    %5100 = vmatpush.bf16.msra.mxu0 %v3807
    %5101 = vmatpush.bf16.msra.mxu0 %v3803
    %5102 = vmatpush.bf16.msra.mxu0 %v3799
    %5103 = vmatmul.bf16.gmra.mxu0 %v851
    %v5104 = vpop.f32.mrf.mxu0
    %v5105 = vadd.f32 %v5092, %v5104
    %v5106 = vpop.f32.mrf.mxu0
    %5107 = vdwg.mxu0
    %5108 = vmatpush.bf16.msra.mxu0 %v3859
    %5109 = vmatpush.bf16.msra.mxu0 %v3855
    %5110 = vmatpush.bf16.msra.mxu0 %v3851
    %5111 = vmatpush.bf16.msra.mxu0 %v3847
    %5112 = vmatpush.bf16.msra.mxu0 %v3843
    %5113 = vmatpush.bf16.msra.mxu0 %v3839
    %5114 = vmatpush.bf16.msra.mxu0 %v3835
    %5115 = vmatpush.bf16.msra.mxu0 %v3831
    %5116 = vmatmul.bf16.gmra.mxu0 %v852
    %v5117 = vpop.f32.mrf.mxu0
    %v5118 = vadd.f32 %v5105, %v5117
    %v5119 = vpop.f32.mrf.mxu0
    %5120 = vdwg.mxu0
    %5121 = vmatpush.bf16.msra.mxu0 %v3891
    %5122 = vmatpush.bf16.msra.mxu0 %v3887
    %5123 = vmatpush.bf16.msra.mxu0 %v3883
    %5124 = vmatpush.bf16.msra.mxu0 %v3879
    %5125 = vmatpush.bf16.msra.mxu0 %v3875
    %5126 = vmatpush.bf16.msra.mxu0 %v3871
    %5127 = vmatpush.bf16.msra.mxu0 %v3867
    %5128 = vmatpush.bf16.msra.mxu0 %v3863
    %5129 = vmatmul.bf16.gmra.mxu0 %v853
    %v5130 = vpop.f32.mrf.mxu0
    %v5131 = vadd.f32 %v5118, %v5130
    %v5132 = vpop.f32.mrf.mxu0
    %5133 = vdwg.mxu0
    %5134 = vmatpush.bf16.msra.mxu0 %v3923
    %5135 = vmatpush.bf16.msra.mxu0 %v3919
    %5136 = vmatpush.bf16.msra.mxu0 %v3915
    %5137 = vmatpush.bf16.msra.mxu0 %v3911
    %5138 = vmatpush.bf16.msra.mxu0 %v3907
    %5139 = vmatpush.bf16.msra.mxu0 %v3903
    %5140 = vmatpush.bf16.msra.mxu0 %v3899
    %5141 = vmatpush.bf16.msra.mxu0 %v3895
    %5142 = vmatmul.bf16.gmra.mxu0 %v854
    %v5143 = vpop.f32.mrf.mxu0
    %v5144 = vadd.f32 %v5131, %v5143
    %v5145 = vpop.f32.mrf.mxu0
    %5146 = vdwg.mxu0
    %5147 = vmatpush.bf16.msra.mxu0 %v3955
    %5148 = vmatpush.bf16.msra.mxu0 %v3951
    %5149 = vmatpush.bf16.msra.mxu0 %v3947
    %5150 = vmatpush.bf16.msra.mxu0 %v3943
    %5151 = vmatpush.bf16.msra.mxu0 %v3939
    %5152 = vmatpush.bf16.msra.mxu0 %v3935
    %5153 = vmatpush.bf16.msra.mxu0 %v3931
    %5154 = vmatpush.bf16.msra.mxu0 %v3927
    %5155 = vmatmul.bf16.gmra.mxu0 %v855
    %v5156 = vpop.f32.mrf.mxu0
    %v5157 = vadd.f32 %v5144, %v5156
    %v5158 = vpop.f32.mrf.mxu0
    %5159 = vdwg.mxu0
    %5160 = vmatpush.bf16.msra.mxu0 %v3987
    %5161 = vmatpush.bf16.msra.mxu0 %v3983
    %5162 = vmatpush.bf16.msra.mxu0 %v3979
    %5163 = vmatpush.bf16.msra.mxu0 %v3975
    %5164 = vmatpush.bf16.msra.mxu0 %v3971
    %5165 = vmatpush.bf16.msra.mxu0 %v3967
    %5166 = vmatpush.bf16.msra.mxu0 %v3963
    %5167 = vmatpush.bf16.msra.mxu0 %v3959
    %5168 = vmatmul.bf16.gmra.mxu0 %v856
    %v5169 = vpop.f32.mrf.mxu0
    %v5170 = vadd.f32 %v5157, %v5169
    %v5171 = vpop.f32.mrf.mxu0
    %5172 = vdwg.mxu0
    %5173 = vmatpush.bf16.msra.mxu0 %v4019
    %5174 = vmatpush.bf16.msra.mxu0 %v4015
    %5175 = vmatpush.bf16.msra.mxu0 %v4011
    %5176 = vmatpush.bf16.msra.mxu0 %v4007
    %5177 = vmatpush.bf16.msra.mxu0 %v4003
    %5178 = vmatpush.bf16.msra.mxu0 %v3999
    %5179 = vmatpush.bf16.msra.mxu0 %v3995
    %5180 = vmatpush.bf16.msra.mxu0 %v3991
    %5181 = vmatmul.bf16.gmra.mxu0 %v857
    %v5182 = vpop.f32.mrf.mxu0
    %v5183 = vadd.f32 %v5170, %v5182
    %v5184 = vpop.f32.mrf.mxu0
    %5185 = vdwg.mxu0
    %5186 = vmatpush.bf16.msra.mxu0 %v4051
    %5187 = vmatpush.bf16.msra.mxu0 %v4047
    %5188 = vmatpush.bf16.msra.mxu0 %v4043
    %5189 = vmatpush.bf16.msra.mxu0 %v4039
    %5190 = vmatpush.bf16.msra.mxu0 %v4035
    %5191 = vmatpush.bf16.msra.mxu0 %v4031
    %5192 = vmatpush.bf16.msra.mxu0 %v4027
    %5193 = vmatpush.bf16.msra.mxu0 %v4023
    %5194 = vmatmul.bf16.gmra.mxu0 %v858
    %v5195 = vpop.f32.mrf.mxu0
    %v5196 = vadd.f32 %v5183, %v5195
    %v5197 = vpop.f32.mrf.mxu0
    %5198 = vdwg.mxu0
    %5199 = vmatpush.bf16.msra.mxu0 %v4083
    %5200 = vmatpush.bf16.msra.mxu0 %v4079
    %5201 = vmatpush.bf16.msra.mxu0 %v4075
    %5202 = vmatpush.bf16.msra.mxu0 %v4071
    %5203 = vmatpush.bf16.msra.mxu0 %v4067
    %5204 = vmatpush.bf16.msra.mxu0 %v4063
    %5205 = vmatpush.bf16.msra.mxu0 %v4059
    %5206 = vmatpush.bf16.msra.mxu0 %v4055
    %5207 = vmatmul.bf16.gmra.mxu0 %v861
    %v5208 = vpop.f32.mrf.mxu0
    %v5209 = vadd.f32 %v5196, %v5208
    %v5210 = vpop.f32.mrf.mxu0
    %5211 = vdwg.mxu0
    %5212 = vmatpush.bf16.msra.mxu0 %v3316
    %5213 = vmatpush.bf16.msra.mxu0 %v3312
    %5214 = vmatpush.bf16.msra.mxu0 %v3308
    %5215 = vmatpush.bf16.msra.mxu0 %v3304
    %5216 = vmatpush.bf16.msra.mxu0 %v3300
    %5217 = vmatpush.bf16.msra.mxu0 %v3296
    %5218 = vmatpush.bf16.msra.mxu0 %v3292
    %5219 = vmatpush.bf16.msra.mxu0 %v3288
    %5220 = vmatmul.bf16.gmra.mxu0 %v831
    %v5221 = vpop.f32.mrf.mxu0
    %v5222 = vadd.f32 %v822, %v5221
    %v5223 = vpop.f32.mrf.mxu0
    %5224 = vdwg.mxu0
    %5225 = vmatpush.bf16.msra.mxu0 %v3348
    %5226 = vmatpush.bf16.msra.mxu0 %v3344
    %5227 = vmatpush.bf16.msra.mxu0 %v3340
    %5228 = vmatpush.bf16.msra.mxu0 %v3336
    %5229 = vmatpush.bf16.msra.mxu0 %v3332
    %5230 = vmatpush.bf16.msra.mxu0 %v3328
    %5231 = vmatpush.bf16.msra.mxu0 %v3324
    %5232 = vmatpush.bf16.msra.mxu0 %v3320
    %5233 = vmatmul.bf16.gmra.mxu0 %v832
    %v5234 = vpop.f32.mrf.mxu0
    %v5235 = vadd.f32 %v5222, %v5234
    %v5236 = vpop.f32.mrf.mxu0
    %5237 = vdwg.mxu0
    %5238 = vmatpush.bf16.msra.mxu0 %v3380
    %5239 = vmatpush.bf16.msra.mxu0 %v3376
    %5240 = vmatpush.bf16.msra.mxu0 %v3372
    %5241 = vmatpush.bf16.msra.mxu0 %v3368
    %5242 = vmatpush.bf16.msra.mxu0 %v3364
    %5243 = vmatpush.bf16.msra.mxu0 %v3360
    %5244 = vmatpush.bf16.msra.mxu0 %v3356
    %5245 = vmatpush.bf16.msra.mxu0 %v3352
    %5246 = vmatmul.bf16.gmra.mxu0 %v833
    %v5247 = vpop.f32.mrf.mxu0
    %v5248 = vadd.f32 %v5235, %v5247
    %v5249 = vpop.f32.mrf.mxu0
    %5250 = vdwg.mxu0
    %5251 = vmatpush.bf16.msra.mxu0 %v3412
    %5252 = vmatpush.bf16.msra.mxu0 %v3408
    %5253 = vmatpush.bf16.msra.mxu0 %v3404
    %5254 = vmatpush.bf16.msra.mxu0 %v3400
    %5255 = vmatpush.bf16.msra.mxu0 %v3396
    %5256 = vmatpush.bf16.msra.mxu0 %v3392
    %5257 = vmatpush.bf16.msra.mxu0 %v3388
    %5258 = vmatpush.bf16.msra.mxu0 %v3384
    %5259 = vmatmul.bf16.gmra.mxu0 %v834
    %v5260 = vpop.f32.mrf.mxu0
    %v5261 = vadd.f32 %v5248, %v5260
    %v5262 = vpop.f32.mrf.mxu0
    %5263 = vdwg.mxu0
    %5264 = vmatpush.bf16.msra.mxu0 %v3444
    %5265 = vmatpush.bf16.msra.mxu0 %v3440
    %5266 = vmatpush.bf16.msra.mxu0 %v3436
    %5267 = vmatpush.bf16.msra.mxu0 %v3432
    %5268 = vmatpush.bf16.msra.mxu0 %v3428
    %5269 = vmatpush.bf16.msra.mxu0 %v3424
    %5270 = vmatpush.bf16.msra.mxu0 %v3420
    %5271 = vmatpush.bf16.msra.mxu0 %v3416
    %5272 = vmatmul.bf16.gmra.mxu0 %v835
    %v5273 = vpop.f32.mrf.mxu0
    %v5274 = vadd.f32 %v5261, %v5273
    %v5275 = vpop.f32.mrf.mxu0
    %5276 = vdwg.mxu0
    %5277 = vmatpush.bf16.msra.mxu0 %v3476
    %5278 = vmatpush.bf16.msra.mxu0 %v3472
    %5279 = vmatpush.bf16.msra.mxu0 %v3468
    %5280 = vmatpush.bf16.msra.mxu0 %v3464
    %5281 = vmatpush.bf16.msra.mxu0 %v3460
    %5282 = vmatpush.bf16.msra.mxu0 %v3456
    %5283 = vmatpush.bf16.msra.mxu0 %v3452
    %5284 = vmatpush.bf16.msra.mxu0 %v3448
    %5285 = vmatmul.bf16.gmra.mxu0 %v836
    %v5286 = vpop.f32.mrf.mxu0
    %v5287 = vadd.f32 %v5274, %v5286
    %v5288 = vpop.f32.mrf.mxu0
    %5289 = vdwg.mxu0
    %5290 = vmatpush.bf16.msra.mxu0 %v3508
    %5291 = vmatpush.bf16.msra.mxu0 %v3504
    %5292 = vmatpush.bf16.msra.mxu0 %v3500
    %5293 = vmatpush.bf16.msra.mxu0 %v3496
    %5294 = vmatpush.bf16.msra.mxu0 %v3492
    %5295 = vmatpush.bf16.msra.mxu0 %v3488
    %5296 = vmatpush.bf16.msra.mxu0 %v3484
    %5297 = vmatpush.bf16.msra.mxu0 %v3480
    %5298 = vmatmul.bf16.gmra.mxu0 %v837
    %v5299 = vpop.f32.mrf.mxu0
    %v5300 = vadd.f32 %v5287, %v5299
    %v5301 = vpop.f32.mrf.mxu0
    %5302 = vdwg.mxu0
    %5303 = vmatpush.bf16.msra.mxu0 %v3540
    %5304 = vmatpush.bf16.msra.mxu0 %v3536
    %5305 = vmatpush.bf16.msra.mxu0 %v3532
    %5306 = vmatpush.bf16.msra.mxu0 %v3528
    %5307 = vmatpush.bf16.msra.mxu0 %v3524
    %5308 = vmatpush.bf16.msra.mxu0 %v3520
    %5309 = vmatpush.bf16.msra.mxu0 %v3516
    %5310 = vmatpush.bf16.msra.mxu0 %v3512
    %5311 = vmatmul.bf16.gmra.mxu0 %v838
    %v5312 = vpop.f32.mrf.mxu0
    %v5313 = vadd.f32 %v5300, %v5312
    %v5314 = vpop.f32.mrf.mxu0
    %5315 = vdwg.mxu0
    %5316 = vmatpush.bf16.msra.mxu0 %v3572
    %5317 = vmatpush.bf16.msra.mxu0 %v3568
    %5318 = vmatpush.bf16.msra.mxu0 %v3564
    %5319 = vmatpush.bf16.msra.mxu0 %v3560
    %5320 = vmatpush.bf16.msra.mxu0 %v3556
    %5321 = vmatpush.bf16.msra.mxu0 %v3552
    %5322 = vmatpush.bf16.msra.mxu0 %v3548
    %5323 = vmatpush.bf16.msra.mxu0 %v3544
    %5324 = vmatmul.bf16.gmra.mxu0 %v841
    %v5325 = vpop.f32.mrf.mxu0
    %v5326 = vadd.f32 %v5313, %v5325
    %v5327 = vpop.f32.mrf.mxu0
    %5328 = vdwg.mxu0
    %5329 = vmatpush.bf16.msra.mxu0 %v3604
    %5330 = vmatpush.bf16.msra.mxu0 %v3600
    %5331 = vmatpush.bf16.msra.mxu0 %v3596
    %5332 = vmatpush.bf16.msra.mxu0 %v3592
    %5333 = vmatpush.bf16.msra.mxu0 %v3588
    %5334 = vmatpush.bf16.msra.mxu0 %v3584
    %5335 = vmatpush.bf16.msra.mxu0 %v3580
    %5336 = vmatpush.bf16.msra.mxu0 %v3576
    %5337 = vmatmul.bf16.gmra.mxu0 %v842
    %v5338 = vpop.f32.mrf.mxu0
    %v5339 = vadd.f32 %v5326, %v5338
    %v5340 = vpop.f32.mrf.mxu0
    %5341 = vdwg.mxu0
    %5342 = vmatpush.bf16.msra.mxu0 %v3636
    %5343 = vmatpush.bf16.msra.mxu0 %v3632
    %5344 = vmatpush.bf16.msra.mxu0 %v3628
    %5345 = vmatpush.bf16.msra.mxu0 %v3624
    %5346 = vmatpush.bf16.msra.mxu0 %v3620
    %5347 = vmatpush.bf16.msra.mxu0 %v3616
    %5348 = vmatpush.bf16.msra.mxu0 %v3612
    %5349 = vmatpush.bf16.msra.mxu0 %v3608
    %5350 = vmatmul.bf16.gmra.mxu0 %v843
    %v5351 = vpop.f32.mrf.mxu0
    %v5352 = vadd.f32 %v5339, %v5351
    %v5353 = vpop.f32.mrf.mxu0
    %5354 = vdwg.mxu0
    %5355 = vmatpush.bf16.msra.mxu0 %v3668
    %5356 = vmatpush.bf16.msra.mxu0 %v3664
    %5357 = vmatpush.bf16.msra.mxu0 %v3660
    %5358 = vmatpush.bf16.msra.mxu0 %v3656
    %5359 = vmatpush.bf16.msra.mxu0 %v3652
    %5360 = vmatpush.bf16.msra.mxu0 %v3648
    %5361 = vmatpush.bf16.msra.mxu0 %v3644
    %5362 = vmatpush.bf16.msra.mxu0 %v3640
    %5363 = vmatmul.bf16.gmra.mxu0 %v844
    %v5364 = vpop.f32.mrf.mxu0
    %v5365 = vadd.f32 %v5352, %v5364
    %v5366 = vpop.f32.mrf.mxu0
    %5367 = vdwg.mxu0
    %5368 = vmatpush.bf16.msra.mxu0 %v3700
    %5369 = vmatpush.bf16.msra.mxu0 %v3696
    %5370 = vmatpush.bf16.msra.mxu0 %v3692
    %5371 = vmatpush.bf16.msra.mxu0 %v3688
    %5372 = vmatpush.bf16.msra.mxu0 %v3684
    %5373 = vmatpush.bf16.msra.mxu0 %v3680
    %5374 = vmatpush.bf16.msra.mxu0 %v3676
    %5375 = vmatpush.bf16.msra.mxu0 %v3672
    %5376 = vmatmul.bf16.gmra.mxu0 %v845
    %v5377 = vpop.f32.mrf.mxu0
    %v5378 = vadd.f32 %v5365, %v5377
    %v5379 = vpop.f32.mrf.mxu0
    %5380 = vdwg.mxu0
    %5381 = vmatpush.bf16.msra.mxu0 %v3732
    %5382 = vmatpush.bf16.msra.mxu0 %v3728
    %5383 = vmatpush.bf16.msra.mxu0 %v3724
    %5384 = vmatpush.bf16.msra.mxu0 %v3720
    %5385 = vmatpush.bf16.msra.mxu0 %v3716
    %5386 = vmatpush.bf16.msra.mxu0 %v3712
    %5387 = vmatpush.bf16.msra.mxu0 %v3708
    %5388 = vmatpush.bf16.msra.mxu0 %v3704
    %5389 = vmatmul.bf16.gmra.mxu0 %v846
    %v5390 = vpop.f32.mrf.mxu0
    %v5391 = vadd.f32 %v5378, %v5390
    %v5392 = vpop.f32.mrf.mxu0
    %5393 = vdwg.mxu0
    %5394 = vmatpush.bf16.msra.mxu0 %v3764
    %5395 = vmatpush.bf16.msra.mxu0 %v3760
    %5396 = vmatpush.bf16.msra.mxu0 %v3756
    %5397 = vmatpush.bf16.msra.mxu0 %v3752
    %5398 = vmatpush.bf16.msra.mxu0 %v3748
    %5399 = vmatpush.bf16.msra.mxu0 %v3744
    %5400 = vmatpush.bf16.msra.mxu0 %v3740
    %5401 = vmatpush.bf16.msra.mxu0 %v3736
    %5402 = vmatmul.bf16.gmra.mxu0 %v847
    %v5403 = vpop.f32.mrf.mxu0
    %v5404 = vadd.f32 %v5391, %v5403
    %v5405 = vpop.f32.mrf.mxu0
    %5406 = vdwg.mxu0
    %5407 = vmatpush.bf16.msra.mxu0 %v3796
    %5408 = vmatpush.bf16.msra.mxu0 %v3792
    %5409 = vmatpush.bf16.msra.mxu0 %v3788
    %5410 = vmatpush.bf16.msra.mxu0 %v3784
    %5411 = vmatpush.bf16.msra.mxu0 %v3780
    %5412 = vmatpush.bf16.msra.mxu0 %v3776
    %5413 = vmatpush.bf16.msra.mxu0 %v3772
    %5414 = vmatpush.bf16.msra.mxu0 %v3768
    %5415 = vmatmul.bf16.gmra.mxu0 %v848
    %v5416 = vpop.f32.mrf.mxu0
    %v5417 = vadd.f32 %v5404, %v5416
    %v5418 = vpop.f32.mrf.mxu0
    %5419 = vdwg.mxu0
    %5420 = vmatpush.bf16.msra.mxu0 %v3828
    %5421 = vmatpush.bf16.msra.mxu0 %v3824
    %5422 = vmatpush.bf16.msra.mxu0 %v3820
    %5423 = vmatpush.bf16.msra.mxu0 %v3816
    %5424 = vmatpush.bf16.msra.mxu0 %v3812
    %5425 = vmatpush.bf16.msra.mxu0 %v3808
    %5426 = vmatpush.bf16.msra.mxu0 %v3804
    %5427 = vmatpush.bf16.msra.mxu0 %v3800
    %5428 = vmatmul.bf16.gmra.mxu0 %v851
    %v5429 = vpop.f32.mrf.mxu0
    %v5430 = vadd.f32 %v5417, %v5429
    %v5431 = vpop.f32.mrf.mxu0
    %5432 = vdwg.mxu0
    %5433 = vmatpush.bf16.msra.mxu0 %v3860
    %5434 = vmatpush.bf16.msra.mxu0 %v3856
    %5435 = vmatpush.bf16.msra.mxu0 %v3852
    %5436 = vmatpush.bf16.msra.mxu0 %v3848
    %5437 = vmatpush.bf16.msra.mxu0 %v3844
    %5438 = vmatpush.bf16.msra.mxu0 %v3840
    %5439 = vmatpush.bf16.msra.mxu0 %v3836
    %5440 = vmatpush.bf16.msra.mxu0 %v3832
    %5441 = vmatmul.bf16.gmra.mxu0 %v852
    %v5442 = vpop.f32.mrf.mxu0
    %v5443 = vadd.f32 %v5430, %v5442
    %v5444 = vpop.f32.mrf.mxu0
    %5445 = vdwg.mxu0
    %5446 = vmatpush.bf16.msra.mxu0 %v3892
    %5447 = vmatpush.bf16.msra.mxu0 %v3888
    %5448 = vmatpush.bf16.msra.mxu0 %v3884
    %5449 = vmatpush.bf16.msra.mxu0 %v3880
    %5450 = vmatpush.bf16.msra.mxu0 %v3876
    %5451 = vmatpush.bf16.msra.mxu0 %v3872
    %5452 = vmatpush.bf16.msra.mxu0 %v3868
    %5453 = vmatpush.bf16.msra.mxu0 %v3864
    %5454 = vmatmul.bf16.gmra.mxu0 %v853
    %v5455 = vpop.f32.mrf.mxu0
    %v5456 = vadd.f32 %v5443, %v5455
    %v5457 = vpop.f32.mrf.mxu0
    %5458 = vdwg.mxu0
    %5459 = vmatpush.bf16.msra.mxu0 %v3924
    %5460 = vmatpush.bf16.msra.mxu0 %v3920
    %5461 = vmatpush.bf16.msra.mxu0 %v3916
    %5462 = vmatpush.bf16.msra.mxu0 %v3912
    %5463 = vmatpush.bf16.msra.mxu0 %v3908
    %5464 = vmatpush.bf16.msra.mxu0 %v3904
    %5465 = vmatpush.bf16.msra.mxu0 %v3900
    %5466 = vmatpush.bf16.msra.mxu0 %v3896
    %5467 = vmatmul.bf16.gmra.mxu0 %v854
    %v5468 = vpop.f32.mrf.mxu0
    %v5469 = vadd.f32 %v5456, %v5468
    %v5470 = vpop.f32.mrf.mxu0
    %5471 = vdwg.mxu0
    %5472 = vmatpush.bf16.msra.mxu0 %v3956
    %5473 = vmatpush.bf16.msra.mxu0 %v3952
    %5474 = vmatpush.bf16.msra.mxu0 %v3948
    %5475 = vmatpush.bf16.msra.mxu0 %v3944
    %5476 = vmatpush.bf16.msra.mxu0 %v3940
    %5477 = vmatpush.bf16.msra.mxu0 %v3936
    %5478 = vmatpush.bf16.msra.mxu0 %v3932
    %5479 = vmatpush.bf16.msra.mxu0 %v3928
    %5480 = vmatmul.bf16.gmra.mxu0 %v855
    %v5481 = vpop.f32.mrf.mxu0
    %v5482 = vadd.f32 %v5469, %v5481
    %v5483 = vpop.f32.mrf.mxu0
    %5484 = vdwg.mxu0
    %5485 = vmatpush.bf16.msra.mxu0 %v3988
    %5486 = vmatpush.bf16.msra.mxu0 %v3984
    %5487 = vmatpush.bf16.msra.mxu0 %v3980
    %5488 = vmatpush.bf16.msra.mxu0 %v3976
    %5489 = vmatpush.bf16.msra.mxu0 %v3972
    %5490 = vmatpush.bf16.msra.mxu0 %v3968
    %5491 = vmatpush.bf16.msra.mxu0 %v3964
    %5492 = vmatpush.bf16.msra.mxu0 %v3960
    %5493 = vmatmul.bf16.gmra.mxu0 %v856
    %v5494 = vpop.f32.mrf.mxu0
    %v5495 = vadd.f32 %v5482, %v5494
    %v5496 = vpop.f32.mrf.mxu0
    %5497 = vdwg.mxu0
    %5498 = vmatpush.bf16.msra.mxu0 %v4020
    %5499 = vmatpush.bf16.msra.mxu0 %v4016
    %5500 = vmatpush.bf16.msra.mxu0 %v4012
    %5501 = vmatpush.bf16.msra.mxu0 %v4008
    %5502 = vmatpush.bf16.msra.mxu0 %v4004
    %5503 = vmatpush.bf16.msra.mxu0 %v4000
    %5504 = vmatpush.bf16.msra.mxu0 %v3996
    %5505 = vmatpush.bf16.msra.mxu0 %v3992
    %5506 = vmatmul.bf16.gmra.mxu0 %v857
    %v5507 = vpop.f32.mrf.mxu0
    %v5508 = vadd.f32 %v5495, %v5507
    %v5509 = vpop.f32.mrf.mxu0
    %5510 = vdwg.mxu0
    %5511 = vmatpush.bf16.msra.mxu0 %v4052
    %5512 = vmatpush.bf16.msra.mxu0 %v4048
    %5513 = vmatpush.bf16.msra.mxu0 %v4044
    %5514 = vmatpush.bf16.msra.mxu0 %v4040
    %5515 = vmatpush.bf16.msra.mxu0 %v4036
    %5516 = vmatpush.bf16.msra.mxu0 %v4032
    %5517 = vmatpush.bf16.msra.mxu0 %v4028
    %5518 = vmatpush.bf16.msra.mxu0 %v4024
    %5519 = vmatmul.bf16.gmra.mxu0 %v858
    %v5520 = vpop.f32.mrf.mxu0
    %v5521 = vadd.f32 %v5508, %v5520
    %v5522 = vpop.f32.mrf.mxu0
    %5523 = vdwg.mxu0
    %5524 = vmatpush.bf16.msra.mxu0 %v4084
    %5525 = vmatpush.bf16.msra.mxu0 %v4080
    %5526 = vmatpush.bf16.msra.mxu0 %v4076
    %5527 = vmatpush.bf16.msra.mxu0 %v4072
    %5528 = vmatpush.bf16.msra.mxu0 %v4068
    %5529 = vmatpush.bf16.msra.mxu0 %v4064
    %5530 = vmatpush.bf16.msra.mxu0 %v4060
    %5531 = vmatpush.bf16.msra.mxu0 %v4056
    %5532 = vmatmul.bf16.gmra.mxu0 %v861
    %v5533 = vpop.f32.mrf.mxu0
    %v5534 = vadd.f32 %v5521, %v5533
    %v5535 = vpop.f32.mrf.mxu0
    %5536 = vdwg.mxu0
    %5537 = vmatpush.bf16.msra.mxu0 %v3317
    %5538 = vmatpush.bf16.msra.mxu0 %v3313
    %5539 = vmatpush.bf16.msra.mxu0 %v3309
    %5540 = vmatpush.bf16.msra.mxu0 %v3305
    %5541 = vmatpush.bf16.msra.mxu0 %v3301
    %5542 = vmatpush.bf16.msra.mxu0 %v3297
    %5543 = vmatpush.bf16.msra.mxu0 %v3293
    %5544 = vmatpush.bf16.msra.mxu0 %v3289
    %5545 = vmatmul.bf16.gmra.mxu0 %v831
    %v5546 = vpop.f32.mrf.mxu0
    %v5547 = vadd.f32 %v823, %v5546
    %v5548 = vpop.f32.mrf.mxu0
    %5549 = vdwg.mxu0
    %5550 = vmatpush.bf16.msra.mxu0 %v3349
    %5551 = vmatpush.bf16.msra.mxu0 %v3345
    %5552 = vmatpush.bf16.msra.mxu0 %v3341
    %5553 = vmatpush.bf16.msra.mxu0 %v3337
    %5554 = vmatpush.bf16.msra.mxu0 %v3333
    %5555 = vmatpush.bf16.msra.mxu0 %v3329
    %5556 = vmatpush.bf16.msra.mxu0 %v3325
    %5557 = vmatpush.bf16.msra.mxu0 %v3321
    %5558 = vmatmul.bf16.gmra.mxu0 %v832
    %v5559 = vpop.f32.mrf.mxu0
    %v5560 = vadd.f32 %v5547, %v5559
    %v5561 = vpop.f32.mrf.mxu0
    %5562 = vdwg.mxu0
    %5563 = vmatpush.bf16.msra.mxu0 %v3381
    %5564 = vmatpush.bf16.msra.mxu0 %v3377
    %5565 = vmatpush.bf16.msra.mxu0 %v3373
    %5566 = vmatpush.bf16.msra.mxu0 %v3369
    %5567 = vmatpush.bf16.msra.mxu0 %v3365
    %5568 = vmatpush.bf16.msra.mxu0 %v3361
    %5569 = vmatpush.bf16.msra.mxu0 %v3357
    %5570 = vmatpush.bf16.msra.mxu0 %v3353
    %5571 = vmatmul.bf16.gmra.mxu0 %v833
    %v5572 = vpop.f32.mrf.mxu0
    %v5573 = vadd.f32 %v5560, %v5572
    %v5574 = vpop.f32.mrf.mxu0
    %5575 = vdwg.mxu0
    %5576 = vmatpush.bf16.msra.mxu0 %v3413
    %5577 = vmatpush.bf16.msra.mxu0 %v3409
    %5578 = vmatpush.bf16.msra.mxu0 %v3405
    %5579 = vmatpush.bf16.msra.mxu0 %v3401
    %5580 = vmatpush.bf16.msra.mxu0 %v3397
    %5581 = vmatpush.bf16.msra.mxu0 %v3393
    %5582 = vmatpush.bf16.msra.mxu0 %v3389
    %5583 = vmatpush.bf16.msra.mxu0 %v3385
    %5584 = vmatmul.bf16.gmra.mxu0 %v834
    %v5585 = vpop.f32.mrf.mxu0
    %v5586 = vadd.f32 %v5573, %v5585
    %v5587 = vpop.f32.mrf.mxu0
    %5588 = vdwg.mxu0
    %5589 = vmatpush.bf16.msra.mxu0 %v3445
    %5590 = vmatpush.bf16.msra.mxu0 %v3441
    %5591 = vmatpush.bf16.msra.mxu0 %v3437
    %5592 = vmatpush.bf16.msra.mxu0 %v3433
    %5593 = vmatpush.bf16.msra.mxu0 %v3429
    %5594 = vmatpush.bf16.msra.mxu0 %v3425
    %5595 = vmatpush.bf16.msra.mxu0 %v3421
    %5596 = vmatpush.bf16.msra.mxu0 %v3417
    %5597 = vmatmul.bf16.gmra.mxu0 %v835
    %v5598 = vpop.f32.mrf.mxu0
    %v5599 = vadd.f32 %v5586, %v5598
    %v5600 = vpop.f32.mrf.mxu0
    %5601 = vdwg.mxu0
    %5602 = vmatpush.bf16.msra.mxu0 %v3477
    %5603 = vmatpush.bf16.msra.mxu0 %v3473
    %5604 = vmatpush.bf16.msra.mxu0 %v3469
    %5605 = vmatpush.bf16.msra.mxu0 %v3465
    %5606 = vmatpush.bf16.msra.mxu0 %v3461
    %5607 = vmatpush.bf16.msra.mxu0 %v3457
    %5608 = vmatpush.bf16.msra.mxu0 %v3453
    %5609 = vmatpush.bf16.msra.mxu0 %v3449
    %5610 = vmatmul.bf16.gmra.mxu0 %v836
    %v5611 = vpop.f32.mrf.mxu0
    %v5612 = vadd.f32 %v5599, %v5611
    %v5613 = vpop.f32.mrf.mxu0
    %5614 = vdwg.mxu0
    %5615 = vmatpush.bf16.msra.mxu0 %v3509
    %5616 = vmatpush.bf16.msra.mxu0 %v3505
    %5617 = vmatpush.bf16.msra.mxu0 %v3501
    %5618 = vmatpush.bf16.msra.mxu0 %v3497
    %5619 = vmatpush.bf16.msra.mxu0 %v3493
    %5620 = vmatpush.bf16.msra.mxu0 %v3489
    %5621 = vmatpush.bf16.msra.mxu0 %v3485
    %5622 = vmatpush.bf16.msra.mxu0 %v3481
    %5623 = vmatmul.bf16.gmra.mxu0 %v837
    %v5624 = vpop.f32.mrf.mxu0
    %v5625 = vadd.f32 %v5612, %v5624
    %v5626 = vpop.f32.mrf.mxu0
    %5627 = vdwg.mxu0
    %5628 = vmatpush.bf16.msra.mxu0 %v3541
    %5629 = vmatpush.bf16.msra.mxu0 %v3537
    %5630 = vmatpush.bf16.msra.mxu0 %v3533
    %5631 = vmatpush.bf16.msra.mxu0 %v3529
    %5632 = vmatpush.bf16.msra.mxu0 %v3525
    %5633 = vmatpush.bf16.msra.mxu0 %v3521
    %5634 = vmatpush.bf16.msra.mxu0 %v3517
    %5635 = vmatpush.bf16.msra.mxu0 %v3513
    %5636 = vmatmul.bf16.gmra.mxu0 %v838
    %v5637 = vpop.f32.mrf.mxu0
    %v5638 = vadd.f32 %v5625, %v5637
    %v5639 = vpop.f32.mrf.mxu0
    %5640 = vdwg.mxu0
    %5641 = vmatpush.bf16.msra.mxu0 %v3573
    %5642 = vmatpush.bf16.msra.mxu0 %v3569
    %5643 = vmatpush.bf16.msra.mxu0 %v3565
    %5644 = vmatpush.bf16.msra.mxu0 %v3561
    %5645 = vmatpush.bf16.msra.mxu0 %v3557
    %5646 = vmatpush.bf16.msra.mxu0 %v3553
    %5647 = vmatpush.bf16.msra.mxu0 %v3549
    %5648 = vmatpush.bf16.msra.mxu0 %v3545
    %5649 = vmatmul.bf16.gmra.mxu0 %v841
    %v5650 = vpop.f32.mrf.mxu0
    %v5651 = vadd.f32 %v5638, %v5650
    %v5652 = vpop.f32.mrf.mxu0
    %5653 = vdwg.mxu0
    %5654 = vmatpush.bf16.msra.mxu0 %v3605
    %5655 = vmatpush.bf16.msra.mxu0 %v3601
    %5656 = vmatpush.bf16.msra.mxu0 %v3597
    %5657 = vmatpush.bf16.msra.mxu0 %v3593
    %5658 = vmatpush.bf16.msra.mxu0 %v3589
    %5659 = vmatpush.bf16.msra.mxu0 %v3585
    %5660 = vmatpush.bf16.msra.mxu0 %v3581
    %5661 = vmatpush.bf16.msra.mxu0 %v3577
    %5662 = vmatmul.bf16.gmra.mxu0 %v842
    %v5663 = vpop.f32.mrf.mxu0
    %v5664 = vadd.f32 %v5651, %v5663
    %v5665 = vpop.f32.mrf.mxu0
    %5666 = vdwg.mxu0
    %5667 = vmatpush.bf16.msra.mxu0 %v3637
    %5668 = vmatpush.bf16.msra.mxu0 %v3633
    %5669 = vmatpush.bf16.msra.mxu0 %v3629
    %5670 = vmatpush.bf16.msra.mxu0 %v3625
    %5671 = vmatpush.bf16.msra.mxu0 %v3621
    %5672 = vmatpush.bf16.msra.mxu0 %v3617
    %5673 = vmatpush.bf16.msra.mxu0 %v3613
    %5674 = vmatpush.bf16.msra.mxu0 %v3609
    %5675 = vmatmul.bf16.gmra.mxu0 %v843
    %v5676 = vpop.f32.mrf.mxu0
    %v5677 = vadd.f32 %v5664, %v5676
    %v5678 = vpop.f32.mrf.mxu0
    %5679 = vdwg.mxu0
    %5680 = vmatpush.bf16.msra.mxu0 %v3669
    %5681 = vmatpush.bf16.msra.mxu0 %v3665
    %5682 = vmatpush.bf16.msra.mxu0 %v3661
    %5683 = vmatpush.bf16.msra.mxu0 %v3657
    %5684 = vmatpush.bf16.msra.mxu0 %v3653
    %5685 = vmatpush.bf16.msra.mxu0 %v3649
    %5686 = vmatpush.bf16.msra.mxu0 %v3645
    %5687 = vmatpush.bf16.msra.mxu0 %v3641
    %5688 = vmatmul.bf16.gmra.mxu0 %v844
    %v5689 = vpop.f32.mrf.mxu0
    %v5690 = vadd.f32 %v5677, %v5689
    %v5691 = vpop.f32.mrf.mxu0
    %5692 = vdwg.mxu0
    %5693 = vmatpush.bf16.msra.mxu0 %v3701
    %5694 = vmatpush.bf16.msra.mxu0 %v3697
    %5695 = vmatpush.bf16.msra.mxu0 %v3693
    %5696 = vmatpush.bf16.msra.mxu0 %v3689
    %5697 = vmatpush.bf16.msra.mxu0 %v3685
    %5698 = vmatpush.bf16.msra.mxu0 %v3681
    %5699 = vmatpush.bf16.msra.mxu0 %v3677
    %5700 = vmatpush.bf16.msra.mxu0 %v3673
    %5701 = vmatmul.bf16.gmra.mxu0 %v845
    %v5702 = vpop.f32.mrf.mxu0
    %v5703 = vadd.f32 %v5690, %v5702
    %v5704 = vpop.f32.mrf.mxu0
    %5705 = vdwg.mxu0
    %5706 = vmatpush.bf16.msra.mxu0 %v3733
    %5707 = vmatpush.bf16.msra.mxu0 %v3729
    %5708 = vmatpush.bf16.msra.mxu0 %v3725
    %5709 = vmatpush.bf16.msra.mxu0 %v3721
    %5710 = vmatpush.bf16.msra.mxu0 %v3717
    %5711 = vmatpush.bf16.msra.mxu0 %v3713
    %5712 = vmatpush.bf16.msra.mxu0 %v3709
    %5713 = vmatpush.bf16.msra.mxu0 %v3705
    %5714 = vmatmul.bf16.gmra.mxu0 %v846
    %v5715 = vpop.f32.mrf.mxu0
    %v5716 = vadd.f32 %v5703, %v5715
    %v5717 = vpop.f32.mrf.mxu0
    %5718 = vdwg.mxu0
    %5719 = vmatpush.bf16.msra.mxu0 %v3765
    %5720 = vmatpush.bf16.msra.mxu0 %v3761
    %5721 = vmatpush.bf16.msra.mxu0 %v3757
    %5722 = vmatpush.bf16.msra.mxu0 %v3753
    %5723 = vmatpush.bf16.msra.mxu0 %v3749
    %5724 = vmatpush.bf16.msra.mxu0 %v3745
    %5725 = vmatpush.bf16.msra.mxu0 %v3741
    %5726 = vmatpush.bf16.msra.mxu0 %v3737
    %5727 = vmatmul.bf16.gmra.mxu0 %v847
    %v5728 = vpop.f32.mrf.mxu0
    %v5729 = vadd.f32 %v5716, %v5728
    %v5730 = vpop.f32.mrf.mxu0
    %5731 = vdwg.mxu0
    %5732 = vmatpush.bf16.msra.mxu0 %v3797
    %5733 = vmatpush.bf16.msra.mxu0 %v3793
    %5734 = vmatpush.bf16.msra.mxu0 %v3789
    %5735 = vmatpush.bf16.msra.mxu0 %v3785
    %5736 = vmatpush.bf16.msra.mxu0 %v3781
    %5737 = vmatpush.bf16.msra.mxu0 %v3777
    %5738 = vmatpush.bf16.msra.mxu0 %v3773
    %5739 = vmatpush.bf16.msra.mxu0 %v3769
    %5740 = vmatmul.bf16.gmra.mxu0 %v848
    %v5741 = vpop.f32.mrf.mxu0
    %v5742 = vadd.f32 %v5729, %v5741
    %v5743 = vpop.f32.mrf.mxu0
    %5744 = vdwg.mxu0
    %5745 = vmatpush.bf16.msra.mxu0 %v3829
    %5746 = vmatpush.bf16.msra.mxu0 %v3825
    %5747 = vmatpush.bf16.msra.mxu0 %v3821
    %5748 = vmatpush.bf16.msra.mxu0 %v3817
    %5749 = vmatpush.bf16.msra.mxu0 %v3813
    %5750 = vmatpush.bf16.msra.mxu0 %v3809
    %5751 = vmatpush.bf16.msra.mxu0 %v3805
    %5752 = vmatpush.bf16.msra.mxu0 %v3801
    %5753 = vmatmul.bf16.gmra.mxu0 %v851
    %v5754 = vpop.f32.mrf.mxu0
    %v5755 = vadd.f32 %v5742, %v5754
    %v5756 = vpop.f32.mrf.mxu0
    %5757 = vdwg.mxu0
    %5758 = vmatpush.bf16.msra.mxu0 %v3861
    %5759 = vmatpush.bf16.msra.mxu0 %v3857
    %5760 = vmatpush.bf16.msra.mxu0 %v3853
    %5761 = vmatpush.bf16.msra.mxu0 %v3849
    %5762 = vmatpush.bf16.msra.mxu0 %v3845
    %5763 = vmatpush.bf16.msra.mxu0 %v3841
    %5764 = vmatpush.bf16.msra.mxu0 %v3837
    %5765 = vmatpush.bf16.msra.mxu0 %v3833
    %5766 = vmatmul.bf16.gmra.mxu0 %v852
    %v5767 = vpop.f32.mrf.mxu0
    %v5768 = vadd.f32 %v5755, %v5767
    %v5769 = vpop.f32.mrf.mxu0
    %5770 = vdwg.mxu0
    %5771 = vmatpush.bf16.msra.mxu0 %v3893
    %5772 = vmatpush.bf16.msra.mxu0 %v3889
    %5773 = vmatpush.bf16.msra.mxu0 %v3885
    %5774 = vmatpush.bf16.msra.mxu0 %v3881
    %5775 = vmatpush.bf16.msra.mxu0 %v3877
    %5776 = vmatpush.bf16.msra.mxu0 %v3873
    %5777 = vmatpush.bf16.msra.mxu0 %v3869
    %5778 = vmatpush.bf16.msra.mxu0 %v3865
    %5779 = vmatmul.bf16.gmra.mxu0 %v853
    %v5780 = vpop.f32.mrf.mxu0
    %v5781 = vadd.f32 %v5768, %v5780
    %v5782 = vpop.f32.mrf.mxu0
    %5783 = vdwg.mxu0
    %5784 = vmatpush.bf16.msra.mxu0 %v3925
    %5785 = vmatpush.bf16.msra.mxu0 %v3921
    %5786 = vmatpush.bf16.msra.mxu0 %v3917
    %5787 = vmatpush.bf16.msra.mxu0 %v3913
    %5788 = vmatpush.bf16.msra.mxu0 %v3909
    %5789 = vmatpush.bf16.msra.mxu0 %v3905
    %5790 = vmatpush.bf16.msra.mxu0 %v3901
    %5791 = vmatpush.bf16.msra.mxu0 %v3897
    %5792 = vmatmul.bf16.gmra.mxu0 %v854
    %v5793 = vpop.f32.mrf.mxu0
    %v5794 = vadd.f32 %v5781, %v5793
    %v5795 = vpop.f32.mrf.mxu0
    %5796 = vdwg.mxu0
    %5797 = vmatpush.bf16.msra.mxu0 %v3957
    %5798 = vmatpush.bf16.msra.mxu0 %v3953
    %5799 = vmatpush.bf16.msra.mxu0 %v3949
    %5800 = vmatpush.bf16.msra.mxu0 %v3945
    %5801 = vmatpush.bf16.msra.mxu0 %v3941
    %5802 = vmatpush.bf16.msra.mxu0 %v3937
    %5803 = vmatpush.bf16.msra.mxu0 %v3933
    %5804 = vmatpush.bf16.msra.mxu0 %v3929
    %5805 = vmatmul.bf16.gmra.mxu0 %v855
    %v5806 = vpop.f32.mrf.mxu0
    %v5807 = vadd.f32 %v5794, %v5806
    %v5808 = vpop.f32.mrf.mxu0
    %5809 = vdwg.mxu0
    %5810 = vmatpush.bf16.msra.mxu0 %v3989
    %5811 = vmatpush.bf16.msra.mxu0 %v3985
    %5812 = vmatpush.bf16.msra.mxu0 %v3981
    %5813 = vmatpush.bf16.msra.mxu0 %v3977
    %5814 = vmatpush.bf16.msra.mxu0 %v3973
    %5815 = vmatpush.bf16.msra.mxu0 %v3969
    %5816 = vmatpush.bf16.msra.mxu0 %v3965
    %5817 = vmatpush.bf16.msra.mxu0 %v3961
    %5818 = vmatmul.bf16.gmra.mxu0 %v856
    %v5819 = vpop.f32.mrf.mxu0
    %v5820 = vadd.f32 %v5807, %v5819
    %v5821 = vpop.f32.mrf.mxu0
    %5822 = vdwg.mxu0
    %5823 = vmatpush.bf16.msra.mxu0 %v4021
    %5824 = vmatpush.bf16.msra.mxu0 %v4017
    %5825 = vmatpush.bf16.msra.mxu0 %v4013
    %5826 = vmatpush.bf16.msra.mxu0 %v4009
    %5827 = vmatpush.bf16.msra.mxu0 %v4005
    %5828 = vmatpush.bf16.msra.mxu0 %v4001
    %5829 = vmatpush.bf16.msra.mxu0 %v3997
    %5830 = vmatpush.bf16.msra.mxu0 %v3993
    %5831 = vmatmul.bf16.gmra.mxu0 %v857
    %v5832 = vpop.f32.mrf.mxu0
    %v5833 = vadd.f32 %v5820, %v5832
    %v5834 = vpop.f32.mrf.mxu0
    %5835 = vdwg.mxu0
    %5836 = vmatpush.bf16.msra.mxu0 %v4053
    %5837 = vmatpush.bf16.msra.mxu0 %v4049
    %5838 = vmatpush.bf16.msra.mxu0 %v4045
    %5839 = vmatpush.bf16.msra.mxu0 %v4041
    %5840 = vmatpush.bf16.msra.mxu0 %v4037
    %5841 = vmatpush.bf16.msra.mxu0 %v4033
    %5842 = vmatpush.bf16.msra.mxu0 %v4029
    %5843 = vmatpush.bf16.msra.mxu0 %v4025
    %5844 = vmatmul.bf16.gmra.mxu0 %v858
    %v5845 = vpop.f32.mrf.mxu0
    %v5846 = vadd.f32 %v5833, %v5845
    %v5847 = vpop.f32.mrf.mxu0
    %5848 = vdwg.mxu0
    %5849 = vmatpush.bf16.msra.mxu0 %v4085
    %5850 = vmatpush.bf16.msra.mxu0 %v4081
    %5851 = vmatpush.bf16.msra.mxu0 %v4077
    %5852 = vmatpush.bf16.msra.mxu0 %v4073
    %5853 = vmatpush.bf16.msra.mxu0 %v4069
    %5854 = vmatpush.bf16.msra.mxu0 %v4065
    %5855 = vmatpush.bf16.msra.mxu0 %v4061
    %5856 = vmatpush.bf16.msra.mxu0 %v4057
    %5857 = vmatmul.bf16.gmra.mxu0 %v861
    %v5858 = vpop.f32.mrf.mxu0
    %v5859 = vadd.f32 %v5846, %v5858
    %v5860 = vpop.f32.mrf.mxu0
    %5861 = vdwg.mxu0
    %5862 = vmatpush.bf16.msra.mxu0 %v3318
    %5863 = vmatpush.bf16.msra.mxu0 %v3314
    %5864 = vmatpush.bf16.msra.mxu0 %v3310
    %5865 = vmatpush.bf16.msra.mxu0 %v3306
    %5866 = vmatpush.bf16.msra.mxu0 %v3302
    %5867 = vmatpush.bf16.msra.mxu0 %v3298
    %5868 = vmatpush.bf16.msra.mxu0 %v3294
    %5869 = vmatpush.bf16.msra.mxu0 %v3290
    %5870 = vmatmul.bf16.gmra.mxu0 %v831
    %v5871 = vpop.f32.mrf.mxu0
    %v5872 = vadd.f32 %v824, %v5871
    %v5873 = vpop.f32.mrf.mxu0
    %5874 = vdwg.mxu0
    %5875 = vmatpush.bf16.msra.mxu0 %v3350
    %5876 = vmatpush.bf16.msra.mxu0 %v3346
    %5877 = vmatpush.bf16.msra.mxu0 %v3342
    %5878 = vmatpush.bf16.msra.mxu0 %v3338
    %5879 = vmatpush.bf16.msra.mxu0 %v3334
    %5880 = vmatpush.bf16.msra.mxu0 %v3330
    %5881 = vmatpush.bf16.msra.mxu0 %v3326
    %5882 = vmatpush.bf16.msra.mxu0 %v3322
    %5883 = vmatmul.bf16.gmra.mxu0 %v832
    %v5884 = vpop.f32.mrf.mxu0
    %v5885 = vadd.f32 %v5872, %v5884
    %v5886 = vpop.f32.mrf.mxu0
    %5887 = vdwg.mxu0
    %5888 = vmatpush.bf16.msra.mxu0 %v3382
    %5889 = vmatpush.bf16.msra.mxu0 %v3378
    %5890 = vmatpush.bf16.msra.mxu0 %v3374
    %5891 = vmatpush.bf16.msra.mxu0 %v3370
    %5892 = vmatpush.bf16.msra.mxu0 %v3366
    %5893 = vmatpush.bf16.msra.mxu0 %v3362
    %5894 = vmatpush.bf16.msra.mxu0 %v3358
    %5895 = vmatpush.bf16.msra.mxu0 %v3354
    %5896 = vmatmul.bf16.gmra.mxu0 %v833
    %v5897 = vpop.f32.mrf.mxu0
    %v5898 = vadd.f32 %v5885, %v5897
    %v5899 = vpop.f32.mrf.mxu0
    %5900 = vdwg.mxu0
    %5901 = vmatpush.bf16.msra.mxu0 %v3414
    %5902 = vmatpush.bf16.msra.mxu0 %v3410
    %5903 = vmatpush.bf16.msra.mxu0 %v3406
    %5904 = vmatpush.bf16.msra.mxu0 %v3402
    %5905 = vmatpush.bf16.msra.mxu0 %v3398
    %5906 = vmatpush.bf16.msra.mxu0 %v3394
    %5907 = vmatpush.bf16.msra.mxu0 %v3390
    %5908 = vmatpush.bf16.msra.mxu0 %v3386
    %5909 = vmatmul.bf16.gmra.mxu0 %v834
    %v5910 = vpop.f32.mrf.mxu0
    %v5911 = vadd.f32 %v5898, %v5910
    %v5912 = vpop.f32.mrf.mxu0
    %5913 = vdwg.mxu0
    %5914 = vmatpush.bf16.msra.mxu0 %v3446
    %5915 = vmatpush.bf16.msra.mxu0 %v3442
    %5916 = vmatpush.bf16.msra.mxu0 %v3438
    %5917 = vmatpush.bf16.msra.mxu0 %v3434
    %5918 = vmatpush.bf16.msra.mxu0 %v3430
    %5919 = vmatpush.bf16.msra.mxu0 %v3426
    %5920 = vmatpush.bf16.msra.mxu0 %v3422
    %5921 = vmatpush.bf16.msra.mxu0 %v3418
    %5922 = vmatmul.bf16.gmra.mxu0 %v835
    %v5923 = vpop.f32.mrf.mxu0
    %v5924 = vadd.f32 %v5911, %v5923
    %v5925 = vpop.f32.mrf.mxu0
    %5926 = vdwg.mxu0
    %5927 = vmatpush.bf16.msra.mxu0 %v3478
    %5928 = vmatpush.bf16.msra.mxu0 %v3474
    %5929 = vmatpush.bf16.msra.mxu0 %v3470
    %5930 = vmatpush.bf16.msra.mxu0 %v3466
    %5931 = vmatpush.bf16.msra.mxu0 %v3462
    %5932 = vmatpush.bf16.msra.mxu0 %v3458
    %5933 = vmatpush.bf16.msra.mxu0 %v3454
    %5934 = vmatpush.bf16.msra.mxu0 %v3450
    %5935 = vmatmul.bf16.gmra.mxu0 %v836
    %v5936 = vpop.f32.mrf.mxu0
    %v5937 = vadd.f32 %v5924, %v5936
    %v5938 = vpop.f32.mrf.mxu0
    %5939 = vdwg.mxu0
    %5940 = vmatpush.bf16.msra.mxu0 %v3510
    %5941 = vmatpush.bf16.msra.mxu0 %v3506
    %5942 = vmatpush.bf16.msra.mxu0 %v3502
    %5943 = vmatpush.bf16.msra.mxu0 %v3498
    %5944 = vmatpush.bf16.msra.mxu0 %v3494
    %5945 = vmatpush.bf16.msra.mxu0 %v3490
    %5946 = vmatpush.bf16.msra.mxu0 %v3486
    %5947 = vmatpush.bf16.msra.mxu0 %v3482
    %5948 = vmatmul.bf16.gmra.mxu0 %v837
    %v5949 = vpop.f32.mrf.mxu0
    %v5950 = vadd.f32 %v5937, %v5949
    %v5951 = vpop.f32.mrf.mxu0
    %5952 = vdwg.mxu0
    %5953 = vmatpush.bf16.msra.mxu0 %v3542
    %5954 = vmatpush.bf16.msra.mxu0 %v3538
    %5955 = vmatpush.bf16.msra.mxu0 %v3534
    %5956 = vmatpush.bf16.msra.mxu0 %v3530
    %5957 = vmatpush.bf16.msra.mxu0 %v3526
    %5958 = vmatpush.bf16.msra.mxu0 %v3522
    %5959 = vmatpush.bf16.msra.mxu0 %v3518
    %5960 = vmatpush.bf16.msra.mxu0 %v3514
    %5961 = vmatmul.bf16.gmra.mxu0 %v838
    %v5962 = vpop.f32.mrf.mxu0
    %v5963 = vadd.f32 %v5950, %v5962
    %v5964 = vpop.f32.mrf.mxu0
    %5965 = vdwg.mxu0
    %5966 = vmatpush.bf16.msra.mxu0 %v3574
    %5967 = vmatpush.bf16.msra.mxu0 %v3570
    %5968 = vmatpush.bf16.msra.mxu0 %v3566
    %5969 = vmatpush.bf16.msra.mxu0 %v3562
    %5970 = vmatpush.bf16.msra.mxu0 %v3558
    %5971 = vmatpush.bf16.msra.mxu0 %v3554
    %5972 = vmatpush.bf16.msra.mxu0 %v3550
    %5973 = vmatpush.bf16.msra.mxu0 %v3546
    %5974 = vmatmul.bf16.gmra.mxu0 %v841
    %v5975 = vpop.f32.mrf.mxu0
    %v5976 = vadd.f32 %v5963, %v5975
    %v5977 = vpop.f32.mrf.mxu0
    %5978 = vdwg.mxu0
    %5979 = vmatpush.bf16.msra.mxu0 %v3606
    %5980 = vmatpush.bf16.msra.mxu0 %v3602
    %5981 = vmatpush.bf16.msra.mxu0 %v3598
    %5982 = vmatpush.bf16.msra.mxu0 %v3594
    %5983 = vmatpush.bf16.msra.mxu0 %v3590
    %5984 = vmatpush.bf16.msra.mxu0 %v3586
    %5985 = vmatpush.bf16.msra.mxu0 %v3582
    %5986 = vmatpush.bf16.msra.mxu0 %v3578
    %5987 = vmatmul.bf16.gmra.mxu0 %v842
    %v5988 = vpop.f32.mrf.mxu0
    %v5989 = vadd.f32 %v5976, %v5988
    %v5990 = vpop.f32.mrf.mxu0
    %5991 = vdwg.mxu0
    %5992 = vmatpush.bf16.msra.mxu0 %v3638
    %5993 = vmatpush.bf16.msra.mxu0 %v3634
    %5994 = vmatpush.bf16.msra.mxu0 %v3630
    %5995 = vmatpush.bf16.msra.mxu0 %v3626
    %5996 = vmatpush.bf16.msra.mxu0 %v3622
    %5997 = vmatpush.bf16.msra.mxu0 %v3618
    %5998 = vmatpush.bf16.msra.mxu0 %v3614
    %5999 = vmatpush.bf16.msra.mxu0 %v3610
    %6000 = vmatmul.bf16.gmra.mxu0 %v843
    %v6001 = vpop.f32.mrf.mxu0
    %v6002 = vadd.f32 %v5989, %v6001
    %v6003 = vpop.f32.mrf.mxu0
    %6004 = vdwg.mxu0
    %6005 = vmatpush.bf16.msra.mxu0 %v3670
    %6006 = vmatpush.bf16.msra.mxu0 %v3666
    %6007 = vmatpush.bf16.msra.mxu0 %v3662
    %6008 = vmatpush.bf16.msra.mxu0 %v3658
    %6009 = vmatpush.bf16.msra.mxu0 %v3654
    %6010 = vmatpush.bf16.msra.mxu0 %v3650
    %6011 = vmatpush.bf16.msra.mxu0 %v3646
    %6012 = vmatpush.bf16.msra.mxu0 %v3642
    %6013 = vmatmul.bf16.gmra.mxu0 %v844
    %v6014 = vpop.f32.mrf.mxu0
    %v6015 = vadd.f32 %v6002, %v6014
    %v6016 = vpop.f32.mrf.mxu0
    %6017 = vdwg.mxu0
    %6018 = vmatpush.bf16.msra.mxu0 %v3702
    %6019 = vmatpush.bf16.msra.mxu0 %v3698
    %6020 = vmatpush.bf16.msra.mxu0 %v3694
    %6021 = vmatpush.bf16.msra.mxu0 %v3690
    %6022 = vmatpush.bf16.msra.mxu0 %v3686
    %6023 = vmatpush.bf16.msra.mxu0 %v3682
    %6024 = vmatpush.bf16.msra.mxu0 %v3678
    %6025 = vmatpush.bf16.msra.mxu0 %v3674
    %6026 = vmatmul.bf16.gmra.mxu0 %v845
    %v6027 = vpop.f32.mrf.mxu0
    %v6028 = vadd.f32 %v6015, %v6027
    %v6029 = vpop.f32.mrf.mxu0
    %6030 = vdwg.mxu0
    %6031 = vmatpush.bf16.msra.mxu0 %v3734
    %6032 = vmatpush.bf16.msra.mxu0 %v3730
    %6033 = vmatpush.bf16.msra.mxu0 %v3726
    %6034 = vmatpush.bf16.msra.mxu0 %v3722
    %6035 = vmatpush.bf16.msra.mxu0 %v3718
    %6036 = vmatpush.bf16.msra.mxu0 %v3714
    %6037 = vmatpush.bf16.msra.mxu0 %v3710
    %6038 = vmatpush.bf16.msra.mxu0 %v3706
    %6039 = vmatmul.bf16.gmra.mxu0 %v846
    %v6040 = vpop.f32.mrf.mxu0
    %v6041 = vadd.f32 %v6028, %v6040
    %v6042 = vpop.f32.mrf.mxu0
    %6043 = vdwg.mxu0
    %6044 = vmatpush.bf16.msra.mxu0 %v3766
    %6045 = vmatpush.bf16.msra.mxu0 %v3762
    %6046 = vmatpush.bf16.msra.mxu0 %v3758
    %6047 = vmatpush.bf16.msra.mxu0 %v3754
    %6048 = vmatpush.bf16.msra.mxu0 %v3750
    %6049 = vmatpush.bf16.msra.mxu0 %v3746
    %6050 = vmatpush.bf16.msra.mxu0 %v3742
    %6051 = vmatpush.bf16.msra.mxu0 %v3738
    %6052 = vmatmul.bf16.gmra.mxu0 %v847
    %v6053 = vpop.f32.mrf.mxu0
    %v6054 = vadd.f32 %v6041, %v6053
    %v6055 = vpop.f32.mrf.mxu0
    %6056 = vdwg.mxu0
    %6057 = vmatpush.bf16.msra.mxu0 %v3798
    %6058 = vmatpush.bf16.msra.mxu0 %v3794
    %6059 = vmatpush.bf16.msra.mxu0 %v3790
    %6060 = vmatpush.bf16.msra.mxu0 %v3786
    %6061 = vmatpush.bf16.msra.mxu0 %v3782
    %6062 = vmatpush.bf16.msra.mxu0 %v3778
    %6063 = vmatpush.bf16.msra.mxu0 %v3774
    %6064 = vmatpush.bf16.msra.mxu0 %v3770
    %6065 = vmatmul.bf16.gmra.mxu0 %v848
    %v6066 = vpop.f32.mrf.mxu0
    %v6067 = vadd.f32 %v6054, %v6066
    %v6068 = vpop.f32.mrf.mxu0
    %6069 = vdwg.mxu0
    %6070 = vmatpush.bf16.msra.mxu0 %v3830
    %6071 = vmatpush.bf16.msra.mxu0 %v3826
    %6072 = vmatpush.bf16.msra.mxu0 %v3822
    %6073 = vmatpush.bf16.msra.mxu0 %v3818
    %6074 = vmatpush.bf16.msra.mxu0 %v3814
    %6075 = vmatpush.bf16.msra.mxu0 %v3810
    %6076 = vmatpush.bf16.msra.mxu0 %v3806
    %6077 = vmatpush.bf16.msra.mxu0 %v3802
    %6078 = vmatmul.bf16.gmra.mxu0 %v851
    %v6079 = vpop.f32.mrf.mxu0
    %v6080 = vadd.f32 %v6067, %v6079
    %v6081 = vpop.f32.mrf.mxu0
    %6082 = vdwg.mxu0
    %6083 = vmatpush.bf16.msra.mxu0 %v3862
    %6084 = vmatpush.bf16.msra.mxu0 %v3858
    %6085 = vmatpush.bf16.msra.mxu0 %v3854
    %6086 = vmatpush.bf16.msra.mxu0 %v3850
    %6087 = vmatpush.bf16.msra.mxu0 %v3846
    %6088 = vmatpush.bf16.msra.mxu0 %v3842
    %6089 = vmatpush.bf16.msra.mxu0 %v3838
    %6090 = vmatpush.bf16.msra.mxu0 %v3834
    %6091 = vmatmul.bf16.gmra.mxu0 %v852
    %v6092 = vpop.f32.mrf.mxu0
    %v6093 = vadd.f32 %v6080, %v6092
    %v6094 = vpop.f32.mrf.mxu0
    %6095 = vdwg.mxu0
    %6096 = vmatpush.bf16.msra.mxu0 %v3894
    %6097 = vmatpush.bf16.msra.mxu0 %v3890
    %6098 = vmatpush.bf16.msra.mxu0 %v3886
    %6099 = vmatpush.bf16.msra.mxu0 %v3882
    %6100 = vmatpush.bf16.msra.mxu0 %v3878
    %6101 = vmatpush.bf16.msra.mxu0 %v3874
    %6102 = vmatpush.bf16.msra.mxu0 %v3870
    %6103 = vmatpush.bf16.msra.mxu0 %v3866
    %6104 = vmatmul.bf16.gmra.mxu0 %v853
    %v6105 = vpop.f32.mrf.mxu0
    %v6106 = vadd.f32 %v6093, %v6105
    %v6107 = vpop.f32.mrf.mxu0
    %6108 = vdwg.mxu0
    %6109 = vmatpush.bf16.msra.mxu0 %v3926
    %6110 = vmatpush.bf16.msra.mxu0 %v3922
    %6111 = vmatpush.bf16.msra.mxu0 %v3918
    %6112 = vmatpush.bf16.msra.mxu0 %v3914
    %6113 = vmatpush.bf16.msra.mxu0 %v3910
    %6114 = vmatpush.bf16.msra.mxu0 %v3906
    %6115 = vmatpush.bf16.msra.mxu0 %v3902
    %6116 = vmatpush.bf16.msra.mxu0 %v3898
    %6117 = vmatmul.bf16.gmra.mxu0 %v854
    %v6118 = vpop.f32.mrf.mxu0
    %v6119 = vadd.f32 %v6106, %v6118
    %v6120 = vpop.f32.mrf.mxu0
    %6121 = vdwg.mxu0
    %6122 = vmatpush.bf16.msra.mxu0 %v3958
    %6123 = vmatpush.bf16.msra.mxu0 %v3954
    %6124 = vmatpush.bf16.msra.mxu0 %v3950
    %6125 = vmatpush.bf16.msra.mxu0 %v3946
    %6126 = vmatpush.bf16.msra.mxu0 %v3942
    %6127 = vmatpush.bf16.msra.mxu0 %v3938
    %6128 = vmatpush.bf16.msra.mxu0 %v3934
    %6129 = vmatpush.bf16.msra.mxu0 %v3930
    %6130 = vmatmul.bf16.gmra.mxu0 %v855
    %v6131 = vpop.f32.mrf.mxu0
    %v6132 = vadd.f32 %v6119, %v6131
    %v6133 = vpop.f32.mrf.mxu0
    %6134 = vdwg.mxu0
    %6135 = vmatpush.bf16.msra.mxu0 %v3990
    %6136 = vmatpush.bf16.msra.mxu0 %v3986
    %6137 = vmatpush.bf16.msra.mxu0 %v3982
    %6138 = vmatpush.bf16.msra.mxu0 %v3978
    %6139 = vmatpush.bf16.msra.mxu0 %v3974
    %6140 = vmatpush.bf16.msra.mxu0 %v3970
    %6141 = vmatpush.bf16.msra.mxu0 %v3966
    %6142 = vmatpush.bf16.msra.mxu0 %v3962
    %6143 = vmatmul.bf16.gmra.mxu0 %v856
    %v6144 = vpop.f32.mrf.mxu0
    %v6145 = vadd.f32 %v6132, %v6144
    %v6146 = vpop.f32.mrf.mxu0
    %6147 = vdwg.mxu0
    %6148 = vmatpush.bf16.msra.mxu0 %v4022
    %6149 = vmatpush.bf16.msra.mxu0 %v4018
    %6150 = vmatpush.bf16.msra.mxu0 %v4014
    %6151 = vmatpush.bf16.msra.mxu0 %v4010
    %6152 = vmatpush.bf16.msra.mxu0 %v4006
    %6153 = vmatpush.bf16.msra.mxu0 %v4002
    %6154 = vmatpush.bf16.msra.mxu0 %v3998
    %6155 = vmatpush.bf16.msra.mxu0 %v3994
    %6156 = vmatmul.bf16.gmra.mxu0 %v857
    %v6157 = vpop.f32.mrf.mxu0
    %v6158 = vadd.f32 %v6145, %v6157
    %v6159 = vpop.f32.mrf.mxu0
    %6160 = vdwg.mxu0
    %6161 = vmatpush.bf16.msra.mxu0 %v4054
    %6162 = vmatpush.bf16.msra.mxu0 %v4050
    %6163 = vmatpush.bf16.msra.mxu0 %v4046
    %6164 = vmatpush.bf16.msra.mxu0 %v4042
    %6165 = vmatpush.bf16.msra.mxu0 %v4038
    %6166 = vmatpush.bf16.msra.mxu0 %v4034
    %6167 = vmatpush.bf16.msra.mxu0 %v4030
    %6168 = vmatpush.bf16.msra.mxu0 %v4026
    %6169 = vmatmul.bf16.gmra.mxu0 %v858
    %v6170 = vpop.f32.mrf.mxu0
    %v6171 = vadd.f32 %v6158, %v6170
    %v6172 = vpop.f32.mrf.mxu0
    %6173 = vdwg.mxu0
    %6174 = vmatpush.bf16.msra.mxu0 %v4086
    %6175 = vmatpush.bf16.msra.mxu0 %v4082
    %6176 = vmatpush.bf16.msra.mxu0 %v4078
    %6177 = vmatpush.bf16.msra.mxu0 %v4074
    %6178 = vmatpush.bf16.msra.mxu0 %v4070
    %6179 = vmatpush.bf16.msra.mxu0 %v4066
    %6180 = vmatpush.bf16.msra.mxu0 %v4062
    %6181 = vmatpush.bf16.msra.mxu0 %v4058
    %6182 = vmatmul.bf16.gmra.mxu0 %v861
    %v6183 = vpop.f32.mrf.mxu0
    %v6184 = vadd.f32 %v6171, %v6183
    %v6185 = vpop.f32.mrf.mxu0
    %6186 = vdwg.mxu0
    %v6191 = vrot.slane %v5534, 6
    %v6192 = vrot.slane %v5859, 4
    %v6193 = vrot.slane %v6184, 2
    %vm6194 = vcmask 1041408
    %v6195 = vsel %vm6194, %v5209, %v6191
    %vm6196 = vcmask 1045508
    %v6197 = vsel %vm6196, %v6192, %v6193
    %vm6198 = vcmask 1043456
    %v6199 = vsel %vm6198, %v6195, %v6197
    %vm6201 = vcmask 1043458
    %vm6202 = vmor %vm6201, %vm6194
    %vm6203 = vmor %vm6196, %vm6202
    %vm6204 = vcmask 949254
    %vm6205 = vmor %vm6204, %vm6203
    %6206 = vst.msk [vmem:[#allocation2] sm:$0xff] %vm6205, %v6199
    // Predicated region
    $region14: #{lenet_forward.5} parent=1 // pred_check
      _
    $region15: #{lenet_forward.5} parent=1 // pred_check_branch
      %6208 = sbr.rel (0) target = $region17
    $region16: #{lenet_forward.5} parent=1 // pred_region
      %6210 = vsyncadd [#allocation3], 0
      %s6212 = sshll.u32 [#allocation2], 4
      %s6213 = int_to_ptr.vmem [resolvable:$true] %s6212
      %s6214 = sshll.u32 %s3, 4
      %s6215 = int_to_ptr.hbm [resolvable:$true] %s6214
      %6217 = dma.vmem_to_hbm [thread:$0]  %s6213, 128, %s6215, [#allocation3]
    $region17: #{lenet_forward.5} parent=1 // pred_fallthru
      _
    // Predicated region
    $region18: #{lenet_forward.5} parent=1 // pred_check
      _
    $region19: #{lenet_forward.5} parent=1 // pred_check_branch
      %6219 = sbr.rel (0) target = $region21
    $region20: #{lenet_forward.5} parent=1 // pred_region
      %6221 = dma.done [#allocation3], 128
    $region21: #{lenet_forward.5} parent=1 // pred_fallthru
      _
    %6222 = vsyncpa [#allocation3], 1

</llo_original>
